<compile_context>
chip_gen: v5e
topology: v5e:2x2
jax: 0.10.0
libtpu: 0.0.40
codegen_flags: <defaults>
</compile_context>

<pallas_src>
import functools

import jax
import jax.numpy as jnp
import numpy as np
from jax import lax
from jax.experimental import pallas as pl
from jax.experimental.pallas import tpu as pltpu

HALO = 8   # frames of temporal context per side (3 stacked k=3 convs need 3)
HB = 16    # halo DMA block along time (bf16 sublane-pack friendly)


def _round_up(v, m):
    return ((v + m - 1) // m) * m


def _speaker_kernel(Bb, T_tile, T, x_ref, xl_ref, xr_ref,
                    w1_ref, b1_ref, w2_ref, b2_ref, w3_ref, b3_ref,
                    wfc_ref, bfc_ref, out_ref, acc_ref):
    """One (batch-block, time-tile) grid step.

    x_ref  : (Bb, T_tile, Cin) bf16   current time tile (channels-last)
    xl/xr  : (Bb, HB, Cin)     bf16   left / right halo blocks of x
    wK_ref : (3*C_inK[pad], C_outK) bf16   tap-stacked conv weights
    bK_ref : (1, C_outK) f32
    wfc_ref: (512, E) bf16 ; bfc_ref : (1, E) f32
    out_ref: (Bb, E) f32              written on the last time tile only
    acc_ref: (Bb, 512) f32 scratch    running pooled sum over frames
    """
    t_blk = pl.program_id(1)
    T_ext = T_tile + 2 * HALO
    N = Bb * T_ext

    # Extended tile [left halo | tile | right halo], flattened batch-major.
    x_ext = jnp.concatenate(
        [xl_ref[:, HB - HALO:, :], x_ref[...], xr_ref[:, :HALO, :]], axis=1)
    x_ext = x_ext.reshape(N, x_ext.shape[-1]).astype(jnp.float32)   # (N, Cin)

    # Global frame index of every row; the masks implement the convs' zero
    # padding at the true sequence boundaries (frame 0 / frame T-1).  Rows
    # whose roll wraps (tile/halo edges) never reach a valid output frame.
    t_glob = (t_blk * T_tile - HALO
              + lax.broadcasted_iota(jnp.int32, (N, 1), 0) % T_ext)
    not_first = t_glob != 0
    not_last = t_glob != T - 1

    def conv_relu(h, w_ref, b_ref):
        # h: (N, C) f32.  Build the (N, 3C) im2col via XLU rolls, cast each tap
        # to bf16 BEFORE the concat, one fused-K MXU matmul, f32 bias + ReLU.
        prev = jnp.where(not_first,
                         pltpu.roll(h, shift=1, axis=0).astype(jnp.bfloat16), 0.0)
        nxt = jnp.where(not_last,
                        pltpu.roll(h, shift=N - 1, axis=0).astype(jnp.bfloat16), 0.0)
        parts = [prev, h.astype(jnp.bfloat16), nxt]
        kpad = w_ref.shape[0] - 3 * h.shape[-1]       # conv1: K padded 120 -> 128
        if kpad:
            parts.append(jnp.zeros((N, kpad), jnp.bfloat16))
        cat = jnp.concatenate(parts, axis=-1)
        y = jnp.dot(cat, w_ref[...], preferred_element_type=jnp.float32)
        return jnp.maximum(y + b_ref[...], 0.0)       # (N, Cout) f32

    h1 = conv_relu(x_ext, w1_ref, b1_ref)             # (N, 128)
    h2 = conv_relu(h1, w2_ref, b2_ref)                # (N, 256)
    h3 = conv_relu(h2, w3_ref, b3_ref)                # (N, 512)

    # AdaptiveAvgPool1d(1): accumulate column sums of the central T_tile frames
    # of this tile; frames >= T (padded last tile) are masked out.
    h3c = h3.reshape(Bb, T_ext, h3.shape[-1])[:, HALO:HALO + T_tile, :]
    frame = t_blk * T_tile + lax.broadcasted_iota(jnp.int32, (1, T_tile, 1), 1)
    tile_sum = jnp.sum(jnp.where(frame < T, h3c, 0.0), axis=1)   # (Bb, 512) f32

    @pl.when(t_blk == 0)
    def _():
        acc_ref[...] = jnp.zeros_like(acc_ref)

    acc_ref[...] += tile_sum

    # Last time tile: mean, fc, rsqrt L2-normalize, lane-dense (Bb, E) store.
    @pl.when(t_blk == pl.num_programs(1) - 1)
    def _():
        pooled = acc_ref[...] * (1.0 / T)             # exact f32 mean
        emb = jnp.dot(pooled.astype(jnp.bfloat16), wfc_ref[...],
                      preferred_element_type=jnp.float32) + bfc_ref[...]
        ss = jnp.sum(emb * emb, axis=-1, keepdims=True)
        inv = lax.rsqrt(jnp.maximum(ss, 1e-24))       # == 1/max(||x||, 1e-12)
        out_ref[...] = (emb * inv).astype(out_ref.dtype)


def speaker_embedding(x_nct, params, *, block_b=8, t_tile=None):
    """x_nct: (B, C_in, T) float32 like the PyTorch module.  Returns (B, E) f32."""
    w1, b1, w2, b2, w3, b3, wfc, bfc = params
    B, Cin, T = x_nct.shape
    E = wfc.shape[1]
    C3 = w3.shape[2]                                   # 512

    # ---- per-generation sizing: v7x has 64 MiB VMEM, v5e/v6e have 128 MiB ----
    try:
        vmem_cap = pltpu.get_tpu_info().vmem_capacity_bytes
    except Exception:                                  # conservative fallback
        vmem_cap = 64 * 2**20
    big_vmem = vmem_cap >= 100 * 2**20
    if t_tile is None:
        t_tile = 256 if big_vmem else 128              # ~2x larger tiles off-v7x
    t_tile = _round_up(min(t_tile, _round_up(T, HB)), HB)
    vmem_limit = (96 if big_vmem else 48) * 2**20

    Bb = block_b
    n_b = pl.cdiv(B, Bb)
    B_pad = n_b * Bb
    n_t = pl.cdiv(T, t_tile)
    T_pad = n_t * t_tile

    # Channels-last bf16 once; zero-pad batch & time.  Padding never reaches a
    # real output (boundary masks + pooled-frame mask + final batch slice).
    x_btc = jnp.transpose(x_nct, (0, 2, 1)).astype(jnp.bfloat16)      # (B, T, Cin)
    x_p = jnp.pad(x_btc, ((0, B_pad - B), (0, T_pad - T), (0, 0)))

    # Tap-stacked bf16 conv weights (rows = [tap-1 | tap0 | tap+1]); conv1's K
    # zero-padded 3*Cin=120 -> 128 for a clean (128,128) MXU tile.  f32 biases.
    K1 = 3 * Cin
    K1p = _round_up(K1, 128)
    w1s = jnp.pad(w1.reshape(K1, w1.shape[2]),
                  ((0, K1p - K1), (0, 0))).astype(jnp.bfloat16)        # (128, 128)
    w2s = w2.reshape(3 * w2.shape[1], w2.shape[2]).astype(jnp.bfloat16)  # (384, 256)
    w3s = w3.reshape(3 * w3.shape[1], w3.shape[2]).astype(jnp.bfloat16)  # (768, 512)
    wfc_b = wfc.astype(jnp.bfloat16)                                     # (512, E)

    RT = t_tile // HB                                  # halo-block units per tile
    nHB = T_pad // HB

    def const_spec(a):
        nd = a.ndim
        return pl.BlockSpec(a.shape, lambda b, t, nd=nd: (0,) * nd)

    kernel = functools.partial(_speaker_kernel, Bb, t_tile, T)

    out = pl.pallas_call(
        kernel,
        out_shape=jax.ShapeDtypeStruct((B_pad, E), jnp.float32),
        grid_spec=pltpu.PrefetchScalarGridSpec(
            num_scalar_prefetch=0,
            grid=(n_b, n_t),                           # reduction (time) axis last
            in_specs=[
                # current tile + 16-frame left/right halo views of the same x
                pl.BlockSpec((Bb, t_tile, Cin), lambda b, t: (b, t, 0)),
                pl.BlockSpec((Bb, HB, Cin),
                             lambda b, t: (b, jnp.maximum(t * RT - 1, 0), 0)),
                pl.BlockSpec((Bb, HB, Cin),
                             lambda b, t: (b, jnp.minimum((t + 1) * RT, nHB - 1), 0)),
                const_spec(w1s), const_spec(b1),
                const_spec(w2s), const_spec(b2),
                const_spec(w3s), const_spec(b3),
                const_spec(wfc_b), const_spec(bfc),
            ],
            out_specs=pl.BlockSpec((Bb, E), lambda b, t: (b, 0)),
            scratch_shapes=[pltpu.VMEM((Bb, C3), jnp.float32)],
        ),
        compiler_params=pltpu.CompilerParams(
            dimension_semantics=("parallel", "arbitrary"),
            vmem_limit_bytes=vmem_limit,
        ),
    )(x_p, x_p, x_p, w1s, b1, w2s, b2, w3s, b3, wfc_b, bfc)

    return out[:B]


def init_params(key, input_size=40, embedding_size=128):
    """Deterministic synthetic parameters (PyTorch-like uniform fan-in init)."""
    ks = jax.random.split(key, 8)

    def conv_w(k, cin, cout):
        s = 1.0 / np.sqrt(cin * 3)
        # stored as (tap, C_in, C_out) == pytorch weight[:, :, tap].T
        return jax.random.uniform(k, (3, cin, cout), jnp.float32, -s, s)

    def vec(k, fan_in, cout):
        s = 1.0 / np.sqrt(fan_in)
        return jax.random.uniform(k, (1, cout), jnp.float32, -s, s)

    w1 = conv_w(ks[0], input_size, 128)
    b1 = vec(ks[1], input_size * 3, 128)
    w2 = conv_w(ks[2], 128, 256)
    b2 = vec(ks[3], 128 * 3, 256)
    w3 = conv_w(ks[4], 256, 512)
    b3 = vec(ks[5], 256 * 3, 512)
    s = 1.0 / np.sqrt(512)
    wfc = jax.random.uniform(ks[6], (512, embedding_size), jnp.float32, -s, s)
    bfc = jax.random.uniform(ks[7], (1, embedding_size), jnp.float32, -s, s)
    return (w1, b1, w2, b2, w3, b3, wfc, bfc)


def ref_forward(x_nct, params):
    """Pure-JAX f32 reference matching the PyTorch forward semantics."""
    w1, b1, w2, b2, w3, b3, wfc, bfc = params
    x = jnp.transpose(x_nct, (0, 2, 1)).astype(jnp.float32)   # (B, T, C)
    B, T, _ = x.shape

    def conv(h, w, b):
        hp = jnp.pad(h, ((0, 0), (1, 1), (0, 0)))
        y = sum(jnp.einsum('btc,cd->btd', hp[:, k:k + T, :], w[k])
                for k in range(3))
        return jax.nn.relu(y + b)

    h = conv(x, w1, b1)
    h = conv(h, w2, b2)
    h = conv(h, w3, b3)
    pooled = jnp.mean(h, axis=1)                 # AdaptiveAvgPool1d(1).squeeze(-1)
    emb = pooled @ wfc + bfc
    norm = jnp.sqrt(jnp.sum(emb * emb, axis=1, keepdims=True))
    return emb / jnp.maximum(norm, 1e-12)        # F.normalize(p=2, dim=1)


if __name__ == "__main__":
    key = jax.random.PRNGKey(0)
    kx, kp, kx2 = jax.random.split(key, 3)

    # Small shapes consistent with the module: (batch, n_mels=40, frames).
    B, Cin, T, E = 2, 40, 16, 128
    x = jax.random.normal(kx, (B, Cin, T), jnp.float32)
    params = init_params(kp, input_size=Cin, embedding_size=E)

    out = jax.block_until_ready(speaker_embedding(x, params))
    assert out.shape == (B, E)
    # bf16 weights/activations with f32 accumulation vs full-f32 reference.
    np.testing.assert_allclose(np.asarray(out), np.asarray(ref_forward(x, params)),
                               rtol=2e-2, atol=2e-2)

    # Exercise the tiled path: multiple batch blocks, multiple time tiles,
    # cross-tile halos and a partial (masked) last tile.
    B2, T2 = 11, 150
    x2 = jax.random.normal(kx2, (B2, Cin, T2), jnp.float32)
    out2 = jax.block_until_ready(speaker_embedding(x2, params, t_tile=64))
    assert out2.shape == (B2, E)
    np.testing.assert_allclose(np.asarray(out2), np.asarray(ref_forward(x2, params)),
                               rtol=2e-2, atol=2e-2)

    print("KERNEL_OK")
</pallas_src>

<mosaic_0001>
module attributes {stable_mosaic.version = 11 : i64} {
  func.func @_speaker_kernel(%arg0: i32, %arg1: i32, %arg2: memref<8x16x40xbf16, #tpu.memory_space<vmem>>, %arg3: memref<8x16x40xbf16, #tpu.memory_space<vmem>>, %arg4: memref<8x16x40xbf16, #tpu.memory_space<vmem>>, %arg5: memref<128x128xbf16, #tpu.memory_space<vmem>>, %arg6: memref<1x128xf32, #tpu.memory_space<vmem>>, %arg7: memref<384x256xbf16, #tpu.memory_space<vmem>>, %arg8: memref<1x256xf32, #tpu.memory_space<vmem>>, %arg9: memref<768x512xbf16, #tpu.memory_space<vmem>>, %arg10: memref<1x512xf32, #tpu.memory_space<vmem>>, %arg11: memref<512x128xbf16, #tpu.memory_space<vmem>>, %arg12: memref<1x128xf32, #tpu.memory_space<vmem>>, %arg13: memref<8x128xf32, #tpu.memory_space<vmem>>, %arg14: memref<8x512xf32, #tpu.memory_space<vmem>>) attributes {dimension_semantics = [#tpu.dimension_semantics<parallel>, #tpu.dimension_semantics<arbitrary>], iteration_bounds = array<i64: 1, 1>, scalar_prefetch = 0 : i64, scratch_operands = 1 : i64, tpu.core_type = #tpu.core_type<tc>, window_params = [{transform_indices = @transform_0, window_bounds = array<i64: 8, 16, 40>}, {transform_indices = @transform_1, window_bounds = array<i64: 8, 16, 40>}, {transform_indices = @transform_2, window_bounds = array<i64: 8, 16, 40>}, {pipeline_mode = #tpu.pipeline_mode<synchronous>, transform_indices = @transform_3, window_bounds = array<i64: 128, 128>}, {pipeline_mode = #tpu.pipeline_mode<synchronous>, transform_indices = @transform_4, window_bounds = array<i64: 1, 128>}, {pipeline_mode = #tpu.pipeline_mode<synchronous>, transform_indices = @transform_5, window_bounds = array<i64: 384, 256>}, {pipeline_mode = #tpu.pipeline_mode<synchronous>, transform_indices = @transform_6, window_bounds = array<i64: 1, 256>}, {pipeline_mode = #tpu.pipeline_mode<synchronous>, transform_indices = @transform_7, window_bounds = array<i64: 768, 512>}, {pipeline_mode = #tpu.pipeline_mode<synchronous>, transform_indices = @transform_8, window_bounds = array<i64: 1, 512>}, {pipeline_mode = #tpu.pipeline_mode<synchronous>, transform_indices = @transform_9, window_bounds = array<i64: 512, 128>}, {pipeline_mode = #tpu.pipeline_mode<synchronous>, transform_indices = @transform_10, window_bounds = array<i64: 1, 128>}, {transform_indices = @transform_11, window_bounds = array<i64: 8, 128>}]} {
    %c0 = arith.constant 0 : index
    %c8 = arith.constant 8 : index
    %c0_0 = arith.constant 0 : index
    %0 = vector.load %arg3[%c0, %c8, %c0_0] : memref<8x16x40xbf16, #tpu.memory_space<vmem>>, vector<8x8x40xbf16>
    %c0_1 = arith.constant 0 : index
    %c0_2 = arith.constant 0 : index
    %c0_3 = arith.constant 0 : index
    %1 = vector.load %arg2[%c0_1, %c0_2, %c0_3] : memref<8x16x40xbf16, #tpu.memory_space<vmem>>, vector<8x16x40xbf16>
    %c0_4 = arith.constant 0 : index
    %c0_5 = arith.constant 0 : index
    %c0_6 = arith.constant 0 : index
    %2 = vector.load %arg4[%c0_4, %c0_5, %c0_6] : memref<8x16x40xbf16, #tpu.memory_space<vmem>>, vector<8x8x40xbf16>
    %3 = tpu.concatenate %0, %1, %2 in 1 : vector<8x8x40xbf16>, vector<8x16x40xbf16>, vector<8x8x40xbf16> -> vector<8x32x40xbf16>
    %4 = vector.shape_cast %3 : vector<8x32x40xbf16> to vector<256x40xbf16>
    %5 = arith.extf %4 : vector<256x40xbf16> to vector<256x40xf32>
    %c16_i32 = arith.constant 16 : i32
    %6 = arith.muli %arg1, %c16_i32 : i32
    %c8_i32 = arith.constant 8 : i32
    %7 = arith.subi %6, %c8_i32 : i32
    %8 = tpu.iota {dimensions = array<i32: 0>} : vector<256x1xi32>
    %c32_i32 = arith.constant 32 : i32
    %c0_i32 = arith.constant 0 : i32
    %9 = arith.cmpi eq, %c32_i32, %c0_i32 : i32
    %c1_i32 = arith.constant 1 : i32
    %10 = arith.select %9, %c1_i32, %c32_i32 : i32
    %11 = vector.broadcast %10 : i32 to vector<256x1xi32>
    %12 = arith.remsi %8, %11 : vector<256x1xi32>
    %c0_i32_7 = arith.constant 0 : i32
    %13 = vector.broadcast %c0_i32_7 : i32 to vector<256x1xi32>
    %14 = arith.cmpi ne, %12, %13 : vector<256x1xi32>
    %c0_i32_8 = arith.constant 0 : i32
    %15 = vector.broadcast %c0_i32_8 : i32 to vector<256x1xi32>
    %16 = arith.cmpi slt, %12, %15 : vector<256x1xi32>
    %c0_i32_9 = arith.constant 0 : i32
    %17 = arith.cmpi slt, %10, %c0_i32_9 : i32
    %18 = vector.broadcast %17 : i1 to vector<256x1xi1>
    %19 = vector.broadcast %18 : vector<256x1xi1> to vector<256x1xi1>
    %20 = arith.xori %16, %19 : vector<256x1xi1>
    %21 = arith.andi %20, %14 : vector<256x1xi1>
    %22 = vector.broadcast %10 : i32 to vector<256x1xi32>
    %23 = arith.addi %12, %22 : vector<256x1xi32>
    %24 = arith.select %21, %23, %12 : vector<256x1xi1>, vector<256x1xi32>
    %25 = vector.broadcast %7 : i32 to vector<256x1xi32>
    %26 = arith.addi %25, %24 : vector<256x1xi32>
    %c0_i32_10 = arith.constant 0 : i32
    %27 = vector.broadcast %c0_i32_10 : i32 to vector<256x1xi32>
    %28 = arith.cmpi ne, %26, %27 : vector<256x1xi32>
    %c15_i32 = arith.constant 15 : i32
    %29 = vector.broadcast %c15_i32 : i32 to vector<256x1xi32>
    %30 = arith.cmpi ne, %26, %29 : vector<256x1xi32>
    %c1_i32_11 = arith.constant 1 : i32
    %31 = tpu.dynamic_rotate %5 by %c1_i32_11 dim 0 : vector<256x40xf32>, i32 -> vector<256x40xf32>
    %32 = arith.truncf %31 : vector<256x40xf32> to vector<256x40xbf16>
    %cst = arith.constant 0.000000e+00 : f32
    %33 = arith.truncf %cst : f32 to bf16
    %34 = vector.shape_cast %28 : vector<256x1xi1> to vector<256x1xi1>
    %35 = vector.broadcast %34 : vector<256x1xi1> to vector<256x40xi1>
    %36 = vector.broadcast %33 : bf16 to vector<256x40xbf16>
    %37 = arith.select %35, %32, %36 : vector<256x40xi1>, vector<256x40xbf16>
    %c255_i32 = arith.constant 255 : i32
    %38 = tpu.dynamic_rotate %5 by %c255_i32 dim 0 : vector<256x40xf32>, i32 -> vector<256x40xf32>
    %39 = arith.truncf %38 : vector<256x40xf32> to vector<256x40xbf16>
    %cst_12 = arith.constant 0.000000e+00 : f32
    %40 = arith.truncf %cst_12 : f32 to bf16
    %41 = vector.shape_cast %30 : vector<256x1xi1> to vector<256x1xi1>
    %42 = vector.broadcast %41 : vector<256x1xi1> to vector<256x40xi1>
    %43 = vector.broadcast %40 : bf16 to vector<256x40xbf16>
    %44 = arith.select %42, %39, %43 : vector<256x40xi1>, vector<256x40xbf16>
    %45 = arith.truncf %5 : vector<256x40xf32> to vector<256x40xbf16>
    %cst_13 = arith.constant 0.000000e+00 : bf16
    %46 = vector.broadcast %cst_13 : bf16 to vector<256x8xbf16>
    %47 = tpu.concatenate %37, %45, %44, %46 in 1 : vector<256x40xbf16>, vector<256x40xbf16>, vector<256x40xbf16>, vector<256x8xbf16> -> vector<256x128xbf16>
    %c0_14 = arith.constant 0 : index
    %c0_15 = arith.constant 0 : index
    %48 = vector.load %arg5[%c0_14, %c0_15] : memref<128x128xbf16, #tpu.memory_space<vmem>>, vector<128x128xbf16>
    %cst_16 = arith.constant dense<0.000000e+00> : vector<256x128xf32>
    %49 = tpu.matmul %47, %48, %cst_16 {dimension_numbers = #tpu.dot_dimension_numbers<[1], [0], [0], [1], [0, 0, 1, 1], [], []>} : vector<256x128xbf16>, vector<128x128xbf16>, vector<256x128xf32> -> vector<256x128xf32>
    %c0_17 = arith.constant 0 : index
    %c0_18 = arith.constant 0 : index
    %50 = vector.load %arg6[%c0_17, %c0_18] : memref<1x128xf32, #tpu.memory_space<vmem>>, vector<1x128xf32>
    %51 = vector.broadcast %50 : vector<1x128xf32> to vector<256x128xf32>
    %52 = arith.addf %49, %51 : vector<256x128xf32>
    %cst_19 = arith.constant 0.000000e+00 : f32
    %53 = vector.broadcast %cst_19 : f32 to vector<256x128xf32>
    %54 = arith.maximumf %52, %53 : vector<256x128xf32>
    %c1_i32_20 = arith.constant 1 : i32
    %55 = tpu.dynamic_rotate %54 by %c1_i32_20 dim 0 : vector<256x128xf32>, i32 -> vector<256x128xf32>
    %56 = arith.truncf %55 : vector<256x128xf32> to vector<256x128xbf16>
    %cst_21 = arith.constant 0.000000e+00 : f32
    %57 = arith.truncf %cst_21 : f32 to bf16
    %58 = vector.shape_cast %28 : vector<256x1xi1> to vector<256x1xi1>
    %59 = vector.broadcast %58 : vector<256x1xi1> to vector<256x128xi1>
    %60 = vector.broadcast %57 : bf16 to vector<256x128xbf16>
    %61 = arith.select %59, %56, %60 : vector<256x128xi1>, vector<256x128xbf16>
    %c255_i32_22 = arith.constant 255 : i32
    %62 = tpu.dynamic_rotate %54 by %c255_i32_22 dim 0 : vector<256x128xf32>, i32 -> vector<256x128xf32>
    %63 = arith.truncf %62 : vector<256x128xf32> to vector<256x128xbf16>
    %cst_23 = arith.constant 0.000000e+00 : f32
    %64 = arith.truncf %cst_23 : f32 to bf16
    %65 = vector.shape_cast %30 : vector<256x1xi1> to vector<256x1xi1>
    %66 = vector.broadcast %65 : vector<256x1xi1> to vector<256x128xi1>
    %67 = vector.broadcast %64 : bf16 to vector<256x128xbf16>
    %68 = arith.select %66, %63, %67 : vector<256x128xi1>, vector<256x128xbf16>
    %69 = arith.truncf %54 : vector<256x128xf32> to vector<256x128xbf16>
    %70 = tpu.concatenate %61, %69, %68 in 1 : vector<256x128xbf16>, vector<256x128xbf16>, vector<256x128xbf16> -> vector<256x384xbf16>
    %c0_24 = arith.constant 0 : index
    %c0_25 = arith.constant 0 : index
    %71 = vector.load %arg7[%c0_24, %c0_25] : memref<384x256xbf16, #tpu.memory_space<vmem>>, vector<384x256xbf16>
    %cst_26 = arith.constant dense<0.000000e+00> : vector<256x256xf32>
    %72 = tpu.matmul %70, %71, %cst_26 {dimension_numbers = #tpu.dot_dimension_numbers<[1], [0], [0], [1], [0, 0, 1, 1], [], []>} : vector<256x384xbf16>, vector<384x256xbf16>, vector<256x256xf32> -> vector<256x256xf32>
    %c0_27 = arith.constant 0 : index
    %c0_28 = arith.constant 0 : index
    %73 = vector.load %arg8[%c0_27, %c0_28] : memref<1x256xf32, #tpu.memory_space<vmem>>, vector<1x256xf32>
    %74 = vector.broadcast %73 : vector<1x256xf32> to vector<256x256xf32>
    %75 = arith.addf %72, %74 : vector<256x256xf32>
    %cst_29 = arith.constant 0.000000e+00 : f32
    %76 = vector.broadcast %cst_29 : f32 to vector<256x256xf32>
    %77 = arith.maximumf %75, %76 : vector<256x256xf32>
    %c1_i32_30 = arith.constant 1 : i32
    %78 = tpu.dynamic_rotate %77 by %c1_i32_30 dim 0 : vector<256x256xf32>, i32 -> vector<256x256xf32>
    %79 = arith.truncf %78 : vector<256x256xf32> to vector<256x256xbf16>
    %cst_31 = arith.constant 0.000000e+00 : f32
    %80 = arith.truncf %cst_31 : f32 to bf16
    %81 = vector.shape_cast %28 : vector<256x1xi1> to vector<256x1xi1>
    %82 = vector.broadcast %81 : vector<256x1xi1> to vector<256x256xi1>
    %83 = vector.broadcast %80 : bf16 to vector<256x256xbf16>
    %84 = arith.select %82, %79, %83 : vector<256x256xi1>, vector<256x256xbf16>
    %c255_i32_32 = arith.constant 255 : i32
    %85 = tpu.dynamic_rotate %77 by %c255_i32_32 dim 0 : vector<256x256xf32>, i32 -> vector<256x256xf32>
    %86 = arith.truncf %85 : vector<256x256xf32> to vector<256x256xbf16>
    %cst_33 = arith.constant 0.000000e+00 : f32
    %87 = arith.truncf %cst_33 : f32 to bf16
    %88 = vector.shape_cast %30 : vector<256x1xi1> to vector<256x1xi1>
    %89 = vector.broadcast %88 : vector<256x1xi1> to vector<256x256xi1>
    %90 = vector.broadcast %87 : bf16 to vector<256x256xbf16>
    %91 = arith.select %89, %86, %90 : vector<256x256xi1>, vector<256x256xbf16>
    %92 = arith.truncf %77 : vector<256x256xf32> to vector<256x256xbf16>
    %93 = tpu.concatenate %84, %92, %91 in 1 : vector<256x256xbf16>, vector<256x256xbf16>, vector<256x256xbf16> -> vector<256x768xbf16>
    %c0_34 = arith.constant 0 : index
    %c0_35 = arith.constant 0 : index
    %94 = vector.load %arg9[%c0_34, %c0_35] : memref<768x512xbf16, #tpu.memory_space<vmem>>, vector<768x512xbf16>
    %cst_36 = arith.constant dense<0.000000e+00> : vector<256x512xf32>
    %95 = tpu.matmul %93, %94, %cst_36 {dimension_numbers = #tpu.dot_dimension_numbers<[1], [0], [0], [1], [0, 0, 1, 1], [], []>} : vector<256x768xbf16>, vector<768x512xbf16>, vector<256x512xf32> -> vector<256x512xf32>
    %c0_37 = arith.constant 0 : index
    %c0_38 = arith.constant 0 : index
    %96 = vector.load %arg10[%c0_37, %c0_38] : memref<1x512xf32, #tpu.memory_space<vmem>>, vector<1x512xf32>
    %97 = vector.broadcast %96 : vector<1x512xf32> to vector<256x512xf32>
    %98 = arith.addf %95, %97 : vector<256x512xf32>
    %cst_39 = arith.constant 0.000000e+00 : f32
    %99 = vector.broadcast %cst_39 : f32 to vector<256x512xf32>
    %100 = arith.maximumf %98, %99 : vector<256x512xf32>
    %101 = vector.shape_cast %100 : vector<256x512xf32> to vector<8x32x512xf32>
    %102 = vector.extract_strided_slice %101 {offsets = [0, 8, 0], sizes = [8, 16, 512], strides = [1, 1, 1]} : vector<8x32x512xf32> to vector<8x16x512xf32>
    %c16_i32_40 = arith.constant 16 : i32
    %103 = arith.muli %arg1, %c16_i32_40 : i32
    %104 = tpu.iota {dimensions = array<i32: 1>} : vector<1x16x1xi32>
    %105 = vector.broadcast %103 : i32 to vector<1x16x1xi32>
    %106 = arith.addi %105, %104 : vector<1x16x1xi32>
    %c16_i32_41 = arith.constant 16 : i32
    %107 = vector.broadcast %c16_i32_41 : i32 to vector<1x16x1xi32>
    %108 = arith.cmpi slt, %106, %107 : vector<1x16x1xi32>
    %cst_42 = arith.constant 0.000000e+00 : f32
    %109 = vector.shape_cast %108 : vector<1x16x1xi1> to vector<1x16x1xi1>
    %110 = vector.broadcast %109 : vector<1x16x1xi1> to vector<8x16x512xi1>
    %111 = vector.broadcast %cst_42 : f32 to vector<8x16x512xf32>
    %112 = arith.select %110, %102, %111 : vector<8x16x512xi1>, vector<8x16x512xf32>
    %cst_43 = arith.constant dense<0.000000e+00> : vector<8x512xf32>
    %113 = vector.multi_reduction <add>, %112, %cst_43 [1] : vector<8x16x512xf32> to vector<8x512xf32>
    %c0_i32_44 = arith.constant 0 : i32
    %114 = arith.cmpi eq, %arg1, %c0_i32_44 : i32
    %115 = arith.extui %114 : i1 to i32
    %c0_i32_45 = arith.constant 0 : i32
    %116 = arith.cmpi ne, %115, %c0_i32_45 : i32
    scf.if %116 {
      %cst_52 = arith.constant 0.000000e+00 : f32
      %123 = vector.broadcast %cst_52 : f32 to vector<8x512xf32>
      %c0_53 = arith.constant 0 : index
      %c0_54 = arith.constant 0 : index
      %124 = vector.load %arg14[%c0_53, %c0_54] : memref<8x512xf32, #tpu.memory_space<vmem>>, vector<8x512xf32>
      tpu.vector_store %arg14[%c0_53, %c0_54], %123 {strides = array<i32>} : memref<8x512xf32, #tpu.memory_space<vmem>>, vector<8x512xf32>,
    } else {
    }
    %c0_46 = arith.constant 0 : index
    %c0_47 = arith.constant 0 : index
    %117 = vector.load %arg14[%c0_46, %c0_47] : memref<8x512xf32, #tpu.memory_space<vmem>>, vector<8x512xf32>
    %118 = arith.addf %117, %113 : vector<8x512xf32>
    %c0_48 = arith.constant 0 : index
    %c0_49 = arith.constant 0 : index
    %119 = vector.load %arg14[%c0_48, %c0_49] : memref<8x512xf32, #tpu.memory_space<vmem>>, vector<8x512xf32>
    tpu.vector_store %arg14[%c0_48, %c0_49], %118 {strides = array<i32>} : memref<8x512xf32, #tpu.memory_space<vmem>>, vector<8x512xf32>,
    %c0_i32_50 = arith.constant 0 : i32
    %120 = arith.cmpi eq, %arg1, %c0_i32_50 : i32
    %121 = arith.extui %120 : i1 to i32
    %c0_i32_51 = arith.constant 0 : i32
    %122 = arith.cmpi ne, %121, %c0_i32_51 : i32
    scf.if %122 {
      %c0_52 = arith.constant 0 : index
      %c0_53 = arith.constant 0 : index
      %123 = vector.load %arg14[%c0_52, %c0_53] : memref<8x512xf32, #tpu.memory_space<vmem>>, vector<8x512xf32>
      %cst_54 = arith.constant 6.250000e-02 : f32
      %124 = vector.broadcast %cst_54 : f32 to vector<8x512xf32>
      %125 = arith.mulf %123, %124 : vector<8x512xf32>
      %126 = arith.truncf %125 : vector<8x512xf32> to vector<8x512xbf16>
      %c0_55 = arith.constant 0 : index
      %c0_56 = arith.constant 0 : index
      %127 = vector.load %arg11[%c0_55, %c0_56] : memref<512x128xbf16, #tpu.memory_space<vmem>>, vector<512x128xbf16>
      %cst_57 = arith.constant dense<0.000000e+00> : vector<8x128xf32>
      %128 = tpu.matmul %126, %127, %cst_57 {dimension_numbers = #tpu.dot_dimension_numbers<[1], [0], [0], [1], [0, 0, 1, 1], [], []>} : vector<8x512xbf16>, vector<512x128xbf16>, vector<8x128xf32> -> vector<8x128xf32>
      %c0_58 = arith.constant 0 : index
      %c0_59 = arith.constant 0 : index
      %129 = vector.load %arg12[%c0_58, %c0_59] : memref<1x128xf32, #tpu.memory_space<vmem>>, vector<1x128xf32>
      %130 = vector.broadcast %129 : vector<1x128xf32> to vector<8x128xf32>
      %131 = arith.addf %128, %130 : vector<8x128xf32>
      %132 = arith.mulf %131, %131 : vector<8x128xf32>
      %cst_60 = arith.constant dense<0.000000e+00> : vector<8xf32>
      %133 = vector.multi_reduction <add>, %132, %cst_60 [1] : vector<8x128xf32> to vector<8xf32>
      %134 = vector.shape_cast %133 : vector<8xf32> to vector<8x1xf32>
      %cst_61 = arith.constant 1.000000e-24 : f32
      %135 = vector.broadcast %cst_61 : f32 to vector<8x1xf32>
      %136 = arith.maximumf %134, %135 : vector<8x1xf32>
      %137 = math.rsqrt %136 : vector<8x1xf32>
      %138 = vector.broadcast %137 : vector<8x1xf32> to vector<8x128xf32>
      %139 = arith.mulf %131, %138 : vector<8x128xf32>
      %c0_62 = arith.constant 0 : index
      %c0_63 = arith.constant 0 : index
      %140 = vector.load %arg13[%c0_62, %c0_63] : memref<8x128xf32, #tpu.memory_space<vmem>>, vector<8x128xf32>
      tpu.vector_store %arg13[%c0_62, %c0_63], %139 {strides = array<i32>} : memref<8x128xf32, #tpu.memory_space<vmem>>, vector<8x128xf32>,
    } else {
    }
    return
  }
  func.func @transform_0(%arg0: i32, %arg1: i32) -> (i32, i32, i32) {
    %c0_i32 = arith.constant 0 : i32
    %c0_i32_0 = arith.constant 0 : i32
    return %arg0, %arg1, %c0_i32 : i32, i32, i32
  }
  func.func @transform_1(%arg0: i32, %arg1: i32) -> (i32, i32, i32) {
    %c1_i32 = arith.constant 1 : i32
    %0 = arith.muli %arg1, %c1_i32 : i32
    %c1_i32_0 = arith.constant 1 : i32
    %1 = arith.subi %0, %c1_i32_0 : i32
    %c0_i32 = arith.constant 0 : i32
    %2 = arith.maxsi %1, %c0_i32 : i32
    %c0_i32_1 = arith.constant 0 : i32
    %c0_i32_2 = arith.constant 0 : i32
    return %arg0, %2, %c0_i32_1 : i32, i32, i32
  }
  func.func @transform_2(%arg0: i32, %arg1: i32) -> (i32, i32, i32) {
    %c1_i32 = arith.constant 1 : i32
    %0 = arith.addi %arg1, %c1_i32 : i32
    %c1_i32_0 = arith.constant 1 : i32
    %1 = arith.muli %0, %c1_i32_0 : i32
    %c0_i32 = arith.constant 0 : i32
    %2 = arith.minsi %1, %c0_i32 : i32
    %c0_i32_1 = arith.constant 0 : i32
    %c0_i32_2 = arith.constant 0 : i32
    return %arg0, %2, %c0_i32_1 : i32, i32, i32
  }
  func.func @transform_3(%arg0: i32, %arg1: i32) -> (i32, i32) {
    %c0_i32 = arith.constant 0 : i32
    %c0_i32_0 = arith.constant 0 : i32
    %c0_i32_1 = arith.constant 0 : i32
    return %c0_i32, %c0_i32_0 : i32, i32
  }
  func.func @transform_4(%arg0: i32, %arg1: i32) -> (i32, i32) {
    %c0_i32 = arith.constant 0 : i32
    %c0_i32_0 = arith.constant 0 : i32
    %c0_i32_1 = arith.constant 0 : i32
    return %c0_i32, %c0_i32_0 : i32, i32
  }
  func.func @transform_5(%arg0: i32, %arg1: i32) -> (i32, i32) {
    %c0_i32 = arith.constant 0 : i32
    %c0_i32_0 = arith.constant 0 : i32
    %c0_i32_1 = arith.constant 0 : i32
    return %c0_i32, %c0_i32_0 : i32, i32
  }
  func.func @transform_6(%arg0: i32, %arg1: i32) -> (i32, i32) {
    %c0_i32 = arith.constant 0 : i32
    %c0_i32_0 = arith.constant 0 : i32
    %c0_i32_1 = arith.constant 0 : i32
    return %c0_i32, %c0_i32_0 : i32, i32
  }
  func.func @transform_7(%arg0: i32, %arg1: i32) -> (i32, i32) {
    %c0_i32 = arith.constant 0 : i32
    %c0_i32_0 = arith.constant 0 : i32
    %c0_i32_1 = arith.constant 0 : i32
    return %c0_i32, %c0_i32_0 : i32, i32
  }
  func.func @transform_8(%arg0: i32, %arg1: i32) -> (i32, i32) {
    %c0_i32 = arith.constant 0 : i32
    %c0_i32_0 = arith.constant 0 : i32
    %c0_i32_1 = arith.constant 0 : i32
    return %c0_i32, %c0_i32_0 : i32, i32
  }
  func.func @transform_9(%arg0: i32, %arg1: i32) -> (i32, i32) {
    %c0_i32 = arith.constant 0 : i32
    %c0_i32_0 = arith.constant 0 : i32
    %c0_i32_1 = arith.constant 0 : i32
    return %c0_i32, %c0_i32_0 : i32, i32
  }
  func.func @transform_10(%arg0: i32, %arg1: i32) -> (i32, i32) {
    %c0_i32 = arith.constant 0 : i32
    %c0_i32_0 = arith.constant 0 : i32
    %c0_i32_1 = arith.constant 0 : i32
    return %c0_i32, %c0_i32_0 : i32, i32
  }
  func.func @transform_11(%arg0: i32, %arg1: i32) -> (i32, i32) {
    %c0_i32 = arith.constant 0 : i32
    %c0_i32_0 = arith.constant 0 : i32
    return %arg0, %c0_i32 : i32, i32
  }
}

</mosaic_0001>

<llo_original>
// kernel: tpu_custom_call.1
$region0: #{tpu_custom_call.1}
  #allocation0 [shape = 'u32[]', space=smem, size = 0x4, offset = 0x4, fixed_abs, tag = 'smem constant byte address 0x4 - core index']
  #allocation1 [shape = 'u32[72,128]{1,0:T(1,128)}', space=vmem, size = 0x9000, scoped, tag = 'internal scratch']
  #allocation2 [shape = 'f32[8,512]{1,0:T(8,128)}', space=vmem, size = 0x4000, scoped, tag = 'scratch operand']
  %s0 = inlined_call_operand.hbm [shape: bf16[8,16,40], index: 0, kind: input, shape index: {}]
  %s1 = inlined_call_operand.hbm [shape: bf16[8,16,40], index: 1, kind: input, shape index: {}]
  %s2 = inlined_call_operand.hbm [shape: bf16[8,16,40], index: 2, kind: input, shape index: {}]
  %s3 = inlined_call_operand.hbm [shape: bf16[128,128], index: 3, kind: input, shape index: {}]
  %s4 = inlined_call_operand.vmem [shape: f32[1,128], index: 4, kind: input, shape index: {}]
  %s5 = inlined_call_operand.hbm [shape: bf16[384,256], index: 5, kind: input, shape index: {}]
  %s6 = inlined_call_operand.vmem [shape: f32[1,256], index: 6, kind: input, shape index: {}]
  %s7 = inlined_call_operand.hbm [shape: bf16[768,512], index: 7, kind: input, shape index: {}]
  %s8 = inlined_call_operand.vmem [shape: f32[1,512], index: 8, kind: input, shape index: {}]
  %s9 = inlined_call_operand.hbm [shape: bf16[512,128], index: 9, kind: input, shape index: {}]
  %s10 = inlined_call_operand.vmem [shape: f32[1,128], index: 10, kind: input, shape index: {}]
  %s11 = inlined_call_operand.hbm [shape: f32[8,128], index: 11, kind: output, shape index: {}]
  %s12 = sld [smem:[#allocation0]]
  $region90: #{tpu_custom_call.1} parent=0
    _
  %s14 = ssub.s32 1, %s12
  %s15 = scalar_select 0, %s14, %s12
  $region1: #{tpu_custom_call.1} parent=0
    #allocation3 [shape = 'u8[32768]{0}', space=vmem, size = 0x8000, scoped, tag = 'input window, operand 0, single buffered']
    #allocation4 [shape = 's32[1]{0}', space=sflag, size = 0x4, scoped, tag = 'scoped memory for tpu_custom_call.1']
    #allocation5 [shape = 's32[1]{0}', space=sflag, size = 0x4, scoped, tag = 'scoped memory for tpu_custom_call.1']
    #allocation6 [shape = 'u8[32768]{0}', space=vmem, size = 0x8000, scoped, tag = 'input window, operand 1, single buffered']
    #allocation7 [shape = 's32[1]{0}', space=sflag, size = 0x4, scoped, tag = 'scoped memory for tpu_custom_call.1']
    #allocation8 [shape = 'u8[32768]{0}', space=vmem, size = 0x8000, scoped, tag = 'input window, operand 2, single buffered']
    #allocation9 [shape = 'u8[32768]{0}', space=vmem, size = 0x8000, scoped, tag = 'input window, operand 3, single buffered']
    #allocation10 [shape = 's32[1]{0}', space=sflag, size = 0x4, scoped, tag = 'scoped memory for tpu_custom_call.1']
    #allocation11 [shape = 'u8[196608]{0}', space=vmem, size = 0x30000, scoped, tag = 'input window, operand 5, single buffered']
    #allocation12 [shape = 'u8[786432]{0}', space=vmem, size = 0xc0000, scoped, tag = 'input window, operand 7, single buffered']
    #allocation13 [shape = 's32[1]{0}', space=sflag, size = 0x4, scoped, tag = 'scoped memory for tpu_custom_call.1']
    #allocation14 [shape = 'u8[131072]{0}', space=vmem, size = 0x20000, scoped, tag = 'input window, operand 9, single buffered']
    #allocation15 [shape = 'u8[4096]{0}', space=vmem, size = 0x1000, scoped, tag = 'output window, operand 0, single buffered']
    %16 = vsyncpa [#allocation4], 0
    %17 = vsyncpa [#allocation7], 0
    %18 = vsyncpa [#allocation10], 0
    %19 = vsyncpa [#allocation13], 0
    %20 = vsyncpa [#allocation5], 0
    // Predicated region
    $region2: #{tpu_custom_call.1} parent=1 // pred_check
      _
    $region3: #{tpu_custom_call.1} parent=1 // pred_check_branch
      %22 = sbr.rel (0) target = $region5
    $region4: #{tpu_custom_call.1} parent=1 // pred_region
      %24 = vsyncadd [#allocation4], 0
      %s25 = sshll.u32 %s0, 4
      %s26 = int_to_ptr.hbm [resolvable:$true] %s25
      %s27 = sshll.u32 [#allocation3], 4
      %s28 = int_to_ptr.vmem [resolvable:$true] %s27
      %33 = dma.hbm_to_vmem [thread:$0]  %s26, 1024, %s28, [#allocation4], 64, 64, 4
    $region5: #{tpu_custom_call.1} parent=1 // pred_fallthru
      _
    // Predicated region
    $region6: #{tpu_custom_call.1} parent=1 // pred_check
      _
    $region7: #{tpu_custom_call.1} parent=1 // pred_check_branch
      %35 = sbr.rel (0) target = $region9
    $region8: #{tpu_custom_call.1} parent=1 // pred_region
      %s36 = ssub.s32 0, 1
      %p37 = scmp.gt.s32.totalorder %s36, 0
      %s38 = scalar_select %p37, %s36, 0
      %s39 = smul.u32 2, %s38
      %41 = vsyncadd [#allocation7], 0
      %s42 = smul.addr %s39, 4
      %s43 = scalar_lea.hbm %s1, %s42
      %s44 = sshll.u32 %s43, 4
      %s45 = int_to_ptr.hbm [resolvable:$true] %s44
      %s46 = sshll.u32 [#allocation6], 4
      %s47 = int_to_ptr.vmem [resolvable:$true] %s46
      %52 = dma.hbm_to_vmem [thread:$0]  %s45, 1024, %s47, [#allocation7], 64, 64, 4
    $region9: #{tpu_custom_call.1} parent=1 // pred_fallthru
      _
    // Predicated region
    $region10: #{tpu_custom_call.1} parent=1 // pred_check
      _
    $region11: #{tpu_custom_call.1} parent=1 // pred_check_branch
      %54 = sbr.rel (0) target = $region13
    $region12: #{tpu_custom_call.1} parent=1 // pred_region
      %s55 = sadd.s32 0, 1
      %p56 = scmp.lt.s32.totalorder %s55, 0
      %s57 = scalar_select %p56, %s55, 0
      %s58 = smul.u32 2, %s57
      %60 = vsyncadd [#allocation7], 0
      %s61 = smul.addr %s58, 4
      %s62 = scalar_lea.hbm %s2, %s61
      %s63 = sshll.u32 %s62, 4
      %s64 = int_to_ptr.hbm [resolvable:$true] %s63
      %s65 = sshll.u32 [#allocation8], 4
      %s66 = int_to_ptr.vmem [resolvable:$true] %s65
      %71 = dma.hbm_to_vmem [thread:$0]  %s64, 1024, %s66, [#allocation7], 64, 64, 4
    $region13: #{tpu_custom_call.1} parent=1 // pred_fallthru
      _
    // Predicated region
    $region14: #{tpu_custom_call.1} parent=1 // pred_check
      _
    $region15: #{tpu_custom_call.1} parent=1 // pred_check_branch
      %73 = sbr.rel (0) target = $region17
    $region16: #{tpu_custom_call.1} parent=1 // pred_region
      %75 = vsyncadd [#allocation10], 0
      %s76 = sshll.u32 %s3, 4
      %s77 = int_to_ptr.hbm [resolvable:$true] %s76
      %s78 = sshll.u32 [#allocation9], 4
      %s79 = int_to_ptr.vmem [resolvable:$true] %s78
      %84 = dma.hbm_to_vmem [thread:$0]  %s77, 1024, %s79, [#allocation10], 64, 64, 4
    $region17: #{tpu_custom_call.1} parent=1 // pred_fallthru
      _
    // Predicated region
    $region18: #{tpu_custom_call.1} parent=1 // pred_check
      _
    $region19: #{tpu_custom_call.1} parent=1 // pred_check_branch
      %86 = sbr.rel (0) target = $region21
    $region20: #{tpu_custom_call.1} parent=1 // pred_region
      _
    $region21: #{tpu_custom_call.1} parent=1 // pred_fallthru
      _
    // Predicated region
    $region22: #{tpu_custom_call.1} parent=1 // pred_check
      _
    $region23: #{tpu_custom_call.1} parent=1 // pred_check_branch
      %88 = sbr.rel (0) target = $region25
    $region24: #{tpu_custom_call.1} parent=1 // pred_region
      %90 = vsyncadd [#allocation10], 0
      %s91 = sshll.u32 %s5, 4
      %s92 = int_to_ptr.hbm [resolvable:$true] %s91
      %s93 = sshll.u32 [#allocation11], 4
      %s94 = int_to_ptr.vmem [resolvable:$true] %s93
      %99 = dma.hbm_to_vmem [thread:$0]  %s92, 6144, %s94, [#allocation10], 128, 128, 8
    $region25: #{tpu_custom_call.1} parent=1 // pred_fallthru
      _
    // Predicated region
    $region26: #{tpu_custom_call.1} parent=1 // pred_check
      _
    $region27: #{tpu_custom_call.1} parent=1 // pred_check_branch
      %101 = sbr.rel (0) target = $region29
    $region28: #{tpu_custom_call.1} parent=1 // pred_region
      _
    $region29: #{tpu_custom_call.1} parent=1 // pred_fallthru
      _
    // Predicated region
    $region30: #{tpu_custom_call.1} parent=1 // pred_check
      _
    $region31: #{tpu_custom_call.1} parent=1 // pred_check_branch
      %103 = sbr.rel (0) target = $region33
    $region32: #{tpu_custom_call.1} parent=1 // pred_region
      %105 = vsyncadd [#allocation13], 0
      %s106 = sshll.u32 %s7, 4
      %s107 = int_to_ptr.hbm [resolvable:$true] %s106
      %s108 = sshll.u32 [#allocation12], 4
      %s109 = int_to_ptr.vmem [resolvable:$true] %s108
      %114 = dma.hbm_to_vmem [thread:$0]  %s107, 24576, %s109, [#allocation13], 256, 256, 16
    $region33: #{tpu_custom_call.1} parent=1 // pred_fallthru
      _
    // Predicated region
    $region34: #{tpu_custom_call.1} parent=1 // pred_check
      _
    $region35: #{tpu_custom_call.1} parent=1 // pred_check_branch
      %116 = sbr.rel (0) target = $region37
    $region36: #{tpu_custom_call.1} parent=1 // pred_region
      _
    $region37: #{tpu_custom_call.1} parent=1 // pred_fallthru
      _
    // Predicated region
    $region38: #{tpu_custom_call.1} parent=1 // pred_check
      _
    $region39: #{tpu_custom_call.1} parent=1 // pred_check_branch
      %118 = sbr.rel (0) target = $region41
    $region40: #{tpu_custom_call.1} parent=1 // pred_region
      %120 = vsyncadd [#allocation13], 0
      %s121 = sshll.u32 %s9, 4
      %s122 = int_to_ptr.hbm [resolvable:$true] %s121
      %s123 = sshll.u32 [#allocation14], 4
      %s124 = int_to_ptr.vmem [resolvable:$true] %s123
      %129 = dma.hbm_to_vmem [thread:$0]  %s122, 4096, %s124, [#allocation13], 64, 64, 4
    $region41: #{tpu_custom_call.1} parent=1 // pred_fallthru
      _
    // Predicated region
    $region42: #{tpu_custom_call.1} parent=1 // pred_check
      _
    $region43: #{tpu_custom_call.1} parent=1 // pred_check_branch
      %131 = sbr.rel (0) target = $region45
    $region44: #{tpu_custom_call.1} parent=1 // pred_region
      _
    $region45: #{tpu_custom_call.1} parent=1 // pred_fallthru
      _
    // Predicated region
    $region46: #{tpu_custom_call.1} parent=1 // pred_check
      _
    $region47: #{tpu_custom_call.1} parent=1 // pred_check_branch
      %133 = sbr.rel (0) target = $region49
    $region48: #{tpu_custom_call.1} parent=1 // pred_region
      %135 = dma.done [#allocation4], 1024
    $region49: #{tpu_custom_call.1} parent=1 // pred_fallthru
      _
    // Predicated region
    $region50: #{tpu_custom_call.1} parent=1 // pred_check
      _
    $region51: #{tpu_custom_call.1} parent=1 // pred_check_branch
      %137 = sbr.rel (0) target = $region53
    $region52: #{tpu_custom_call.1} parent=1 // pred_region
      %139 = dma.done [#allocation7], 1024
    $region53: #{tpu_custom_call.1} parent=1 // pred_fallthru
      _
    // Predicated region
    $region54: #{tpu_custom_call.1} parent=1 // pred_check
      _
    $region55: #{tpu_custom_call.1} parent=1 // pred_check_branch
      %141 = sbr.rel (0) target = $region57
    $region56: #{tpu_custom_call.1} parent=1 // pred_region
      %143 = dma.done [#allocation7], 1024
    $region57: #{tpu_custom_call.1} parent=1 // pred_fallthru
      _
    // Predicated region
    $region58: #{tpu_custom_call.1} parent=1 // pred_check
      _
    $region59: #{tpu_custom_call.1} parent=1 // pred_check_branch
      %145 = sbr.rel (0) target = $region61
    $region60: #{tpu_custom_call.1} parent=1 // pred_region
      %147 = dma.done [#allocation10], 1024
    $region61: #{tpu_custom_call.1} parent=1 // pred_fallthru
      _
    // Predicated region
    $region62: #{tpu_custom_call.1} parent=1 // pred_check
      _
    $region63: #{tpu_custom_call.1} parent=1 // pred_check_branch
      %149 = sbr.rel (0) target = $region65
    $region64: #{tpu_custom_call.1} parent=1 // pred_region
      %151 = dma.done [#allocation10], 6144
    $region65: #{tpu_custom_call.1} parent=1 // pred_fallthru
      _
    // Predicated region
    $region66: #{tpu_custom_call.1} parent=1 // pred_check
      _
    $region67: #{tpu_custom_call.1} parent=1 // pred_check_branch
      %153 = sbr.rel (0) target = $region69
    $region68: #{tpu_custom_call.1} parent=1 // pred_region
      %155 = dma.done [#allocation13], 24576
    $region69: #{tpu_custom_call.1} parent=1 // pred_fallthru
      _
    // Predicated region
    $region70: #{tpu_custom_call.1} parent=1 // pred_check
      _
    $region71: #{tpu_custom_call.1} parent=1 // pred_check_branch
      %157 = sbr.rel (0) target = $region73
    $region72: #{tpu_custom_call.1} parent=1 // pred_region
      %159 = dma.done [#allocation13], 4096
    $region73: #{tpu_custom_call.1} parent=1 // pred_fallthru
      _
    %s160 = ssub.s32 0, 1
    %p161 = scmp.gt.s32.totalorder %s160, 0
    %s162 = scalar_select %p161, %s160, 0
    %s163 = smul.u32 2, %s162
    %s164 = sadd.s32 0, 1
    %p165 = scmp.lt.s32.totalorder %s164, 0
    %s166 = scalar_select %p165, %s164, 0
    %s167 = smul.u32 2, %s166
    %v169 = vld [vmem:[#allocation6 + $0x4] sm:$0xf]
    %v170 = vld [vmem:[#allocation6 + $0xc] sm:$0xf]
    %v171 = vld [vmem:[#allocation6 + $0x14] sm:$0xf]
    %v172 = vld [vmem:[#allocation6 + $0x1c] sm:$0xf]
    %v173 = vld [vmem:[#allocation6 + $0x24] sm:$0xf]
    %v174 = vld [vmem:[#allocation6 + $0x2c] sm:$0xf]
    %v175 = vld [vmem:[#allocation6 + $0x34] sm:$0xf]
    %v176 = vld [vmem:[#allocation6 + $0x3c] sm:$0xf]
    %v177 = vld [vmem:[#allocation3] sm:$0xf]
    %v178 = vld [vmem:[#allocation3 + $0x4] sm:$0xf]
    %v179 = vld [vmem:[#allocation3 + $0x8] sm:$0xf]
    %v180 = vld [vmem:[#allocation3 + $0xc] sm:$0xf]
    %v181 = vld [vmem:[#allocation3 + $0x10] sm:$0xf]
    %v182 = vld [vmem:[#allocation3 + $0x14] sm:$0xf]
    %v183 = vld [vmem:[#allocation3 + $0x18] sm:$0xf]
    %v184 = vld [vmem:[#allocation3 + $0x1c] sm:$0xf]
    %v185 = vld [vmem:[#allocation3 + $0x20] sm:$0xf]
    %v186 = vld [vmem:[#allocation3 + $0x24] sm:$0xf]
    %v187 = vld [vmem:[#allocation3 + $0x28] sm:$0xf]
    %v188 = vld [vmem:[#allocation3 + $0x2c] sm:$0xf]
    %v189 = vld [vmem:[#allocation3 + $0x30] sm:$0xf]
    %v190 = vld [vmem:[#allocation3 + $0x34] sm:$0xf]
    %v191 = vld [vmem:[#allocation3 + $0x38] sm:$0xf]
    %v192 = vld [vmem:[#allocation3 + $0x3c] sm:$0xf]
    %v193 = vld [vmem:[#allocation8] sm:$0xf]
    %v194 = vld [vmem:[#allocation8 + $0x8] sm:$0xf]
    %v195 = vld [vmem:[#allocation8 + $0x10] sm:$0xf]
    %v196 = vld [vmem:[#allocation8 + $0x18] sm:$0xf]
    %v197 = vld [vmem:[#allocation8 + $0x20] sm:$0xf]
    %v198 = vld [vmem:[#allocation8 + $0x28] sm:$0xf]
    %v199 = vld [vmem:[#allocation8 + $0x30] sm:$0xf]
    %v200 = vld [vmem:[#allocation8 + $0x38] sm:$0xf]
    %v217 = vunpack.c.l.b16 %v177
    %v218 = vunpack.c.l.b16 %v178
    %v219 = vunpack.c.l.b16 %v179
    %v220 = vunpack.c.l.b16 %v180
    %v221 = vunpack.c.l.b16 %v181
    %v222 = vunpack.c.l.b16 %v182
    %v223 = vunpack.c.l.b16 %v183
    %v224 = vunpack.c.l.b16 %v184
    %v225 = vunpack.c.l.b16 %v185
    %v226 = vunpack.c.l.b16 %v186
    %v227 = vunpack.c.l.b16 %v187
    %v228 = vunpack.c.l.b16 %v188
    %v229 = vunpack.c.l.b16 %v189
    %v230 = vunpack.c.l.b16 %v190
    %v231 = vunpack.c.l.b16 %v191
    %v232 = vunpack.c.l.b16 %v192
    %v233 = vpack.c.b16 %v217, %v217
    %v234 = vpack.c.b16 %v218, %v218
    %v235 = vpack.c.b16 %v219, %v219
    %v236 = vpack.c.b16 %v220, %v220
    %v237 = vpack.c.b16 %v221, %v221
    %v238 = vpack.c.b16 %v222, %v222
    %v239 = vpack.c.b16 %v223, %v223
    %v240 = vpack.c.b16 %v224, %v224
    %v241 = vpack.c.b16 %v225, %v225
    %v242 = vpack.c.b16 %v226, %v226
    %v243 = vpack.c.b16 %v227, %v227
    %v244 = vpack.c.b16 %v228, %v228
    %v245 = vpack.c.b16 %v229, %v229
    %v246 = vpack.c.b16 %v230, %v230
    %v247 = vpack.c.b16 %v231, %v231
    %v248 = vpack.c.b16 %v232, %v232
    %v257 = vunpack.c.l.b16 %v193
    %v258 = vunpack.c.l.b16 %v194
    %v259 = vunpack.c.l.b16 %v195
    %v260 = vunpack.c.l.b16 %v196
    %v261 = vunpack.c.l.b16 %v197
    %v262 = vunpack.c.l.b16 %v198
    %v263 = vunpack.c.l.b16 %v199
    %v264 = vunpack.c.l.b16 %v200
    %v265 = vpack.c.b16 %v257, %v257
    %v266 = vpack.c.b16 %v258, %v258
    %v267 = vpack.c.b16 %v259, %v259
    %v268 = vpack.c.b16 %v260, %v260
    %v269 = vpack.c.b16 %v261, %v261
    %v270 = vpack.c.b16 %v262, %v262
    %v271 = vpack.c.b16 %v263, %v263
    %v272 = vpack.c.b16 %v264, %v264
    %vm273 = vcmask 1043456
    %v276 = vsel %vm273, %v169, %v233
    %v280 = vsel %vm273, %v170, %v235
    %v284 = vsel %vm273, %v171, %v237
    %v288 = vsel %vm273, %v172, %v239
    %v292 = vsel %vm273, %v173, %v241
    %v296 = vsel %vm273, %v174, %v243
    %v300 = vsel %vm273, %v175, %v245
    %v304 = vsel %vm273, %v176, %v247
    %v308 = vsel %vm273, %v234, %v265
    %v312 = vsel %vm273, %v236, %v266
    %v316 = vsel %vm273, %v238, %v267
    %v320 = vsel %vm273, %v240, %v268
    %v324 = vsel %vm273, %v242, %v269
    %v328 = vsel %vm273, %v244, %v270
    %v332 = vsel %vm273, %v246, %v271
    %v336 = vsel %vm273, %v248, %v272
    %v338 = vunpack.c.l.bf16 %v276
    %v339 = vunpack.c.h.bf16 %v276
    %v340 = vunpack.c.l.bf16 %v308
    %v341 = vunpack.c.h.bf16 %v308
    %v342 = vunpack.c.l.bf16 %v280
    %v343 = vunpack.c.h.bf16 %v280
    %v344 = vunpack.c.l.bf16 %v312
    %v345 = vunpack.c.h.bf16 %v312
    %v346 = vunpack.c.l.bf16 %v284
    %v347 = vunpack.c.h.bf16 %v284
    %v348 = vunpack.c.l.bf16 %v316
    %v349 = vunpack.c.h.bf16 %v316
    %v350 = vunpack.c.l.bf16 %v288
    %v351 = vunpack.c.h.bf16 %v288
    %v352 = vunpack.c.l.bf16 %v320
    %v353 = vunpack.c.h.bf16 %v320
    %v354 = vunpack.c.l.bf16 %v292
    %v355 = vunpack.c.h.bf16 %v292
    %v356 = vunpack.c.l.bf16 %v324
    %v357 = vunpack.c.h.bf16 %v324
    %v358 = vunpack.c.l.bf16 %v296
    %v359 = vunpack.c.h.bf16 %v296
    %v360 = vunpack.c.l.bf16 %v328
    %v361 = vunpack.c.h.bf16 %v328
    %v362 = vunpack.c.l.bf16 %v300
    %v363 = vunpack.c.h.bf16 %v300
    %v364 = vunpack.c.l.bf16 %v332
    %v365 = vunpack.c.h.bf16 %v332
    %v366 = vunpack.c.l.bf16 %v304
    %v367 = vunpack.c.h.bf16 %v304
    %v368 = vunpack.c.l.bf16 %v336
    %v369 = vunpack.c.h.bf16 %v336
    %s370 = smul.u32 0, 16
    %s371 = ssub.s32 %s370, 8
    %v372 = vlaneseq
    %v373 = vshrl.u32 %v372, 7
    %v374 = vadd.s32 %v373, 8
    %v375 = vadd.s32 %v373, 16
    %v376 = vadd.s32 %v373, 24
    %v377 = vadd.s32 %v373, 32
    %v378 = vadd.s32 %v373, 40
    %v379 = vadd.s32 %v373, 48
    %v380 = vadd.s32 %v373, 56
    %v381 = vadd.s32 %v373, 64
    %v382 = vadd.s32 %v373, 72
    %v383 = vadd.s32 %v373, 80
    %v384 = vadd.s32 %v373, 88
    %v385 = vadd.s32 %v373, 96
    %v386 = vadd.s32 %v373, 104
    %v387 = vadd.s32 %v373, 112
    %v388 = vadd.s32 %v373, 120
    %v389 = vadd.s32 %v373, 128
    %v390 = vadd.s32 %v373, 136
    %v391 = vadd.s32 %v373, 144
    %v392 = vadd.s32 %v373, 152
    %v393 = vadd.s32 %v373, 160
    %v394 = vadd.s32 %v373, 168
    %v395 = vadd.s32 %v373, 176
    %v396 = vadd.s32 %v373, 184
    %v397 = vadd.s32 %v373, 192
    %v398 = vadd.s32 %v373, 200
    %v399 = vadd.s32 %v373, 208
    %v400 = vadd.s32 %v373, 216
    %v401 = vadd.s32 %v373, 224
    %v402 = vadd.s32 %v373, 232
    %v403 = vadd.s32 %v373, 240
    %v404 = vadd.s32 %v373, 248
    %vm405 = vcmp.lt.s32.totalorder %v373, 0
    %v406 = vsub.s32 0, %v373
    %v407 = vsel %vm405, %v406, %v373
    %v408 = vshrl.u32 %v407, 5
    %v409 = vand.u32 %v407, 31
    %v410 = vsub.s32 0, %v409
    %v411 = vsel %vm405, %v410, %v409
    %vm412 = vcmp.lt.s32.totalorder %v374, 0
    %v413 = vsub.s32 0, %v374
    %v414 = vsel %vm412, %v413, %v374
    %v415 = vshrl.u32 %v414, 5
    %v416 = vand.u32 %v414, 31
    %v417 = vsub.s32 0, %v416
    %v418 = vsel %vm412, %v417, %v416
    %vm419 = vcmp.lt.s32.totalorder %v375, 0
    %v420 = vsub.s32 0, %v375
    %v421 = vsel %vm419, %v420, %v375
    %v422 = vshrl.u32 %v421, 5
    %v423 = vand.u32 %v421, 31
    %v424 = vsub.s32 0, %v423
    %v425 = vsel %vm419, %v424, %v423
    %vm426 = vcmp.lt.s32.totalorder %v376, 0
    %v427 = vsub.s32 0, %v376
    %v428 = vsel %vm426, %v427, %v376
    %v429 = vshrl.u32 %v428, 5
    %v430 = vand.u32 %v428, 31
    %v431 = vsub.s32 0, %v430
    %v432 = vsel %vm426, %v431, %v430
    %vm433 = vcmp.lt.s32.totalorder %v377, 0
    %v434 = vsub.s32 0, %v377
    %v435 = vsel %vm433, %v434, %v377
    %v436 = vshrl.u32 %v435, 5
    %v437 = vand.u32 %v435, 31
    %v438 = vsub.s32 0, %v437
    %v439 = vsel %vm433, %v438, %v437
    %vm440 = vcmp.lt.s32.totalorder %v378, 0
    %v441 = vsub.s32 0, %v378
    %v442 = vsel %vm440, %v441, %v378
    %v443 = vshrl.u32 %v442, 5
    %v444 = vand.u32 %v442, 31
    %v445 = vsub.s32 0, %v444
    %v446 = vsel %vm440, %v445, %v444
    %vm447 = vcmp.lt.s32.totalorder %v379, 0
    %v448 = vsub.s32 0, %v379
    %v449 = vsel %vm447, %v448, %v379
    %v450 = vshrl.u32 %v449, 5
    %v451 = vand.u32 %v449, 31
    %v452 = vsub.s32 0, %v451
    %v453 = vsel %vm447, %v452, %v451
    %vm454 = vcmp.lt.s32.totalorder %v380, 0
    %v455 = vsub.s32 0, %v380
    %v456 = vsel %vm454, %v455, %v380
    %v457 = vshrl.u32 %v456, 5
    %v458 = vand.u32 %v456, 31
    %v459 = vsub.s32 0, %v458
    %v460 = vsel %vm454, %v459, %v458
    %vm461 = vcmp.lt.s32.totalorder %v381, 0
    %v462 = vsub.s32 0, %v381
    %v463 = vsel %vm461, %v462, %v381
    %v464 = vshrl.u32 %v463, 5
    %v465 = vand.u32 %v463, 31
    %v466 = vsub.s32 0, %v465
    %v467 = vsel %vm461, %v466, %v465
    %vm468 = vcmp.lt.s32.totalorder %v382, 0
    %v469 = vsub.s32 0, %v382
    %v470 = vsel %vm468, %v469, %v382
    %v471 = vshrl.u32 %v470, 5
    %v472 = vand.u32 %v470, 31
    %v473 = vsub.s32 0, %v472
    %v474 = vsel %vm468, %v473, %v472
    %vm475 = vcmp.lt.s32.totalorder %v383, 0
    %v476 = vsub.s32 0, %v383
    %v477 = vsel %vm475, %v476, %v383
    %v478 = vshrl.u32 %v477, 5
    %v479 = vand.u32 %v477, 31
    %v480 = vsub.s32 0, %v479
    %v481 = vsel %vm475, %v480, %v479
    %vm482 = vcmp.lt.s32.totalorder %v384, 0
    %v483 = vsub.s32 0, %v384
    %v484 = vsel %vm482, %v483, %v384
    %v485 = vshrl.u32 %v484, 5
    %v486 = vand.u32 %v484, 31
    %v487 = vsub.s32 0, %v486
    %v488 = vsel %vm482, %v487, %v486
    %vm489 = vcmp.lt.s32.totalorder %v385, 0
    %v490 = vsub.s32 0, %v385
    %v491 = vsel %vm489, %v490, %v385
    %v492 = vshrl.u32 %v491, 5
    %v493 = vand.u32 %v491, 31
    %v494 = vsub.s32 0, %v493
    %v495 = vsel %vm489, %v494, %v493
    %vm496 = vcmp.lt.s32.totalorder %v386, 0
    %v497 = vsub.s32 0, %v386
    %v498 = vsel %vm496, %v497, %v386
    %v499 = vshrl.u32 %v498, 5
    %v500 = vand.u32 %v498, 31
    %v501 = vsub.s32 0, %v500
    %v502 = vsel %vm496, %v501, %v500
    %vm503 = vcmp.lt.s32.totalorder %v387, 0
    %v504 = vsub.s32 0, %v387
    %v505 = vsel %vm503, %v504, %v387
    %v506 = vshrl.u32 %v505, 5
    %v507 = vand.u32 %v505, 31
    %v508 = vsub.s32 0, %v507
    %v509 = vsel %vm503, %v508, %v507
    %vm510 = vcmp.lt.s32.totalorder %v388, 0
    %v511 = vsub.s32 0, %v388
    %v512 = vsel %vm510, %v511, %v388
    %v513 = vshrl.u32 %v512, 5
    %v514 = vand.u32 %v512, 31
    %v515 = vsub.s32 0, %v514
    %v516 = vsel %vm510, %v515, %v514
    %vm517 = vcmp.lt.s32.totalorder %v389, 0
    %v518 = vsub.s32 0, %v389
    %v519 = vsel %vm517, %v518, %v389
    %v520 = vshrl.u32 %v519, 5
    %v521 = vand.u32 %v519, 31
    %v522 = vsub.s32 0, %v521
    %v523 = vsel %vm517, %v522, %v521
    %vm524 = vcmp.lt.s32.totalorder %v390, 0
    %v525 = vsub.s32 0, %v390
    %v526 = vsel %vm524, %v525, %v390
    %v527 = vshrl.u32 %v526, 5
    %v528 = vand.u32 %v526, 31
    %v529 = vsub.s32 0, %v528
    %v530 = vsel %vm524, %v529, %v528
    %vm531 = vcmp.lt.s32.totalorder %v391, 0
    %v532 = vsub.s32 0, %v391
    %v533 = vsel %vm531, %v532, %v391
    %v534 = vshrl.u32 %v533, 5
    %v535 = vand.u32 %v533, 31
    %v536 = vsub.s32 0, %v535
    %v537 = vsel %vm531, %v536, %v535
    %vm538 = vcmp.lt.s32.totalorder %v392, 0
    %v539 = vsub.s32 0, %v392
    %v540 = vsel %vm538, %v539, %v392
    %v541 = vshrl.u32 %v540, 5
    %v542 = vand.u32 %v540, 31
    %v543 = vsub.s32 0, %v542
    %v544 = vsel %vm538, %v543, %v542
    %vm545 = vcmp.lt.s32.totalorder %v393, 0
    %v546 = vsub.s32 0, %v393
    %v547 = vsel %vm545, %v546, %v393
    %v548 = vshrl.u32 %v547, 5
    %v549 = vand.u32 %v547, 31
    %v550 = vsub.s32 0, %v549
    %v551 = vsel %vm545, %v550, %v549
    %vm552 = vcmp.lt.s32.totalorder %v394, 0
    %v553 = vsub.s32 0, %v394
    %v554 = vsel %vm552, %v553, %v394
    %v555 = vshrl.u32 %v554, 5
    %v556 = vand.u32 %v554, 31
    %v557 = vsub.s32 0, %v556
    %v558 = vsel %vm552, %v557, %v556
    %vm559 = vcmp.lt.s32.totalorder %v395, 0
    %v560 = vsub.s32 0, %v395
    %v561 = vsel %vm559, %v560, %v395
    %v562 = vshrl.u32 %v561, 5
    %v563 = vand.u32 %v561, 31
    %v564 = vsub.s32 0, %v563
    %v565 = vsel %vm559, %v564, %v563
    %vm566 = vcmp.lt.s32.totalorder %v396, 0
    %v567 = vsub.s32 0, %v396
    %v568 = vsel %vm566, %v567, %v396
    %v569 = vshrl.u32 %v568, 5
    %v570 = vand.u32 %v568, 31
    %v571 = vsub.s32 0, %v570
    %v572 = vsel %vm566, %v571, %v570
    %vm573 = vcmp.lt.s32.totalorder %v397, 0
    %v574 = vsub.s32 0, %v397
    %v575 = vsel %vm573, %v574, %v397
    %v576 = vshrl.u32 %v575, 5
    %v577 = vand.u32 %v575, 31
    %v578 = vsub.s32 0, %v577
    %v579 = vsel %vm573, %v578, %v577
    %vm580 = vcmp.lt.s32.totalorder %v398, 0
    %v581 = vsub.s32 0, %v398
    %v582 = vsel %vm580, %v581, %v398
    %v583 = vshrl.u32 %v582, 5
    %v584 = vand.u32 %v582, 31
    %v585 = vsub.s32 0, %v584
    %v586 = vsel %vm580, %v585, %v584
    %vm587 = vcmp.lt.s32.totalorder %v399, 0
    %v588 = vsub.s32 0, %v399
    %v589 = vsel %vm587, %v588, %v399
    %v590 = vshrl.u32 %v589, 5
    %v591 = vand.u32 %v589, 31
    %v592 = vsub.s32 0, %v591
    %v593 = vsel %vm587, %v592, %v591
    %vm594 = vcmp.lt.s32.totalorder %v400, 0
    %v595 = vsub.s32 0, %v400
    %v596 = vsel %vm594, %v595, %v400
    %v597 = vshrl.u32 %v596, 5
    %v598 = vand.u32 %v596, 31
    %v599 = vsub.s32 0, %v598
    %v600 = vsel %vm594, %v599, %v598
    %vm601 = vcmp.lt.s32.totalorder %v401, 0
    %v602 = vsub.s32 0, %v401
    %v603 = vsel %vm601, %v602, %v401
    %v604 = vshrl.u32 %v603, 5
    %v605 = vand.u32 %v603, 31
    %v606 = vsub.s32 0, %v605
    %v607 = vsel %vm601, %v606, %v605
    %vm608 = vcmp.lt.s32.totalorder %v402, 0
    %v609 = vsub.s32 0, %v402
    %v610 = vsel %vm608, %v609, %v402
    %v611 = vshrl.u32 %v610, 5
    %v612 = vand.u32 %v610, 31
    %v613 = vsub.s32 0, %v612
    %v614 = vsel %vm608, %v613, %v612
    %vm615 = vcmp.lt.s32.totalorder %v403, 0
    %v616 = vsub.s32 0, %v403
    %v617 = vsel %vm615, %v616, %v403
    %v618 = vshrl.u32 %v617, 5
    %v619 = vand.u32 %v617, 31
    %v620 = vsub.s32 0, %v619
    %v621 = vsel %vm615, %v620, %v619
    %vm622 = vcmp.lt.s32.totalorder %v404, 0
    %v623 = vsub.s32 0, %v404
    %v624 = vsel %vm622, %v623, %v404
    %v625 = vshrl.u32 %v624, 5
    %v626 = vand.u32 %v624, 31
    %v627 = vsub.s32 0, %v626
    %v628 = vsel %vm622, %v627, %v626
    %vm629 = vcmp.ne.s32.totalorder %v411, 0
    %vm630 = vcmp.ne.s32.totalorder %v418, 0
    %vm631 = vcmp.ne.s32.totalorder %v425, 0
    %vm632 = vcmp.ne.s32.totalorder %v432, 0
    %vm633 = vcmp.ne.s32.totalorder %v439, 0
    %vm634 = vcmp.ne.s32.totalorder %v446, 0
    %vm635 = vcmp.ne.s32.totalorder %v453, 0
    %vm636 = vcmp.ne.s32.totalorder %v460, 0
    %vm637 = vcmp.ne.s32.totalorder %v467, 0
    %vm638 = vcmp.ne.s32.totalorder %v474, 0
    %vm639 = vcmp.ne.s32.totalorder %v481, 0
    %vm640 = vcmp.ne.s32.totalorder %v488, 0
    %vm641 = vcmp.ne.s32.totalorder %v495, 0
    %vm642 = vcmp.ne.s32.totalorder %v502, 0
    %vm643 = vcmp.ne.s32.totalorder %v509, 0
    %vm644 = vcmp.ne.s32.totalorder %v516, 0
    %vm645 = vcmp.ne.s32.totalorder %v523, 0
    %vm646 = vcmp.ne.s32.totalorder %v530, 0
    %vm647 = vcmp.ne.s32.totalorder %v537, 0
    %vm648 = vcmp.ne.s32.totalorder %v544, 0
    %vm649 = vcmp.ne.s32.totalorder %v551, 0
    %vm650 = vcmp.ne.s32.totalorder %v558, 0
    %vm651 = vcmp.ne.s32.totalorder %v565, 0
    %vm652 = vcmp.ne.s32.totalorder %v572, 0
    %vm653 = vcmp.ne.s32.totalorder %v579, 0
    %vm654 = vcmp.ne.s32.totalorder %v586, 0
    %vm655 = vcmp.ne.s32.totalorder %v593, 0
    %vm656 = vcmp.ne.s32.totalorder %v600, 0
    %vm657 = vcmp.ne.s32.totalorder %v607, 0
    %vm658 = vcmp.ne.s32.totalorder %v614, 0
    %vm659 = vcmp.ne.s32.totalorder %v621, 0
    %vm660 = vcmp.ne.s32.totalorder %v628, 0
    %vm661 = vcmp.lt.s32.totalorder %v411, 0
    %vm662 = vcmp.lt.s32.totalorder %v418, 0
    %vm663 = vcmp.lt.s32.totalorder %v425, 0
    %vm664 = vcmp.lt.s32.totalorder %v432, 0
    %vm665 = vcmp.lt.s32.totalorder %v439, 0
    %vm666 = vcmp.lt.s32.totalorder %v446, 0
    %vm667 = vcmp.lt.s32.totalorder %v453, 0
    %vm668 = vcmp.lt.s32.totalorder %v460, 0
    %vm669 = vcmp.lt.s32.totalorder %v467, 0
    %vm670 = vcmp.lt.s32.totalorder %v474, 0
    %vm671 = vcmp.lt.s32.totalorder %v481, 0
    %vm672 = vcmp.lt.s32.totalorder %v488, 0
    %vm673 = vcmp.lt.s32.totalorder %v495, 0
    %vm674 = vcmp.lt.s32.totalorder %v502, 0
    %vm675 = vcmp.lt.s32.totalorder %v509, 0
    %vm676 = vcmp.lt.s32.totalorder %v516, 0
    %vm677 = vcmp.lt.s32.totalorder %v523, 0
    %vm678 = vcmp.lt.s32.totalorder %v530, 0
    %vm679 = vcmp.lt.s32.totalorder %v537, 0
    %vm680 = vcmp.lt.s32.totalorder %v544, 0
    %vm681 = vcmp.lt.s32.totalorder %v551, 0
    %vm682 = vcmp.lt.s32.totalorder %v558, 0
    %vm683 = vcmp.lt.s32.totalorder %v565, 0
    %vm684 = vcmp.lt.s32.totalorder %v572, 0
    %vm685 = vcmp.lt.s32.totalorder %v579, 0
    %vm686 = vcmp.lt.s32.totalorder %v586, 0
    %vm687 = vcmp.lt.s32.totalorder %v593, 0
    %vm688 = vcmp.lt.s32.totalorder %v600, 0
    %vm689 = vcmp.lt.s32.totalorder %v607, 0
    %vm690 = vcmp.lt.s32.totalorder %v614, 0
    %vm691 = vcmp.lt.s32.totalorder %v621, 0
    %vm692 = vcmp.lt.s32.totalorder %v628, 0
    %vm693 = vmand %vm661, %vm629
    %vm694 = vmand %vm662, %vm630
    %vm695 = vmand %vm663, %vm631
    %vm696 = vmand %vm664, %vm632
    %vm697 = vmand %vm665, %vm633
    %vm698 = vmand %vm666, %vm634
    %vm699 = vmand %vm667, %vm635
    %vm700 = vmand %vm668, %vm636
    %vm701 = vmand %vm669, %vm637
    %vm702 = vmand %vm670, %vm638
    %vm703 = vmand %vm671, %vm639
    %vm704 = vmand %vm672, %vm640
    %vm705 = vmand %vm673, %vm641
    %vm706 = vmand %vm674, %vm642
    %vm707 = vmand %vm675, %vm643
    %vm708 = vmand %vm676, %vm644
    %vm709 = vmand %vm677, %vm645
    %vm710 = vmand %vm678, %vm646
    %vm711 = vmand %vm679, %vm647
    %vm712 = vmand %vm680, %vm648
    %vm713 = vmand %vm681, %vm649
    %vm714 = vmand %vm682, %vm650
    %vm715 = vmand %vm683, %vm651
    %vm716 = vmand %vm684, %vm652
    %vm717 = vmand %vm685, %vm653
    %vm718 = vmand %vm686, %vm654
    %vm719 = vmand %vm687, %vm655
    %vm720 = vmand %vm688, %vm656
    %vm721 = vmand %vm689, %vm657
    %vm722 = vmand %vm690, %vm658
    %vm723 = vmand %vm691, %vm659
    %vm724 = vmand %vm692, %vm660
    %v725 = vadd.s32 %v411, 32
    %v726 = vadd.s32 %v418, 32
    %v727 = vadd.s32 %v425, 32
    %v728 = vadd.s32 %v432, 32
    %v729 = vadd.s32 %v439, 32
    %v730 = vadd.s32 %v446, 32
    %v731 = vadd.s32 %v453, 32
    %v732 = vadd.s32 %v460, 32
    %v733 = vadd.s32 %v467, 32
    %v734 = vadd.s32 %v474, 32
    %v735 = vadd.s32 %v481, 32
    %v736 = vadd.s32 %v488, 32
    %v737 = vadd.s32 %v495, 32
    %v738 = vadd.s32 %v502, 32
    %v739 = vadd.s32 %v509, 32
    %v740 = vadd.s32 %v516, 32
    %v741 = vadd.s32 %v523, 32
    %v742 = vadd.s32 %v530, 32
    %v743 = vadd.s32 %v537, 32
    %v744 = vadd.s32 %v544, 32
    %v745 = vadd.s32 %v551, 32
    %v746 = vadd.s32 %v558, 32
    %v747 = vadd.s32 %v565, 32
    %v748 = vadd.s32 %v572, 32
    %v749 = vadd.s32 %v579, 32
    %v750 = vadd.s32 %v586, 32
    %v751 = vadd.s32 %v593, 32
    %v752 = vadd.s32 %v600, 32
    %v753 = vadd.s32 %v607, 32
    %v754 = vadd.s32 %v614, 32
    %v755 = vadd.s32 %v621, 32
    %v756 = vadd.s32 %v628, 32
    %v757 = vsel %vm693, %v725, %v411
    %v758 = vsel %vm694, %v726, %v418
    %v759 = vsel %vm695, %v727, %v425
    %v760 = vsel %vm696, %v728, %v432
    %v761 = vsel %vm697, %v729, %v439
    %v762 = vsel %vm698, %v730, %v446
    %v763 = vsel %vm699, %v731, %v453
    %v764 = vsel %vm700, %v732, %v460
    %v765 = vsel %vm701, %v733, %v467
    %v766 = vsel %vm702, %v734, %v474
    %v767 = vsel %vm703, %v735, %v481
    %v768 = vsel %vm704, %v736, %v488
    %v769 = vsel %vm705, %v737, %v495
    %v770 = vsel %vm706, %v738, %v502
    %v771 = vsel %vm707, %v739, %v509
    %v772 = vsel %vm708, %v740, %v516
    %v773 = vsel %vm709, %v741, %v523
    %v774 = vsel %vm710, %v742, %v530
    %v775 = vsel %vm711, %v743, %v537
    %v776 = vsel %vm712, %v744, %v544
    %v777 = vsel %vm713, %v745, %v551
    %v778 = vsel %vm714, %v746, %v558
    %v779 = vsel %vm715, %v747, %v565
    %v780 = vsel %vm716, %v748, %v572
    %v781 = vsel %vm717, %v749, %v579
    %v782 = vsel %vm718, %v750, %v586
    %v783 = vsel %vm719, %v751, %v593
    %v784 = vsel %vm720, %v752, %v600
    %v785 = vsel %vm721, %v753, %v607
    %v786 = vsel %vm722, %v754, %v614
    %v787 = vsel %vm723, %v755, %v621
    %v788 = vsel %vm724, %v756, %v628
    %v789 = vstv %s371
    %v790 = vadd.s32 %v789, %v757
    %v791 = vadd.s32 %v789, %v758
    %v792 = vadd.s32 %v789, %v759
    %v793 = vadd.s32 %v789, %v760
    %v794 = vadd.s32 %v789, %v761
    %v795 = vadd.s32 %v789, %v762
    %v796 = vadd.s32 %v789, %v763
    %v797 = vadd.s32 %v789, %v764
    %v798 = vadd.s32 %v789, %v765
    %v799 = vadd.s32 %v789, %v766
    %v800 = vadd.s32 %v789, %v767
    %v801 = vadd.s32 %v789, %v768
    %v802 = vadd.s32 %v789, %v769
    %v803 = vadd.s32 %v789, %v770
    %v804 = vadd.s32 %v789, %v771
    %v805 = vadd.s32 %v789, %v772
    %v806 = vadd.s32 %v789, %v773
    %v807 = vadd.s32 %v789, %v774
    %v808 = vadd.s32 %v789, %v775
    %v809 = vadd.s32 %v789, %v776
    %v810 = vadd.s32 %v789, %v777
    %v811 = vadd.s32 %v789, %v778
    %v812 = vadd.s32 %v789, %v779
    %v813 = vadd.s32 %v789, %v780
    %v814 = vadd.s32 %v789, %v781
    %v815 = vadd.s32 %v789, %v782
    %v816 = vadd.s32 %v789, %v783
    %v817 = vadd.s32 %v789, %v784
    %v818 = vadd.s32 %v789, %v785
    %v819 = vadd.s32 %v789, %v786
    %v820 = vadd.s32 %v789, %v787
    %v821 = vadd.s32 %v789, %v788
    %vm822 = vcmp.ne.s32.totalorder %v790, 0
    %vm823 = vcmp.ne.s32.totalorder %v791, 0
    %vm824 = vcmp.ne.s32.totalorder %v792, 0
    %vm825 = vcmp.ne.s32.totalorder %v793, 0
    %vm826 = vcmp.ne.s32.totalorder %v794, 0
    %vm827 = vcmp.ne.s32.totalorder %v795, 0
    %vm828 = vcmp.ne.s32.totalorder %v796, 0
    %vm829 = vcmp.ne.s32.totalorder %v797, 0
    %vm830 = vcmp.ne.s32.totalorder %v798, 0
    %vm831 = vcmp.ne.s32.totalorder %v799, 0
    %vm832 = vcmp.ne.s32.totalorder %v800, 0
    %vm833 = vcmp.ne.s32.totalorder %v801, 0
    %vm834 = vcmp.ne.s32.totalorder %v802, 0
    %vm835 = vcmp.ne.s32.totalorder %v803, 0
    %vm836 = vcmp.ne.s32.totalorder %v804, 0
    %vm837 = vcmp.ne.s32.totalorder %v805, 0
    %vm838 = vcmp.ne.s32.totalorder %v806, 0
    %vm839 = vcmp.ne.s32.totalorder %v807, 0
    %vm840 = vcmp.ne.s32.totalorder %v808, 0
    %vm841 = vcmp.ne.s32.totalorder %v809, 0
    %vm842 = vcmp.ne.s32.totalorder %v810, 0
    %vm843 = vcmp.ne.s32.totalorder %v811, 0
    %vm844 = vcmp.ne.s32.totalorder %v812, 0
    %vm845 = vcmp.ne.s32.totalorder %v813, 0
    %vm846 = vcmp.ne.s32.totalorder %v814, 0
    %vm847 = vcmp.ne.s32.totalorder %v815, 0
    %vm848 = vcmp.ne.s32.totalorder %v816, 0
    %vm849 = vcmp.ne.s32.totalorder %v817, 0
    %vm850 = vcmp.ne.s32.totalorder %v818, 0
    %vm851 = vcmp.ne.s32.totalorder %v819, 0
    %vm852 = vcmp.ne.s32.totalorder %v820, 0
    %vm853 = vcmp.ne.s32.totalorder %v821, 0
    %vm854 = vcmp.ne.s32.totalorder %v790, 15
    %vm855 = vcmp.ne.s32.totalorder %v791, 15
    %vm856 = vcmp.ne.s32.totalorder %v792, 15
    %vm857 = vcmp.ne.s32.totalorder %v793, 15
    %vm858 = vcmp.ne.s32.totalorder %v794, 15
    %vm859 = vcmp.ne.s32.totalorder %v795, 15
    %vm860 = vcmp.ne.s32.totalorder %v796, 15
    %vm861 = vcmp.ne.s32.totalorder %v797, 15
    %vm862 = vcmp.ne.s32.totalorder %v798, 15
    %vm863 = vcmp.ne.s32.totalorder %v799, 15
    %vm864 = vcmp.ne.s32.totalorder %v800, 15
    %vm865 = vcmp.ne.s32.totalorder %v801, 15
    %vm866 = vcmp.ne.s32.totalorder %v802, 15
    %vm867 = vcmp.ne.s32.totalorder %v803, 15
    %vm868 = vcmp.ne.s32.totalorder %v804, 15
    %vm869 = vcmp.ne.s32.totalorder %v805, 15
    %vm870 = vcmp.ne.s32.totalorder %v806, 15
    %vm871 = vcmp.ne.s32.totalorder %v807, 15
    %vm872 = vcmp.ne.s32.totalorder %v808, 15
    %vm873 = vcmp.ne.s32.totalorder %v809, 15
    %vm874 = vcmp.ne.s32.totalorder %v810, 15
    %vm875 = vcmp.ne.s32.totalorder %v811, 15
    %vm876 = vcmp.ne.s32.totalorder %v812, 15
    %vm877 = vcmp.ne.s32.totalorder %v813, 15
    %vm878 = vcmp.ne.s32.totalorder %v814, 15
    %vm879 = vcmp.ne.s32.totalorder %v815, 15
    %vm880 = vcmp.ne.s32.totalorder %v816, 15
    %vm881 = vcmp.ne.s32.totalorder %v817, 15
    %vm882 = vcmp.ne.s32.totalorder %v818, 15
    %vm883 = vcmp.ne.s32.totalorder %v819, 15
    %vm884 = vcmp.ne.s32.totalorder %v820, 15
    %vm885 = vcmp.ne.s32.totalorder %v821, 15
    %v886 = vrot.slane %v338, 7
    %v887 = vrot.slane %v339, 7
    %v888 = vrot.slane %v340, 7
    %v889 = vrot.slane %v341, 7
    %v890 = vrot.slane %v342, 7
    %v891 = vrot.slane %v343, 7
    %v892 = vrot.slane %v344, 7
    %v893 = vrot.slane %v345, 7
    %v894 = vrot.slane %v346, 7
    %v895 = vrot.slane %v347, 7
    %v896 = vrot.slane %v348, 7
    %v897 = vrot.slane %v349, 7
    %v898 = vrot.slane %v350, 7
    %v899 = vrot.slane %v351, 7
    %v900 = vrot.slane %v352, 7
    %v901 = vrot.slane %v353, 7
    %v902 = vrot.slane %v354, 7
    %v903 = vrot.slane %v355, 7
    %v904 = vrot.slane %v356, 7
    %v905 = vrot.slane %v357, 7
    %v906 = vrot.slane %v358, 7
    %v907 = vrot.slane %v359, 7
    %v908 = vrot.slane %v360, 7
    %v909 = vrot.slane %v361, 7
    %v910 = vrot.slane %v362, 7
    %v911 = vrot.slane %v363, 7
    %v912 = vrot.slane %v364, 7
    %v913 = vrot.slane %v365, 7
    %v914 = vrot.slane %v366, 7
    %v915 = vrot.slane %v367, 7
    %v916 = vrot.slane %v368, 7
    %v917 = vrot.slane %v369, 7
    %vm918 = vcmp.lt.s32.totalorder %v373, 1
    %v919 = vsel %vm918, %v916, %v917
    %v920 = vsel %vm918, %v915, %v916
    %v921 = vsel %vm918, %v914, %v915
    %v922 = vsel %vm918, %v913, %v914
    %v923 = vsel %vm918, %v912, %v913
    %v924 = vsel %vm918, %v911, %v912
    %v925 = vsel %vm918, %v910, %v911
    %v926 = vsel %vm918, %v909, %v910
    %v927 = vsel %vm918, %v908, %v909
    %v928 = vsel %vm918, %v907, %v908
    %v929 = vsel %vm918, %v906, %v907
    %v930 = vsel %vm918, %v905, %v906
    %v931 = vsel %vm918, %v904, %v905
    %v932 = vsel %vm918, %v903, %v904
    %v933 = vsel %vm918, %v902, %v903
    %v934 = vsel %vm918, %v901, %v902
    %v935 = vsel %vm918, %v900, %v901
    %v936 = vsel %vm918, %v899, %v900
    %v937 = vsel %vm918, %v898, %v899
    %v938 = vsel %vm918, %v897, %v898
    %v939 = vsel %vm918, %v896, %v897
    %v940 = vsel %vm918, %v895, %v896
    %v941 = vsel %vm918, %v894, %v895
    %v942 = vsel %vm918, %v893, %v894
    %v943 = vsel %vm918, %v892, %v893
    %v944 = vsel %vm918, %v891, %v892
    %v945 = vsel %vm918, %v890, %v891
    %v946 = vsel %vm918, %v889, %v890
    %v947 = vsel %vm918, %v888, %v889
    %v948 = vsel %vm918, %v887, %v888
    %v949 = vsel %vm918, %v886, %v887
    %v950 = vsel %vm918, %v917, %v886
    %v951 = vpack.c.bf16 %v950, %v950
    %v952 = vpack.c.bf16 %v949, %v949
    %v953 = vpack.c.bf16 %v948, %v948
    %v954 = vpack.c.bf16 %v947, %v947
    %v955 = vpack.c.bf16 %v946, %v946
    %v956 = vpack.c.bf16 %v945, %v945
    %v957 = vpack.c.bf16 %v944, %v944
    %v958 = vpack.c.bf16 %v943, %v943
    %v959 = vpack.c.bf16 %v942, %v942
    %v960 = vpack.c.bf16 %v941, %v941
    %v961 = vpack.c.bf16 %v940, %v940
    %v962 = vpack.c.bf16 %v939, %v939
    %v963 = vpack.c.bf16 %v938, %v938
    %v964 = vpack.c.bf16 %v937, %v937
    %v965 = vpack.c.bf16 %v936, %v936
    %v966 = vpack.c.bf16 %v935, %v935
    %v967 = vpack.c.bf16 %v934, %v934
    %v968 = vpack.c.bf16 %v933, %v933
    %v969 = vpack.c.bf16 %v932, %v932
    %v970 = vpack.c.bf16 %v931, %v931
    %v971 = vpack.c.bf16 %v930, %v930
    %v972 = vpack.c.bf16 %v929, %v929
    %v973 = vpack.c.bf16 %v928, %v928
    %v974 = vpack.c.bf16 %v927, %v927
    %v975 = vpack.c.bf16 %v926, %v926
    %v976 = vpack.c.bf16 %v925, %v925
    %v977 = vpack.c.bf16 %v924, %v924
    %v978 = vpack.c.bf16 %v923, %v923
    %v979 = vpack.c.bf16 %v922, %v922
    %v980 = vpack.c.bf16 %v921, %v921
    %v981 = vpack.c.bf16 %v920, %v920
    %v982 = vpack.c.bf16 %v919, %v919
    %v983 = vsel %vm822, 1, 0
    %v984 = vsel %vm823, 1, 0
    %v985 = vsel %vm824, 1, 0
    %v986 = vsel %vm825, 1, 0
    %v987 = vsel %vm826, 1, 0
    %v988 = vsel %vm827, 1, 0
    %v989 = vsel %vm828, 1, 0
    %v990 = vsel %vm829, 1, 0
    %v991 = vsel %vm830, 1, 0
    %v992 = vsel %vm831, 1, 0
    %v993 = vsel %vm832, 1, 0
    %v994 = vsel %vm833, 1, 0
    %v995 = vsel %vm834, 1, 0
    %v996 = vsel %vm835, 1, 0
    %v997 = vsel %vm836, 1, 0
    %v998 = vsel %vm837, 1, 0
    %v999 = vsel %vm838, 1, 0
    %v1000 = vsel %vm839, 1, 0
    %v1001 = vsel %vm840, 1, 0
    %v1002 = vsel %vm841, 1, 0
    %v1003 = vsel %vm842, 1, 0
    %v1004 = vsel %vm843, 1, 0
    %v1005 = vsel %vm844, 1, 0
    %v1006 = vsel %vm845, 1, 0
    %v1007 = vsel %vm846, 1, 0
    %v1008 = vsel %vm847, 1, 0
    %v1009 = vsel %vm848, 1, 0
    %v1010 = vsel %vm849, 1, 0
    %v1011 = vsel %vm850, 1, 0
    %v1012 = vsel %vm851, 1, 0
    %v1013 = vsel %vm852, 1, 0
    %v1014 = vsel %vm853, 1, 0
    %vm1015 = vcmp.eq.s32.totalorder %v983, 1
    %vm1016 = vcmp.eq.s32.totalorder %v984, 1
    %vm1017 = vcmp.eq.s32.totalorder %v985, 1
    %vm1018 = vcmp.eq.s32.totalorder %v986, 1
    %vm1019 = vcmp.eq.s32.totalorder %v987, 1
    %vm1020 = vcmp.eq.s32.totalorder %v988, 1
    %vm1021 = vcmp.eq.s32.totalorder %v989, 1
    %vm1022 = vcmp.eq.s32.totalorder %v990, 1
    %vm1023 = vcmp.eq.s32.totalorder %v991, 1
    %vm1024 = vcmp.eq.s32.totalorder %v992, 1
    %vm1025 = vcmp.eq.s32.totalorder %v993, 1
    %vm1026 = vcmp.eq.s32.totalorder %v994, 1
    %vm1027 = vcmp.eq.s32.totalorder %v995, 1
    %vm1028 = vcmp.eq.s32.totalorder %v996, 1
    %vm1029 = vcmp.eq.s32.totalorder %v997, 1
    %vm1030 = vcmp.eq.s32.totalorder %v998, 1
    %vm1031 = vcmp.eq.s32.totalorder %v999, 1
    %vm1032 = vcmp.eq.s32.totalorder %v1000, 1
    %vm1033 = vcmp.eq.s32.totalorder %v1001, 1
    %vm1034 = vcmp.eq.s32.totalorder %v1002, 1
    %vm1035 = vcmp.eq.s32.totalorder %v1003, 1
    %vm1036 = vcmp.eq.s32.totalorder %v1004, 1
    %vm1037 = vcmp.eq.s32.totalorder %v1005, 1
    %vm1038 = vcmp.eq.s32.totalorder %v1006, 1
    %vm1039 = vcmp.eq.s32.totalorder %v1007, 1
    %vm1040 = vcmp.eq.s32.totalorder %v1008, 1
    %vm1041 = vcmp.eq.s32.totalorder %v1009, 1
    %vm1042 = vcmp.eq.s32.totalorder %v1010, 1
    %vm1043 = vcmp.eq.s32.totalorder %v1011, 1
    %vm1044 = vcmp.eq.s32.totalorder %v1012, 1
    %vm1045 = vcmp.eq.s32.totalorder %v1013, 1
    %vm1046 = vcmp.eq.s32.totalorder %v1014, 1
    %vm1047 = vmpackc.low %vm1015, %vm1015
    %vm1048 = vmpackc.low %vm1016, %vm1016
    %vm1049 = vmpackc.low %vm1017, %vm1017
    %vm1050 = vmpackc.low %vm1018, %vm1018
    %vm1051 = vmpackc.low %vm1019, %vm1019
    %vm1052 = vmpackc.low %vm1020, %vm1020
    %vm1053 = vmpackc.low %vm1021, %vm1021
    %vm1054 = vmpackc.low %vm1022, %vm1022
    %vm1055 = vmpackc.low %vm1023, %vm1023
    %vm1056 = vmpackc.low %vm1024, %vm1024
    %vm1057 = vmpackc.low %vm1025, %vm1025
    %vm1058 = vmpackc.low %vm1026, %vm1026
    %vm1059 = vmpackc.low %vm1027, %vm1027
    %vm1060 = vmpackc.low %vm1028, %vm1028
    %vm1061 = vmpackc.low %vm1029, %vm1029
    %vm1062 = vmpackc.low %vm1030, %vm1030
    %vm1063 = vmpackc.low %vm1031, %vm1031
    %vm1064 = vmpackc.low %vm1032, %vm1032
    %vm1065 = vmpackc.low %vm1033, %vm1033
    %vm1066 = vmpackc.low %vm1034, %vm1034
    %vm1067 = vmpackc.low %vm1035, %vm1035
    %vm1068 = vmpackc.low %vm1036, %vm1036
    %vm1069 = vmpackc.low %vm1037, %vm1037
    %vm1070 = vmpackc.low %vm1038, %vm1038
    %vm1071 = vmpackc.low %vm1039, %vm1039
    %vm1072 = vmpackc.low %vm1040, %vm1040
    %vm1073 = vmpackc.low %vm1041, %vm1041
    %vm1074 = vmpackc.low %vm1042, %vm1042
    %vm1075 = vmpackc.low %vm1043, %vm1043
    %vm1076 = vmpackc.low %vm1044, %vm1044
    %vm1077 = vmpackc.low %vm1045, %vm1045
    %vm1078 = vmpackc.low %vm1046, %vm1046
    %v1079 = vsel %vm1047, %v951, 0
    %v1080 = vsel %vm1048, %v952, 0
    %v1081 = vsel %vm1049, %v953, 0
    %v1082 = vsel %vm1050, %v954, 0
    %v1083 = vsel %vm1051, %v955, 0
    %v1084 = vsel %vm1052, %v956, 0
    %v1085 = vsel %vm1053, %v957, 0
    %v1086 = vsel %vm1054, %v958, 0
    %v1087 = vsel %vm1055, %v959, 0
    %v1088 = vsel %vm1056, %v960, 0
    %v1089 = vsel %vm1057, %v961, 0
    %v1090 = vsel %vm1058, %v962, 0
    %v1091 = vsel %vm1059, %v963, 0
    %v1092 = vsel %vm1060, %v964, 0
    %v1093 = vsel %vm1061, %v965, 0
    %v1094 = vsel %vm1062, %v966, 0
    %v1095 = vsel %vm1063, %v967, 0
    %v1096 = vsel %vm1064, %v968, 0
    %v1097 = vsel %vm1065, %v969, 0
    %v1098 = vsel %vm1066, %v970, 0
    %v1099 = vsel %vm1067, %v971, 0
    %v1100 = vsel %vm1068, %v972, 0
    %v1101 = vsel %vm1069, %v973, 0
    %v1102 = vsel %vm1070, %v974, 0
    %v1103 = vsel %vm1071, %v975, 0
    %v1104 = vsel %vm1072, %v976, 0
    %v1105 = vsel %vm1073, %v977, 0
    %v1106 = vsel %vm1074, %v978, 0
    %v1107 = vsel %vm1075, %v979, 0
    %v1108 = vsel %vm1076, %v980, 0
    %v1109 = vsel %vm1077, %v981, 0
    %v1110 = vsel %vm1078, %v982, 0
    %v1111 = vrot.slane %v338, 1
    %v1112 = vrot.slane %v339, 1
    %v1113 = vrot.slane %v340, 1
    %v1114 = vrot.slane %v341, 1
    %v1115 = vrot.slane %v342, 1
    %v1116 = vrot.slane %v343, 1
    %v1117 = vrot.slane %v344, 1
    %v1118 = vrot.slane %v345, 1
    %v1119 = vrot.slane %v346, 1
    %v1120 = vrot.slane %v347, 1
    %v1121 = vrot.slane %v348, 1
    %v1122 = vrot.slane %v349, 1
    %v1123 = vrot.slane %v350, 1
    %v1124 = vrot.slane %v351, 1
    %v1125 = vrot.slane %v352, 1
    %v1126 = vrot.slane %v353, 1
    %v1127 = vrot.slane %v354, 1
    %v1128 = vrot.slane %v355, 1
    %v1129 = vrot.slane %v356, 1
    %v1130 = vrot.slane %v357, 1
    %v1131 = vrot.slane %v358, 1
    %v1132 = vrot.slane %v359, 1
    %v1133 = vrot.slane %v360, 1
    %v1134 = vrot.slane %v361, 1
    %v1135 = vrot.slane %v362, 1
    %v1136 = vrot.slane %v363, 1
    %v1137 = vrot.slane %v364, 1
    %v1138 = vrot.slane %v365, 1
    %v1139 = vrot.slane %v366, 1
    %v1140 = vrot.slane %v367, 1
    %v1141 = vrot.slane %v368, 1
    %v1142 = vrot.slane %v369, 1
    %vm1143 = vcmp.lt.s32.totalorder %v373, 7
    %v1144 = vsel %vm1143, %v1141, %v1142
    %v1145 = vsel %vm1143, %v1140, %v1141
    %v1146 = vsel %vm1143, %v1139, %v1140
    %v1147 = vsel %vm1143, %v1138, %v1139
    %v1148 = vsel %vm1143, %v1137, %v1138
    %v1149 = vsel %vm1143, %v1136, %v1137
    %v1150 = vsel %vm1143, %v1135, %v1136
    %v1151 = vsel %vm1143, %v1134, %v1135
    %v1152 = vsel %vm1143, %v1133, %v1134
    %v1153 = vsel %vm1143, %v1132, %v1133
    %v1154 = vsel %vm1143, %v1131, %v1132
    %v1155 = vsel %vm1143, %v1130, %v1131
    %v1156 = vsel %vm1143, %v1129, %v1130
    %v1157 = vsel %vm1143, %v1128, %v1129
    %v1158 = vsel %vm1143, %v1127, %v1128
    %v1159 = vsel %vm1143, %v1126, %v1127
    %v1160 = vsel %vm1143, %v1125, %v1126
    %v1161 = vsel %vm1143, %v1124, %v1125
    %v1162 = vsel %vm1143, %v1123, %v1124
    %v1163 = vsel %vm1143, %v1122, %v1123
    %v1164 = vsel %vm1143, %v1121, %v1122
    %v1165 = vsel %vm1143, %v1120, %v1121
    %v1166 = vsel %vm1143, %v1119, %v1120
    %v1167 = vsel %vm1143, %v1118, %v1119
    %v1168 = vsel %vm1143, %v1117, %v1118
    %v1169 = vsel %vm1143, %v1116, %v1117
    %v1170 = vsel %vm1143, %v1115, %v1116
    %v1171 = vsel %vm1143, %v1114, %v1115
    %v1172 = vsel %vm1143, %v1113, %v1114
    %v1173 = vsel %vm1143, %v1112, %v1113
    %v1174 = vsel %vm1143, %v1111, %v1112
    %v1175 = vsel %vm1143, %v1142, %v1111
    %v1176 = vpack.c.bf16 %v1174, %v1174
    %v1177 = vpack.c.bf16 %v1173, %v1173
    %v1178 = vpack.c.bf16 %v1172, %v1172
    %v1179 = vpack.c.bf16 %v1171, %v1171
    %v1180 = vpack.c.bf16 %v1170, %v1170
    %v1181 = vpack.c.bf16 %v1169, %v1169
    %v1182 = vpack.c.bf16 %v1168, %v1168
    %v1183 = vpack.c.bf16 %v1167, %v1167
    %v1184 = vpack.c.bf16 %v1166, %v1166
    %v1185 = vpack.c.bf16 %v1165, %v1165
    %v1186 = vpack.c.bf16 %v1164, %v1164
    %v1187 = vpack.c.bf16 %v1163, %v1163
    %v1188 = vpack.c.bf16 %v1162, %v1162
    %v1189 = vpack.c.bf16 %v1161, %v1161
    %v1190 = vpack.c.bf16 %v1160, %v1160
    %v1191 = vpack.c.bf16 %v1159, %v1159
    %v1192 = vpack.c.bf16 %v1158, %v1158
    %v1193 = vpack.c.bf16 %v1157, %v1157
    %v1194 = vpack.c.bf16 %v1156, %v1156
    %v1195 = vpack.c.bf16 %v1155, %v1155
    %v1196 = vpack.c.bf16 %v1154, %v1154
    %v1197 = vpack.c.bf16 %v1153, %v1153
    %v1198 = vpack.c.bf16 %v1152, %v1152
    %v1199 = vpack.c.bf16 %v1151, %v1151
    %v1200 = vpack.c.bf16 %v1150, %v1150
    %v1201 = vpack.c.bf16 %v1149, %v1149
    %v1202 = vpack.c.bf16 %v1148, %v1148
    %v1203 = vpack.c.bf16 %v1147, %v1147
    %v1204 = vpack.c.bf16 %v1146, %v1146
    %v1205 = vpack.c.bf16 %v1145, %v1145
    %v1206 = vpack.c.bf16 %v1144, %v1144
    %v1207 = vpack.c.bf16 %v1175, %v1175
    %v1208 = vsel %vm854, 1, 0
    %v1209 = vsel %vm855, 1, 0
    %v1210 = vsel %vm856, 1, 0
    %v1211 = vsel %vm857, 1, 0
    %v1212 = vsel %vm858, 1, 0
    %v1213 = vsel %vm859, 1, 0
    %v1214 = vsel %vm860, 1, 0
    %v1215 = vsel %vm861, 1, 0
    %v1216 = vsel %vm862, 1, 0
    %v1217 = vsel %vm863, 1, 0
    %v1218 = vsel %vm864, 1, 0
    %v1219 = vsel %vm865, 1, 0
    %v1220 = vsel %vm866, 1, 0
    %v1221 = vsel %vm867, 1, 0
    %v1222 = vsel %vm868, 1, 0
    %v1223 = vsel %vm869, 1, 0
    %v1224 = vsel %vm870, 1, 0
    %v1225 = vsel %vm871, 1, 0
    %v1226 = vsel %vm872, 1, 0
    %v1227 = vsel %vm873, 1, 0
    %v1228 = vsel %vm874, 1, 0
    %v1229 = vsel %vm875, 1, 0
    %v1230 = vsel %vm876, 1, 0
    %v1231 = vsel %vm877, 1, 0
    %v1232 = vsel %vm878, 1, 0
    %v1233 = vsel %vm879, 1, 0
    %v1234 = vsel %vm880, 1, 0
    %v1235 = vsel %vm881, 1, 0
    %v1236 = vsel %vm882, 1, 0
    %v1237 = vsel %vm883, 1, 0
    %v1238 = vsel %vm884, 1, 0
    %v1239 = vsel %vm885, 1, 0
    %vm1240 = vcmp.eq.s32.totalorder %v1208, 1
    %vm1241 = vcmp.eq.s32.totalorder %v1209, 1
    %vm1242 = vcmp.eq.s32.totalorder %v1210, 1
    %vm1243 = vcmp.eq.s32.totalorder %v1211, 1
    %vm1244 = vcmp.eq.s32.totalorder %v1212, 1
    %vm1245 = vcmp.eq.s32.totalorder %v1213, 1
    %vm1246 = vcmp.eq.s32.totalorder %v1214, 1
    %vm1247 = vcmp.eq.s32.totalorder %v1215, 1
    %vm1248 = vcmp.eq.s32.totalorder %v1216, 1
    %vm1249 = vcmp.eq.s32.totalorder %v1217, 1
    %vm1250 = vcmp.eq.s32.totalorder %v1218, 1
    %vm1251 = vcmp.eq.s32.totalorder %v1219, 1
    %vm1252 = vcmp.eq.s32.totalorder %v1220, 1
    %vm1253 = vcmp.eq.s32.totalorder %v1221, 1
    %vm1254 = vcmp.eq.s32.totalorder %v1222, 1
    %vm1255 = vcmp.eq.s32.totalorder %v1223, 1
    %vm1256 = vcmp.eq.s32.totalorder %v1224, 1
    %vm1257 = vcmp.eq.s32.totalorder %v1225, 1
    %vm1258 = vcmp.eq.s32.totalorder %v1226, 1
    %vm1259 = vcmp.eq.s32.totalorder %v1227, 1
    %vm1260 = vcmp.eq.s32.totalorder %v1228, 1
    %vm1261 = vcmp.eq.s32.totalorder %v1229, 1
    %vm1262 = vcmp.eq.s32.totalorder %v1230, 1
    %vm1263 = vcmp.eq.s32.totalorder %v1231, 1
    %vm1264 = vcmp.eq.s32.totalorder %v1232, 1
    %vm1265 = vcmp.eq.s32.totalorder %v1233, 1
    %vm1266 = vcmp.eq.s32.totalorder %v1234, 1
    %vm1267 = vcmp.eq.s32.totalorder %v1235, 1
    %vm1268 = vcmp.eq.s32.totalorder %v1236, 1
    %vm1269 = vcmp.eq.s32.totalorder %v1237, 1
    %vm1270 = vcmp.eq.s32.totalorder %v1238, 1
    %vm1271 = vcmp.eq.s32.totalorder %v1239, 1
    %vm1272 = vmpackc.low %vm1240, %vm1240
    %vm1273 = vmpackc.low %vm1241, %vm1241
    %vm1274 = vmpackc.low %vm1242, %vm1242
    %vm1275 = vmpackc.low %vm1243, %vm1243
    %vm1276 = vmpackc.low %vm1244, %vm1244
    %vm1277 = vmpackc.low %vm1245, %vm1245
    %vm1278 = vmpackc.low %vm1246, %vm1246
    %vm1279 = vmpackc.low %vm1247, %vm1247
    %vm1280 = vmpackc.low %vm1248, %vm1248
    %vm1281 = vmpackc.low %vm1249, %vm1249
    %vm1282 = vmpackc.low %vm1250, %vm1250
    %vm1283 = vmpackc.low %vm1251, %vm1251
    %vm1284 = vmpackc.low %vm1252, %vm1252
    %vm1285 = vmpackc.low %vm1253, %vm1253
    %vm1286 = vmpackc.low %vm1254, %vm1254
    %vm1287 = vmpackc.low %vm1255, %vm1255
    %vm1288 = vmpackc.low %vm1256, %vm1256
    %vm1289 = vmpackc.low %vm1257, %vm1257
    %vm1290 = vmpackc.low %vm1258, %vm1258
    %vm1291 = vmpackc.low %vm1259, %vm1259
    %vm1292 = vmpackc.low %vm1260, %vm1260
    %vm1293 = vmpackc.low %vm1261, %vm1261
    %vm1294 = vmpackc.low %vm1262, %vm1262
    %vm1295 = vmpackc.low %vm1263, %vm1263
    %vm1296 = vmpackc.low %vm1264, %vm1264
    %vm1297 = vmpackc.low %vm1265, %vm1265
    %vm1298 = vmpackc.low %vm1266, %vm1266
    %vm1299 = vmpackc.low %vm1267, %vm1267
    %vm1300 = vmpackc.low %vm1268, %vm1268
    %vm1301 = vmpackc.low %vm1269, %vm1269
    %vm1302 = vmpackc.low %vm1270, %vm1270
    %vm1303 = vmpackc.low %vm1271, %vm1271
    %v1304 = vsel %vm1272, %v1176, 0
    %v1305 = vsel %vm1273, %v1177, 0
    %v1306 = vsel %vm1274, %v1178, 0
    %v1307 = vsel %vm1275, %v1179, 0
    %v1308 = vsel %vm1276, %v1180, 0
    %v1309 = vsel %vm1277, %v1181, 0
    %v1310 = vsel %vm1278, %v1182, 0
    %v1311 = vsel %vm1279, %v1183, 0
    %v1312 = vsel %vm1280, %v1184, 0
    %v1313 = vsel %vm1281, %v1185, 0
    %v1314 = vsel %vm1282, %v1186, 0
    %v1315 = vsel %vm1283, %v1187, 0
    %v1316 = vsel %vm1284, %v1188, 0
    %v1317 = vsel %vm1285, %v1189, 0
    %v1318 = vsel %vm1286, %v1190, 0
    %v1319 = vsel %vm1287, %v1191, 0
    %v1320 = vsel %vm1288, %v1192, 0
    %v1321 = vsel %vm1289, %v1193, 0
    %v1322 = vsel %vm1290, %v1194, 0
    %v1323 = vsel %vm1291, %v1195, 0
    %v1324 = vsel %vm1292, %v1196, 0
    %v1325 = vsel %vm1293, %v1197, 0
    %v1326 = vsel %vm1294, %v1198, 0
    %v1327 = vsel %vm1295, %v1199, 0
    %v1328 = vsel %vm1296, %v1200, 0
    %v1329 = vsel %vm1297, %v1201, 0
    %v1330 = vsel %vm1298, %v1202, 0
    %v1331 = vsel %vm1299, %v1203, 0
    %v1332 = vsel %vm1300, %v1204, 0
    %v1333 = vsel %vm1301, %v1205, 0
    %v1334 = vsel %vm1302, %v1206, 0
    %v1335 = vsel %vm1303, %v1207, 0
    %v1368 = vunpack.c.l.b16 %v1079
    %v1369 = vunpack.c.l.b16 %v1080
    %v1370 = vunpack.c.l.b16 %v1081
    %v1371 = vunpack.c.l.b16 %v1082
    %v1372 = vunpack.c.l.b16 %v1083
    %v1373 = vunpack.c.l.b16 %v1084
    %v1374 = vunpack.c.l.b16 %v1085
    %v1375 = vunpack.c.l.b16 %v1086
    %v1376 = vunpack.c.l.b16 %v1087
    %v1377 = vunpack.c.l.b16 %v1088
    %v1378 = vunpack.c.l.b16 %v1089
    %v1379 = vunpack.c.l.b16 %v1090
    %v1380 = vunpack.c.l.b16 %v1091
    %v1381 = vunpack.c.l.b16 %v1092
    %v1382 = vunpack.c.l.b16 %v1093
    %v1383 = vunpack.c.l.b16 %v1094
    %v1384 = vunpack.c.l.b16 %v1095
    %v1385 = vunpack.c.l.b16 %v1096
    %v1386 = vunpack.c.l.b16 %v1097
    %v1387 = vunpack.c.l.b16 %v1098
    %v1388 = vunpack.c.l.b16 %v1099
    %v1389 = vunpack.c.l.b16 %v1100
    %v1390 = vunpack.c.l.b16 %v1101
    %v1391 = vunpack.c.l.b16 %v1102
    %v1392 = vunpack.c.l.b16 %v1103
    %v1393 = vunpack.c.l.b16 %v1104
    %v1394 = vunpack.c.l.b16 %v1105
    %v1395 = vunpack.c.l.b16 %v1106
    %v1396 = vunpack.c.l.b16 %v1107
    %v1397 = vunpack.c.l.b16 %v1108
    %v1398 = vunpack.c.l.b16 %v1109
    %v1399 = vunpack.c.l.b16 %v1110
    %v1400 = vpack.c.b16 %v1369, %v1368
    %v1401 = vpack.c.b16 %v1371, %v1370
    %v1402 = vpack.c.b16 %v1373, %v1372
    %v1403 = vpack.c.b16 %v1375, %v1374
    %v1404 = vpack.c.b16 %v1377, %v1376
    %v1405 = vpack.c.b16 %v1379, %v1378
    %v1406 = vpack.c.b16 %v1381, %v1380
    %v1407 = vpack.c.b16 %v1383, %v1382
    %v1408 = vpack.c.b16 %v1385, %v1384
    %v1409 = vpack.c.b16 %v1387, %v1386
    %v1410 = vpack.c.b16 %v1389, %v1388
    %v1411 = vpack.c.b16 %v1391, %v1390
    %v1412 = vpack.c.b16 %v1393, %v1392
    %v1413 = vpack.c.b16 %v1395, %v1394
    %v1414 = vpack.c.b16 %v1397, %v1396
    %v1415 = vpack.c.b16 %v1399, %v1398
    %1432 = vrot.lane.b32.xlu0 %v276, 40
    %v1433 = vpop.permute.xlu0 %1432
    %1434 = vrot.lane.b32.xlu0 %v308, 40
    %v1435 = vpop.permute.xlu0 %1434
    %1436 = vrot.lane.b32.xlu0 %v280, 40
    %v1437 = vpop.permute.xlu0 %1436
    %1438 = vrot.lane.b32.xlu0 %v312, 40
    %v1439 = vpop.permute.xlu0 %1438
    %1440 = vrot.lane.b32.xlu0 %v284, 40
    %v1441 = vpop.permute.xlu0 %1440
    %1442 = vrot.lane.b32.xlu0 %v316, 40
    %v1443 = vpop.permute.xlu0 %1442
    %1444 = vrot.lane.b32.xlu0 %v288, 40
    %v1445 = vpop.permute.xlu0 %1444
    %1446 = vrot.lane.b32.xlu0 %v320, 40
    %v1447 = vpop.permute.xlu0 %1446
    %1448 = vrot.lane.b32.xlu0 %v292, 40
    %v1449 = vpop.permute.xlu0 %1448
    %1450 = vrot.lane.b32.xlu0 %v324, 40
    %v1451 = vpop.permute.xlu0 %1450
    %1452 = vrot.lane.b32.xlu0 %v296, 40
    %v1453 = vpop.permute.xlu0 %1452
    %1454 = vrot.lane.b32.xlu0 %v328, 40
    %v1455 = vpop.permute.xlu0 %1454
    %1456 = vrot.lane.b32.xlu0 %v300, 40
    %v1457 = vpop.permute.xlu0 %1456
    %1458 = vrot.lane.b32.xlu0 %v332, 40
    %v1459 = vpop.permute.xlu0 %1458
    %1460 = vrot.lane.b32.xlu0 %v304, 40
    %v1461 = vpop.permute.xlu0 %1460
    %1462 = vrot.lane.b32.xlu0 %v336, 40
    %v1463 = vpop.permute.xlu0 %1462
    %v1496 = vunpack.c.l.b16 %v1304
    %v1497 = vunpack.c.l.b16 %v1305
    %v1498 = vunpack.c.l.b16 %v1306
    %v1499 = vunpack.c.l.b16 %v1307
    %v1500 = vunpack.c.l.b16 %v1308
    %v1501 = vunpack.c.l.b16 %v1309
    %v1502 = vunpack.c.l.b16 %v1310
    %v1503 = vunpack.c.l.b16 %v1311
    %v1504 = vunpack.c.l.b16 %v1312
    %v1505 = vunpack.c.l.b16 %v1313
    %v1506 = vunpack.c.l.b16 %v1314
    %v1507 = vunpack.c.l.b16 %v1315
    %v1508 = vunpack.c.l.b16 %v1316
    %v1509 = vunpack.c.l.b16 %v1317
    %v1510 = vunpack.c.l.b16 %v1318
    %v1511 = vunpack.c.l.b16 %v1319
    %v1512 = vunpack.c.l.b16 %v1320
    %v1513 = vunpack.c.l.b16 %v1321
    %v1514 = vunpack.c.l.b16 %v1322
    %v1515 = vunpack.c.l.b16 %v1323
    %v1516 = vunpack.c.l.b16 %v1324
    %v1517 = vunpack.c.l.b16 %v1325
    %v1518 = vunpack.c.l.b16 %v1326
    %v1519 = vunpack.c.l.b16 %v1327
    %v1520 = vunpack.c.l.b16 %v1328
    %v1521 = vunpack.c.l.b16 %v1329
    %v1522 = vunpack.c.l.b16 %v1330
    %v1523 = vunpack.c.l.b16 %v1331
    %v1524 = vunpack.c.l.b16 %v1332
    %v1525 = vunpack.c.l.b16 %v1333
    %v1526 = vunpack.c.l.b16 %v1334
    %v1527 = vunpack.c.l.b16 %v1335
    %v1528 = vpack.c.b16 %v1497, %v1496
    %v1529 = vpack.c.b16 %v1499, %v1498
    %v1530 = vpack.c.b16 %v1501, %v1500
    %v1531 = vpack.c.b16 %v1503, %v1502
    %v1532 = vpack.c.b16 %v1505, %v1504
    %v1533 = vpack.c.b16 %v1507, %v1506
    %v1534 = vpack.c.b16 %v1509, %v1508
    %v1535 = vpack.c.b16 %v1511, %v1510
    %v1536 = vpack.c.b16 %v1513, %v1512
    %v1537 = vpack.c.b16 %v1515, %v1514
    %v1538 = vpack.c.b16 %v1517, %v1516
    %v1539 = vpack.c.b16 %v1519, %v1518
    %v1540 = vpack.c.b16 %v1521, %v1520
    %v1541 = vpack.c.b16 %v1523, %v1522
    %v1542 = vpack.c.b16 %v1525, %v1524
    %v1543 = vpack.c.b16 %v1527, %v1526
    %1544 = vrot.lane.b32.xlu0 %v1528, 80
    %v1545 = vpop.permute.xlu0 %1544
    %1546 = vrot.lane.b32.xlu0 %v1529, 80
    %v1547 = vpop.permute.xlu0 %1546
    %1548 = vrot.lane.b32.xlu0 %v1530, 80
    %v1549 = vpop.permute.xlu0 %1548
    %1550 = vrot.lane.b32.xlu0 %v1531, 80
    %v1551 = vpop.permute.xlu0 %1550
    %1552 = vrot.lane.b32.xlu0 %v1532, 80
    %v1553 = vpop.permute.xlu0 %1552
    %1554 = vrot.lane.b32.xlu0 %v1533, 80
    %v1555 = vpop.permute.xlu0 %1554
    %1556 = vrot.lane.b32.xlu0 %v1534, 80
    %v1557 = vpop.permute.xlu0 %1556
    %1558 = vrot.lane.b32.xlu0 %v1535, 80
    %v1559 = vpop.permute.xlu0 %1558
    %1560 = vrot.lane.b32.xlu0 %v1536, 80
    %v1561 = vpop.permute.xlu0 %1560
    %1562 = vrot.lane.b32.xlu0 %v1537, 80
    %v1563 = vpop.permute.xlu0 %1562
    %1564 = vrot.lane.b32.xlu0 %v1538, 80
    %v1565 = vpop.permute.xlu0 %1564
    %1566 = vrot.lane.b32.xlu0 %v1539, 80
    %v1567 = vpop.permute.xlu0 %1566
    %1568 = vrot.lane.b32.xlu0 %v1540, 80
    %v1569 = vpop.permute.xlu0 %1568
    %1570 = vrot.lane.b32.xlu0 %v1541, 80
    %v1571 = vpop.permute.xlu0 %1570
    %1572 = vrot.lane.b32.xlu0 %v1542, 80
    %v1573 = vpop.permute.xlu0 %1572
    %1574 = vrot.lane.b32.xlu0 %v1543, 80
    %v1575 = vpop.permute.xlu0 %1574
    %vm1576 = vcmask 326656
    %v1579 = vsel %vm1576, %v1400, %v1433
    %v1582 = vsel %vm1576, %v1401, %v1435
    %v1585 = vsel %vm1576, %v1402, %v1437
    %v1588 = vsel %vm1576, %v1403, %v1439
    %v1591 = vsel %vm1576, %v1404, %v1441
    %v1594 = vsel %vm1576, %v1405, %v1443
    %v1597 = vsel %vm1576, %v1406, %v1445
    %v1600 = vsel %vm1576, %v1407, %v1447
    %v1603 = vsel %vm1576, %v1408, %v1449
    %v1606 = vsel %vm1576, %v1409, %v1451
    %v1609 = vsel %vm1576, %v1410, %v1453
    %v1612 = vsel %vm1576, %v1411, %v1455
    %v1615 = vsel %vm1576, %v1412, %v1457
    %v1618 = vsel %vm1576, %v1413, %v1459
    %v1621 = vsel %vm1576, %v1414, %v1461
    %v1624 = vsel %vm1576, %v1415, %v1463
    %vm1625 = vcmask 654336
    %v1627 = vsel %vm1625, %v1579, %v1545
    %v1629 = vsel %vm1625, %v1582, %v1547
    %v1631 = vsel %vm1625, %v1585, %v1549
    %v1633 = vsel %vm1625, %v1588, %v1551
    %v1635 = vsel %vm1625, %v1591, %v1553
    %v1637 = vsel %vm1625, %v1594, %v1555
    %v1639 = vsel %vm1625, %v1597, %v1557
    %v1641 = vsel %vm1625, %v1600, %v1559
    %v1643 = vsel %vm1625, %v1603, %v1561
    %v1645 = vsel %vm1625, %v1606, %v1563
    %v1647 = vsel %vm1625, %v1609, %v1565
    %v1649 = vsel %vm1625, %v1612, %v1567
    %v1651 = vsel %vm1625, %v1615, %v1569
    %v1653 = vsel %vm1625, %v1618, %v1571
    %v1655 = vsel %vm1625, %v1621, %v1573
    %v1657 = vsel %vm1625, %v1624, %v1575
    %vm1658 = vcmask 982016
    %v1660 = vsel %vm1658, %v1627, 0
    %v1662 = vsel %vm1658, %v1629, 0
    %v1664 = vsel %vm1658, %v1631, 0
    %v1666 = vsel %vm1658, %v1633, 0
    %v1668 = vsel %vm1658, %v1635, 0
    %v1670 = vsel %vm1658, %v1637, 0
    %v1672 = vsel %vm1658, %v1639, 0
    %v1674 = vsel %vm1658, %v1641, 0
    %v1676 = vsel %vm1658, %v1643, 0
    %v1678 = vsel %vm1658, %v1645, 0
    %v1680 = vsel %vm1658, %v1647, 0
    %v1682 = vsel %vm1658, %v1649, 0
    %v1684 = vsel %vm1658, %v1651, 0
    %v1686 = vsel %vm1658, %v1653, 0
    %v1688 = vsel %vm1658, %v1655, 0
    %v1690 = vsel %vm1658, %v1657, 0
    %v1692 = vld [vmem:[#allocation9] sm:$0xf]
    %v1693 = vld [vmem:[#allocation9 + $0x4] sm:$0xf]
    %v1694 = vld [vmem:[#allocation9 + $0x8] sm:$0xf]
    %v1695 = vld [vmem:[#allocation9 + $0xc] sm:$0xf]
    %v1696 = vld [vmem:[#allocation9 + $0x10] sm:$0xf]
    %v1697 = vld [vmem:[#allocation9 + $0x14] sm:$0xf]
    %v1698 = vld [vmem:[#allocation9 + $0x18] sm:$0xf]
    %v1699 = vld [vmem:[#allocation9 + $0x1c] sm:$0xf]
    %v1700 = vld [vmem:[#allocation9 + $0x20] sm:$0xf]
    %v1701 = vld [vmem:[#allocation9 + $0x24] sm:$0xf]
    %v1702 = vld [vmem:[#allocation9 + $0x28] sm:$0xf]
    %v1703 = vld [vmem:[#allocation9 + $0x2c] sm:$0xf]
    %v1704 = vld [vmem:[#allocation9 + $0x30] sm:$0xf]
    %v1705 = vld [vmem:[#allocation9 + $0x34] sm:$0xf]
    %v1706 = vld [vmem:[#allocation9 + $0x38] sm:$0xf]
    %v1707 = vld [vmem:[#allocation9 + $0x3c] sm:$0xf]
    %v1708 = vld [vmem:[%s4] sm:$0x1]
    %v1710 = vperm.slane %v1708, 0
    %v1728 = vunpack.c.l.b16 %v1692
    %v1729 = vunpack.c.l.b16 %v1693
    %v1730 = vunpack.c.l.b16 %v1694
    %v1731 = vunpack.c.l.b16 %v1695
    %v1732 = vunpack.c.l.b16 %v1696
    %v1733 = vunpack.c.l.b16 %v1697
    %v1734 = vunpack.c.l.b16 %v1698
    %v1735 = vunpack.c.l.b16 %v1699
    %v1736 = vunpack.c.l.b16 %v1700
    %v1737 = vunpack.c.l.b16 %v1701
    %v1738 = vunpack.c.l.b16 %v1702
    %v1739 = vunpack.c.l.b16 %v1703
    %v1740 = vunpack.c.l.b16 %v1704
    %v1741 = vunpack.c.l.b16 %v1705
    %v1742 = vunpack.c.l.b16 %v1706
    %v1743 = vunpack.c.l.b16 %v1707
    %v1744 = vpack.c.b16 %v1729, %v1728
    %v1745 = vpack.c.b16 %v1731, %v1730
    %v1746 = vpack.c.b16 %v1733, %v1732
    %v1747 = vpack.c.b16 %v1735, %v1734
    %v1748 = vpack.c.b16 %v1737, %v1736
    %v1749 = vpack.c.b16 %v1739, %v1738
    %v1750 = vpack.c.b16 %v1741, %v1740
    %v1751 = vpack.c.b16 %v1743, %v1742
    %1760 = vmatpush.bf16.msra.mxu0 %v1751
    %1761 = vmatpush.bf16.msra.mxu0 %v1750
    %1762 = vmatpush.bf16.msra.mxu0 %v1749
    %1763 = vmatpush.bf16.msra.mxu0 %v1748
    %1764 = vmatpush.bf16.msra.mxu0 %v1747
    %1765 = vmatpush.bf16.msra.mxu0 %v1746
    %1766 = vmatpush.bf16.msra.mxu0 %v1745
    %1767 = vmatpush.bf16.msra.mxu0 %v1744
    %1768 = vmatmul.bf16.gmra.mxu0 %v1660
    %v1769 = vpop.f32.mrf.mxu0
    %v1770 = vadd.f32 %v1710, %v1769
    %v1771 = vpop.f32.mrf.mxu0
    %v1772 = vadd.f32 %v1710, %v1771
    %1773 = vmatmul.bf16.gmra.mxu0 %v1662
    %v1774 = vpop.f32.mrf.mxu0
    %v1775 = vadd.f32 %v1710, %v1774
    %v1776 = vpop.f32.mrf.mxu0
    %v1777 = vadd.f32 %v1710, %v1776
    %1778 = vmatmul.bf16.gmra.mxu0 %v1664
    %v1779 = vpop.f32.mrf.mxu0
    %v1780 = vadd.f32 %v1710, %v1779
    %v1781 = vpop.f32.mrf.mxu0
    %v1782 = vadd.f32 %v1710, %v1781
    %1783 = vmatmul.bf16.gmra.mxu0 %v1666
    %v1784 = vpop.f32.mrf.mxu0
    %v1785 = vadd.f32 %v1710, %v1784
    %v1786 = vpop.f32.mrf.mxu0
    %v1787 = vadd.f32 %v1710, %v1786
    %1788 = vmatmul.bf16.gmra.mxu0 %v1668
    %v1789 = vpop.f32.mrf.mxu0
    %v1790 = vadd.f32 %v1710, %v1789
    %v1791 = vpop.f32.mrf.mxu0
    %v1792 = vadd.f32 %v1710, %v1791
    %1793 = vmatmul.bf16.gmra.mxu0 %v1670
    %v1794 = vpop.f32.mrf.mxu0
    %v1795 = vadd.f32 %v1710, %v1794
    %v1796 = vpop.f32.mrf.mxu0
    %v1797 = vadd.f32 %v1710, %v1796
    %1798 = vmatmul.bf16.gmra.mxu0 %v1672
    %v1799 = vpop.f32.mrf.mxu0
    %v1800 = vadd.f32 %v1710, %v1799
    %v1801 = vpop.f32.mrf.mxu0
    %v1802 = vadd.f32 %v1710, %v1801
    %1803 = vmatmul.bf16.gmra.mxu0 %v1674
    %v1804 = vpop.f32.mrf.mxu0
    %v1805 = vadd.f32 %v1710, %v1804
    %v1806 = vpop.f32.mrf.mxu0
    %v1807 = vadd.f32 %v1710, %v1806
    %1808 = vmatmul.bf16.gmra.mxu0 %v1676
    %v1809 = vpop.f32.mrf.mxu0
    %v1810 = vadd.f32 %v1710, %v1809
    %v1811 = vpop.f32.mrf.mxu0
    %v1812 = vadd.f32 %v1710, %v1811
    %1813 = vmatmul.bf16.gmra.mxu0 %v1678
    %v1814 = vpop.f32.mrf.mxu0
    %v1815 = vadd.f32 %v1710, %v1814
    %v1816 = vpop.f32.mrf.mxu0
    %v1817 = vadd.f32 %v1710, %v1816
    %1818 = vmatmul.bf16.gmra.mxu0 %v1680
    %v1819 = vpop.f32.mrf.mxu0
    %v1820 = vadd.f32 %v1710, %v1819
    %v1821 = vpop.f32.mrf.mxu0
    %v1822 = vadd.f32 %v1710, %v1821
    %1823 = vmatmul.bf16.gmra.mxu0 %v1682
    %v1824 = vpop.f32.mrf.mxu0
    %v1825 = vadd.f32 %v1710, %v1824
    %v1826 = vpop.f32.mrf.mxu0
    %v1827 = vadd.f32 %v1710, %v1826
    %1828 = vmatmul.bf16.gmra.mxu0 %v1684
    %v1829 = vpop.f32.mrf.mxu0
    %v1830 = vadd.f32 %v1710, %v1829
    %v1831 = vpop.f32.mrf.mxu0
    %v1832 = vadd.f32 %v1710, %v1831
    %1833 = vmatmul.bf16.gmra.mxu0 %v1686
    %v1834 = vpop.f32.mrf.mxu0
    %v1835 = vadd.f32 %v1710, %v1834
    %v1836 = vpop.f32.mrf.mxu0
    %v1837 = vadd.f32 %v1710, %v1836
    %1838 = vmatmul.bf16.gmra.mxu0 %v1688
    %v1839 = vpop.f32.mrf.mxu0
    %v1840 = vadd.f32 %v1710, %v1839
    %v1841 = vpop.f32.mrf.mxu0
    %v1842 = vadd.f32 %v1710, %v1841
    %1843 = vmatmul.bf16.gmra.mxu0 %v1690
    %v1844 = vpop.f32.mrf.mxu0
    %v1845 = vadd.f32 %v1710, %v1844
    %v1846 = vpop.f32.mrf.mxu0
    %v1847 = vadd.f32 %v1710, %v1846
    %1848 = vdwg.mxu0
    %v1849 = vmax.f32 %v1770, 0.0
    %v1850 = vmax.f32 %v1772, 0.0
    %v1851 = vmax.f32 %v1775, 0.0
    %v1852 = vmax.f32 %v1777, 0.0
    %v1853 = vmax.f32 %v1780, 0.0
    %v1854 = vmax.f32 %v1782, 0.0
    %v1855 = vmax.f32 %v1785, 0.0
    %v1856 = vmax.f32 %v1787, 0.0
    %v1857 = vmax.f32 %v1790, 0.0
    %v1858 = vmax.f32 %v1792, 0.0
    %v1859 = vmax.f32 %v1795, 0.0
    %v1860 = vmax.f32 %v1797, 0.0
    %v1861 = vmax.f32 %v1800, 0.0
    %v1862 = vmax.f32 %v1802, 0.0
    %v1863 = vmax.f32 %v1805, 0.0
    %v1864 = vmax.f32 %v1807, 0.0
    %v1865 = vmax.f32 %v1810, 0.0
    %v1866 = vmax.f32 %v1812, 0.0
    %v1867 = vmax.f32 %v1815, 0.0
    %v1868 = vmax.f32 %v1817, 0.0
    %v1869 = vmax.f32 %v1820, 0.0
    %v1870 = vmax.f32 %v1822, 0.0
    %v1871 = vmax.f32 %v1825, 0.0
    %v1872 = vmax.f32 %v1827, 0.0
    %v1873 = vmax.f32 %v1830, 0.0
    %v1874 = vmax.f32 %v1832, 0.0
    %v1875 = vmax.f32 %v1835, 0.0
    %v1876 = vmax.f32 %v1837, 0.0
    %v1877 = vmax.f32 %v1840, 0.0
    %v1878 = vmax.f32 %v1842, 0.0
    %v1879 = vmax.f32 %v1845, 0.0
    %v1880 = vmax.f32 %v1847, 0.0
    %v1881 = vrot.slane %v1849, 7
    %v1882 = vrot.slane %v1850, 7
    %v1883 = vrot.slane %v1851, 7
    %v1884 = vrot.slane %v1852, 7
    %v1885 = vrot.slane %v1853, 7
    %v1886 = vrot.slane %v1854, 7
    %v1887 = vrot.slane %v1855, 7
    %v1888 = vrot.slane %v1856, 7
    %v1889 = vrot.slane %v1857, 7
    %v1890 = vrot.slane %v1858, 7
    %v1891 = vrot.slane %v1859, 7
    %v1892 = vrot.slane %v1860, 7
    %v1893 = vrot.slane %v1861, 7
    %v1894 = vrot.slane %v1862, 7
    %v1895 = vrot.slane %v1863, 7
    %v1896 = vrot.slane %v1864, 7
    %v1897 = vrot.slane %v1865, 7
    %v1898 = vrot.slane %v1866, 7
    %v1899 = vrot.slane %v1867, 7
    %v1900 = vrot.slane %v1868, 7
    %v1901 = vrot.slane %v1869, 7
    %v1902 = vrot.slane %v1870, 7
    %v1903 = vrot.slane %v1871, 7
    %v1904 = vrot.slane %v1872, 7
    %v1905 = vrot.slane %v1873, 7
    %v1906 = vrot.slane %v1874, 7
    %v1907 = vrot.slane %v1875, 7
    %v1908 = vrot.slane %v1876, 7
    %v1909 = vrot.slane %v1877, 7
    %v1910 = vrot.slane %v1878, 7
    %v1911 = vrot.slane %v1879, 7
    %v1912 = vrot.slane %v1880, 7
    %v1913 = vsel %vm918, %v1911, %v1912
    %v1914 = vsel %vm918, %v1910, %v1911
    %v1915 = vsel %vm918, %v1909, %v1910
    %v1916 = vsel %vm918, %v1908, %v1909
    %v1917 = vsel %vm918, %v1907, %v1908
    %v1918 = vsel %vm918, %v1906, %v1907
    %v1919 = vsel %vm918, %v1905, %v1906
    %v1920 = vsel %vm918, %v1904, %v1905
    %v1921 = vsel %vm918, %v1903, %v1904
    %v1922 = vsel %vm918, %v1902, %v1903
    %v1923 = vsel %vm918, %v1901, %v1902
    %v1924 = vsel %vm918, %v1900, %v1901
    %v1925 = vsel %vm918, %v1899, %v1900
    %v1926 = vsel %vm918, %v1898, %v1899
    %v1927 = vsel %vm918, %v1897, %v1898
    %v1928 = vsel %vm918, %v1896, %v1897
    %v1929 = vsel %vm918, %v1895, %v1896
    %v1930 = vsel %vm918, %v1894, %v1895
    %v1931 = vsel %vm918, %v1893, %v1894
    %v1932 = vsel %vm918, %v1892, %v1893
    %v1933 = vsel %vm918, %v1891, %v1892
    %v1934 = vsel %vm918, %v1890, %v1891
    %v1935 = vsel %vm918, %v1889, %v1890
    %v1936 = vsel %vm918, %v1888, %v1889
    %v1937 = vsel %vm918, %v1887, %v1888
    %v1938 = vsel %vm918, %v1886, %v1887
    %v1939 = vsel %vm918, %v1885, %v1886
    %v1940 = vsel %vm918, %v1884, %v1885
    %v1941 = vsel %vm918, %v1883, %v1884
    %v1942 = vsel %vm918, %v1882, %v1883
    %v1943 = vsel %vm918, %v1881, %v1882
    %v1944 = vsel %vm918, %v1912, %v1881
    %v1945 = vpack.c.bf16 %v1944, %v1944
    %v1946 = vpack.c.bf16 %v1943, %v1943
    %v1947 = vpack.c.bf16 %v1942, %v1942
    %v1948 = vpack.c.bf16 %v1941, %v1941
    %v1949 = vpack.c.bf16 %v1940, %v1940
    %v1950 = vpack.c.bf16 %v1939, %v1939
    %v1951 = vpack.c.bf16 %v1938, %v1938
    %v1952 = vpack.c.bf16 %v1937, %v1937
    %v1953 = vpack.c.bf16 %v1936, %v1936
    %v1954 = vpack.c.bf16 %v1935, %v1935
    %v1955 = vpack.c.bf16 %v1934, %v1934
    %v1956 = vpack.c.bf16 %v1933, %v1933
    %v1957 = vpack.c.bf16 %v1932, %v1932
    %v1958 = vpack.c.bf16 %v1931, %v1931
    %v1959 = vpack.c.bf16 %v1930, %v1930
    %v1960 = vpack.c.bf16 %v1929, %v1929
    %v1961 = vpack.c.bf16 %v1928, %v1928
    %v1962 = vpack.c.bf16 %v1927, %v1927
    %v1963 = vpack.c.bf16 %v1926, %v1926
    %v1964 = vpack.c.bf16 %v1925, %v1925
    %v1965 = vpack.c.bf16 %v1924, %v1924
    %v1966 = vpack.c.bf16 %v1923, %v1923
    %v1967 = vpack.c.bf16 %v1922, %v1922
    %v1968 = vpack.c.bf16 %v1921, %v1921
    %v1969 = vpack.c.bf16 %v1920, %v1920
    %v1970 = vpack.c.bf16 %v1919, %v1919
    %v1971 = vpack.c.bf16 %v1918, %v1918
    %v1972 = vpack.c.bf16 %v1917, %v1917
    %v1973 = vpack.c.bf16 %v1916, %v1916
    %v1974 = vpack.c.bf16 %v1915, %v1915
    %v1975 = vpack.c.bf16 %v1914, %v1914
    %v1976 = vpack.c.bf16 %v1913, %v1913
    %v1977 = vsel %vm1047, %v1945, 0
    %v1978 = vsel %vm1048, %v1946, 0
    %v1979 = vsel %vm1049, %v1947, 0
    %v1980 = vsel %vm1050, %v1948, 0
    %v1981 = vsel %vm1051, %v1949, 0
    %v1982 = vsel %vm1052, %v1950, 0
    %v1983 = vsel %vm1053, %v1951, 0
    %v1984 = vsel %vm1054, %v1952, 0
    %v1985 = vsel %vm1055, %v1953, 0
    %v1986 = vsel %vm1056, %v1954, 0
    %v1987 = vsel %vm1057, %v1955, 0
    %v1988 = vsel %vm1058, %v1956, 0
    %v1989 = vsel %vm1059, %v1957, 0
    %v1990 = vsel %vm1060, %v1958, 0
    %v1991 = vsel %vm1061, %v1959, 0
    %v1992 = vsel %vm1062, %v1960, 0
    %v1993 = vsel %vm1063, %v1961, 0
    %v1994 = vsel %vm1064, %v1962, 0
    %v1995 = vsel %vm1065, %v1963, 0
    %v1996 = vsel %vm1066, %v1964, 0
    %v1997 = vsel %vm1067, %v1965, 0
    %v1998 = vsel %vm1068, %v1966, 0
    %v1999 = vsel %vm1069, %v1967, 0
    %v2000 = vsel %vm1070, %v1968, 0
    %v2001 = vsel %vm1071, %v1969, 0
    %v2002 = vsel %vm1072, %v1970, 0
    %v2003 = vsel %vm1073, %v1971, 0
    %v2004 = vsel %vm1074, %v1972, 0
    %v2005 = vsel %vm1075, %v1973, 0
    %v2006 = vsel %vm1076, %v1974, 0
    %v2007 = vsel %vm1077, %v1975, 0
    %v2008 = vsel %vm1078, %v1976, 0
    %v2009 = vrot.slane %v1849, 1
    %v2010 = vrot.slane %v1850, 1
    %v2011 = vrot.slane %v1851, 1
    %v2012 = vrot.slane %v1852, 1
    %v2013 = vrot.slane %v1853, 1
    %v2014 = vrot.slane %v1854, 1
    %v2015 = vrot.slane %v1855, 1
    %v2016 = vrot.slane %v1856, 1
    %v2017 = vrot.slane %v1857, 1
    %v2018 = vrot.slane %v1858, 1
    %v2019 = vrot.slane %v1859, 1
    %v2020 = vrot.slane %v1860, 1
    %v2021 = vrot.slane %v1861, 1
    %v2022 = vrot.slane %v1862, 1
    %v2023 = vrot.slane %v1863, 1
    %v2024 = vrot.slane %v1864, 1
    %v2025 = vrot.slane %v1865, 1
    %v2026 = vrot.slane %v1866, 1
    %v2027 = vrot.slane %v1867, 1
    %v2028 = vrot.slane %v1868, 1
    %v2029 = vrot.slane %v1869, 1
    %v2030 = vrot.slane %v1870, 1
    %v2031 = vrot.slane %v1871, 1
    %v2032 = vrot.slane %v1872, 1
    %v2033 = vrot.slane %v1873, 1
    %v2034 = vrot.slane %v1874, 1
    %v2035 = vrot.slane %v1875, 1
    %v2036 = vrot.slane %v1876, 1
    %v2037 = vrot.slane %v1877, 1
    %v2038 = vrot.slane %v1878, 1
    %v2039 = vrot.slane %v1879, 1
    %v2040 = vrot.slane %v1880, 1
    %v2041 = vsel %vm1143, %v2039, %v2040
    %v2042 = vsel %vm1143, %v2038, %v2039
    %v2043 = vsel %vm1143, %v2037, %v2038
    %v2044 = vsel %vm1143, %v2036, %v2037
    %v2045 = vsel %vm1143, %v2035, %v2036
    %v2046 = vsel %vm1143, %v2034, %v2035
    %v2047 = vsel %vm1143, %v2033, %v2034
    %v2048 = vsel %vm1143, %v2032, %v2033
    %v2049 = vsel %vm1143, %v2031, %v2032
    %v2050 = vsel %vm1143, %v2030, %v2031
    %v2051 = vsel %vm1143, %v2029, %v2030
    %v2052 = vsel %vm1143, %v2028, %v2029
    %v2053 = vsel %vm1143, %v2027, %v2028
    %v2054 = vsel %vm1143, %v2026, %v2027
    %v2055 = vsel %vm1143, %v2025, %v2026
    %v2056 = vsel %vm1143, %v2024, %v2025
    %v2057 = vsel %vm1143, %v2023, %v2024
    %v2058 = vsel %vm1143, %v2022, %v2023
    %v2059 = vsel %vm1143, %v2021, %v2022
    %v2060 = vsel %vm1143, %v2020, %v2021
    %v2061 = vsel %vm1143, %v2019, %v2020
    %v2062 = vsel %vm1143, %v2018, %v2019
    %v2063 = vsel %vm1143, %v2017, %v2018
    %v2064 = vsel %vm1143, %v2016, %v2017
    %v2065 = vsel %vm1143, %v2015, %v2016
    %v2066 = vsel %vm1143, %v2014, %v2015
    %v2067 = vsel %vm1143, %v2013, %v2014
    %v2068 = vsel %vm1143, %v2012, %v2013
    %v2069 = vsel %vm1143, %v2011, %v2012
    %v2070 = vsel %vm1143, %v2010, %v2011
    %v2071 = vsel %vm1143, %v2009, %v2010
    %v2072 = vsel %vm1143, %v2040, %v2009
    %v2073 = vpack.c.bf16 %v2071, %v2071
    %v2074 = vpack.c.bf16 %v2070, %v2070
    %v2075 = vpack.c.bf16 %v2069, %v2069
    %v2076 = vpack.c.bf16 %v2068, %v2068
    %v2077 = vpack.c.bf16 %v2067, %v2067
    %v2078 = vpack.c.bf16 %v2066, %v2066
    %v2079 = vpack.c.bf16 %v2065, %v2065
    %v2080 = vpack.c.bf16 %v2064, %v2064
    %v2081 = vpack.c.bf16 %v2063, %v2063
    %v2082 = vpack.c.bf16 %v2062, %v2062
    %v2083 = vpack.c.bf16 %v2061, %v2061
    %v2084 = vpack.c.bf16 %v2060, %v2060
    %v2085 = vpack.c.bf16 %v2059, %v2059
    %v2086 = vpack.c.bf16 %v2058, %v2058
    %v2087 = vpack.c.bf16 %v2057, %v2057
    %v2088 = vpack.c.bf16 %v2056, %v2056
    %v2089 = vpack.c.bf16 %v2055, %v2055
    %v2090 = vpack.c.bf16 %v2054, %v2054
    %v2091 = vpack.c.bf16 %v2053, %v2053
    %v2092 = vpack.c.bf16 %v2052, %v2052
    %v2093 = vpack.c.bf16 %v2051, %v2051
    %v2094 = vpack.c.bf16 %v2050, %v2050
    %v2095 = vpack.c.bf16 %v2049, %v2049
    %v2096 = vpack.c.bf16 %v2048, %v2048
    %v2097 = vpack.c.bf16 %v2047, %v2047
    %v2098 = vpack.c.bf16 %v2046, %v2046
    %v2099 = vpack.c.bf16 %v2045, %v2045
    %v2100 = vpack.c.bf16 %v2044, %v2044
    %v2101 = vpack.c.bf16 %v2043, %v2043
    %v2102 = vpack.c.bf16 %v2042, %v2042
    %v2103 = vpack.c.bf16 %v2041, %v2041
    %v2104 = vpack.c.bf16 %v2072, %v2072
    %v2105 = vsel %vm1272, %v2073, 0
    %v2106 = vsel %vm1273, %v2074, 0
    %v2107 = vsel %vm1274, %v2075, 0
    %v2108 = vsel %vm1275, %v2076, 0
    %v2109 = vsel %vm1276, %v2077, 0
    %v2110 = vsel %vm1277, %v2078, 0
    %v2111 = vsel %vm1278, %v2079, 0
    %v2112 = vsel %vm1279, %v2080, 0
    %v2113 = vsel %vm1280, %v2081, 0
    %v2114 = vsel %vm1281, %v2082, 0
    %v2115 = vsel %vm1282, %v2083, 0
    %v2116 = vsel %vm1283, %v2084, 0
    %v2117 = vsel %vm1284, %v2085, 0
    %v2118 = vsel %vm1285, %v2086, 0
    %v2119 = vsel %vm1286, %v2087, 0
    %v2120 = vsel %vm1287, %v2088, 0
    %v2121 = vsel %vm1288, %v2089, 0
    %v2122 = vsel %vm1289, %v2090, 0
    %v2123 = vsel %vm1290, %v2091, 0
    %v2124 = vsel %vm1291, %v2092, 0
    %v2125 = vsel %vm1292, %v2093, 0
    %v2126 = vsel %vm1293, %v2094, 0
    %v2127 = vsel %vm1294, %v2095, 0
    %v2128 = vsel %vm1295, %v2096, 0
    %v2129 = vsel %vm1296, %v2097, 0
    %v2130 = vsel %vm1297, %v2098, 0
    %v2131 = vsel %vm1298, %v2099, 0
    %v2132 = vsel %vm1299, %v2100, 0
    %v2133 = vsel %vm1300, %v2101, 0
    %v2134 = vsel %vm1301, %v2102, 0
    %v2135 = vsel %vm1302, %v2103, 0
    %v2136 = vsel %vm1303, %v2104, 0
    %v2137 = vpack.c.bf16 %v1849, %v1849
    %v2138 = vpack.c.bf16 %v1850, %v1850
    %v2139 = vpack.c.bf16 %v1851, %v1851
    %v2140 = vpack.c.bf16 %v1852, %v1852
    %v2141 = vpack.c.bf16 %v1853, %v1853
    %v2142 = vpack.c.bf16 %v1854, %v1854
    %v2143 = vpack.c.bf16 %v1855, %v1855
    %v2144 = vpack.c.bf16 %v1856, %v1856
    %v2145 = vpack.c.bf16 %v1857, %v1857
    %v2146 = vpack.c.bf16 %v1858, %v1858
    %v2147 = vpack.c.bf16 %v1859, %v1859
    %v2148 = vpack.c.bf16 %v1860, %v1860
    %v2149 = vpack.c.bf16 %v1861, %v1861
    %v2150 = vpack.c.bf16 %v1862, %v1862
    %v2151 = vpack.c.bf16 %v1863, %v1863
    %v2152 = vpack.c.bf16 %v1864, %v1864
    %v2153 = vpack.c.bf16 %v1865, %v1865
    %v2154 = vpack.c.bf16 %v1866, %v1866
    %v2155 = vpack.c.bf16 %v1867, %v1867
    %v2156 = vpack.c.bf16 %v1868, %v1868
    %v2157 = vpack.c.bf16 %v1869, %v1869
    %v2158 = vpack.c.bf16 %v1870, %v1870
    %v2159 = vpack.c.bf16 %v1871, %v1871
    %v2160 = vpack.c.bf16 %v1872, %v1872
    %v2161 = vpack.c.bf16 %v1873, %v1873
    %v2162 = vpack.c.bf16 %v1874, %v1874
    %v2163 = vpack.c.bf16 %v1875, %v1875
    %v2164 = vpack.c.bf16 %v1876, %v1876
    %v2165 = vpack.c.bf16 %v1877, %v1877
    %v2166 = vpack.c.bf16 %v1878, %v1878
    %v2167 = vpack.c.bf16 %v1879, %v1879
    %v2168 = vpack.c.bf16 %v1880, %v1880
    %v2201 = vunpack.c.l.b16 %v1977
    %v2202 = vunpack.c.l.b16 %v1978
    %v2203 = vunpack.c.l.b16 %v1979
    %v2204 = vunpack.c.l.b16 %v1980
    %v2205 = vunpack.c.l.b16 %v1981
    %v2206 = vunpack.c.l.b16 %v1982
    %v2207 = vunpack.c.l.b16 %v1983
    %v2208 = vunpack.c.l.b16 %v1984
    %v2209 = vunpack.c.l.b16 %v1985
    %v2210 = vunpack.c.l.b16 %v1986
    %v2211 = vunpack.c.l.b16 %v1987
    %v2212 = vunpack.c.l.b16 %v1988
    %v2213 = vunpack.c.l.b16 %v1989
    %v2214 = vunpack.c.l.b16 %v1990
    %v2215 = vunpack.c.l.b16 %v1991
    %v2216 = vunpack.c.l.b16 %v1992
    %v2217 = vunpack.c.l.b16 %v1993
    %v2218 = vunpack.c.l.b16 %v1994
    %v2219 = vunpack.c.l.b16 %v1995
    %v2220 = vunpack.c.l.b16 %v1996
    %v2221 = vunpack.c.l.b16 %v1997
    %v2222 = vunpack.c.l.b16 %v1998
    %v2223 = vunpack.c.l.b16 %v1999
    %v2224 = vunpack.c.l.b16 %v2000
    %v2225 = vunpack.c.l.b16 %v2001
    %v2226 = vunpack.c.l.b16 %v2002
    %v2227 = vunpack.c.l.b16 %v2003
    %v2228 = vunpack.c.l.b16 %v2004
    %v2229 = vunpack.c.l.b16 %v2005
    %v2230 = vunpack.c.l.b16 %v2006
    %v2231 = vunpack.c.l.b16 %v2007
    %v2232 = vunpack.c.l.b16 %v2008
    %v2233 = vpack.c.b16 %v2202, %v2201
    %v2234 = vpack.c.b16 %v2204, %v2203
    %v2235 = vpack.c.b16 %v2206, %v2205
    %v2236 = vpack.c.b16 %v2208, %v2207
    %v2237 = vpack.c.b16 %v2210, %v2209
    %v2238 = vpack.c.b16 %v2212, %v2211
    %v2239 = vpack.c.b16 %v2214, %v2213
    %v2240 = vpack.c.b16 %v2216, %v2215
    %v2241 = vpack.c.b16 %v2218, %v2217
    %v2242 = vpack.c.b16 %v2220, %v2219
    %v2243 = vpack.c.b16 %v2222, %v2221
    %v2244 = vpack.c.b16 %v2224, %v2223
    %v2245 = vpack.c.b16 %v2226, %v2225
    %v2246 = vpack.c.b16 %v2228, %v2227
    %v2247 = vpack.c.b16 %v2230, %v2229
    %v2248 = vpack.c.b16 %v2232, %v2231
    %v2297 = vunpack.c.l.b16 %v2137
    %v2298 = vunpack.c.l.b16 %v2138
    %v2299 = vunpack.c.l.b16 %v2139
    %v2300 = vunpack.c.l.b16 %v2140
    %v2301 = vunpack.c.l.b16 %v2141
    %v2302 = vunpack.c.l.b16 %v2142
    %v2303 = vunpack.c.l.b16 %v2143
    %v2304 = vunpack.c.l.b16 %v2144
    %v2305 = vunpack.c.l.b16 %v2145
    %v2306 = vunpack.c.l.b16 %v2146
    %v2307 = vunpack.c.l.b16 %v2147
    %v2308 = vunpack.c.l.b16 %v2148
    %v2309 = vunpack.c.l.b16 %v2149
    %v2310 = vunpack.c.l.b16 %v2150
    %v2311 = vunpack.c.l.b16 %v2151
    %v2312 = vunpack.c.l.b16 %v2152
    %v2313 = vunpack.c.l.b16 %v2153
    %v2314 = vunpack.c.l.b16 %v2154
    %v2315 = vunpack.c.l.b16 %v2155
    %v2316 = vunpack.c.l.b16 %v2156
    %v2317 = vunpack.c.l.b16 %v2157
    %v2318 = vunpack.c.l.b16 %v2158
    %v2319 = vunpack.c.l.b16 %v2159
    %v2320 = vunpack.c.l.b16 %v2160
    %v2321 = vunpack.c.l.b16 %v2161
    %v2322 = vunpack.c.l.b16 %v2162
    %v2323 = vunpack.c.l.b16 %v2163
    %v2324 = vunpack.c.l.b16 %v2164
    %v2325 = vunpack.c.l.b16 %v2165
    %v2326 = vunpack.c.l.b16 %v2166
    %v2327 = vunpack.c.l.b16 %v2167
    %v2328 = vunpack.c.l.b16 %v2168
    %v2329 = vpack.c.b16 %v2298, %v2297
    %v2330 = vpack.c.b16 %v2300, %v2299
    %v2331 = vpack.c.b16 %v2302, %v2301
    %v2332 = vpack.c.b16 %v2304, %v2303
    %v2333 = vpack.c.b16 %v2306, %v2305
    %v2334 = vpack.c.b16 %v2308, %v2307
    %v2335 = vpack.c.b16 %v2310, %v2309
    %v2336 = vpack.c.b16 %v2312, %v2311
    %v2337 = vpack.c.b16 %v2314, %v2313
    %v2338 = vpack.c.b16 %v2316, %v2315
    %v2339 = vpack.c.b16 %v2318, %v2317
    %v2340 = vpack.c.b16 %v2320, %v2319
    %v2341 = vpack.c.b16 %v2322, %v2321
    %v2342 = vpack.c.b16 %v2324, %v2323
    %v2343 = vpack.c.b16 %v2326, %v2325
    %v2344 = vpack.c.b16 %v2328, %v2327
    %v2393 = vunpack.c.l.b16 %v2105
    %v2394 = vunpack.c.l.b16 %v2106
    %v2395 = vunpack.c.l.b16 %v2107
    %v2396 = vunpack.c.l.b16 %v2108
    %v2397 = vunpack.c.l.b16 %v2109
    %v2398 = vunpack.c.l.b16 %v2110
    %v2399 = vunpack.c.l.b16 %v2111
    %v2400 = vunpack.c.l.b16 %v2112
    %v2401 = vunpack.c.l.b16 %v2113
    %v2402 = vunpack.c.l.b16 %v2114
    %v2403 = vunpack.c.l.b16 %v2115
    %v2404 = vunpack.c.l.b16 %v2116
    %v2405 = vunpack.c.l.b16 %v2117
    %v2406 = vunpack.c.l.b16 %v2118
    %v2407 = vunpack.c.l.b16 %v2119
    %v2408 = vunpack.c.l.b16 %v2120
    %v2409 = vunpack.c.l.b16 %v2121
    %v2410 = vunpack.c.l.b16 %v2122
    %v2411 = vunpack.c.l.b16 %v2123
    %v2412 = vunpack.c.l.b16 %v2124
    %v2413 = vunpack.c.l.b16 %v2125
    %v2414 = vunpack.c.l.b16 %v2126
    %v2415 = vunpack.c.l.b16 %v2127
    %v2416 = vunpack.c.l.b16 %v2128
    %v2417 = vunpack.c.l.b16 %v2129
    %v2418 = vunpack.c.l.b16 %v2130
    %v2419 = vunpack.c.l.b16 %v2131
    %v2420 = vunpack.c.l.b16 %v2132
    %v2421 = vunpack.c.l.b16 %v2133
    %v2422 = vunpack.c.l.b16 %v2134
    %v2423 = vunpack.c.l.b16 %v2135
    %v2424 = vunpack.c.l.b16 %v2136
    %v2425 = vpack.c.b16 %v2394, %v2393
    %v2426 = vpack.c.b16 %v2396, %v2395
    %v2427 = vpack.c.b16 %v2398, %v2397
    %v2428 = vpack.c.b16 %v2400, %v2399
    %v2429 = vpack.c.b16 %v2402, %v2401
    %v2430 = vpack.c.b16 %v2404, %v2403
    %v2431 = vpack.c.b16 %v2406, %v2405
    %v2432 = vpack.c.b16 %v2408, %v2407
    %v2433 = vpack.c.b16 %v2410, %v2409
    %v2434 = vpack.c.b16 %v2412, %v2411
    %v2435 = vpack.c.b16 %v2414, %v2413
    %v2436 = vpack.c.b16 %v2416, %v2415
    %v2437 = vpack.c.b16 %v2418, %v2417
    %v2438 = vpack.c.b16 %v2420, %v2419
    %v2439 = vpack.c.b16 %v2422, %v2421
    %v2440 = vpack.c.b16 %v2424, %v2423
    %v2457 = vld [vmem:[#allocation11] sm:$0xff]
    %v2458 = vld [vmem:[#allocation11 + $0x8] sm:$0xff]
    %v2459 = vld [vmem:[#allocation11 + $0x10] sm:$0xff]
    %v2460 = vld [vmem:[#allocation11 + $0x18] sm:$0xff]
    %v2461 = vld [vmem:[#allocation11 + $0x20] sm:$0xff]
    %v2462 = vld [vmem:[#allocation11 + $0x28] sm:$0xff]
    %v2463 = vld [vmem:[#allocation11 + $0x30] sm:$0xff]
    %v2464 = vld [vmem:[#allocation11 + $0x38] sm:$0xff]
    %v2465 = vld [vmem:[#allocation11 + $0x40] sm:$0xff]
    %v2466 = vld [vmem:[#allocation11 + $0x48] sm:$0xff]
    %v2467 = vld [vmem:[#allocation11 + $0x50] sm:$0xff]
    %v2468 = vld [vmem:[#allocation11 + $0x58] sm:$0xff]
    %v2469 = vld [vmem:[#allocation11 + $0x60] sm:$0xff]
    %v2470 = vld [vmem:[#allocation11 + $0x68] sm:$0xff]
    %v2471 = vld [vmem:[#allocation11 + $0x70] sm:$0xff]
    %v2472 = vld [vmem:[#allocation11 + $0x78] sm:$0xff]
    %v2473 = vld [vmem:[#allocation11 + $0x80] sm:$0xff]
    %v2474 = vld [vmem:[#allocation11 + $0x88] sm:$0xff]
    %v2475 = vld [vmem:[#allocation11 + $0x90] sm:$0xff]
    %v2476 = vld [vmem:[#allocation11 + $0x98] sm:$0xff]
    %v2477 = vld [vmem:[#allocation11 + $0xa0] sm:$0xff]
    %v2478 = vld [vmem:[#allocation11 + $0xa8] sm:$0xff]
    %v2479 = vld [vmem:[#allocation11 + $0xb0] sm:$0xff]
    %v2480 = vld [vmem:[#allocation11 + $0xb8] sm:$0xff]
    %v2481 = vld [vmem:[#allocation11 + $0xc0] sm:$0xff]
    %v2482 = vld [vmem:[#allocation11 + $0xc8] sm:$0xff]
    %v2483 = vld [vmem:[#allocation11 + $0xd0] sm:$0xff]
    %v2484 = vld [vmem:[#allocation11 + $0xd8] sm:$0xff]
    %v2485 = vld [vmem:[#allocation11 + $0xe0] sm:$0xff]
    %v2486 = vld [vmem:[#allocation11 + $0xe8] sm:$0xff]
    %v2487 = vld [vmem:[#allocation11 + $0xf0] sm:$0xff]
    %v2488 = vld [vmem:[#allocation11 + $0xf8] sm:$0xff]
    %v2489 = vld [vmem:[#allocation11 + $0x100] sm:$0xff]
    %v2490 = vld [vmem:[#allocation11 + $0x108] sm:$0xff]
    %v2491 = vld [vmem:[#allocation11 + $0x110] sm:$0xff]
    %v2492 = vld [vmem:[#allocation11 + $0x118] sm:$0xff]
    %v2493 = vld [vmem:[#allocation11 + $0x120] sm:$0xff]
    %v2494 = vld [vmem:[#allocation11 + $0x128] sm:$0xff]
    %v2495 = vld [vmem:[#allocation11 + $0x130] sm:$0xff]
    %v2496 = vld [vmem:[#allocation11 + $0x138] sm:$0xff]
    %v2497 = vld [vmem:[#allocation11 + $0x140] sm:$0xff]
    %v2498 = vld [vmem:[#allocation11 + $0x148] sm:$0xff]
    %v2499 = vld [vmem:[#allocation11 + $0x150] sm:$0xff]
    %v2500 = vld [vmem:[#allocation11 + $0x158] sm:$0xff]
    %v2501 = vld [vmem:[#allocation11 + $0x160] sm:$0xff]
    %v2502 = vld [vmem:[#allocation11 + $0x168] sm:$0xff]
    %v2503 = vld [vmem:[#allocation11 + $0x170] sm:$0xff]
    %v2504 = vld [vmem:[#allocation11 + $0x178] sm:$0xff]
    %v2505 = vld [vmem:[%s6] sm:$0x3]
    %v2507 = vperm.slane %v2505, 0
    %v2508 = vperm.slane %v2505, 1
    %v2559 = vunpack.c.l.b16 %v2457
    %v2560 = vunpack.c.h.b16 %v2457
    %v2561 = vunpack.c.l.b16 %v2458
    %v2562 = vunpack.c.h.b16 %v2458
    %v2563 = vunpack.c.l.b16 %v2459
    %v2564 = vunpack.c.h.b16 %v2459
    %v2565 = vunpack.c.l.b16 %v2460
    %v2566 = vunpack.c.h.b16 %v2460
    %v2567 = vunpack.c.l.b16 %v2461
    %v2568 = vunpack.c.h.b16 %v2461
    %v2569 = vunpack.c.l.b16 %v2462
    %v2570 = vunpack.c.h.b16 %v2462
    %v2571 = vunpack.c.l.b16 %v2463
    %v2572 = vunpack.c.h.b16 %v2463
    %v2573 = vunpack.c.l.b16 %v2464
    %v2574 = vunpack.c.h.b16 %v2464
    %v2575 = vunpack.c.l.b16 %v2465
    %v2576 = vunpack.c.h.b16 %v2465
    %v2577 = vunpack.c.l.b16 %v2466
    %v2578 = vunpack.c.h.b16 %v2466
    %v2579 = vunpack.c.l.b16 %v2467
    %v2580 = vunpack.c.h.b16 %v2467
    %v2581 = vunpack.c.l.b16 %v2468
    %v2582 = vunpack.c.h.b16 %v2468
    %v2583 = vunpack.c.l.b16 %v2469
    %v2584 = vunpack.c.h.b16 %v2469
    %v2585 = vunpack.c.l.b16 %v2470
    %v2586 = vunpack.c.h.b16 %v2470
    %v2587 = vunpack.c.l.b16 %v2471
    %v2588 = vunpack.c.h.b16 %v2471
    %v2589 = vunpack.c.l.b16 %v2472
    %v2590 = vunpack.c.h.b16 %v2472
    %v2591 = vunpack.c.l.b16 %v2473
    %v2592 = vunpack.c.h.b16 %v2473
    %v2593 = vunpack.c.l.b16 %v2474
    %v2594 = vunpack.c.h.b16 %v2474
    %v2595 = vunpack.c.l.b16 %v2475
    %v2596 = vunpack.c.h.b16 %v2475
    %v2597 = vunpack.c.l.b16 %v2476
    %v2598 = vunpack.c.h.b16 %v2476
    %v2599 = vunpack.c.l.b16 %v2477
    %v2600 = vunpack.c.h.b16 %v2477
    %v2601 = vunpack.c.l.b16 %v2478
    %v2602 = vunpack.c.h.b16 %v2478
    %v2603 = vunpack.c.l.b16 %v2479
    %v2604 = vunpack.c.h.b16 %v2479
    %v2605 = vunpack.c.l.b16 %v2480
    %v2606 = vunpack.c.h.b16 %v2480
    %v2607 = vunpack.c.l.b16 %v2481
    %v2608 = vunpack.c.h.b16 %v2481
    %v2609 = vunpack.c.l.b16 %v2482
    %v2610 = vunpack.c.h.b16 %v2482
    %v2611 = vunpack.c.l.b16 %v2483
    %v2612 = vunpack.c.h.b16 %v2483
    %v2613 = vunpack.c.l.b16 %v2484
    %v2614 = vunpack.c.h.b16 %v2484
    %v2615 = vunpack.c.l.b16 %v2485
    %v2616 = vunpack.c.h.b16 %v2485
    %v2617 = vunpack.c.l.b16 %v2486
    %v2618 = vunpack.c.h.b16 %v2486
    %v2619 = vunpack.c.l.b16 %v2487
    %v2620 = vunpack.c.h.b16 %v2487
    %v2621 = vunpack.c.l.b16 %v2488
    %v2622 = vunpack.c.h.b16 %v2488
    %v2623 = vunpack.c.l.b16 %v2489
    %v2624 = vunpack.c.h.b16 %v2489
    %v2625 = vunpack.c.l.b16 %v2490
    %v2626 = vunpack.c.h.b16 %v2490
    %v2627 = vunpack.c.l.b16 %v2491
    %v2628 = vunpack.c.h.b16 %v2491
    %v2629 = vunpack.c.l.b16 %v2492
    %v2630 = vunpack.c.h.b16 %v2492
    %v2631 = vunpack.c.l.b16 %v2493
    %v2632 = vunpack.c.h.b16 %v2493
    %v2633 = vunpack.c.l.b16 %v2494
    %v2634 = vunpack.c.h.b16 %v2494
    %v2635 = vunpack.c.l.b16 %v2495
    %v2636 = vunpack.c.h.b16 %v2495
    %v2637 = vunpack.c.l.b16 %v2496
    %v2638 = vunpack.c.h.b16 %v2496
    %v2639 = vunpack.c.l.b16 %v2497
    %v2640 = vunpack.c.h.b16 %v2497
    %v2641 = vunpack.c.l.b16 %v2498
    %v2642 = vunpack.c.h.b16 %v2498
    %v2643 = vunpack.c.l.b16 %v2499
    %v2644 = vunpack.c.h.b16 %v2499
    %v2645 = vunpack.c.l.b16 %v2500
    %v2646 = vunpack.c.h.b16 %v2500
    %v2647 = vunpack.c.l.b16 %v2501
    %v2648 = vunpack.c.h.b16 %v2501
    %v2649 = vunpack.c.l.b16 %v2502
    %v2650 = vunpack.c.h.b16 %v2502
    %v2651 = vunpack.c.l.b16 %v2503
    %v2652 = vunpack.c.h.b16 %v2503
    %v2653 = vunpack.c.l.b16 %v2504
    %v2654 = vunpack.c.h.b16 %v2504
    %v2655 = vpack.c.b16 %v2561, %v2559
    %v2656 = vpack.c.b16 %v2562, %v2560
    %v2657 = vpack.c.b16 %v2565, %v2563
    %v2658 = vpack.c.b16 %v2566, %v2564
    %v2659 = vpack.c.b16 %v2569, %v2567
    %v2660 = vpack.c.b16 %v2570, %v2568
    %v2661 = vpack.c.b16 %v2573, %v2571
    %v2662 = vpack.c.b16 %v2574, %v2572
    %v2663 = vpack.c.b16 %v2577, %v2575
    %v2664 = vpack.c.b16 %v2578, %v2576
    %v2665 = vpack.c.b16 %v2581, %v2579
    %v2666 = vpack.c.b16 %v2582, %v2580
    %v2667 = vpack.c.b16 %v2585, %v2583
    %v2668 = vpack.c.b16 %v2586, %v2584
    %v2669 = vpack.c.b16 %v2589, %v2587
    %v2670 = vpack.c.b16 %v2590, %v2588
    %v2671 = vpack.c.b16 %v2593, %v2591
    %v2672 = vpack.c.b16 %v2594, %v2592
    %v2673 = vpack.c.b16 %v2597, %v2595
    %v2674 = vpack.c.b16 %v2598, %v2596
    %v2675 = vpack.c.b16 %v2601, %v2599
    %v2676 = vpack.c.b16 %v2602, %v2600
    %v2677 = vpack.c.b16 %v2605, %v2603
    %v2678 = vpack.c.b16 %v2606, %v2604
    %v2679 = vpack.c.b16 %v2609, %v2607
    %v2680 = vpack.c.b16 %v2610, %v2608
    %v2681 = vpack.c.b16 %v2613, %v2611
    %v2682 = vpack.c.b16 %v2614, %v2612
    %v2683 = vpack.c.b16 %v2617, %v2615
    %v2684 = vpack.c.b16 %v2618, %v2616
    %v2685 = vpack.c.b16 %v2621, %v2619
    %v2686 = vpack.c.b16 %v2622, %v2620
    %v2687 = vpack.c.b16 %v2625, %v2623
    %v2688 = vpack.c.b16 %v2626, %v2624
    %v2689 = vpack.c.b16 %v2629, %v2627
    %v2690 = vpack.c.b16 %v2630, %v2628
    %v2691 = vpack.c.b16 %v2633, %v2631
    %v2692 = vpack.c.b16 %v2634, %v2632
    %v2693 = vpack.c.b16 %v2637, %v2635
    %v2694 = vpack.c.b16 %v2638, %v2636
    %v2695 = vpack.c.b16 %v2641, %v2639
    %v2696 = vpack.c.b16 %v2642, %v2640
    %v2697 = vpack.c.b16 %v2645, %v2643
    %v2698 = vpack.c.b16 %v2646, %v2644
    %v2699 = vpack.c.b16 %v2649, %v2647
    %v2700 = vpack.c.b16 %v2650, %v2648
    %v2701 = vpack.c.b16 %v2653, %v2651
    %v2702 = vpack.c.b16 %v2654, %v2652
    %2751 = vmatpush.bf16.msra.mxu0 %v2669
    %2752 = vmatpush.bf16.msra.mxu0 %v2667
    %2753 = vmatpush.bf16.msra.mxu0 %v2665
    %2754 = vmatpush.bf16.msra.mxu0 %v2663
    %2755 = vmatpush.bf16.msra.mxu0 %v2661
    %2756 = vmatpush.bf16.msra.mxu0 %v2659
    %2757 = vmatpush.bf16.msra.mxu0 %v2657
    %2758 = vmatpush.bf16.msra.mxu0 %v2655
    %2759 = vmatmul.bf16.gmra.mxu0 %v2233
    %v2760 = vpop.f32.mrf.mxu0
    %v2761 = vadd.f32 %v2507, %v2760
    %v2762 = vpop.f32.mrf.mxu0
    %v2763 = vadd.f32 %v2507, %v2762
    %2764 = vmatmul.bf16.gmra.mxu0 %v2234
    %v2765 = vpop.f32.mrf.mxu0
    %v2766 = vadd.f32 %v2507, %v2765
    %v2767 = vpop.f32.mrf.mxu0
    %v2768 = vadd.f32 %v2507, %v2767
    %2769 = vmatmul.bf16.gmra.mxu0 %v2235
    %v2770 = vpop.f32.mrf.mxu0
    %v2771 = vadd.f32 %v2507, %v2770
    %v2772 = vpop.f32.mrf.mxu0
    %v2773 = vadd.f32 %v2507, %v2772
    %2774 = vmatmul.bf16.gmra.mxu0 %v2236
    %v2775 = vpop.f32.mrf.mxu0
    %v2776 = vadd.f32 %v2507, %v2775
    %v2777 = vpop.f32.mrf.mxu0
    %v2778 = vadd.f32 %v2507, %v2777
    %2779 = vmatmul.bf16.gmra.mxu0 %v2237
    %v2780 = vpop.f32.mrf.mxu0
    %v2781 = vadd.f32 %v2507, %v2780
    %v2782 = vpop.f32.mrf.mxu0
    %v2783 = vadd.f32 %v2507, %v2782
    %2784 = vmatmul.bf16.gmra.mxu0 %v2238
    %v2785 = vpop.f32.mrf.mxu0
    %v2786 = vadd.f32 %v2507, %v2785
    %v2787 = vpop.f32.mrf.mxu0
    %v2788 = vadd.f32 %v2507, %v2787
    %2789 = vmatmul.bf16.gmra.mxu0 %v2239
    %v2790 = vpop.f32.mrf.mxu0
    %v2791 = vadd.f32 %v2507, %v2790
    %v2792 = vpop.f32.mrf.mxu0
    %v2793 = vadd.f32 %v2507, %v2792
    %2794 = vmatmul.bf16.gmra.mxu0 %v2240
    %v2795 = vpop.f32.mrf.mxu0
    %v2796 = vadd.f32 %v2507, %v2795
    %v2797 = vpop.f32.mrf.mxu0
    %v2798 = vadd.f32 %v2507, %v2797
    %2799 = vmatmul.bf16.gmra.mxu0 %v2241
    %v2800 = vpop.f32.mrf.mxu0
    %v2801 = vadd.f32 %v2507, %v2800
    %v2802 = vpop.f32.mrf.mxu0
    %v2803 = vadd.f32 %v2507, %v2802
    %2804 = vmatmul.bf16.gmra.mxu0 %v2242
    %v2805 = vpop.f32.mrf.mxu0
    %v2806 = vadd.f32 %v2507, %v2805
    %v2807 = vpop.f32.mrf.mxu0
    %v2808 = vadd.f32 %v2507, %v2807
    %2809 = vmatmul.bf16.gmra.mxu0 %v2243
    %v2810 = vpop.f32.mrf.mxu0
    %v2811 = vadd.f32 %v2507, %v2810
    %v2812 = vpop.f32.mrf.mxu0
    %v2813 = vadd.f32 %v2507, %v2812
    %2814 = vmatmul.bf16.gmra.mxu0 %v2244
    %v2815 = vpop.f32.mrf.mxu0
    %v2816 = vadd.f32 %v2507, %v2815
    %v2817 = vpop.f32.mrf.mxu0
    %v2818 = vadd.f32 %v2507, %v2817
    %2819 = vmatmul.bf16.gmra.mxu0 %v2245
    %v2820 = vpop.f32.mrf.mxu0
    %v2821 = vadd.f32 %v2507, %v2820
    %v2822 = vpop.f32.mrf.mxu0
    %v2823 = vadd.f32 %v2507, %v2822
    %2824 = vmatmul.bf16.gmra.mxu0 %v2246
    %v2825 = vpop.f32.mrf.mxu0
    %v2826 = vadd.f32 %v2507, %v2825
    %v2827 = vpop.f32.mrf.mxu0
    %v2828 = vadd.f32 %v2507, %v2827
    %2829 = vmatmul.bf16.gmra.mxu0 %v2247
    %v2830 = vpop.f32.mrf.mxu0
    %v2831 = vadd.f32 %v2507, %v2830
    %v2832 = vpop.f32.mrf.mxu0
    %v2833 = vadd.f32 %v2507, %v2832
    %2834 = vmatmul.bf16.gmra.mxu0 %v2248
    %v2835 = vpop.f32.mrf.mxu0
    %v2836 = vadd.f32 %v2507, %v2835
    %v2837 = vpop.f32.mrf.mxu0
    %v2838 = vadd.f32 %v2507, %v2837
    %2839 = vdwg.mxu0
    %2840 = vmatpush.bf16.msra.mxu0 %v2685
    %2841 = vmatpush.bf16.msra.mxu0 %v2683
    %2842 = vmatpush.bf16.msra.mxu0 %v2681
    %2843 = vmatpush.bf16.msra.mxu0 %v2679
    %2844 = vmatpush.bf16.msra.mxu0 %v2677
    %2845 = vmatpush.bf16.msra.mxu0 %v2675
    %2846 = vmatpush.bf16.msra.mxu0 %v2673
    %2847 = vmatpush.bf16.msra.mxu0 %v2671
    %2848 = vmatmul.bf16.gmra.mxu0 %v2329
    %v2849 = vpop.f32.mrf.mxu0
    %v2850 = vadd.f32 %v2761, %v2849
    %v2851 = vpop.f32.mrf.mxu0
    %v2852 = vadd.f32 %v2763, %v2851
    %2853 = vmatmul.bf16.gmra.mxu0 %v2330
    %v2854 = vpop.f32.mrf.mxu0
    %v2855 = vadd.f32 %v2766, %v2854
    %v2856 = vpop.f32.mrf.mxu0
    %v2857 = vadd.f32 %v2768, %v2856
    %2858 = vmatmul.bf16.gmra.mxu0 %v2331
    %v2859 = vpop.f32.mrf.mxu0
    %v2860 = vadd.f32 %v2771, %v2859
    %v2861 = vpop.f32.mrf.mxu0
    %v2862 = vadd.f32 %v2773, %v2861
    %2863 = vmatmul.bf16.gmra.mxu0 %v2332
    %v2864 = vpop.f32.mrf.mxu0
    %v2865 = vadd.f32 %v2776, %v2864
    %v2866 = vpop.f32.mrf.mxu0
    %v2867 = vadd.f32 %v2778, %v2866
    %2868 = vmatmul.bf16.gmra.mxu0 %v2333
    %v2869 = vpop.f32.mrf.mxu0
    %v2870 = vadd.f32 %v2781, %v2869
    %v2871 = vpop.f32.mrf.mxu0
    %v2872 = vadd.f32 %v2783, %v2871
    %2873 = vmatmul.bf16.gmra.mxu0 %v2334
    %v2874 = vpop.f32.mrf.mxu0
    %v2875 = vadd.f32 %v2786, %v2874
    %v2876 = vpop.f32.mrf.mxu0
    %v2877 = vadd.f32 %v2788, %v2876
    %2878 = vmatmul.bf16.gmra.mxu0 %v2335
    %v2879 = vpop.f32.mrf.mxu0
    %v2880 = vadd.f32 %v2791, %v2879
    %v2881 = vpop.f32.mrf.mxu0
    %v2882 = vadd.f32 %v2793, %v2881
    %2883 = vmatmul.bf16.gmra.mxu0 %v2336
    %v2884 = vpop.f32.mrf.mxu0
    %v2885 = vadd.f32 %v2796, %v2884
    %v2886 = vpop.f32.mrf.mxu0
    %v2887 = vadd.f32 %v2798, %v2886
    %2888 = vmatmul.bf16.gmra.mxu0 %v2337
    %v2889 = vpop.f32.mrf.mxu0
    %v2890 = vadd.f32 %v2801, %v2889
    %v2891 = vpop.f32.mrf.mxu0
    %v2892 = vadd.f32 %v2803, %v2891
    %2893 = vmatmul.bf16.gmra.mxu0 %v2338
    %v2894 = vpop.f32.mrf.mxu0
    %v2895 = vadd.f32 %v2806, %v2894
    %v2896 = vpop.f32.mrf.mxu0
    %v2897 = vadd.f32 %v2808, %v2896
    %2898 = vmatmul.bf16.gmra.mxu0 %v2339
    %v2899 = vpop.f32.mrf.mxu0
    %v2900 = vadd.f32 %v2811, %v2899
    %v2901 = vpop.f32.mrf.mxu0
    %v2902 = vadd.f32 %v2813, %v2901
    %2903 = vmatmul.bf16.gmra.mxu0 %v2340
    %v2904 = vpop.f32.mrf.mxu0
    %v2905 = vadd.f32 %v2816, %v2904
    %v2906 = vpop.f32.mrf.mxu0
    %v2907 = vadd.f32 %v2818, %v2906
    %2908 = vmatmul.bf16.gmra.mxu0 %v2341
    %v2909 = vpop.f32.mrf.mxu0
    %v2910 = vadd.f32 %v2821, %v2909
    %v2911 = vpop.f32.mrf.mxu0
    %v2912 = vadd.f32 %v2823, %v2911
    %2913 = vmatmul.bf16.gmra.mxu0 %v2342
    %v2914 = vpop.f32.mrf.mxu0
    %v2915 = vadd.f32 %v2826, %v2914
    %v2916 = vpop.f32.mrf.mxu0
    %v2917 = vadd.f32 %v2828, %v2916
    %2918 = vmatmul.bf16.gmra.mxu0 %v2343
    %v2919 = vpop.f32.mrf.mxu0
    %v2920 = vadd.f32 %v2831, %v2919
    %v2921 = vpop.f32.mrf.mxu0
    %v2922 = vadd.f32 %v2833, %v2921
    %2923 = vmatmul.bf16.gmra.mxu0 %v2344
    %v2924 = vpop.f32.mrf.mxu0
    %v2925 = vadd.f32 %v2836, %v2924
    %v2926 = vpop.f32.mrf.mxu0
    %v2927 = vadd.f32 %v2838, %v2926
    %2928 = vdwg.mxu0
    %2929 = vmatpush.bf16.msra.mxu0 %v2701
    %2930 = vmatpush.bf16.msra.mxu0 %v2699
    %2931 = vmatpush.bf16.msra.mxu0 %v2697
    %2932 = vmatpush.bf16.msra.mxu0 %v2695
    %2933 = vmatpush.bf16.msra.mxu0 %v2693
    %2934 = vmatpush.bf16.msra.mxu0 %v2691
    %2935 = vmatpush.bf16.msra.mxu0 %v2689
    %2936 = vmatpush.bf16.msra.mxu0 %v2687
    %2937 = vmatmul.bf16.gmra.mxu0 %v2425
    %v2938 = vpop.f32.mrf.mxu0
    %v2939 = vadd.f32 %v2850, %v2938
    %v2940 = vpop.f32.mrf.mxu0
    %v2941 = vadd.f32 %v2852, %v2940
    %2942 = vmatmul.bf16.gmra.mxu0 %v2426
    %v2943 = vpop.f32.mrf.mxu0
    %v2944 = vadd.f32 %v2855, %v2943
    %v2945 = vpop.f32.mrf.mxu0
    %v2946 = vadd.f32 %v2857, %v2945
    %2947 = vmatmul.bf16.gmra.mxu0 %v2427
    %v2948 = vpop.f32.mrf.mxu0
    %v2949 = vadd.f32 %v2860, %v2948
    %v2950 = vpop.f32.mrf.mxu0
    %v2951 = vadd.f32 %v2862, %v2950
    %2952 = vmatmul.bf16.gmra.mxu0 %v2428
    %v2953 = vpop.f32.mrf.mxu0
    %v2954 = vadd.f32 %v2865, %v2953
    %v2955 = vpop.f32.mrf.mxu0
    %v2956 = vadd.f32 %v2867, %v2955
    %2957 = vmatmul.bf16.gmra.mxu0 %v2429
    %v2958 = vpop.f32.mrf.mxu0
    %v2959 = vadd.f32 %v2870, %v2958
    %v2960 = vpop.f32.mrf.mxu0
    %v2961 = vadd.f32 %v2872, %v2960
    %2962 = vmatmul.bf16.gmra.mxu0 %v2430
    %v2963 = vpop.f32.mrf.mxu0
    %v2964 = vadd.f32 %v2875, %v2963
    %v2965 = vpop.f32.mrf.mxu0
    %v2966 = vadd.f32 %v2877, %v2965
    %2967 = vmatmul.bf16.gmra.mxu0 %v2431
    %v2968 = vpop.f32.mrf.mxu0
    %v2969 = vadd.f32 %v2880, %v2968
    %v2970 = vpop.f32.mrf.mxu0
    %v2971 = vadd.f32 %v2882, %v2970
    %2972 = vmatmul.bf16.gmra.mxu0 %v2432
    %v2973 = vpop.f32.mrf.mxu0
    %v2974 = vadd.f32 %v2885, %v2973
    %v2975 = vpop.f32.mrf.mxu0
    %v2976 = vadd.f32 %v2887, %v2975
    %2977 = vmatmul.bf16.gmra.mxu0 %v2433
    %v2978 = vpop.f32.mrf.mxu0
    %v2979 = vadd.f32 %v2890, %v2978
    %v2980 = vpop.f32.mrf.mxu0
    %v2981 = vadd.f32 %v2892, %v2980
    %2982 = vmatmul.bf16.gmra.mxu0 %v2434
    %v2983 = vpop.f32.mrf.mxu0
    %v2984 = vadd.f32 %v2895, %v2983
    %v2985 = vpop.f32.mrf.mxu0
    %v2986 = vadd.f32 %v2897, %v2985
    %2987 = vmatmul.bf16.gmra.mxu0 %v2435
    %v2988 = vpop.f32.mrf.mxu0
    %v2989 = vadd.f32 %v2900, %v2988
    %v2990 = vpop.f32.mrf.mxu0
    %v2991 = vadd.f32 %v2902, %v2990
    %2992 = vmatmul.bf16.gmra.mxu0 %v2436
    %v2993 = vpop.f32.mrf.mxu0
    %v2994 = vadd.f32 %v2905, %v2993
    %v2995 = vpop.f32.mrf.mxu0
    %v2996 = vadd.f32 %v2907, %v2995
    %2997 = vmatmul.bf16.gmra.mxu0 %v2437
    %v2998 = vpop.f32.mrf.mxu0
    %v2999 = vadd.f32 %v2910, %v2998
    %v3000 = vpop.f32.mrf.mxu0
    %v3001 = vadd.f32 %v2912, %v3000
    %3002 = vmatmul.bf16.gmra.mxu0 %v2438
    %v3003 = vpop.f32.mrf.mxu0
    %v3004 = vadd.f32 %v2915, %v3003
    %v3005 = vpop.f32.mrf.mxu0
    %v3006 = vadd.f32 %v2917, %v3005
    %3007 = vmatmul.bf16.gmra.mxu0 %v2439
    %v3008 = vpop.f32.mrf.mxu0
    %v3009 = vadd.f32 %v2920, %v3008
    %v3010 = vpop.f32.mrf.mxu0
    %v3011 = vadd.f32 %v2922, %v3010
    %3012 = vmatmul.bf16.gmra.mxu0 %v2440
    %v3013 = vpop.f32.mrf.mxu0
    %v3014 = vadd.f32 %v2925, %v3013
    %v3015 = vpop.f32.mrf.mxu0
    %v3016 = vadd.f32 %v2927, %v3015
    %3017 = vdwg.mxu0
    %3018 = vmatpush.bf16.msra.mxu0 %v2670
    %3019 = vmatpush.bf16.msra.mxu0 %v2668
    %3020 = vmatpush.bf16.msra.mxu0 %v2666
    %3021 = vmatpush.bf16.msra.mxu0 %v2664
    %3022 = vmatpush.bf16.msra.mxu0 %v2662
    %3023 = vmatpush.bf16.msra.mxu0 %v2660
    %3024 = vmatpush.bf16.msra.mxu0 %v2658
    %3025 = vmatpush.bf16.msra.mxu0 %v2656
    %3026 = vmatmul.bf16.gmra.mxu0 %v2233
    %v3027 = vpop.f32.mrf.mxu0
    %v3028 = vadd.f32 %v2508, %v3027
    %v3029 = vpop.f32.mrf.mxu0
    %v3030 = vadd.f32 %v2508, %v3029
    %3031 = vmatmul.bf16.gmra.mxu0 %v2234
    %v3032 = vpop.f32.mrf.mxu0
    %v3033 = vadd.f32 %v2508, %v3032
    %v3034 = vpop.f32.mrf.mxu0
    %v3035 = vadd.f32 %v2508, %v3034
    %3036 = vmatmul.bf16.gmra.mxu0 %v2235
    %v3037 = vpop.f32.mrf.mxu0
    %v3038 = vadd.f32 %v2508, %v3037
    %v3039 = vpop.f32.mrf.mxu0
    %v3040 = vadd.f32 %v2508, %v3039
    %3041 = vmatmul.bf16.gmra.mxu0 %v2236
    %v3042 = vpop.f32.mrf.mxu0
    %v3043 = vadd.f32 %v2508, %v3042
    %v3044 = vpop.f32.mrf.mxu0
    %v3045 = vadd.f32 %v2508, %v3044
    %3046 = vmatmul.bf16.gmra.mxu0 %v2237
    %v3047 = vpop.f32.mrf.mxu0
    %v3048 = vadd.f32 %v2508, %v3047
    %v3049 = vpop.f32.mrf.mxu0
    %v3050 = vadd.f32 %v2508, %v3049
    %3051 = vmatmul.bf16.gmra.mxu0 %v2238
    %v3052 = vpop.f32.mrf.mxu0
    %v3053 = vadd.f32 %v2508, %v3052
    %v3054 = vpop.f32.mrf.mxu0
    %v3055 = vadd.f32 %v2508, %v3054
    %3056 = vmatmul.bf16.gmra.mxu0 %v2239
    %v3057 = vpop.f32.mrf.mxu0
    %v3058 = vadd.f32 %v2508, %v3057
    %v3059 = vpop.f32.mrf.mxu0
    %v3060 = vadd.f32 %v2508, %v3059
    %3061 = vmatmul.bf16.gmra.mxu0 %v2240
    %v3062 = vpop.f32.mrf.mxu0
    %v3063 = vadd.f32 %v2508, %v3062
    %v3064 = vpop.f32.mrf.mxu0
    %v3065 = vadd.f32 %v2508, %v3064
    %3066 = vmatmul.bf16.gmra.mxu0 %v2241
    %v3067 = vpop.f32.mrf.mxu0
    %v3068 = vadd.f32 %v2508, %v3067
    %v3069 = vpop.f32.mrf.mxu0
    %v3070 = vadd.f32 %v2508, %v3069
    %3071 = vmatmul.bf16.gmra.mxu0 %v2242
    %v3072 = vpop.f32.mrf.mxu0
    %v3073 = vadd.f32 %v2508, %v3072
    %v3074 = vpop.f32.mrf.mxu0
    %v3075 = vadd.f32 %v2508, %v3074
    %3076 = vmatmul.bf16.gmra.mxu0 %v2243
    %v3077 = vpop.f32.mrf.mxu0
    %v3078 = vadd.f32 %v2508, %v3077
    %v3079 = vpop.f32.mrf.mxu0
    %v3080 = vadd.f32 %v2508, %v3079
    %3081 = vmatmul.bf16.gmra.mxu0 %v2244
    %v3082 = vpop.f32.mrf.mxu0
    %v3083 = vadd.f32 %v2508, %v3082
    %v3084 = vpop.f32.mrf.mxu0
    %v3085 = vadd.f32 %v2508, %v3084
    %3086 = vmatmul.bf16.gmra.mxu0 %v2245
    %v3087 = vpop.f32.mrf.mxu0
    %v3088 = vadd.f32 %v2508, %v3087
    %v3089 = vpop.f32.mrf.mxu0
    %v3090 = vadd.f32 %v2508, %v3089
    %3091 = vmatmul.bf16.gmra.mxu0 %v2246
    %v3092 = vpop.f32.mrf.mxu0
    %v3093 = vadd.f32 %v2508, %v3092
    %v3094 = vpop.f32.mrf.mxu0
    %v3095 = vadd.f32 %v2508, %v3094
    %3096 = vmatmul.bf16.gmra.mxu0 %v2247
    %v3097 = vpop.f32.mrf.mxu0
    %v3098 = vadd.f32 %v2508, %v3097
    %v3099 = vpop.f32.mrf.mxu0
    %v3100 = vadd.f32 %v2508, %v3099
    %3101 = vmatmul.bf16.gmra.mxu0 %v2248
    %v3102 = vpop.f32.mrf.mxu0
    %v3103 = vadd.f32 %v2508, %v3102
    %v3104 = vpop.f32.mrf.mxu0
    %v3105 = vadd.f32 %v2508, %v3104
    %3106 = vdwg.mxu0
    %3107 = vmatpush.bf16.msra.mxu0 %v2686
    %3108 = vmatpush.bf16.msra.mxu0 %v2684
    %3109 = vmatpush.bf16.msra.mxu0 %v2682
    %3110 = vmatpush.bf16.msra.mxu0 %v2680
    %3111 = vmatpush.bf16.msra.mxu0 %v2678
    %3112 = vmatpush.bf16.msra.mxu0 %v2676
    %3113 = vmatpush.bf16.msra.mxu0 %v2674
    %3114 = vmatpush.bf16.msra.mxu0 %v2672
    %3115 = vmatmul.bf16.gmra.mxu0 %v2329
    %v3116 = vpop.f32.mrf.mxu0
    %v3117 = vadd.f32 %v3028, %v3116
    %v3118 = vpop.f32.mrf.mxu0
    %v3119 = vadd.f32 %v3030, %v3118
    %3120 = vmatmul.bf16.gmra.mxu0 %v2330
    %v3121 = vpop.f32.mrf.mxu0
    %v3122 = vadd.f32 %v3033, %v3121
    %v3123 = vpop.f32.mrf.mxu0
    %v3124 = vadd.f32 %v3035, %v3123
    %3125 = vmatmul.bf16.gmra.mxu0 %v2331
    %v3126 = vpop.f32.mrf.mxu0
    %v3127 = vadd.f32 %v3038, %v3126
    %v3128 = vpop.f32.mrf.mxu0
    %v3129 = vadd.f32 %v3040, %v3128
    %3130 = vmatmul.bf16.gmra.mxu0 %v2332
    %v3131 = vpop.f32.mrf.mxu0
    %v3132 = vadd.f32 %v3043, %v3131
    %v3133 = vpop.f32.mrf.mxu0
    %v3134 = vadd.f32 %v3045, %v3133
    %3135 = vmatmul.bf16.gmra.mxu0 %v2333
    %v3136 = vpop.f32.mrf.mxu0
    %v3137 = vadd.f32 %v3048, %v3136
    %v3138 = vpop.f32.mrf.mxu0
    %v3139 = vadd.f32 %v3050, %v3138
    %3140 = vmatmul.bf16.gmra.mxu0 %v2334
    %v3141 = vpop.f32.mrf.mxu0
    %v3142 = vadd.f32 %v3053, %v3141
    %v3143 = vpop.f32.mrf.mxu0
    %v3144 = vadd.f32 %v3055, %v3143
    %3145 = vmatmul.bf16.gmra.mxu0 %v2335
    %v3146 = vpop.f32.mrf.mxu0
    %v3147 = vadd.f32 %v3058, %v3146
    %v3148 = vpop.f32.mrf.mxu0
    %v3149 = vadd.f32 %v3060, %v3148
    %3150 = vmatmul.bf16.gmra.mxu0 %v2336
    %v3151 = vpop.f32.mrf.mxu0
    %v3152 = vadd.f32 %v3063, %v3151
    %v3153 = vpop.f32.mrf.mxu0
    %v3154 = vadd.f32 %v3065, %v3153
    %3155 = vmatmul.bf16.gmra.mxu0 %v2337
    %v3156 = vpop.f32.mrf.mxu0
    %v3157 = vadd.f32 %v3068, %v3156
    %v3158 = vpop.f32.mrf.mxu0
    %v3159 = vadd.f32 %v3070, %v3158
    %3160 = vmatmul.bf16.gmra.mxu0 %v2338
    %v3161 = vpop.f32.mrf.mxu0
    %v3162 = vadd.f32 %v3073, %v3161
    %v3163 = vpop.f32.mrf.mxu0
    %v3164 = vadd.f32 %v3075, %v3163
    %3165 = vmatmul.bf16.gmra.mxu0 %v2339
    %v3166 = vpop.f32.mrf.mxu0
    %v3167 = vadd.f32 %v3078, %v3166
    %v3168 = vpop.f32.mrf.mxu0
    %v3169 = vadd.f32 %v3080, %v3168
    %3170 = vmatmul.bf16.gmra.mxu0 %v2340
    %v3171 = vpop.f32.mrf.mxu0
    %v3172 = vadd.f32 %v3083, %v3171
    %v3173 = vpop.f32.mrf.mxu0
    %v3174 = vadd.f32 %v3085, %v3173
    %3175 = vmatmul.bf16.gmra.mxu0 %v2341
    %v3176 = vpop.f32.mrf.mxu0
    %v3177 = vadd.f32 %v3088, %v3176
    %v3178 = vpop.f32.mrf.mxu0
    %v3179 = vadd.f32 %v3090, %v3178
    %3180 = vmatmul.bf16.gmra.mxu0 %v2342
    %v3181 = vpop.f32.mrf.mxu0
    %v3182 = vadd.f32 %v3093, %v3181
    %v3183 = vpop.f32.mrf.mxu0
    %v3184 = vadd.f32 %v3095, %v3183
    %3185 = vmatmul.bf16.gmra.mxu0 %v2343
    %v3186 = vpop.f32.mrf.mxu0
    %v3187 = vadd.f32 %v3098, %v3186
    %v3188 = vpop.f32.mrf.mxu0
    %v3189 = vadd.f32 %v3100, %v3188
    %3190 = vmatmul.bf16.gmra.mxu0 %v2344
    %v3191 = vpop.f32.mrf.mxu0
    %v3192 = vadd.f32 %v3103, %v3191
    %v3193 = vpop.f32.mrf.mxu0
    %v3194 = vadd.f32 %v3105, %v3193
    %3195 = vdwg.mxu0
    %3196 = vmatpush.bf16.msra.mxu0 %v2702
    %3197 = vmatpush.bf16.msra.mxu0 %v2700
    %3198 = vmatpush.bf16.msra.mxu0 %v2698
    %3199 = vmatpush.bf16.msra.mxu0 %v2696
    %3200 = vmatpush.bf16.msra.mxu0 %v2694
    %3201 = vmatpush.bf16.msra.mxu0 %v2692
    %3202 = vmatpush.bf16.msra.mxu0 %v2690
    %3203 = vmatpush.bf16.msra.mxu0 %v2688
    %3204 = vmatmul.bf16.gmra.mxu0 %v2425
    %v3205 = vpop.f32.mrf.mxu0
    %v3206 = vadd.f32 %v3117, %v3205
    %v3207 = vpop.f32.mrf.mxu0
    %v3208 = vadd.f32 %v3119, %v3207
    %3209 = vmatmul.bf16.gmra.mxu0 %v2426
    %v3210 = vpop.f32.mrf.mxu0
    %v3211 = vadd.f32 %v3122, %v3210
    %v3212 = vpop.f32.mrf.mxu0
    %v3213 = vadd.f32 %v3124, %v3212
    %3214 = vmatmul.bf16.gmra.mxu0 %v2427
    %v3215 = vpop.f32.mrf.mxu0
    %v3216 = vadd.f32 %v3127, %v3215
    %v3217 = vpop.f32.mrf.mxu0
    %v3218 = vadd.f32 %v3129, %v3217
    %3219 = vmatmul.bf16.gmra.mxu0 %v2428
    %v3220 = vpop.f32.mrf.mxu0
    %v3221 = vadd.f32 %v3132, %v3220
    %v3222 = vpop.f32.mrf.mxu0
    %v3223 = vadd.f32 %v3134, %v3222
    %3224 = vmatmul.bf16.gmra.mxu0 %v2429
    %v3225 = vpop.f32.mrf.mxu0
    %v3226 = vadd.f32 %v3137, %v3225
    %v3227 = vpop.f32.mrf.mxu0
    %v3228 = vadd.f32 %v3139, %v3227
    %3229 = vmatmul.bf16.gmra.mxu0 %v2430
    %v3230 = vpop.f32.mrf.mxu0
    %v3231 = vadd.f32 %v3142, %v3230
    %v3232 = vpop.f32.mrf.mxu0
    %v3233 = vadd.f32 %v3144, %v3232
    %3234 = vmatmul.bf16.gmra.mxu0 %v2431
    %v3235 = vpop.f32.mrf.mxu0
    %v3236 = vadd.f32 %v3147, %v3235
    %v3237 = vpop.f32.mrf.mxu0
    %v3238 = vadd.f32 %v3149, %v3237
    %3239 = vmatmul.bf16.gmra.mxu0 %v2432
    %v3240 = vpop.f32.mrf.mxu0
    %v3241 = vadd.f32 %v3152, %v3240
    %v3242 = vpop.f32.mrf.mxu0
    %v3243 = vadd.f32 %v3154, %v3242
    %3244 = vmatmul.bf16.gmra.mxu0 %v2433
    %v3245 = vpop.f32.mrf.mxu0
    %v3246 = vadd.f32 %v3157, %v3245
    %v3247 = vpop.f32.mrf.mxu0
    %v3248 = vadd.f32 %v3159, %v3247
    %3249 = vmatmul.bf16.gmra.mxu0 %v2434
    %v3250 = vpop.f32.mrf.mxu0
    %v3251 = vadd.f32 %v3162, %v3250
    %v3252 = vpop.f32.mrf.mxu0
    %v3253 = vadd.f32 %v3164, %v3252
    %3254 = vmatmul.bf16.gmra.mxu0 %v2435
    %v3255 = vpop.f32.mrf.mxu0
    %v3256 = vadd.f32 %v3167, %v3255
    %v3257 = vpop.f32.mrf.mxu0
    %v3258 = vadd.f32 %v3169, %v3257
    %3259 = vmatmul.bf16.gmra.mxu0 %v2436
    %v3260 = vpop.f32.mrf.mxu0
    %v3261 = vadd.f32 %v3172, %v3260
    %v3262 = vpop.f32.mrf.mxu0
    %v3263 = vadd.f32 %v3174, %v3262
    %3264 = vmatmul.bf16.gmra.mxu0 %v2437
    %v3265 = vpop.f32.mrf.mxu0
    %v3266 = vadd.f32 %v3177, %v3265
    %v3267 = vpop.f32.mrf.mxu0
    %v3268 = vadd.f32 %v3179, %v3267
    %3269 = vmatmul.bf16.gmra.mxu0 %v2438
    %v3270 = vpop.f32.mrf.mxu0
    %v3271 = vadd.f32 %v3182, %v3270
    %v3272 = vpop.f32.mrf.mxu0
    %v3273 = vadd.f32 %v3184, %v3272
    %3274 = vmatmul.bf16.gmra.mxu0 %v2439
    %v3275 = vpop.f32.mrf.mxu0
    %v3276 = vadd.f32 %v3187, %v3275
    %v3277 = vpop.f32.mrf.mxu0
    %v3278 = vadd.f32 %v3189, %v3277
    %3279 = vmatmul.bf16.gmra.mxu0 %v2440
    %v3280 = vpop.f32.mrf.mxu0
    %v3281 = vadd.f32 %v3192, %v3280
    %v3282 = vpop.f32.mrf.mxu0
    %v3283 = vadd.f32 %v3194, %v3282
    %3284 = vdwg.mxu0
    %v3285 = vmax.f32 %v2939, 0.0
    %v3286 = vmax.f32 %v3206, 0.0
    %v3287 = vmax.f32 %v2941, 0.0
    %v3288 = vmax.f32 %v3208, 0.0
    %v3289 = vmax.f32 %v2944, 0.0
    %v3290 = vmax.f32 %v3211, 0.0
    %v3291 = vmax.f32 %v2946, 0.0
    %v3292 = vmax.f32 %v3213, 0.0
    %v3293 = vmax.f32 %v2949, 0.0
    %v3294 = vmax.f32 %v3216, 0.0
    %v3295 = vmax.f32 %v2951, 0.0
    %v3296 = vmax.f32 %v3218, 0.0
    %v3297 = vmax.f32 %v2954, 0.0
    %v3298 = vmax.f32 %v3221, 0.0
    %v3299 = vmax.f32 %v2956, 0.0
    %v3300 = vmax.f32 %v3223, 0.0
    %v3301 = vmax.f32 %v2959, 0.0
    %v3302 = vmax.f32 %v3226, 0.0
    %v3303 = vmax.f32 %v2961, 0.0
    %v3304 = vmax.f32 %v3228, 0.0
    %v3305 = vmax.f32 %v2964, 0.0
    %v3306 = vmax.f32 %v3231, 0.0
    %v3307 = vmax.f32 %v2966, 0.0
    %v3308 = vmax.f32 %v3233, 0.0
    %v3309 = vmax.f32 %v2969, 0.0
    %v3310 = vmax.f32 %v3236, 0.0
    %v3311 = vmax.f32 %v2971, 0.0
    %v3312 = vmax.f32 %v3238, 0.0
    %v3313 = vmax.f32 %v2974, 0.0
    %v3314 = vmax.f32 %v3241, 0.0
    %v3315 = vmax.f32 %v2976, 0.0
    %v3316 = vmax.f32 %v3243, 0.0
    %v3317 = vmax.f32 %v2979, 0.0
    %v3318 = vmax.f32 %v3246, 0.0
    %v3319 = vmax.f32 %v2981, 0.0
    %v3320 = vmax.f32 %v3248, 0.0
    %v3321 = vmax.f32 %v2984, 0.0
    %v3322 = vmax.f32 %v3251, 0.0
    %v3323 = vmax.f32 %v2986, 0.0
    %v3324 = vmax.f32 %v3253, 0.0
    %v3325 = vmax.f32 %v2989, 0.0
    %v3326 = vmax.f32 %v3256, 0.0
    %v3327 = vmax.f32 %v2991, 0.0
    %v3328 = vmax.f32 %v3258, 0.0
    %v3329 = vmax.f32 %v2994, 0.0
    %v3330 = vmax.f32 %v3261, 0.0
    %v3331 = vmax.f32 %v2996, 0.0
    %v3332 = vmax.f32 %v3263, 0.0
    %v3333 = vmax.f32 %v2999, 0.0
    %v3334 = vmax.f32 %v3266, 0.0
    %v3335 = vmax.f32 %v3001, 0.0
    %v3336 = vmax.f32 %v3268, 0.0
    %v3337 = vmax.f32 %v3004, 0.0
    %v3338 = vmax.f32 %v3271, 0.0
    %v3339 = vmax.f32 %v3006, 0.0
    %v3340 = vmax.f32 %v3273, 0.0
    %v3341 = vmax.f32 %v3009, 0.0
    %v3342 = vmax.f32 %v3276, 0.0
    %v3343 = vmax.f32 %v3011, 0.0
    %v3344 = vmax.f32 %v3278, 0.0
    %v3345 = vmax.f32 %v3014, 0.0
    %v3346 = vmax.f32 %v3281, 0.0
    %v3347 = vmax.f32 %v3016, 0.0
    %v3348 = vmax.f32 %v3283, 0.0
    %v3349 = vrot.slane %v3285, 7
    %v3350 = vrot.slane %v3286, 7
    %v3351 = vrot.slane %v3287, 7
    %v3352 = vrot.slane %v3288, 7
    %v3353 = vrot.slane %v3289, 7
    %v3354 = vrot.slane %v3290, 7
    %v3355 = vrot.slane %v3291, 7
    %v3356 = vrot.slane %v3292, 7
    %v3357 = vrot.slane %v3293, 7
    %v3358 = vrot.slane %v3294, 7
    %v3359 = vrot.slane %v3295, 7
    %v3360 = vrot.slane %v3296, 7
    %v3361 = vrot.slane %v3297, 7
    %v3362 = vrot.slane %v3298, 7
    %v3363 = vrot.slane %v3299, 7
    %v3364 = vrot.slane %v3300, 7
    %v3365 = vrot.slane %v3301, 7
    %v3366 = vrot.slane %v3302, 7
    %v3367 = vrot.slane %v3303, 7
    %v3368 = vrot.slane %v3304, 7
    %v3369 = vrot.slane %v3305, 7
    %v3370 = vrot.slane %v3306, 7
    %v3371 = vrot.slane %v3307, 7
    %v3372 = vrot.slane %v3308, 7
    %v3373 = vrot.slane %v3309, 7
    %v3374 = vrot.slane %v3310, 7
    %v3375 = vrot.slane %v3311, 7
    %v3376 = vrot.slane %v3312, 7
    %v3377 = vrot.slane %v3313, 7
    %v3378 = vrot.slane %v3314, 7
    %v3379 = vrot.slane %v3315, 7
    %v3380 = vrot.slane %v3316, 7
    %v3381 = vrot.slane %v3317, 7
    %v3382 = vrot.slane %v3318, 7
    %v3383 = vrot.slane %v3319, 7
    %v3384 = vrot.slane %v3320, 7
    %v3385 = vrot.slane %v3321, 7
    %v3386 = vrot.slane %v3322, 7
    %v3387 = vrot.slane %v3323, 7
    %v3388 = vrot.slane %v3324, 7
    %v3389 = vrot.slane %v3325, 7
    %v3390 = vrot.slane %v3326, 7
    %v3391 = vrot.slane %v3327, 7
    %v3392 = vrot.slane %v3328, 7
    %v3393 = vrot.slane %v3329, 7
    %v3394 = vrot.slane %v3330, 7
    %v3395 = vrot.slane %v3331, 7
    %v3396 = vrot.slane %v3332, 7
    %v3397 = vrot.slane %v3333, 7
    %v3398 = vrot.slane %v3334, 7
    %v3399 = vrot.slane %v3335, 7
    %v3400 = vrot.slane %v3336, 7
    %v3401 = vrot.slane %v3337, 7
    %v3402 = vrot.slane %v3338, 7
    %v3403 = vrot.slane %v3339, 7
    %v3404 = vrot.slane %v3340, 7
    %v3405 = vrot.slane %v3341, 7
    %v3406 = vrot.slane %v3342, 7
    %v3407 = vrot.slane %v3343, 7
    %v3408 = vrot.slane %v3344, 7
    %v3409 = vrot.slane %v3345, 7
    %v3410 = vrot.slane %v3346, 7
    %v3411 = vrot.slane %v3347, 7
    %v3412 = vrot.slane %v3348, 7
    %v3413 = vsel %vm918, %v3409, %v3411
    %v3414 = vsel %vm918, %v3410, %v3412
    %v3415 = vsel %vm918, %v3407, %v3409
    %v3416 = vsel %vm918, %v3408, %v3410
    %v3417 = vsel %vm918, %v3405, %v3407
    %v3418 = vsel %vm918, %v3406, %v3408
    %v3419 = vsel %vm918, %v3403, %v3405
    %v3420 = vsel %vm918, %v3404, %v3406
    %v3421 = vsel %vm918, %v3401, %v3403
    %v3422 = vsel %vm918, %v3402, %v3404
    %v3423 = vsel %vm918, %v3399, %v3401
    %v3424 = vsel %vm918, %v3400, %v3402
    %v3425 = vsel %vm918, %v3397, %v3399
    %v3426 = vsel %vm918, %v3398, %v3400
    %v3427 = vsel %vm918, %v3395, %v3397
    %v3428 = vsel %vm918, %v3396, %v3398
    %v3429 = vsel %vm918, %v3393, %v3395
    %v3430 = vsel %vm918, %v3394, %v3396
    %v3431 = vsel %vm918, %v3391, %v3393
    %v3432 = vsel %vm918, %v3392, %v3394
    %v3433 = vsel %vm918, %v3389, %v3391
    %v3434 = vsel %vm918, %v3390, %v3392
    %v3435 = vsel %vm918, %v3387, %v3389
    %v3436 = vsel %vm918, %v3388, %v3390
    %v3437 = vsel %vm918, %v3385, %v3387
    %v3438 = vsel %vm918, %v3386, %v3388
    %v3439 = vsel %vm918, %v3383, %v3385
    %v3440 = vsel %vm918, %v3384, %v3386
    %v3441 = vsel %vm918, %v3381, %v3383
    %v3442 = vsel %vm918, %v3382, %v3384
    %v3443 = vsel %vm918, %v3379, %v3381
    %v3444 = vsel %vm918, %v3380, %v3382
    %v3445 = vsel %vm918, %v3377, %v3379
    %v3446 = vsel %vm918, %v3378, %v3380
    %v3447 = vsel %vm918, %v3375, %v3377
    %v3448 = vsel %vm918, %v3376, %v3378
    %v3449 = vsel %vm918, %v3373, %v3375
    %v3450 = vsel %vm918, %v3374, %v3376
    %v3451 = vsel %vm918, %v3371, %v3373
    %v3452 = vsel %vm918, %v3372, %v3374
    %v3453 = vsel %vm918, %v3369, %v3371
    %v3454 = vsel %vm918, %v3370, %v3372
    %v3455 = vsel %vm918, %v3367, %v3369
    %v3456 = vsel %vm918, %v3368, %v3370
    %v3457 = vsel %vm918, %v3365, %v3367
    %v3458 = vsel %vm918, %v3366, %v3368
    %v3459 = vsel %vm918, %v3363, %v3365
    %v3460 = vsel %vm918, %v3364, %v3366
    %v3461 = vsel %vm918, %v3361, %v3363
    %v3462 = vsel %vm918, %v3362, %v3364
    %v3463 = vsel %vm918, %v3359, %v3361
    %v3464 = vsel %vm918, %v3360, %v3362
    %v3465 = vsel %vm918, %v3357, %v3359
    %v3466 = vsel %vm918, %v3358, %v3360
    %v3467 = vsel %vm918, %v3355, %v3357
    %v3468 = vsel %vm918, %v3356, %v3358
    %v3469 = vsel %vm918, %v3353, %v3355
    %v3470 = vsel %vm918, %v3354, %v3356
    %v3471 = vsel %vm918, %v3351, %v3353
    %v3472 = vsel %vm918, %v3352, %v3354
    %v3473 = vsel %vm918, %v3349, %v3351
    %v3474 = vsel %vm918, %v3350, %v3352
    %v3475 = vsel %vm918, %v3411, %v3349
    %v3476 = vsel %vm918, %v3412, %v3350
    %v3477 = vpack.c.bf16 %v3476, %v3475
    %v3478 = vpack.c.bf16 %v3474, %v3473
    %v3479 = vpack.c.bf16 %v3472, %v3471
    %v3480 = vpack.c.bf16 %v3470, %v3469
    %v3481 = vpack.c.bf16 %v3468, %v3467
    %v3482 = vpack.c.bf16 %v3466, %v3465
    %v3483 = vpack.c.bf16 %v3464, %v3463
    %v3484 = vpack.c.bf16 %v3462, %v3461
    %v3485 = vpack.c.bf16 %v3460, %v3459
    %v3486 = vpack.c.bf16 %v3458, %v3457
    %v3487 = vpack.c.bf16 %v3456, %v3455
    %v3488 = vpack.c.bf16 %v3454, %v3453
    %v3489 = vpack.c.bf16 %v3452, %v3451
    %v3490 = vpack.c.bf16 %v3450, %v3449
    %v3491 = vpack.c.bf16 %v3448, %v3447
    %v3492 = vpack.c.bf16 %v3446, %v3445
    %v3493 = vpack.c.bf16 %v3444, %v3443
    %v3494 = vpack.c.bf16 %v3442, %v3441
    %v3495 = vpack.c.bf16 %v3440, %v3439
    %v3496 = vpack.c.bf16 %v3438, %v3437
    %v3497 = vpack.c.bf16 %v3436, %v3435
    %v3498 = vpack.c.bf16 %v3434, %v3433
    %v3499 = vpack.c.bf16 %v3432, %v3431
    %v3500 = vpack.c.bf16 %v3430, %v3429
    %v3501 = vpack.c.bf16 %v3428, %v3427
    %v3502 = vpack.c.bf16 %v3426, %v3425
    %v3503 = vpack.c.bf16 %v3424, %v3423
    %v3504 = vpack.c.bf16 %v3422, %v3421
    %v3505 = vpack.c.bf16 %v3420, %v3419
    %v3506 = vpack.c.bf16 %v3418, %v3417
    %v3507 = vpack.c.bf16 %v3416, %v3415
    %v3508 = vpack.c.bf16 %v3414, %v3413
    %v3509 = vsel %vm1047, %v3477, 0
    %v3510 = vsel %vm1048, %v3478, 0
    %v3511 = vsel %vm1049, %v3479, 0
    %v3512 = vsel %vm1050, %v3480, 0
    %v3513 = vsel %vm1051, %v3481, 0
    %v3514 = vsel %vm1052, %v3482, 0
    %v3515 = vsel %vm1053, %v3483, 0
    %v3516 = vsel %vm1054, %v3484, 0
    %v3517 = vsel %vm1055, %v3485, 0
    %v3518 = vsel %vm1056, %v3486, 0
    %v3519 = vsel %vm1057, %v3487, 0
    %v3520 = vsel %vm1058, %v3488, 0
    %v3521 = vsel %vm1059, %v3489, 0
    %v3522 = vsel %vm1060, %v3490, 0
    %v3523 = vsel %vm1061, %v3491, 0
    %v3524 = vsel %vm1062, %v3492, 0
    %v3525 = vsel %vm1063, %v3493, 0
    %v3526 = vsel %vm1064, %v3494, 0
    %v3527 = vsel %vm1065, %v3495, 0
    %v3528 = vsel %vm1066, %v3496, 0
    %v3529 = vsel %vm1067, %v3497, 0
    %v3530 = vsel %vm1068, %v3498, 0
    %v3531 = vsel %vm1069, %v3499, 0
    %v3532 = vsel %vm1070, %v3500, 0
    %v3533 = vsel %vm1071, %v3501, 0
    %v3534 = vsel %vm1072, %v3502, 0
    %v3535 = vsel %vm1073, %v3503, 0
    %v3536 = vsel %vm1074, %v3504, 0
    %v3537 = vsel %vm1075, %v3505, 0
    %v3538 = vsel %vm1076, %v3506, 0
    %v3539 = vsel %vm1077, %v3507, 0
    %v3540 = vsel %vm1078, %v3508, 0
    %v3541 = vrot.slane %v3285, 1
    %v3542 = vrot.slane %v3286, 1
    %v3543 = vrot.slane %v3287, 1
    %v3544 = vrot.slane %v3288, 1
    %v3545 = vrot.slane %v3289, 1
    %v3546 = vrot.slane %v3290, 1
    %v3547 = vrot.slane %v3291, 1
    %v3548 = vrot.slane %v3292, 1
    %v3549 = vrot.slane %v3293, 1
    %v3550 = vrot.slane %v3294, 1
    %v3551 = vrot.slane %v3295, 1
    %v3552 = vrot.slane %v3296, 1
    %v3553 = vrot.slane %v3297, 1
    %v3554 = vrot.slane %v3298, 1
    %v3555 = vrot.slane %v3299, 1
    %v3556 = vrot.slane %v3300, 1
    %v3557 = vrot.slane %v3301, 1
    %v3558 = vrot.slane %v3302, 1
    %v3559 = vrot.slane %v3303, 1
    %v3560 = vrot.slane %v3304, 1
    %v3561 = vrot.slane %v3305, 1
    %v3562 = vrot.slane %v3306, 1
    %v3563 = vrot.slane %v3307, 1
    %v3564 = vrot.slane %v3308, 1
    %v3565 = vrot.slane %v3309, 1
    %v3566 = vrot.slane %v3310, 1
    %v3567 = vrot.slane %v3311, 1
    %v3568 = vrot.slane %v3312, 1
    %v3569 = vrot.slane %v3313, 1
    %v3570 = vrot.slane %v3314, 1
    %v3571 = vrot.slane %v3315, 1
    %v3572 = vrot.slane %v3316, 1
    %v3573 = vrot.slane %v3317, 1
    %v3574 = vrot.slane %v3318, 1
    %v3575 = vrot.slane %v3319, 1
    %v3576 = vrot.slane %v3320, 1
    %v3577 = vrot.slane %v3321, 1
    %v3578 = vrot.slane %v3322, 1
    %v3579 = vrot.slane %v3323, 1
    %v3580 = vrot.slane %v3324, 1
    %v3581 = vrot.slane %v3325, 1
    %v3582 = vrot.slane %v3326, 1
    %v3583 = vrot.slane %v3327, 1
    %v3584 = vrot.slane %v3328, 1
    %v3585 = vrot.slane %v3329, 1
    %v3586 = vrot.slane %v3330, 1
    %v3587 = vrot.slane %v3331, 1
    %v3588 = vrot.slane %v3332, 1
    %v3589 = vrot.slane %v3333, 1
    %v3590 = vrot.slane %v3334, 1
    %v3591 = vrot.slane %v3335, 1
    %v3592 = vrot.slane %v3336, 1
    %v3593 = vrot.slane %v3337, 1
    %v3594 = vrot.slane %v3338, 1
    %v3595 = vrot.slane %v3339, 1
    %v3596 = vrot.slane %v3340, 1
    %v3597 = vrot.slane %v3341, 1
    %v3598 = vrot.slane %v3342, 1
    %v3599 = vrot.slane %v3343, 1
    %v3600 = vrot.slane %v3344, 1
    %v3601 = vrot.slane %v3345, 1
    %v3602 = vrot.slane %v3346, 1
    %v3603 = vrot.slane %v3347, 1
    %v3604 = vrot.slane %v3348, 1
    %v3605 = vsel %vm1143, %v3601, %v3603
    %v3606 = vsel %vm1143, %v3602, %v3604
    %v3607 = vsel %vm1143, %v3599, %v3601
    %v3608 = vsel %vm1143, %v3600, %v3602
    %v3609 = vsel %vm1143, %v3597, %v3599
    %v3610 = vsel %vm1143, %v3598, %v3600
    %v3611 = vsel %vm1143, %v3595, %v3597
    %v3612 = vsel %vm1143, %v3596, %v3598
    %v3613 = vsel %vm1143, %v3593, %v3595
    %v3614 = vsel %vm1143, %v3594, %v3596
    %v3615 = vsel %vm1143, %v3591, %v3593
    %v3616 = vsel %vm1143, %v3592, %v3594
    %v3617 = vsel %vm1143, %v3589, %v3591
    %v3618 = vsel %vm1143, %v3590, %v3592
    %v3619 = vsel %vm1143, %v3587, %v3589
    %v3620 = vsel %vm1143, %v3588, %v3590
    %v3621 = vsel %vm1143, %v3585, %v3587
    %v3622 = vsel %vm1143, %v3586, %v3588
    %v3623 = vsel %vm1143, %v3583, %v3585
    %v3624 = vsel %vm1143, %v3584, %v3586
    %v3625 = vsel %vm1143, %v3581, %v3583
    %v3626 = vsel %vm1143, %v3582, %v3584
    %v3627 = vsel %vm1143, %v3579, %v3581
    %v3628 = vsel %vm1143, %v3580, %v3582
    %v3629 = vsel %vm1143, %v3577, %v3579
    %v3630 = vsel %vm1143, %v3578, %v3580
    %v3631 = vsel %vm1143, %v3575, %v3577
    %v3632 = vsel %vm1143, %v3576, %v3578
    %v3633 = vsel %vm1143, %v3573, %v3575
    %v3634 = vsel %vm1143, %v3574, %v3576
    %v3635 = vsel %vm1143, %v3571, %v3573
    %v3636 = vsel %vm1143, %v3572, %v3574
    %v3637 = vsel %vm1143, %v3569, %v3571
    %v3638 = vsel %vm1143, %v3570, %v3572
    %v3639 = vsel %vm1143, %v3567, %v3569
    %v3640 = vsel %vm1143, %v3568, %v3570
    %v3641 = vsel %vm1143, %v3565, %v3567
    %v3642 = vsel %vm1143, %v3566, %v3568
    %v3643 = vsel %vm1143, %v3563, %v3565
    %v3644 = vsel %vm1143, %v3564, %v3566
    %v3645 = vsel %vm1143, %v3561, %v3563
    %v3646 = vsel %vm1143, %v3562, %v3564
    %v3647 = vsel %vm1143, %v3559, %v3561
    %v3648 = vsel %vm1143, %v3560, %v3562
    %v3649 = vsel %vm1143, %v3557, %v3559
    %v3650 = vsel %vm1143, %v3558, %v3560
    %v3651 = vsel %vm1143, %v3555, %v3557
    %v3652 = vsel %vm1143, %v3556, %v3558
    %v3653 = vsel %vm1143, %v3553, %v3555
    %v3654 = vsel %vm1143, %v3554, %v3556
    %v3655 = vsel %vm1143, %v3551, %v3553
    %v3656 = vsel %vm1143, %v3552, %v3554
    %v3657 = vsel %vm1143, %v3549, %v3551
    %v3658 = vsel %vm1143, %v3550, %v3552
    %v3659 = vsel %vm1143, %v3547, %v3549
    %v3660 = vsel %vm1143, %v3548, %v3550
    %v3661 = vsel %vm1143, %v3545, %v3547
    %v3662 = vsel %vm1143, %v3546, %v3548
    %v3663 = vsel %vm1143, %v3543, %v3545
    %v3664 = vsel %vm1143, %v3544, %v3546
    %v3665 = vsel %vm1143, %v3541, %v3543
    %v3666 = vsel %vm1143, %v3542, %v3544
    %v3667 = vsel %vm1143, %v3603, %v3541
    %v3668 = vsel %vm1143, %v3604, %v3542
    %v3669 = vpack.c.bf16 %v3666, %v3665
    %v3670 = vpack.c.bf16 %v3664, %v3663
    %v3671 = vpack.c.bf16 %v3662, %v3661
    %v3672 = vpack.c.bf16 %v3660, %v3659
    %v3673 = vpack.c.bf16 %v3658, %v3657
    %v3674 = vpack.c.bf16 %v3656, %v3655
    %v3675 = vpack.c.bf16 %v3654, %v3653
    %v3676 = vpack.c.bf16 %v3652, %v3651
    %v3677 = vpack.c.bf16 %v3650, %v3649
    %v3678 = vpack.c.bf16 %v3648, %v3647
    %v3679 = vpack.c.bf16 %v3646, %v3645
    %v3680 = vpack.c.bf16 %v3644, %v3643
    %v3681 = vpack.c.bf16 %v3642, %v3641
    %v3682 = vpack.c.bf16 %v3640, %v3639
    %v3683 = vpack.c.bf16 %v3638, %v3637
    %v3684 = vpack.c.bf16 %v3636, %v3635
    %v3685 = vpack.c.bf16 %v3634, %v3633
    %v3686 = vpack.c.bf16 %v3632, %v3631
    %v3687 = vpack.c.bf16 %v3630, %v3629
    %v3688 = vpack.c.bf16 %v3628, %v3627
    %v3689 = vpack.c.bf16 %v3626, %v3625
    %v3690 = vpack.c.bf16 %v3624, %v3623
    %v3691 = vpack.c.bf16 %v3622, %v3621
    %v3692 = vpack.c.bf16 %v3620, %v3619
    %v3693 = vpack.c.bf16 %v3618, %v3617
    %v3694 = vpack.c.bf16 %v3616, %v3615
    %v3695 = vpack.c.bf16 %v3614, %v3613
    %v3696 = vpack.c.bf16 %v3612, %v3611
    %v3697 = vpack.c.bf16 %v3610, %v3609
    %v3698 = vpack.c.bf16 %v3608, %v3607
    %v3699 = vpack.c.bf16 %v3606, %v3605
    %v3700 = vpack.c.bf16 %v3668, %v3667
    %v3701 = vsel %vm1272, %v3669, 0
    %v3702 = vsel %vm1273, %v3670, 0
    %v3703 = vsel %vm1274, %v3671, 0
    %v3704 = vsel %vm1275, %v3672, 0
    %v3705 = vsel %vm1276, %v3673, 0
    %v3706 = vsel %vm1277, %v3674, 0
    %v3707 = vsel %vm1278, %v3675, 0
    %v3708 = vsel %vm1279, %v3676, 0
    %v3709 = vsel %vm1280, %v3677, 0
    %v3710 = vsel %vm1281, %v3678, 0
    %v3711 = vsel %vm1282, %v3679, 0
    %v3712 = vsel %vm1283, %v3680, 0
    %v3713 = vsel %vm1284, %v3681, 0
    %v3714 = vsel %vm1285, %v3682, 0
    %v3715 = vsel %vm1286, %v3683, 0
    %v3716 = vsel %vm1287, %v3684, 0
    %v3717 = vsel %vm1288, %v3685, 0
    %v3718 = vsel %vm1289, %v3686, 0
    %v3719 = vsel %vm1290, %v3687, 0
    %v3720 = vsel %vm1291, %v3688, 0
    %v3721 = vsel %vm1292, %v3689, 0
    %v3722 = vsel %vm1293, %v3690, 0
    %v3723 = vsel %vm1294, %v3691, 0
    %v3724 = vsel %vm1295, %v3692, 0
    %v3725 = vsel %vm1296, %v3693, 0
    %v3726 = vsel %vm1297, %v3694, 0
    %v3727 = vsel %vm1298, %v3695, 0
    %v3728 = vsel %vm1299, %v3696, 0
    %v3729 = vsel %vm1300, %v3697, 0
    %v3730 = vsel %vm1301, %v3698, 0
    %v3731 = vsel %vm1302, %v3699, 0
    %v3732 = vsel %vm1303, %v3700, 0
    %v3733 = vpack.c.bf16 %v3286, %v3285
    %v3734 = vpack.c.bf16 %v3288, %v3287
    %v3735 = vpack.c.bf16 %v3290, %v3289
    %v3736 = vpack.c.bf16 %v3292, %v3291
    %v3737 = vpack.c.bf16 %v3294, %v3293
    %v3738 = vpack.c.bf16 %v3296, %v3295
    %v3739 = vpack.c.bf16 %v3298, %v3297
    %v3740 = vpack.c.bf16 %v3300, %v3299
    %v3741 = vpack.c.bf16 %v3302, %v3301
    %v3742 = vpack.c.bf16 %v3304, %v3303
    %v3743 = vpack.c.bf16 %v3306, %v3305
    %v3744 = vpack.c.bf16 %v3308, %v3307
    %v3745 = vpack.c.bf16 %v3310, %v3309
    %v3746 = vpack.c.bf16 %v3312, %v3311
    %v3747 = vpack.c.bf16 %v3314, %v3313
    %v3748 = vpack.c.bf16 %v3316, %v3315
    %v3749 = vpack.c.bf16 %v3318, %v3317
    %v3750 = vpack.c.bf16 %v3320, %v3319
    %v3751 = vpack.c.bf16 %v3322, %v3321
    %v3752 = vpack.c.bf16 %v3324, %v3323
    %v3753 = vpack.c.bf16 %v3326, %v3325
    %v3754 = vpack.c.bf16 %v3328, %v3327
    %v3755 = vpack.c.bf16 %v3330, %v3329
    %v3756 = vpack.c.bf16 %v3332, %v3331
    %v3757 = vpack.c.bf16 %v3334, %v3333
    %v3758 = vpack.c.bf16 %v3336, %v3335
    %v3759 = vpack.c.bf16 %v3338, %v3337
    %v3760 = vpack.c.bf16 %v3340, %v3339
    %v3761 = vpack.c.bf16 %v3342, %v3341
    %v3762 = vpack.c.bf16 %v3344, %v3343
    %v3763 = vpack.c.bf16 %v3346, %v3345
    %v3764 = vpack.c.bf16 %v3348, %v3347
    %v3797 = vunpack.c.l.b16 %v3509
    %v3798 = vunpack.c.h.b16 %v3509
    %v3799 = vunpack.c.l.b16 %v3510
    %v3800 = vunpack.c.h.b16 %v3510
    %v3801 = vunpack.c.l.b16 %v3511
    %v3802 = vunpack.c.h.b16 %v3511
    %v3803 = vunpack.c.l.b16 %v3512
    %v3804 = vunpack.c.h.b16 %v3512
    %v3805 = vunpack.c.l.b16 %v3513
    %v3806 = vunpack.c.h.b16 %v3513
    %v3807 = vunpack.c.l.b16 %v3514
    %v3808 = vunpack.c.h.b16 %v3514
    %v3809 = vunpack.c.l.b16 %v3515
    %v3810 = vunpack.c.h.b16 %v3515
    %v3811 = vunpack.c.l.b16 %v3516
    %v3812 = vunpack.c.h.b16 %v3516
    %v3813 = vunpack.c.l.b16 %v3517
    %v3814 = vunpack.c.h.b16 %v3517
    %v3815 = vunpack.c.l.b16 %v3518
    %v3816 = vunpack.c.h.b16 %v3518
    %v3817 = vunpack.c.l.b16 %v3519
    %v3818 = vunpack.c.h.b16 %v3519
    %v3819 = vunpack.c.l.b16 %v3520
    %v3820 = vunpack.c.h.b16 %v3520
    %v3821 = vunpack.c.l.b16 %v3521
    %v3822 = vunpack.c.h.b16 %v3521
    %v3823 = vunpack.c.l.b16 %v3522
    %v3824 = vunpack.c.h.b16 %v3522
    %v3825 = vunpack.c.l.b16 %v3523
    %v3826 = vunpack.c.h.b16 %v3523
    %v3827 = vunpack.c.l.b16 %v3524
    %v3828 = vunpack.c.h.b16 %v3524
    %v3829 = vunpack.c.l.b16 %v3525
    %v3830 = vunpack.c.h.b16 %v3525
    %v3831 = vunpack.c.l.b16 %v3526
    %v3832 = vunpack.c.h.b16 %v3526
    %v3833 = vunpack.c.l.b16 %v3527
    %v3834 = vunpack.c.h.b16 %v3527
    %v3835 = vunpack.c.l.b16 %v3528
    %v3836 = vunpack.c.h.b16 %v3528
    %v3837 = vunpack.c.l.b16 %v3529
    %v3838 = vunpack.c.h.b16 %v3529
    %v3839 = vunpack.c.l.b16 %v3530
    %v3840 = vunpack.c.h.b16 %v3530
    %v3841 = vunpack.c.l.b16 %v3531
    %v3842 = vunpack.c.h.b16 %v3531
    %v3843 = vunpack.c.l.b16 %v3532
    %v3844 = vunpack.c.h.b16 %v3532
    %v3845 = vunpack.c.l.b16 %v3533
    %v3846 = vunpack.c.h.b16 %v3533
    %v3847 = vunpack.c.l.b16 %v3534
    %v3848 = vunpack.c.h.b16 %v3534
    %v3849 = vunpack.c.l.b16 %v3535
    %v3850 = vunpack.c.h.b16 %v3535
    %v3851 = vunpack.c.l.b16 %v3536
    %v3852 = vunpack.c.h.b16 %v3536
    %v3853 = vunpack.c.l.b16 %v3537
    %v3854 = vunpack.c.h.b16 %v3537
    %v3855 = vunpack.c.l.b16 %v3538
    %v3856 = vunpack.c.h.b16 %v3538
    %v3857 = vunpack.c.l.b16 %v3539
    %v3858 = vunpack.c.h.b16 %v3539
    %v3859 = vunpack.c.l.b16 %v3540
    %v3860 = vunpack.c.h.b16 %v3540
    %v3861 = vpack.c.b16 %v3799, %v3797
    %v3862 = vpack.c.b16 %v3800, %v3798
    %v3863 = vpack.c.b16 %v3803, %v3801
    %v3864 = vpack.c.b16 %v3804, %v3802
    %v3865 = vpack.c.b16 %v3807, %v3805
    %v3866 = vpack.c.b16 %v3808, %v3806
    %v3867 = vpack.c.b16 %v3811, %v3809
    %v3868 = vpack.c.b16 %v3812, %v3810
    %v3869 = vpack.c.b16 %v3815, %v3813
    %v3870 = vpack.c.b16 %v3816, %v3814
    %v3871 = vpack.c.b16 %v3819, %v3817
    %v3872 = vpack.c.b16 %v3820, %v3818
    %v3873 = vpack.c.b16 %v3823, %v3821
    %v3874 = vpack.c.b16 %v3824, %v3822
    %v3875 = vpack.c.b16 %v3827, %v3825
    %v3876 = vpack.c.b16 %v3828, %v3826
    %v3877 = vpack.c.b16 %v3831, %v3829
    %v3878 = vpack.c.b16 %v3832, %v3830
    %v3879 = vpack.c.b16 %v3835, %v3833
    %v3880 = vpack.c.b16 %v3836, %v3834
    %v3881 = vpack.c.b16 %v3839, %v3837
    %v3882 = vpack.c.b16 %v3840, %v3838
    %v3883 = vpack.c.b16 %v3843, %v3841
    %v3884 = vpack.c.b16 %v3844, %v3842
    %v3885 = vpack.c.b16 %v3847, %v3845
    %v3886 = vpack.c.b16 %v3848, %v3846
    %v3887 = vpack.c.b16 %v3851, %v3849
    %v3888 = vpack.c.b16 %v3852, %v3850
    %v3889 = vpack.c.b16 %v3855, %v3853
    %v3890 = vpack.c.b16 %v3856, %v3854
    %v3891 = vpack.c.b16 %v3859, %v3857
    %v3892 = vpack.c.b16 %v3860, %v3858
    %v3957 = vunpack.c.l.b16 %v3733
    %v3958 = vunpack.c.h.b16 %v3733
    %v3959 = vunpack.c.l.b16 %v3734
    %v3960 = vunpack.c.h.b16 %v3734
    %v3961 = vunpack.c.l.b16 %v3735
    %v3962 = vunpack.c.h.b16 %v3735
    %v3963 = vunpack.c.l.b16 %v3736
    %v3964 = vunpack.c.h.b16 %v3736
    %v3965 = vunpack.c.l.b16 %v3737
    %v3966 = vunpack.c.h.b16 %v3737
    %v3967 = vunpack.c.l.b16 %v3738
    %v3968 = vunpack.c.h.b16 %v3738
    %v3969 = vunpack.c.l.b16 %v3739
    %v3970 = vunpack.c.h.b16 %v3739
    %v3971 = vunpack.c.l.b16 %v3740
    %v3972 = vunpack.c.h.b16 %v3740
    %v3973 = vunpack.c.l.b16 %v3741
    %v3974 = vunpack.c.h.b16 %v3741
    %v3975 = vunpack.c.l.b16 %v3742
    %v3976 = vunpack.c.h.b16 %v3742
    %v3977 = vunpack.c.l.b16 %v3743
    %v3978 = vunpack.c.h.b16 %v3743
    %v3979 = vunpack.c.l.b16 %v3744
    %v3980 = vunpack.c.h.b16 %v3744
    %v3981 = vunpack.c.l.b16 %v3745
    %v3982 = vunpack.c.h.b16 %v3745
    %v3983 = vunpack.c.l.b16 %v3746
    %v3984 = vunpack.c.h.b16 %v3746
    %v3985 = vunpack.c.l.b16 %v3747
    %v3986 = vunpack.c.h.b16 %v3747
    %v3987 = vunpack.c.l.b16 %v3748
    %v3988 = vunpack.c.h.b16 %v3748
    %v3989 = vunpack.c.l.b16 %v3749
    %v3990 = vunpack.c.h.b16 %v3749
    %v3991 = vunpack.c.l.b16 %v3750
    %v3992 = vunpack.c.h.b16 %v3750
    %v3993 = vunpack.c.l.b16 %v3751
    %v3994 = vunpack.c.h.b16 %v3751
    %v3995 = vunpack.c.l.b16 %v3752
    %v3996 = vunpack.c.h.b16 %v3752
    %v3997 = vunpack.c.l.b16 %v3753
    %v3998 = vunpack.c.h.b16 %v3753
    %v3999 = vunpack.c.l.b16 %v3754
    %v4000 = vunpack.c.h.b16 %v3754
    %v4001 = vunpack.c.l.b16 %v3755
    %v4002 = vunpack.c.h.b16 %v3755
    %v4003 = vunpack.c.l.b16 %v3756
    %v4004 = vunpack.c.h.b16 %v3756
    %v4005 = vunpack.c.l.b16 %v3757
    %v4006 = vunpack.c.h.b16 %v3757
    %v4007 = vunpack.c.l.b16 %v3758
    %v4008 = vunpack.c.h.b16 %v3758
    %v4009 = vunpack.c.l.b16 %v3759
    %v4010 = vunpack.c.h.b16 %v3759
    %v4011 = vunpack.c.l.b16 %v3760
    %v4012 = vunpack.c.h.b16 %v3760
    %v4013 = vunpack.c.l.b16 %v3761
    %v4014 = vunpack.c.h.b16 %v3761
    %v4015 = vunpack.c.l.b16 %v3762
    %v4016 = vunpack.c.h.b16 %v3762
    %v4017 = vunpack.c.l.b16 %v3763
    %v4018 = vunpack.c.h.b16 %v3763
    %v4019 = vunpack.c.l.b16 %v3764
    %v4020 = vunpack.c.h.b16 %v3764
    %v4021 = vpack.c.b16 %v3959, %v3957
    %v4022 = vpack.c.b16 %v3960, %v3958
    %v4023 = vpack.c.b16 %v3963, %v3961
    %v4024 = vpack.c.b16 %v3964, %v3962
    %v4025 = vpack.c.b16 %v3967, %v3965
    %v4026 = vpack.c.b16 %v3968, %v3966
    %v4027 = vpack.c.b16 %v3971, %v3969
    %v4028 = vpack.c.b16 %v3972, %v3970
    %v4029 = vpack.c.b16 %v3975, %v3973
    %v4030 = vpack.c.b16 %v3976, %v3974
    %v4031 = vpack.c.b16 %v3979, %v3977
    %v4032 = vpack.c.b16 %v3980, %v3978
    %v4033 = vpack.c.b16 %v3983, %v3981
    %v4034 = vpack.c.b16 %v3984, %v3982
    %v4035 = vpack.c.b16 %v3987, %v3985
    %v4036 = vpack.c.b16 %v3988, %v3986
    %v4037 = vpack.c.b16 %v3991, %v3989
    %v4038 = vpack.c.b16 %v3992, %v3990
    %v4039 = vpack.c.b16 %v3995, %v3993
    %v4040 = vpack.c.b16 %v3996, %v3994
    %v4041 = vpack.c.b16 %v3999, %v3997
    %v4042 = vpack.c.b16 %v4000, %v3998
    %v4043 = vpack.c.b16 %v4003, %v4001
    %v4044 = vpack.c.b16 %v4004, %v4002
    %v4045 = vpack.c.b16 %v4007, %v4005
    %v4046 = vpack.c.b16 %v4008, %v4006
    %v4047 = vpack.c.b16 %v4011, %v4009
    %v4048 = vpack.c.b16 %v4012, %v4010
    %v4049 = vpack.c.b16 %v4015, %v4013
    %v4050 = vpack.c.b16 %v4016, %v4014
    %v4051 = vpack.c.b16 %v4019, %v4017
    %v4052 = vpack.c.b16 %v4020, %v4018
    %v4117 = vunpack.c.l.b16 %v3701
    %v4118 = vunpack.c.h.b16 %v3701
    %v4119 = vunpack.c.l.b16 %v3702
    %v4120 = vunpack.c.h.b16 %v3702
    %v4121 = vunpack.c.l.b16 %v3703
    %v4122 = vunpack.c.h.b16 %v3703
    %v4123 = vunpack.c.l.b16 %v3704
    %v4124 = vunpack.c.h.b16 %v3704
    %v4125 = vunpack.c.l.b16 %v3705
    %v4126 = vunpack.c.h.b16 %v3705
    %v4127 = vunpack.c.l.b16 %v3706
    %v4128 = vunpack.c.h.b16 %v3706
    %v4129 = vunpack.c.l.b16 %v3707
    %v4130 = vunpack.c.h.b16 %v3707
    %v4131 = vunpack.c.l.b16 %v3708
    %v4132 = vunpack.c.h.b16 %v3708
    %v4133 = vunpack.c.l.b16 %v3709
    %v4134 = vunpack.c.h.b16 %v3709
    %v4135 = vunpack.c.l.b16 %v3710
    %v4136 = vunpack.c.h.b16 %v3710
    %v4137 = vunpack.c.l.b16 %v3711
    %v4138 = vunpack.c.h.b16 %v3711
    %v4139 = vunpack.c.l.b16 %v3712
    %v4140 = vunpack.c.h.b16 %v3712
    %v4141 = vunpack.c.l.b16 %v3713
    %v4142 = vunpack.c.h.b16 %v3713
    %v4143 = vunpack.c.l.b16 %v3714
    %v4144 = vunpack.c.h.b16 %v3714
    %v4145 = vunpack.c.l.b16 %v3715
    %v4146 = vunpack.c.h.b16 %v3715
    %v4147 = vunpack.c.l.b16 %v3716
    %v4148 = vunpack.c.h.b16 %v3716
    %v4149 = vunpack.c.l.b16 %v3717
    %v4150 = vunpack.c.h.b16 %v3717
    %v4151 = vunpack.c.l.b16 %v3718
    %v4152 = vunpack.c.h.b16 %v3718
    %v4153 = vunpack.c.l.b16 %v3719
    %v4154 = vunpack.c.h.b16 %v3719
    %v4155 = vunpack.c.l.b16 %v3720
    %v4156 = vunpack.c.h.b16 %v3720
    %v4157 = vunpack.c.l.b16 %v3721
    %v4158 = vunpack.c.h.b16 %v3721
    %v4159 = vunpack.c.l.b16 %v3722
    %v4160 = vunpack.c.h.b16 %v3722
    %v4161 = vunpack.c.l.b16 %v3723
    %v4162 = vunpack.c.h.b16 %v3723
    %v4163 = vunpack.c.l.b16 %v3724
    %v4164 = vunpack.c.h.b16 %v3724
    %v4165 = vunpack.c.l.b16 %v3725
    %v4166 = vunpack.c.h.b16 %v3725
    %v4167 = vunpack.c.l.b16 %v3726
    %v4168 = vunpack.c.h.b16 %v3726
    %v4169 = vunpack.c.l.b16 %v3727
    %v4170 = vunpack.c.h.b16 %v3727
    %v4171 = vunpack.c.l.b16 %v3728
    %v4172 = vunpack.c.h.b16 %v3728
    %v4173 = vunpack.c.l.b16 %v3729
    %v4174 = vunpack.c.h.b16 %v3729
    %v4175 = vunpack.c.l.b16 %v3730
    %v4176 = vunpack.c.h.b16 %v3730
    %v4177 = vunpack.c.l.b16 %v3731
    %v4178 = vunpack.c.h.b16 %v3731
    %v4179 = vunpack.c.l.b16 %v3732
    %v4180 = vunpack.c.h.b16 %v3732
    %v4181 = vpack.c.b16 %v4119, %v4117
    %v4182 = vpack.c.b16 %v4120, %v4118
    %v4183 = vpack.c.b16 %v4123, %v4121
    %v4184 = vpack.c.b16 %v4124, %v4122
    %v4185 = vpack.c.b16 %v4127, %v4125
    %v4186 = vpack.c.b16 %v4128, %v4126
    %v4187 = vpack.c.b16 %v4131, %v4129
    %v4188 = vpack.c.b16 %v4132, %v4130
    %v4189 = vpack.c.b16 %v4135, %v4133
    %v4190 = vpack.c.b16 %v4136, %v4134
    %v4191 = vpack.c.b16 %v4139, %v4137
    %v4192 = vpack.c.b16 %v4140, %v4138
    %v4193 = vpack.c.b16 %v4143, %v4141
    %v4194 = vpack.c.b16 %v4144, %v4142
    %v4195 = vpack.c.b16 %v4147, %v4145
    %v4196 = vpack.c.b16 %v4148, %v4146
    %v4197 = vpack.c.b16 %v4151, %v4149
    %v4198 = vpack.c.b16 %v4152, %v4150
    %v4199 = vpack.c.b16 %v4155, %v4153
    %v4200 = vpack.c.b16 %v4156, %v4154
    %v4201 = vpack.c.b16 %v4159, %v4157
    %v4202 = vpack.c.b16 %v4160, %v4158
    %v4203 = vpack.c.b16 %v4163, %v4161
    %v4204 = vpack.c.b16 %v4164, %v4162
    %v4205 = vpack.c.b16 %v4167, %v4165
    %v4206 = vpack.c.b16 %v4168, %v4166
    %v4207 = vpack.c.b16 %v4171, %v4169
    %v4208 = vpack.c.b16 %v4172, %v4170
    %v4209 = vpack.c.b16 %v4175, %v4173
    %v4210 = vpack.c.b16 %v4176, %v4174
    %v4211 = vpack.c.b16 %v4179, %v4177
    %v4212 = vpack.c.b16 %v4180, %v4178
    %v4245 = vld [vmem:[#allocation12] sm:$0xff]
    %v4246 = vld [vmem:[#allocation12 + $0x8] sm:$0xff]
    %v4247 = vld [vmem:[#allocation12 + $0x10] sm:$0xff]
    %v4248 = vld [vmem:[#allocation12 + $0x18] sm:$0xff]
    %v4249 = vld [vmem:[#allocation12 + $0x20] sm:$0xff]
    %v4250 = vld [vmem:[#allocation12 + $0x28] sm:$0xff]
    %v4251 = vld [vmem:[#allocation12 + $0x30] sm:$0xff]
    %v4252 = vld [vmem:[#allocation12 + $0x38] sm:$0xff]
    %v4253 = vld [vmem:[#allocation12 + $0x40] sm:$0xff]
    %v4254 = vld [vmem:[#allocation12 + $0x48] sm:$0xff]
    %v4255 = vld [vmem:[#allocation12 + $0x50] sm:$0xff]
    %v4256 = vld [vmem:[#allocation12 + $0x58] sm:$0xff]
    %v4257 = vld [vmem:[#allocation12 + $0x60] sm:$0xff]
    %v4258 = vld [vmem:[#allocation12 + $0x68] sm:$0xff]
    %v4259 = vld [vmem:[#allocation12 + $0x70] sm:$0xff]
    %v4260 = vld [vmem:[#allocation12 + $0x78] sm:$0xff]
    %v4261 = vld [vmem:[#allocation12 + $0x80] sm:$0xff]
    %v4262 = vld [vmem:[#allocation12 + $0x88] sm:$0xff]
    %v4263 = vld [vmem:[#allocation12 + $0x90] sm:$0xff]
    %v4264 = vld [vmem:[#allocation12 + $0x98] sm:$0xff]
    %v4265 = vld [vmem:[#allocation12 + $0xa0] sm:$0xff]
    %v4266 = vld [vmem:[#allocation12 + $0xa8] sm:$0xff]
    %v4267 = vld [vmem:[#allocation12 + $0xb0] sm:$0xff]
    %v4268 = vld [vmem:[#allocation12 + $0xb8] sm:$0xff]
    %v4269 = vld [vmem:[#allocation12 + $0xc0] sm:$0xff]
    %v4270 = vld [vmem:[#allocation12 + $0xc8] sm:$0xff]
    %v4271 = vld [vmem:[#allocation12 + $0xd0] sm:$0xff]
    %v4272 = vld [vmem:[#allocation12 + $0xd8] sm:$0xff]
    %v4273 = vld [vmem:[#allocation12 + $0xe0] sm:$0xff]
    %v4274 = vld [vmem:[#allocation12 + $0xe8] sm:$0xff]
    %v4275 = vld [vmem:[#allocation12 + $0xf0] sm:$0xff]
    %v4276 = vld [vmem:[#allocation12 + $0xf8] sm:$0xff]
    %v4277 = vld [vmem:[#allocation12 + $0x100] sm:$0xff]
    %v4278 = vld [vmem:[#allocation12 + $0x108] sm:$0xff]
    %v4279 = vld [vmem:[#allocation12 + $0x110] sm:$0xff]
    %v4280 = vld [vmem:[#allocation12 + $0x118] sm:$0xff]
    %v4281 = vld [vmem:[#allocation12 + $0x120] sm:$0xff]
    %v4282 = vld [vmem:[#allocation12 + $0x128] sm:$0xff]
    %v4283 = vld [vmem:[#allocation12 + $0x130] sm:$0xff]
    %v4284 = vld [vmem:[#allocation12 + $0x138] sm:$0xff]
    %v4285 = vld [vmem:[#allocation12 + $0x140] sm:$0xff]
    %v4286 = vld [vmem:[#allocation12 + $0x148] sm:$0xff]
    %v4287 = vld [vmem:[#allocation12 + $0x150] sm:$0xff]
    %v4288 = vld [vmem:[#allocation12 + $0x158] sm:$0xff]
    %v4289 = vld [vmem:[#allocation12 + $0x160] sm:$0xff]
    %v4290 = vld [vmem:[#allocation12 + $0x168] sm:$0xff]
    %v4291 = vld [vmem:[#allocation12 + $0x170] sm:$0xff]
    %v4292 = vld [vmem:[#allocation12 + $0x178] sm:$0xff]
    %v4293 = vld [vmem:[#allocation12 + $0x180] sm:$0xff]
    %v4294 = vld [vmem:[#allocation12 + $0x188] sm:$0xff]
    %v4295 = vld [vmem:[#allocation12 + $0x190] sm:$0xff]
    %v4296 = vld [vmem:[#allocation12 + $0x198] sm:$0xff]
    %v4297 = vld [vmem:[#allocation12 + $0x1a0] sm:$0xff]
    %v4298 = vld [vmem:[#allocation12 + $0x1a8] sm:$0xff]
    %v4299 = vld [vmem:[#allocation12 + $0x1b0] sm:$0xff]
    %v4300 = vld [vmem:[#allocation12 + $0x1b8] sm:$0xff]
    %v4301 = vld [vmem:[#allocation12 + $0x1c0] sm:$0xff]
    %v4302 = vld [vmem:[#allocation12 + $0x1c8] sm:$0xff]
    %v4303 = vld [vmem:[#allocation12 + $0x1d0] sm:$0xff]
    %v4304 = vld [vmem:[#allocation12 + $0x1d8] sm:$0xff]
    %v4305 = vld [vmem:[#allocation12 + $0x1e0] sm:$0xff]
    %v4306 = vld [vmem:[#allocation12 + $0x1e8] sm:$0xff]
    %v4307 = vld [vmem:[#allocation12 + $0x1f0] sm:$0xff]
    %v4308 = vld [vmem:[#allocation12 + $0x1f8] sm:$0xff]
    %v4309 = vld [vmem:[#allocation12 + $0x200] sm:$0xff]
    %v4310 = vld [vmem:[#allocation12 + $0x208] sm:$0xff]
    %v4311 = vld [vmem:[#allocation12 + $0x210] sm:$0xff]
    %v4312 = vld [vmem:[#allocation12 + $0x218] sm:$0xff]
    %v4313 = vld [vmem:[#allocation12 + $0x220] sm:$0xff]
    %v4314 = vld [vmem:[#allocation12 + $0x228] sm:$0xff]
    %v4315 = vld [vmem:[#allocation12 + $0x230] sm:$0xff]
    %v4316 = vld [vmem:[#allocation12 + $0x238] sm:$0xff]
    %v4317 = vld [vmem:[#allocation12 + $0x240] sm:$0xff]
    %v4318 = vld [vmem:[#allocation12 + $0x248] sm:$0xff]
    %v4319 = vld [vmem:[#allocation12 + $0x250] sm:$0xff]
    %v4320 = vld [vmem:[#allocation12 + $0x258] sm:$0xff]
    %v4321 = vld [vmem:[#allocation12 + $0x260] sm:$0xff]
    %v4322 = vld [vmem:[#allocation12 + $0x268] sm:$0xff]
    %v4323 = vld [vmem:[#allocation12 + $0x270] sm:$0xff]
    %v4324 = vld [vmem:[#allocation12 + $0x278] sm:$0xff]
    %v4325 = vld [vmem:[#allocation12 + $0x280] sm:$0xff]
    %v4326 = vld [vmem:[#allocation12 + $0x288] sm:$0xff]
    %v4327 = vld [vmem:[#allocation12 + $0x290] sm:$0xff]
    %v4328 = vld [vmem:[#allocation12 + $0x298] sm:$0xff]
    %v4329 = vld [vmem:[#allocation12 + $0x2a0] sm:$0xff]
    %v4330 = vld [vmem:[#allocation12 + $0x2a8] sm:$0xff]
    %v4331 = vld [vmem:[#allocation12 + $0x2b0] sm:$0xff]
    %v4332 = vld [vmem:[#allocation12 + $0x2b8] sm:$0xff]
    %v4333 = vld [vmem:[#allocation12 + $0x2c0] sm:$0xff]
    %v4334 = vld [vmem:[#allocation12 + $0x2c8] sm:$0xff]
    %v4335 = vld [vmem:[#allocation12 + $0x2d0] sm:$0xff]
    %v4336 = vld [vmem:[#allocation12 + $0x2d8] sm:$0xff]
    %v4337 = vld [vmem:[#allocation12 + $0x2e0] sm:$0xff]
    %v4338 = vld [vmem:[#allocation12 + $0x2e8] sm:$0xff]
    %v4339 = vld [vmem:[#allocation12 + $0x2f0] sm:$0xff]
    %v4340 = vld [vmem:[#allocation12 + $0x2f8] sm:$0xff]
    %v4341 = vld [vmem:[#allocation12 + $0x300] sm:$0xff]
    %v4342 = vld [vmem:[#allocation12 + $0x308] sm:$0xff]
    %v4343 = vld [vmem:[#allocation12 + $0x310] sm:$0xff]
    %v4344 = vld [vmem:[#allocation12 + $0x318] sm:$0xff]
    %v4345 = vld [vmem:[#allocation12 + $0x320] sm:$0xff]
    %v4346 = vld [vmem:[#allocation12 + $0x328] sm:$0xff]
    %v4347 = vld [vmem:[#allocation12 + $0x330] sm:$0xff]
    %v4348 = vld [vmem:[#allocation12 + $0x338] sm:$0xff]
    %v4349 = vld [vmem:[#allocation12 + $0x340] sm:$0xff]
    %v4350 = vld [vmem:[#allocation12 + $0x348] sm:$0xff]
    %v4351 = vld [vmem:[#allocation12 + $0x350] sm:$0xff]
    %v4352 = vld [vmem:[#allocation12 + $0x358] sm:$0xff]
    %v4353 = vld [vmem:[#allocation12 + $0x360] sm:$0xff]
    %v4354 = vld [vmem:[#allocation12 + $0x368] sm:$0xff]
    %v4355 = vld [vmem:[#allocation12 + $0x370] sm:$0xff]
    %v4356 = vld [vmem:[#allocation12 + $0x378] sm:$0xff]
    %v4357 = vld [vmem:[#allocation12 + $0x380] sm:$0xff]
    %v4358 = vld [vmem:[#allocation12 + $0x388] sm:$0xff]
    %v4359 = vld [vmem:[#allocation12 + $0x390] sm:$0xff]
    %v4360 = vld [vmem:[#allocation12 + $0x398] sm:$0xff]
    %v4361 = vld [vmem:[#allocation12 + $0x3a0] sm:$0xff]
    %v4362 = vld [vmem:[#allocation12 + $0x3a8] sm:$0xff]
    %v4363 = vld [vmem:[#allocation12 + $0x3b0] sm:$0xff]
    %v4364 = vld [vmem:[#allocation12 + $0x3b8] sm:$0xff]
    %v4365 = vld [vmem:[#allocation12 + $0x3c0] sm:$0xff]
    %v4366 = vld [vmem:[#allocation12 + $0x3c8] sm:$0xff]
    %v4367 = vld [vmem:[#allocation12 + $0x3d0] sm:$0xff]
    %v4368 = vld [vmem:[#allocation12 + $0x3d8] sm:$0xff]
    %v4369 = vld [vmem:[#allocation12 + $0x3e0] sm:$0xff]
    %v4370 = vld [vmem:[#allocation12 + $0x3e8] sm:$0xff]
    %v4371 = vld [vmem:[#allocation12 + $0x3f0] sm:$0xff]
    %v4372 = vld [vmem:[#allocation12 + $0x3f8] sm:$0xff]
    %v4373 = vld [vmem:[#allocation12 + $0x400] sm:$0xff]
    %v4374 = vld [vmem:[#allocation12 + $0x408] sm:$0xff]
    %v4375 = vld [vmem:[#allocation12 + $0x410] sm:$0xff]
    %v4376 = vld [vmem:[#allocation12 + $0x418] sm:$0xff]
    %v4377 = vld [vmem:[#allocation12 + $0x420] sm:$0xff]
    %v4378 = vld [vmem:[#allocation12 + $0x428] sm:$0xff]
    %v4379 = vld [vmem:[#allocation12 + $0x430] sm:$0xff]
    %v4380 = vld [vmem:[#allocation12 + $0x438] sm:$0xff]
    %v4381 = vld [vmem:[#allocation12 + $0x440] sm:$0xff]
    %v4382 = vld [vmem:[#allocation12 + $0x448] sm:$0xff]
    %v4383 = vld [vmem:[#allocation12 + $0x450] sm:$0xff]
    %v4384 = vld [vmem:[#allocation12 + $0x458] sm:$0xff]
    %v4385 = vld [vmem:[#allocation12 + $0x460] sm:$0xff]
    %v4386 = vld [vmem:[#allocation12 + $0x468] sm:$0xff]
    %v4387 = vld [vmem:[#allocation12 + $0x470] sm:$0xff]
    %v4388 = vld [vmem:[#allocation12 + $0x478] sm:$0xff]
    %v4389 = vld [vmem:[#allocation12 + $0x480] sm:$0xff]
    %v4390 = vld [vmem:[#allocation12 + $0x488] sm:$0xff]
    %v4391 = vld [vmem:[#allocation12 + $0x490] sm:$0xff]
    %v4392 = vld [vmem:[#allocation12 + $0x498] sm:$0xff]
    %v4393 = vld [vmem:[#allocation12 + $0x4a0] sm:$0xff]
    %v4394 = vld [vmem:[#allocation12 + $0x4a8] sm:$0xff]
    %v4395 = vld [vmem:[#allocation12 + $0x4b0] sm:$0xff]
    %v4396 = vld [vmem:[#allocation12 + $0x4b8] sm:$0xff]
    %v4397 = vld [vmem:[#allocation12 + $0x4c0] sm:$0xff]
    %v4398 = vld [vmem:[#allocation12 + $0x4c8] sm:$0xff]
    %v4399 = vld [vmem:[#allocation12 + $0x4d0] sm:$0xff]
    %v4400 = vld [vmem:[#allocation12 + $0x4d8] sm:$0xff]
    %v4401 = vld [vmem:[#allocation12 + $0x4e0] sm:$0xff]
    %v4402 = vld [vmem:[#allocation12 + $0x4e8] sm:$0xff]
    %v4403 = vld [vmem:[#allocation12 + $0x4f0] sm:$0xff]
    %v4404 = vld [vmem:[#allocation12 + $0x4f8] sm:$0xff]
    %v4405 = vld [vmem:[#allocation12 + $0x500] sm:$0xff]
    %v4406 = vld [vmem:[#allocation12 + $0x508] sm:$0xff]
    %v4407 = vld [vmem:[#allocation12 + $0x510] sm:$0xff]
    %v4408 = vld [vmem:[#allocation12 + $0x518] sm:$0xff]
    %v4409 = vld [vmem:[#allocation12 + $0x520] sm:$0xff]
    %v4410 = vld [vmem:[#allocation12 + $0x528] sm:$0xff]
    %v4411 = vld [vmem:[#allocation12 + $0x530] sm:$0xff]
    %v4412 = vld [vmem:[#allocation12 + $0x538] sm:$0xff]
    %v4413 = vld [vmem:[#allocation12 + $0x540] sm:$0xff]
    %v4414 = vld [vmem:[#allocation12 + $0x548] sm:$0xff]
    %v4415 = vld [vmem:[#allocation12 + $0x550] sm:$0xff]
    %v4416 = vld [vmem:[#allocation12 + $0x558] sm:$0xff]
    %v4417 = vld [vmem:[#allocation12 + $0x560] sm:$0xff]
    %v4418 = vld [vmem:[#allocation12 + $0x568] sm:$0xff]
    %v4419 = vld [vmem:[#allocation12 + $0x570] sm:$0xff]
    %v4420 = vld [vmem:[#allocation12 + $0x578] sm:$0xff]
    %v4421 = vld [vmem:[#allocation12 + $0x580] sm:$0xff]
    %v4422 = vld [vmem:[#allocation12 + $0x588] sm:$0xff]
    %v4423 = vld [vmem:[#allocation12 + $0x590] sm:$0xff]
    %v4424 = vld [vmem:[#allocation12 + $0x598] sm:$0xff]
    %v4425 = vld [vmem:[#allocation12 + $0x5a0] sm:$0xff]
    %v4426 = vld [vmem:[#allocation12 + $0x5a8] sm:$0xff]
    %v4427 = vld [vmem:[#allocation12 + $0x5b0] sm:$0xff]
    %v4428 = vld [vmem:[#allocation12 + $0x5b8] sm:$0xff]
    %v4429 = vld [vmem:[#allocation12 + $0x5c0] sm:$0xff]
    %v4430 = vld [vmem:[#allocation12 + $0x5c8] sm:$0xff]
    %v4431 = vld [vmem:[#allocation12 + $0x5d0] sm:$0xff]
    %v4432 = vld [vmem:[#allocation12 + $0x5d8] sm:$0xff]
    %v4433 = vld [vmem:[#allocation12 + $0x5e0] sm:$0xff]
    %v4434 = vld [vmem:[#allocation12 + $0x5e8] sm:$0xff]
    %v4435 = vld [vmem:[#allocation12 + $0x5f0] sm:$0xff]
    %v4436 = vld [vmem:[#allocation12 + $0x5f8] sm:$0xff]
    %v4437 = vld [vmem:[%s8] sm:$0xf]
    %v4439 = vperm.slane %v4437, 0
    %v4440 = vperm.slane %v4437, 1
    %v4441 = vperm.slane %v4437, 2
    %v4442 = vperm.slane %v4437, 3
    %v4639 = vunpack.c.l.b16 %v4245
    %v4640 = vunpack.c.h.b16 %v4245
    %v4641 = vunpack.c.l.b16 %v4246
    %v4642 = vunpack.c.h.b16 %v4246
    %v4643 = vunpack.c.l.b16 %v4247
    %v4644 = vunpack.c.h.b16 %v4247
    %v4645 = vunpack.c.l.b16 %v4248
    %v4646 = vunpack.c.h.b16 %v4248
    %v4647 = vunpack.c.l.b16 %v4249
    %v4648 = vunpack.c.h.b16 %v4249
    %v4649 = vunpack.c.l.b16 %v4250
    %v4650 = vunpack.c.h.b16 %v4250
    %v4651 = vunpack.c.l.b16 %v4251
    %v4652 = vunpack.c.h.b16 %v4251
    %v4653 = vunpack.c.l.b16 %v4252
    %v4654 = vunpack.c.h.b16 %v4252
    %v4655 = vunpack.c.l.b16 %v4253
    %v4656 = vunpack.c.h.b16 %v4253
    %v4657 = vunpack.c.l.b16 %v4254
    %v4658 = vunpack.c.h.b16 %v4254
    %v4659 = vunpack.c.l.b16 %v4255
    %v4660 = vunpack.c.h.b16 %v4255
    %v4661 = vunpack.c.l.b16 %v4256
    %v4662 = vunpack.c.h.b16 %v4256
    %v4663 = vunpack.c.l.b16 %v4257
    %v4664 = vunpack.c.h.b16 %v4257
    %v4665 = vunpack.c.l.b16 %v4258
    %v4666 = vunpack.c.h.b16 %v4258
    %v4667 = vunpack.c.l.b16 %v4259
    %v4668 = vunpack.c.h.b16 %v4259
    %v4669 = vunpack.c.l.b16 %v4260
    %v4670 = vunpack.c.h.b16 %v4260
    %v4671 = vunpack.c.l.b16 %v4261
    %v4672 = vunpack.c.h.b16 %v4261
    %v4673 = vunpack.c.l.b16 %v4262
    %v4674 = vunpack.c.h.b16 %v4262
    %v4675 = vunpack.c.l.b16 %v4263
    %v4676 = vunpack.c.h.b16 %v4263
    %v4677 = vunpack.c.l.b16 %v4264
    %v4678 = vunpack.c.h.b16 %v4264
    %v4679 = vunpack.c.l.b16 %v4265
    %v4680 = vunpack.c.h.b16 %v4265
    %v4681 = vunpack.c.l.b16 %v4266
    %v4682 = vunpack.c.h.b16 %v4266
    %v4683 = vunpack.c.l.b16 %v4267
    %v4684 = vunpack.c.h.b16 %v4267
    %v4685 = vunpack.c.l.b16 %v4268
    %v4686 = vunpack.c.h.b16 %v4268
    %v4687 = vunpack.c.l.b16 %v4269
    %v4688 = vunpack.c.h.b16 %v4269
    %v4689 = vunpack.c.l.b16 %v4270
    %v4690 = vunpack.c.h.b16 %v4270
    %v4691 = vunpack.c.l.b16 %v4271
    %v4692 = vunpack.c.h.b16 %v4271
    %v4693 = vunpack.c.l.b16 %v4272
    %v4694 = vunpack.c.h.b16 %v4272
    %v4695 = vunpack.c.l.b16 %v4273
    %v4696 = vunpack.c.h.b16 %v4273
    %v4697 = vunpack.c.l.b16 %v4274
    %v4698 = vunpack.c.h.b16 %v4274
    %v4699 = vunpack.c.l.b16 %v4275
    %v4700 = vunpack.c.h.b16 %v4275
    %v4701 = vunpack.c.l.b16 %v4276
    %v4702 = vunpack.c.h.b16 %v4276
    %v4703 = vunpack.c.l.b16 %v4277
    %v4704 = vunpack.c.h.b16 %v4277
    %v4705 = vunpack.c.l.b16 %v4278
    %v4706 = vunpack.c.h.b16 %v4278
    %v4707 = vunpack.c.l.b16 %v4279
    %v4708 = vunpack.c.h.b16 %v4279
    %v4709 = vunpack.c.l.b16 %v4280
    %v4710 = vunpack.c.h.b16 %v4280
    %v4711 = vunpack.c.l.b16 %v4281
    %v4712 = vunpack.c.h.b16 %v4281
    %v4713 = vunpack.c.l.b16 %v4282
    %v4714 = vunpack.c.h.b16 %v4282
    %v4715 = vunpack.c.l.b16 %v4283
    %v4716 = vunpack.c.h.b16 %v4283
    %v4717 = vunpack.c.l.b16 %v4284
    %v4718 = vunpack.c.h.b16 %v4284
    %v4719 = vunpack.c.l.b16 %v4285
    %v4720 = vunpack.c.h.b16 %v4285
    %v4721 = vunpack.c.l.b16 %v4286
    %v4722 = vunpack.c.h.b16 %v4286
    %v4723 = vunpack.c.l.b16 %v4287
    %v4724 = vunpack.c.h.b16 %v4287
    %v4725 = vunpack.c.l.b16 %v4288
    %v4726 = vunpack.c.h.b16 %v4288
    %v4727 = vunpack.c.l.b16 %v4289
    %v4728 = vunpack.c.h.b16 %v4289
    %v4729 = vunpack.c.l.b16 %v4290
    %v4730 = vunpack.c.h.b16 %v4290
    %v4731 = vunpack.c.l.b16 %v4291
    %v4732 = vunpack.c.h.b16 %v4291
    %v4733 = vunpack.c.l.b16 %v4292
    %v4734 = vunpack.c.h.b16 %v4292
    %v4735 = vunpack.c.l.b16 %v4293
    %v4736 = vunpack.c.h.b16 %v4293
    %v4737 = vunpack.c.l.b16 %v4294
    %v4738 = vunpack.c.h.b16 %v4294
    %v4739 = vunpack.c.l.b16 %v4295
    %v4740 = vunpack.c.h.b16 %v4295
    %v4741 = vunpack.c.l.b16 %v4296
    %v4742 = vunpack.c.h.b16 %v4296
    %v4743 = vunpack.c.l.b16 %v4297
    %v4744 = vunpack.c.h.b16 %v4297
    %v4745 = vunpack.c.l.b16 %v4298
    %v4746 = vunpack.c.h.b16 %v4298
    %v4747 = vunpack.c.l.b16 %v4299
    %v4748 = vunpack.c.h.b16 %v4299
    %v4749 = vunpack.c.l.b16 %v4300
    %v4750 = vunpack.c.h.b16 %v4300
    %v4751 = vunpack.c.l.b16 %v4301
    %v4752 = vunpack.c.h.b16 %v4301
    %v4753 = vunpack.c.l.b16 %v4302
    %v4754 = vunpack.c.h.b16 %v4302
    %v4755 = vunpack.c.l.b16 %v4303
    %v4756 = vunpack.c.h.b16 %v4303
    %v4757 = vunpack.c.l.b16 %v4304
    %v4758 = vunpack.c.h.b16 %v4304
    %v4759 = vunpack.c.l.b16 %v4305
    %v4760 = vunpack.c.h.b16 %v4305
    %v4761 = vunpack.c.l.b16 %v4306
    %v4762 = vunpack.c.h.b16 %v4306
    %v4763 = vunpack.c.l.b16 %v4307
    %v4764 = vunpack.c.h.b16 %v4307
    %v4765 = vunpack.c.l.b16 %v4308
    %v4766 = vunpack.c.h.b16 %v4308
    %v4767 = vunpack.c.l.b16 %v4309
    %v4768 = vunpack.c.h.b16 %v4309
    %v4769 = vunpack.c.l.b16 %v4310
    %v4770 = vunpack.c.h.b16 %v4310
    %v4771 = vunpack.c.l.b16 %v4311
    %v4772 = vunpack.c.h.b16 %v4311
    %v4773 = vunpack.c.l.b16 %v4312
    %v4774 = vunpack.c.h.b16 %v4312
    %v4775 = vunpack.c.l.b16 %v4313
    %v4776 = vunpack.c.h.b16 %v4313
    %v4777 = vunpack.c.l.b16 %v4314
    %v4778 = vunpack.c.h.b16 %v4314
    %v4779 = vunpack.c.l.b16 %v4315
    %v4780 = vunpack.c.h.b16 %v4315
    %v4781 = vunpack.c.l.b16 %v4316
    %v4782 = vunpack.c.h.b16 %v4316
    %v4783 = vunpack.c.l.b16 %v4317
    %v4784 = vunpack.c.h.b16 %v4317
    %v4785 = vunpack.c.l.b16 %v4318
    %v4786 = vunpack.c.h.b16 %v4318
    %v4787 = vunpack.c.l.b16 %v4319
    %v4788 = vunpack.c.h.b16 %v4319
    %v4789 = vunpack.c.l.b16 %v4320
    %v4790 = vunpack.c.h.b16 %v4320
    %v4791 = vunpack.c.l.b16 %v4321
    %v4792 = vunpack.c.h.b16 %v4321
    %v4793 = vunpack.c.l.b16 %v4322
    %v4794 = vunpack.c.h.b16 %v4322
    %v4795 = vunpack.c.l.b16 %v4323
    %v4796 = vunpack.c.h.b16 %v4323
    %v4797 = vunpack.c.l.b16 %v4324
    %v4798 = vunpack.c.h.b16 %v4324
    %v4799 = vunpack.c.l.b16 %v4325
    %v4800 = vunpack.c.h.b16 %v4325
    %v4801 = vunpack.c.l.b16 %v4326
    %v4802 = vunpack.c.h.b16 %v4326
    %v4803 = vunpack.c.l.b16 %v4327
    %v4804 = vunpack.c.h.b16 %v4327
    %v4805 = vunpack.c.l.b16 %v4328
    %v4806 = vunpack.c.h.b16 %v4328
    %v4807 = vunpack.c.l.b16 %v4329
    %v4808 = vunpack.c.h.b16 %v4329
    %v4809 = vunpack.c.l.b16 %v4330
    %v4810 = vunpack.c.h.b16 %v4330
    %v4811 = vunpack.c.l.b16 %v4331
    %v4812 = vunpack.c.h.b16 %v4331
    %v4813 = vunpack.c.l.b16 %v4332
    %v4814 = vunpack.c.h.b16 %v4332
    %v4815 = vunpack.c.l.b16 %v4333
    %v4816 = vunpack.c.h.b16 %v4333
    %v4817 = vunpack.c.l.b16 %v4334
    %v4818 = vunpack.c.h.b16 %v4334
    %v4819 = vunpack.c.l.b16 %v4335
    %v4820 = vunpack.c.h.b16 %v4335
    %v4821 = vunpack.c.l.b16 %v4336
    %v4822 = vunpack.c.h.b16 %v4336
    %v4823 = vunpack.c.l.b16 %v4337
    %v4824 = vunpack.c.h.b16 %v4337
    %v4825 = vunpack.c.l.b16 %v4338
    %v4826 = vunpack.c.h.b16 %v4338
    %v4827 = vunpack.c.l.b16 %v4339
    %v4828 = vunpack.c.h.b16 %v4339
    %v4829 = vunpack.c.l.b16 %v4340
    %v4830 = vunpack.c.h.b16 %v4340
    %v4831 = vunpack.c.l.b16 %v4341
    %v4832 = vunpack.c.h.b16 %v4341
    %v4833 = vunpack.c.l.b16 %v4342
    %v4834 = vunpack.c.h.b16 %v4342
    %v4835 = vunpack.c.l.b16 %v4343
    %v4836 = vunpack.c.h.b16 %v4343
    %v4837 = vunpack.c.l.b16 %v4344
    %v4838 = vunpack.c.h.b16 %v4344
    %v4839 = vunpack.c.l.b16 %v4345
    %v4840 = vunpack.c.h.b16 %v4345
    %v4841 = vunpack.c.l.b16 %v4346
    %v4842 = vunpack.c.h.b16 %v4346
    %v4843 = vunpack.c.l.b16 %v4347
    %v4844 = vunpack.c.h.b16 %v4347
    %v4845 = vunpack.c.l.b16 %v4348
    %v4846 = vunpack.c.h.b16 %v4348
    %v4847 = vunpack.c.l.b16 %v4349
    %v4848 = vunpack.c.h.b16 %v4349
    %v4849 = vunpack.c.l.b16 %v4350
    %v4850 = vunpack.c.h.b16 %v4350
    %v4851 = vunpack.c.l.b16 %v4351
    %v4852 = vunpack.c.h.b16 %v4351
    %v4853 = vunpack.c.l.b16 %v4352
    %v4854 = vunpack.c.h.b16 %v4352
    %v4855 = vunpack.c.l.b16 %v4353
    %v4856 = vunpack.c.h.b16 %v4353
    %v4857 = vunpack.c.l.b16 %v4354
    %v4858 = vunpack.c.h.b16 %v4354
    %v4859 = vunpack.c.l.b16 %v4355
    %v4860 = vunpack.c.h.b16 %v4355
    %v4861 = vunpack.c.l.b16 %v4356
    %v4862 = vunpack.c.h.b16 %v4356
    %v4863 = vunpack.c.l.b16 %v4357
    %v4864 = vunpack.c.h.b16 %v4357
    %v4865 = vunpack.c.l.b16 %v4358
    %v4866 = vunpack.c.h.b16 %v4358
    %v4867 = vunpack.c.l.b16 %v4359
    %v4868 = vunpack.c.h.b16 %v4359
    %v4869 = vunpack.c.l.b16 %v4360
    %v4870 = vunpack.c.h.b16 %v4360
    %v4871 = vunpack.c.l.b16 %v4361
    %v4872 = vunpack.c.h.b16 %v4361
    %v4873 = vunpack.c.l.b16 %v4362
    %v4874 = vunpack.c.h.b16 %v4362
    %v4875 = vunpack.c.l.b16 %v4363
    %v4876 = vunpack.c.h.b16 %v4363
    %v4877 = vunpack.c.l.b16 %v4364
    %v4878 = vunpack.c.h.b16 %v4364
    %v4879 = vunpack.c.l.b16 %v4365
    %v4880 = vunpack.c.h.b16 %v4365
    %v4881 = vunpack.c.l.b16 %v4366
    %v4882 = vunpack.c.h.b16 %v4366
    %v4883 = vunpack.c.l.b16 %v4367
    %v4884 = vunpack.c.h.b16 %v4367
    %v4885 = vunpack.c.l.b16 %v4368
    %v4886 = vunpack.c.h.b16 %v4368
    %v4887 = vunpack.c.l.b16 %v4369
    %v4888 = vunpack.c.h.b16 %v4369
    %v4889 = vunpack.c.l.b16 %v4370
    %v4890 = vunpack.c.h.b16 %v4370
    %v4891 = vunpack.c.l.b16 %v4371
    %v4892 = vunpack.c.h.b16 %v4371
    %v4893 = vunpack.c.l.b16 %v4372
    %v4894 = vunpack.c.h.b16 %v4372
    %v4895 = vunpack.c.l.b16 %v4373
    %v4896 = vunpack.c.h.b16 %v4373
    %v4897 = vunpack.c.l.b16 %v4374
    %v4898 = vunpack.c.h.b16 %v4374
    %v4899 = vunpack.c.l.b16 %v4375
    %v4900 = vunpack.c.h.b16 %v4375
    %v4901 = vunpack.c.l.b16 %v4376
    %v4902 = vunpack.c.h.b16 %v4376
    %v4903 = vunpack.c.l.b16 %v4377
    %v4904 = vunpack.c.h.b16 %v4377
    %v4905 = vunpack.c.l.b16 %v4378
    %v4906 = vunpack.c.h.b16 %v4378
    %v4907 = vunpack.c.l.b16 %v4379
    %v4908 = vunpack.c.h.b16 %v4379
    %v4909 = vunpack.c.l.b16 %v4380
    %v4910 = vunpack.c.h.b16 %v4380
    %v4911 = vunpack.c.l.b16 %v4381
    %v4912 = vunpack.c.h.b16 %v4381
    %v4913 = vunpack.c.l.b16 %v4382
    %v4914 = vunpack.c.h.b16 %v4382
    %v4915 = vunpack.c.l.b16 %v4383
    %v4916 = vunpack.c.h.b16 %v4383
    %v4917 = vunpack.c.l.b16 %v4384
    %v4918 = vunpack.c.h.b16 %v4384
    %v4919 = vunpack.c.l.b16 %v4385
    %v4920 = vunpack.c.h.b16 %v4385
    %v4921 = vunpack.c.l.b16 %v4386
    %v4922 = vunpack.c.h.b16 %v4386
    %v4923 = vunpack.c.l.b16 %v4387
    %v4924 = vunpack.c.h.b16 %v4387
    %v4925 = vunpack.c.l.b16 %v4388
    %v4926 = vunpack.c.h.b16 %v4388
    %v4927 = vunpack.c.l.b16 %v4389
    %v4928 = vunpack.c.h.b16 %v4389
    %v4929 = vunpack.c.l.b16 %v4390
    %v4930 = vunpack.c.h.b16 %v4390
    %v4931 = vunpack.c.l.b16 %v4391
    %v4932 = vunpack.c.h.b16 %v4391
    %v4933 = vunpack.c.l.b16 %v4392
    %v4934 = vunpack.c.h.b16 %v4392
    %v4935 = vunpack.c.l.b16 %v4393
    %v4936 = vunpack.c.h.b16 %v4393
    %v4937 = vunpack.c.l.b16 %v4394
    %v4938 = vunpack.c.h.b16 %v4394
    %v4939 = vunpack.c.l.b16 %v4395
    %v4940 = vunpack.c.h.b16 %v4395
    %v4941 = vunpack.c.l.b16 %v4396
    %v4942 = vunpack.c.h.b16 %v4396
    %v4943 = vunpack.c.l.b16 %v4397
    %v4944 = vunpack.c.h.b16 %v4397
    %v4945 = vunpack.c.l.b16 %v4398
    %v4946 = vunpack.c.h.b16 %v4398
    %v4947 = vunpack.c.l.b16 %v4399
    %v4948 = vunpack.c.h.b16 %v4399
    %v4949 = vunpack.c.l.b16 %v4400
    %v4950 = vunpack.c.h.b16 %v4400
    %v4951 = vunpack.c.l.b16 %v4401
    %v4952 = vunpack.c.h.b16 %v4401
    %v4953 = vunpack.c.l.b16 %v4402
    %v4954 = vunpack.c.h.b16 %v4402
    %v4955 = vunpack.c.l.b16 %v4403
    %v4956 = vunpack.c.h.b16 %v4403
    %v4957 = vunpack.c.l.b16 %v4404
    %v4958 = vunpack.c.h.b16 %v4404
    %v4959 = vunpack.c.l.b16 %v4405
    %v4960 = vunpack.c.h.b16 %v4405
    %v4961 = vunpack.c.l.b16 %v4406
    %v4962 = vunpack.c.h.b16 %v4406
    %v4963 = vunpack.c.l.b16 %v4407
    %v4964 = vunpack.c.h.b16 %v4407
    %v4965 = vunpack.c.l.b16 %v4408
    %v4966 = vunpack.c.h.b16 %v4408
    %v4967 = vunpack.c.l.b16 %v4409
    %v4968 = vunpack.c.h.b16 %v4409
    %v4969 = vunpack.c.l.b16 %v4410
    %v4970 = vunpack.c.h.b16 %v4410
    %v4971 = vunpack.c.l.b16 %v4411
    %v4972 = vunpack.c.h.b16 %v4411
    %v4973 = vunpack.c.l.b16 %v4412
    %v4974 = vunpack.c.h.b16 %v4412
    %v4975 = vunpack.c.l.b16 %v4413
    %v4976 = vunpack.c.h.b16 %v4413
    %v4977 = vunpack.c.l.b16 %v4414
    %v4978 = vunpack.c.h.b16 %v4414
    %v4979 = vunpack.c.l.b16 %v4415
    %v4980 = vunpack.c.h.b16 %v4415
    %v4981 = vunpack.c.l.b16 %v4416
    %v4982 = vunpack.c.h.b16 %v4416
    %v4983 = vunpack.c.l.b16 %v4417
    %v4984 = vunpack.c.h.b16 %v4417
    %v4985 = vunpack.c.l.b16 %v4418
    %v4986 = vunpack.c.h.b16 %v4418
    %v4987 = vunpack.c.l.b16 %v4419
    %v4988 = vunpack.c.h.b16 %v4419
    %v4989 = vunpack.c.l.b16 %v4420
    %v4990 = vunpack.c.h.b16 %v4420
    %v4991 = vunpack.c.l.b16 %v4421
    %v4992 = vunpack.c.h.b16 %v4421
    %v4993 = vunpack.c.l.b16 %v4422
    %v4994 = vunpack.c.h.b16 %v4422
    %v4995 = vunpack.c.l.b16 %v4423
    %v4996 = vunpack.c.h.b16 %v4423
    %v4997 = vunpack.c.l.b16 %v4424
    %v4998 = vunpack.c.h.b16 %v4424
    %v4999 = vunpack.c.l.b16 %v4425
    %v5000 = vunpack.c.h.b16 %v4425
    %v5001 = vunpack.c.l.b16 %v4426
    %v5002 = vunpack.c.h.b16 %v4426
    %v5003 = vunpack.c.l.b16 %v4427
    %v5004 = vunpack.c.h.b16 %v4427
    %v5005 = vunpack.c.l.b16 %v4428
    %v5006 = vunpack.c.h.b16 %v4428
    %v5007 = vunpack.c.l.b16 %v4429
    %v5008 = vunpack.c.h.b16 %v4429
    %v5009 = vunpack.c.l.b16 %v4430
    %v5010 = vunpack.c.h.b16 %v4430
    %v5011 = vunpack.c.l.b16 %v4431
    %v5012 = vunpack.c.h.b16 %v4431
    %v5013 = vunpack.c.l.b16 %v4432
    %v5014 = vunpack.c.h.b16 %v4432
    %v5015 = vunpack.c.l.b16 %v4433
    %v5016 = vunpack.c.h.b16 %v4433
    %v5017 = vunpack.c.l.b16 %v4434
    %v5018 = vunpack.c.h.b16 %v4434
    %v5019 = vunpack.c.l.b16 %v4435
    %v5020 = vunpack.c.h.b16 %v4435
    %v5021 = vunpack.c.l.b16 %v4436
    %v5022 = vunpack.c.h.b16 %v4436
    %v5023 = vpack.c.b16 %v4643, %v4639
    %v5024 = vpack.c.b16 %v4644, %v4640
    %v5025 = vpack.c.b16 %v4645, %v4641
    %v5026 = vpack.c.b16 %v4646, %v4642
    %v5027 = vpack.c.b16 %v4651, %v4647
    %v5028 = vpack.c.b16 %v4652, %v4648
    %v5029 = vpack.c.b16 %v4653, %v4649
    %v5030 = vpack.c.b16 %v4654, %v4650
    %v5031 = vpack.c.b16 %v4659, %v4655
    %v5032 = vpack.c.b16 %v4660, %v4656
    %v5033 = vpack.c.b16 %v4661, %v4657
    %v5034 = vpack.c.b16 %v4662, %v4658
    %v5035 = vpack.c.b16 %v4667, %v4663
    %v5036 = vpack.c.b16 %v4668, %v4664
    %v5037 = vpack.c.b16 %v4669, %v4665
    %v5038 = vpack.c.b16 %v4670, %v4666
    %v5039 = vpack.c.b16 %v4675, %v4671
    %v5040 = vpack.c.b16 %v4676, %v4672
    %v5041 = vpack.c.b16 %v4677, %v4673
    %v5042 = vpack.c.b16 %v4678, %v4674
    %v5043 = vpack.c.b16 %v4683, %v4679
    %v5044 = vpack.c.b16 %v4684, %v4680
    %v5045 = vpack.c.b16 %v4685, %v4681
    %v5046 = vpack.c.b16 %v4686, %v4682
    %v5047 = vpack.c.b16 %v4691, %v4687
    %v5048 = vpack.c.b16 %v4692, %v4688
    %v5049 = vpack.c.b16 %v4693, %v4689
    %v5050 = vpack.c.b16 %v4694, %v4690
    %v5051 = vpack.c.b16 %v4699, %v4695
    %v5052 = vpack.c.b16 %v4700, %v4696
    %v5053 = vpack.c.b16 %v4701, %v4697
    %v5054 = vpack.c.b16 %v4702, %v4698
    %v5055 = vpack.c.b16 %v4707, %v4703
    %v5056 = vpack.c.b16 %v4708, %v4704
    %v5057 = vpack.c.b16 %v4709, %v4705
    %v5058 = vpack.c.b16 %v4710, %v4706
    %v5059 = vpack.c.b16 %v4715, %v4711
    %v5060 = vpack.c.b16 %v4716, %v4712
    %v5061 = vpack.c.b16 %v4717, %v4713
    %v5062 = vpack.c.b16 %v4718, %v4714
    %v5063 = vpack.c.b16 %v4723, %v4719
    %v5064 = vpack.c.b16 %v4724, %v4720
    %v5065 = vpack.c.b16 %v4725, %v4721
    %v5066 = vpack.c.b16 %v4726, %v4722
    %v5067 = vpack.c.b16 %v4731, %v4727
    %v5068 = vpack.c.b16 %v4732, %v4728
    %v5069 = vpack.c.b16 %v4733, %v4729
    %v5070 = vpack.c.b16 %v4734, %v4730
    %v5071 = vpack.c.b16 %v4739, %v4735
    %v5072 = vpack.c.b16 %v4740, %v4736
    %v5073 = vpack.c.b16 %v4741, %v4737
    %v5074 = vpack.c.b16 %v4742, %v4738
    %v5075 = vpack.c.b16 %v4747, %v4743
    %v5076 = vpack.c.b16 %v4748, %v4744
    %v5077 = vpack.c.b16 %v4749, %v4745
    %v5078 = vpack.c.b16 %v4750, %v4746
    %v5079 = vpack.c.b16 %v4755, %v4751
    %v5080 = vpack.c.b16 %v4756, %v4752
    %v5081 = vpack.c.b16 %v4757, %v4753
    %v5082 = vpack.c.b16 %v4758, %v4754
    %v5083 = vpack.c.b16 %v4763, %v4759
    %v5084 = vpack.c.b16 %v4764, %v4760
    %v5085 = vpack.c.b16 %v4765, %v4761
    %v5086 = vpack.c.b16 %v4766, %v4762
    %v5087 = vpack.c.b16 %v4771, %v4767
    %v5088 = vpack.c.b16 %v4772, %v4768
    %v5089 = vpack.c.b16 %v4773, %v4769
    %v5090 = vpack.c.b16 %v4774, %v4770
    %v5091 = vpack.c.b16 %v4779, %v4775
    %v5092 = vpack.c.b16 %v4780, %v4776
    %v5093 = vpack.c.b16 %v4781, %v4777
    %v5094 = vpack.c.b16 %v4782, %v4778
    %v5095 = vpack.c.b16 %v4787, %v4783
    %v5096 = vpack.c.b16 %v4788, %v4784
    %v5097 = vpack.c.b16 %v4789, %v4785
    %v5098 = vpack.c.b16 %v4790, %v4786
    %v5099 = vpack.c.b16 %v4795, %v4791
    %v5100 = vpack.c.b16 %v4796, %v4792
    %v5101 = vpack.c.b16 %v4797, %v4793
    %v5102 = vpack.c.b16 %v4798, %v4794
    %v5103 = vpack.c.b16 %v4803, %v4799
    %v5104 = vpack.c.b16 %v4804, %v4800
    %v5105 = vpack.c.b16 %v4805, %v4801
    %v5106 = vpack.c.b16 %v4806, %v4802
    %v5107 = vpack.c.b16 %v4811, %v4807
    %v5108 = vpack.c.b16 %v4812, %v4808
    %v5109 = vpack.c.b16 %v4813, %v4809
    %v5110 = vpack.c.b16 %v4814, %v4810
    %v5111 = vpack.c.b16 %v4819, %v4815
    %v5112 = vpack.c.b16 %v4820, %v4816
    %v5113 = vpack.c.b16 %v4821, %v4817
    %v5114 = vpack.c.b16 %v4822, %v4818
    %v5115 = vpack.c.b16 %v4827, %v4823
    %v5116 = vpack.c.b16 %v4828, %v4824
    %v5117 = vpack.c.b16 %v4829, %v4825
    %v5118 = vpack.c.b16 %v4830, %v4826
    %v5119 = vpack.c.b16 %v4835, %v4831
    %v5120 = vpack.c.b16 %v4836, %v4832
    %v5121 = vpack.c.b16 %v4837, %v4833
    %v5122 = vpack.c.b16 %v4838, %v4834
    %v5123 = vpack.c.b16 %v4843, %v4839
    %v5124 = vpack.c.b16 %v4844, %v4840
    %v5125 = vpack.c.b16 %v4845, %v4841
    %v5126 = vpack.c.b16 %v4846, %v4842
    %v5127 = vpack.c.b16 %v4851, %v4847
    %v5128 = vpack.c.b16 %v4852, %v4848
    %v5129 = vpack.c.b16 %v4853, %v4849
    %v5130 = vpack.c.b16 %v4854, %v4850
    %v5131 = vpack.c.b16 %v4859, %v4855
    %v5132 = vpack.c.b16 %v4860, %v4856
    %v5133 = vpack.c.b16 %v4861, %v4857
    %v5134 = vpack.c.b16 %v4862, %v4858
    %v5135 = vpack.c.b16 %v4867, %v4863
    %v5136 = vpack.c.b16 %v4868, %v4864
    %v5137 = vpack.c.b16 %v4869, %v4865
    %v5138 = vpack.c.b16 %v4870, %v4866
    %v5139 = vpack.c.b16 %v4875, %v4871
    %v5140 = vpack.c.b16 %v4876, %v4872
    %v5141 = vpack.c.b16 %v4877, %v4873
    %v5142 = vpack.c.b16 %v4878, %v4874
    %v5143 = vpack.c.b16 %v4883, %v4879
    %v5144 = vpack.c.b16 %v4884, %v4880
    %v5145 = vpack.c.b16 %v4885, %v4881
    %v5146 = vpack.c.b16 %v4886, %v4882
    %v5147 = vpack.c.b16 %v4891, %v4887
    %v5148 = vpack.c.b16 %v4892, %v4888
    %v5149 = vpack.c.b16 %v4893, %v4889
    %v5150 = vpack.c.b16 %v4894, %v4890
    %v5151 = vpack.c.b16 %v4899, %v4895
    %v5152 = vpack.c.b16 %v4900, %v4896
    %v5153 = vpack.c.b16 %v4901, %v4897
    %v5154 = vpack.c.b16 %v4902, %v4898
    %v5155 = vpack.c.b16 %v4907, %v4903
    %v5156 = vpack.c.b16 %v4908, %v4904
    %v5157 = vpack.c.b16 %v4909, %v4905
    %v5158 = vpack.c.b16 %v4910, %v4906
    %v5159 = vpack.c.b16 %v4915, %v4911
    %v5160 = vpack.c.b16 %v4916, %v4912
    %v5161 = vpack.c.b16 %v4917, %v4913
    %v5162 = vpack.c.b16 %v4918, %v4914
    %v5163 = vpack.c.b16 %v4923, %v4919
    %v5164 = vpack.c.b16 %v4924, %v4920
    %v5165 = vpack.c.b16 %v4925, %v4921
    %v5166 = vpack.c.b16 %v4926, %v4922
    %v5167 = vpack.c.b16 %v4931, %v4927
    %v5168 = vpack.c.b16 %v4932, %v4928
    %v5169 = vpack.c.b16 %v4933, %v4929
    %v5170 = vpack.c.b16 %v4934, %v4930
    %v5171 = vpack.c.b16 %v4939, %v4935
    %v5172 = vpack.c.b16 %v4940, %v4936
    %v5173 = vpack.c.b16 %v4941, %v4937
    %v5174 = vpack.c.b16 %v4942, %v4938
    %v5175 = vpack.c.b16 %v4947, %v4943
    %v5176 = vpack.c.b16 %v4948, %v4944
    %v5177 = vpack.c.b16 %v4949, %v4945
    %v5178 = vpack.c.b16 %v4950, %v4946
    %v5179 = vpack.c.b16 %v4955, %v4951
    %v5180 = vpack.c.b16 %v4956, %v4952
    %v5181 = vpack.c.b16 %v4957, %v4953
    %v5182 = vpack.c.b16 %v4958, %v4954
    %v5183 = vpack.c.b16 %v4963, %v4959
    %v5184 = vpack.c.b16 %v4964, %v4960
    %v5185 = vpack.c.b16 %v4965, %v4961
    %v5186 = vpack.c.b16 %v4966, %v4962
    %v5187 = vpack.c.b16 %v4971, %v4967
    %v5188 = vpack.c.b16 %v4972, %v4968
    %v5189 = vpack.c.b16 %v4973, %v4969
    %v5190 = vpack.c.b16 %v4974, %v4970
    %v5191 = vpack.c.b16 %v4979, %v4975
    %v5192 = vpack.c.b16 %v4980, %v4976
    %v5193 = vpack.c.b16 %v4981, %v4977
    %v5194 = vpack.c.b16 %v4982, %v4978
    %v5195 = vpack.c.b16 %v4987, %v4983
    %v5196 = vpack.c.b16 %v4988, %v4984
    %v5197 = vpack.c.b16 %v4989, %v4985
    %v5198 = vpack.c.b16 %v4990, %v4986
    %v5199 = vpack.c.b16 %v4995, %v4991
    %v5200 = vpack.c.b16 %v4996, %v4992
    %v5201 = vpack.c.b16 %v4997, %v4993
    %v5202 = vpack.c.b16 %v4998, %v4994
    %v5203 = vpack.c.b16 %v5003, %v4999
    %v5204 = vpack.c.b16 %v5004, %v5000
    %v5205 = vpack.c.b16 %v5005, %v5001
    %v5206 = vpack.c.b16 %v5006, %v5002
    %v5207 = vpack.c.b16 %v5011, %v5007
    %v5208 = vpack.c.b16 %v5012, %v5008
    %v5209 = vpack.c.b16 %v5013, %v5009
    %v5210 = vpack.c.b16 %v5014, %v5010
    %v5211 = vpack.c.b16 %v5019, %v5015
    %v5212 = vpack.c.b16 %v5020, %v5016
    %v5213 = vpack.c.b16 %v5021, %v5017
    %v5214 = vpack.c.b16 %v5022, %v5018
    %5407 = vmatpush.bf16.msra.mxu0 %v5051
    %5408 = vmatpush.bf16.msra.mxu0 %v5047
    %5409 = vmatpush.bf16.msra.mxu0 %v5043
    %5410 = vmatpush.bf16.msra.mxu0 %v5039
    %5411 = vmatpush.bf16.msra.mxu0 %v5035
    %5412 = vmatpush.bf16.msra.mxu0 %v5031
    %5413 = vmatpush.bf16.msra.mxu0 %v5027
    %5414 = vmatpush.bf16.msra.mxu0 %v5023
    %5415 = vmatmul.bf16.gmra.mxu0 %v3861
    %v5416 = vpop.f32.mrf.mxu0
    %v5417 = vpop.f32.mrf.mxu0
    %v5418 = vadd.f32 %v4439, %v5417
    %5419 = vmatmul.bf16.gmra.mxu0 %v3863
    %v5420 = vpop.f32.mrf.mxu0
    %v5421 = vadd.f32 %v4439, %v5420
    %v5422 = vpop.f32.mrf.mxu0
    %5423 = vmatmul.bf16.gmra.mxu0 %v3865
    %v5424 = vpop.f32.mrf.mxu0
    %v5425 = vpop.f32.mrf.mxu0
    %v5426 = vadd.f32 %v4439, %v5425
    %5427 = vmatmul.bf16.gmra.mxu0 %v3867
    %v5428 = vpop.f32.mrf.mxu0
    %v5429 = vadd.f32 %v4439, %v5428
    %v5430 = vpop.f32.mrf.mxu0
    %5431 = vmatmul.bf16.gmra.mxu0 %v3869
    %v5432 = vpop.f32.mrf.mxu0
    %v5433 = vpop.f32.mrf.mxu0
    %v5434 = vadd.f32 %v4439, %v5433
    %5435 = vmatmul.bf16.gmra.mxu0 %v3871
    %v5436 = vpop.f32.mrf.mxu0
    %v5437 = vadd.f32 %v4439, %v5436
    %v5438 = vpop.f32.mrf.mxu0
    %5439 = vmatmul.bf16.gmra.mxu0 %v3873
    %v5440 = vpop.f32.mrf.mxu0
    %v5441 = vpop.f32.mrf.mxu0
    %v5442 = vadd.f32 %v4439, %v5441
    %5443 = vmatmul.bf16.gmra.mxu0 %v3875
    %v5444 = vpop.f32.mrf.mxu0
    %v5445 = vadd.f32 %v4439, %v5444
    %v5446 = vpop.f32.mrf.mxu0
    %5447 = vmatmul.bf16.gmra.mxu0 %v3877
    %v5448 = vpop.f32.mrf.mxu0
    %v5449 = vpop.f32.mrf.mxu0
    %v5450 = vadd.f32 %v4439, %v5449
    %5451 = vmatmul.bf16.gmra.mxu0 %v3879
    %v5452 = vpop.f32.mrf.mxu0
    %v5453 = vadd.f32 %v4439, %v5452
    %v5454 = vpop.f32.mrf.mxu0
    %5455 = vmatmul.bf16.gmra.mxu0 %v3881
    %v5456 = vpop.f32.mrf.mxu0
    %v5457 = vpop.f32.mrf.mxu0
    %v5458 = vadd.f32 %v4439, %v5457
    %5459 = vmatmul.bf16.gmra.mxu0 %v3883
    %v5460 = vpop.f32.mrf.mxu0
    %v5461 = vadd.f32 %v4439, %v5460
    %v5462 = vpop.f32.mrf.mxu0
    %5463 = vmatmul.bf16.gmra.mxu0 %v3885
    %v5464 = vpop.f32.mrf.mxu0
    %v5465 = vpop.f32.mrf.mxu0
    %v5466 = vadd.f32 %v4439, %v5465
    %5467 = vmatmul.bf16.gmra.mxu0 %v3887
    %v5468 = vpop.f32.mrf.mxu0
    %v5469 = vadd.f32 %v4439, %v5468
    %v5470 = vpop.f32.mrf.mxu0
    %5471 = vmatmul.bf16.gmra.mxu0 %v3889
    %v5472 = vpop.f32.mrf.mxu0
    %v5473 = vpop.f32.mrf.mxu0
    %v5474 = vadd.f32 %v4439, %v5473
    %5475 = vmatmul.bf16.gmra.mxu0 %v3891
    %v5476 = vpop.f32.mrf.mxu0
    %v5477 = vadd.f32 %v4439, %v5476
    %v5478 = vpop.f32.mrf.mxu0
    %5479 = vdwg.mxu0
    %5480 = vmatpush.bf16.msra.mxu0 %v5083
    %5481 = vmatpush.bf16.msra.mxu0 %v5079
    %5482 = vmatpush.bf16.msra.mxu0 %v5075
    %5483 = vmatpush.bf16.msra.mxu0 %v5071
    %5484 = vmatpush.bf16.msra.mxu0 %v5067
    %5485 = vmatpush.bf16.msra.mxu0 %v5063
    %5486 = vmatpush.bf16.msra.mxu0 %v5059
    %5487 = vmatpush.bf16.msra.mxu0 %v5055
    %5488 = vmatmul.bf16.gmra.mxu0 %v3862
    %v5489 = vpop.f32.mrf.mxu0
    %v5490 = vpop.f32.mrf.mxu0
    %v5491 = vadd.f32 %v5418, %v5490
    %5492 = vmatmul.bf16.gmra.mxu0 %v3864
    %v5493 = vpop.f32.mrf.mxu0
    %v5494 = vadd.f32 %v5421, %v5493
    %v5495 = vpop.f32.mrf.mxu0
    %5496 = vmatmul.bf16.gmra.mxu0 %v3866
    %v5497 = vpop.f32.mrf.mxu0
    %v5498 = vpop.f32.mrf.mxu0
    %v5499 = vadd.f32 %v5426, %v5498
    %5500 = vmatmul.bf16.gmra.mxu0 %v3868
    %v5501 = vpop.f32.mrf.mxu0
    %v5502 = vadd.f32 %v5429, %v5501
    %v5503 = vpop.f32.mrf.mxu0
    %5504 = vmatmul.bf16.gmra.mxu0 %v3870
    %v5505 = vpop.f32.mrf.mxu0
    %v5506 = vpop.f32.mrf.mxu0
    %v5507 = vadd.f32 %v5434, %v5506
    %5508 = vmatmul.bf16.gmra.mxu0 %v3872
    %v5509 = vpop.f32.mrf.mxu0
    %v5510 = vadd.f32 %v5437, %v5509
    %v5511 = vpop.f32.mrf.mxu0
    %5512 = vmatmul.bf16.gmra.mxu0 %v3874
    %v5513 = vpop.f32.mrf.mxu0
    %v5514 = vpop.f32.mrf.mxu0
    %v5515 = vadd.f32 %v5442, %v5514
    %5516 = vmatmul.bf16.gmra.mxu0 %v3876
    %v5517 = vpop.f32.mrf.mxu0
    %v5518 = vadd.f32 %v5445, %v5517
    %v5519 = vpop.f32.mrf.mxu0
    %5520 = vmatmul.bf16.gmra.mxu0 %v3878
    %v5521 = vpop.f32.mrf.mxu0
    %v5522 = vpop.f32.mrf.mxu0
    %v5523 = vadd.f32 %v5450, %v5522
    %5524 = vmatmul.bf16.gmra.mxu0 %v3880
    %v5525 = vpop.f32.mrf.mxu0
    %v5526 = vadd.f32 %v5453, %v5525
    %v5527 = vpop.f32.mrf.mxu0
    %5528 = vmatmul.bf16.gmra.mxu0 %v3882
    %v5529 = vpop.f32.mrf.mxu0
    %v5530 = vpop.f32.mrf.mxu0
    %v5531 = vadd.f32 %v5458, %v5530
    %5532 = vmatmul.bf16.gmra.mxu0 %v3884
    %v5533 = vpop.f32.mrf.mxu0
    %v5534 = vadd.f32 %v5461, %v5533
    %v5535 = vpop.f32.mrf.mxu0
    %5536 = vmatmul.bf16.gmra.mxu0 %v3886
    %v5537 = vpop.f32.mrf.mxu0
    %v5538 = vpop.f32.mrf.mxu0
    %v5539 = vadd.f32 %v5466, %v5538
    %5540 = vmatmul.bf16.gmra.mxu0 %v3888
    %v5541 = vpop.f32.mrf.mxu0
    %v5542 = vadd.f32 %v5469, %v5541
    %v5543 = vpop.f32.mrf.mxu0
    %5544 = vmatmul.bf16.gmra.mxu0 %v3890
    %v5545 = vpop.f32.mrf.mxu0
    %v5546 = vpop.f32.mrf.mxu0
    %v5547 = vadd.f32 %v5474, %v5546
    %5548 = vmatmul.bf16.gmra.mxu0 %v3892
    %v5549 = vpop.f32.mrf.mxu0
    %v5550 = vadd.f32 %v5477, %v5549
    %v5551 = vpop.f32.mrf.mxu0
    %5552 = vdwg.mxu0
    %5553 = vmatpush.bf16.msra.mxu0 %v5115
    %5554 = vmatpush.bf16.msra.mxu0 %v5111
    %5555 = vmatpush.bf16.msra.mxu0 %v5107
    %5556 = vmatpush.bf16.msra.mxu0 %v5103
    %5557 = vmatpush.bf16.msra.mxu0 %v5099
    %5558 = vmatpush.bf16.msra.mxu0 %v5095
    %5559 = vmatpush.bf16.msra.mxu0 %v5091
    %5560 = vmatpush.bf16.msra.mxu0 %v5087
    %5561 = vmatmul.bf16.gmra.mxu0 %v4021
    %v5562 = vpop.f32.mrf.mxu0
    %v5563 = vpop.f32.mrf.mxu0
    %v5564 = vadd.f32 %v5491, %v5563
    %5565 = vmatmul.bf16.gmra.mxu0 %v4023
    %v5566 = vpop.f32.mrf.mxu0
    %v5567 = vadd.f32 %v5494, %v5566
    %v5568 = vpop.f32.mrf.mxu0
    %5569 = vmatmul.bf16.gmra.mxu0 %v4025
    %v5570 = vpop.f32.mrf.mxu0
    %v5571 = vpop.f32.mrf.mxu0
    %v5572 = vadd.f32 %v5499, %v5571
    %5573 = vmatmul.bf16.gmra.mxu0 %v4027
    %v5574 = vpop.f32.mrf.mxu0
    %v5575 = vadd.f32 %v5502, %v5574
    %v5576 = vpop.f32.mrf.mxu0
    %5577 = vmatmul.bf16.gmra.mxu0 %v4029
    %v5578 = vpop.f32.mrf.mxu0
    %v5579 = vpop.f32.mrf.mxu0
    %v5580 = vadd.f32 %v5507, %v5579
    %5581 = vmatmul.bf16.gmra.mxu0 %v4031
    %v5582 = vpop.f32.mrf.mxu0
    %v5583 = vadd.f32 %v5510, %v5582
    %v5584 = vpop.f32.mrf.mxu0
    %5585 = vmatmul.bf16.gmra.mxu0 %v4033
    %v5586 = vpop.f32.mrf.mxu0
    %v5587 = vpop.f32.mrf.mxu0
    %v5588 = vadd.f32 %v5515, %v5587
    %5589 = vmatmul.bf16.gmra.mxu0 %v4035
    %v5590 = vpop.f32.mrf.mxu0
    %v5591 = vadd.f32 %v5518, %v5590
    %v5592 = vpop.f32.mrf.mxu0
    %5593 = vmatmul.bf16.gmra.mxu0 %v4037
    %v5594 = vpop.f32.mrf.mxu0
    %v5595 = vpop.f32.mrf.mxu0
    %v5596 = vadd.f32 %v5523, %v5595
    %5597 = vmatmul.bf16.gmra.mxu0 %v4039
    %v5598 = vpop.f32.mrf.mxu0
    %v5599 = vadd.f32 %v5526, %v5598
    %v5600 = vpop.f32.mrf.mxu0
    %5601 = vmatmul.bf16.gmra.mxu0 %v4041
    %v5602 = vpop.f32.mrf.mxu0
    %v5603 = vpop.f32.mrf.mxu0
    %v5604 = vadd.f32 %v5531, %v5603
    %5605 = vmatmul.bf16.gmra.mxu0 %v4043
    %v5606 = vpop.f32.mrf.mxu0
    %v5607 = vadd.f32 %v5534, %v5606
    %v5608 = vpop.f32.mrf.mxu0
    %5609 = vmatmul.bf16.gmra.mxu0 %v4045
    %v5610 = vpop.f32.mrf.mxu0
    %v5611 = vpop.f32.mrf.mxu0
    %v5612 = vadd.f32 %v5539, %v5611
    %5613 = vmatmul.bf16.gmra.mxu0 %v4047
    %v5614 = vpop.f32.mrf.mxu0
    %v5615 = vadd.f32 %v5542, %v5614
    %v5616 = vpop.f32.mrf.mxu0
    %5617 = vmatmul.bf16.gmra.mxu0 %v4049
    %v5618 = vpop.f32.mrf.mxu0
    %v5619 = vpop.f32.mrf.mxu0
    %v5620 = vadd.f32 %v5547, %v5619
    %5621 = vmatmul.bf16.gmra.mxu0 %v4051
    %v5622 = vpop.f32.mrf.mxu0
    %v5623 = vadd.f32 %v5550, %v5622
    %v5624 = vpop.f32.mrf.mxu0
    %5625 = vdwg.mxu0
    %5626 = vmatpush.bf16.msra.mxu0 %v5147
    %5627 = vmatpush.bf16.msra.mxu0 %v5143
    %5628 = vmatpush.bf16.msra.mxu0 %v5139
    %5629 = vmatpush.bf16.msra.mxu0 %v5135
    %5630 = vmatpush.bf16.msra.mxu0 %v5131
    %5631 = vmatpush.bf16.msra.mxu0 %v5127
    %5632 = vmatpush.bf16.msra.mxu0 %v5123
    %5633 = vmatpush.bf16.msra.mxu0 %v5119
    %5634 = vmatmul.bf16.gmra.mxu0 %v4022
    %v5635 = vpop.f32.mrf.mxu0
    %v5636 = vpop.f32.mrf.mxu0
    %v5637 = vadd.f32 %v5564, %v5636
    %5638 = vmatmul.bf16.gmra.mxu0 %v4024
    %v5639 = vpop.f32.mrf.mxu0
    %v5640 = vadd.f32 %v5567, %v5639
    %v5641 = vpop.f32.mrf.mxu0
    %5642 = vmatmul.bf16.gmra.mxu0 %v4026
    %v5643 = vpop.f32.mrf.mxu0
    %v5644 = vpop.f32.mrf.mxu0
    %v5645 = vadd.f32 %v5572, %v5644
    %5646 = vmatmul.bf16.gmra.mxu0 %v4028
    %v5647 = vpop.f32.mrf.mxu0
    %v5648 = vadd.f32 %v5575, %v5647
    %v5649 = vpop.f32.mrf.mxu0
    %5650 = vmatmul.bf16.gmra.mxu0 %v4030
    %v5651 = vpop.f32.mrf.mxu0
    %v5652 = vpop.f32.mrf.mxu0
    %v5653 = vadd.f32 %v5580, %v5652
    %5654 = vmatmul.bf16.gmra.mxu0 %v4032
    %v5655 = vpop.f32.mrf.mxu0
    %v5656 = vadd.f32 %v5583, %v5655
    %v5657 = vpop.f32.mrf.mxu0
    %5658 = vmatmul.bf16.gmra.mxu0 %v4034
    %v5659 = vpop.f32.mrf.mxu0
    %v5660 = vpop.f32.mrf.mxu0
    %v5661 = vadd.f32 %v5588, %v5660
    %5662 = vmatmul.bf16.gmra.mxu0 %v4036
    %v5663 = vpop.f32.mrf.mxu0
    %v5664 = vadd.f32 %v5591, %v5663
    %v5665 = vpop.f32.mrf.mxu0
    %5666 = vmatmul.bf16.gmra.mxu0 %v4038
    %v5667 = vpop.f32.mrf.mxu0
    %v5668 = vpop.f32.mrf.mxu0
    %v5669 = vadd.f32 %v5596, %v5668
    %5670 = vmatmul.bf16.gmra.mxu0 %v4040
    %v5671 = vpop.f32.mrf.mxu0
    %v5672 = vadd.f32 %v5599, %v5671
    %v5673 = vpop.f32.mrf.mxu0
    %5674 = vmatmul.bf16.gmra.mxu0 %v4042
    %v5675 = vpop.f32.mrf.mxu0
    %v5676 = vpop.f32.mrf.mxu0
    %v5677 = vadd.f32 %v5604, %v5676
    %5678 = vmatmul.bf16.gmra.mxu0 %v4044
    %v5679 = vpop.f32.mrf.mxu0
    %v5680 = vadd.f32 %v5607, %v5679
    %v5681 = vpop.f32.mrf.mxu0
    %5682 = vmatmul.bf16.gmra.mxu0 %v4046
    %v5683 = vpop.f32.mrf.mxu0
    %v5684 = vpop.f32.mrf.mxu0
    %v5685 = vadd.f32 %v5612, %v5684
    %5686 = vmatmul.bf16.gmra.mxu0 %v4048
    %v5687 = vpop.f32.mrf.mxu0
    %v5688 = vadd.f32 %v5615, %v5687
    %v5689 = vpop.f32.mrf.mxu0
    %5690 = vmatmul.bf16.gmra.mxu0 %v4050
    %v5691 = vpop.f32.mrf.mxu0
    %v5692 = vpop.f32.mrf.mxu0
    %v5693 = vadd.f32 %v5620, %v5692
    %5694 = vmatmul.bf16.gmra.mxu0 %v4052
    %v5695 = vpop.f32.mrf.mxu0
    %v5696 = vadd.f32 %v5623, %v5695
    %v5697 = vpop.f32.mrf.mxu0
    %5698 = vdwg.mxu0
    %5699 = vmatpush.bf16.msra.mxu0 %v5179
    %5700 = vmatpush.bf16.msra.mxu0 %v5175
    %5701 = vmatpush.bf16.msra.mxu0 %v5171
    %5702 = vmatpush.bf16.msra.mxu0 %v5167
    %5703 = vmatpush.bf16.msra.mxu0 %v5163
    %5704 = vmatpush.bf16.msra.mxu0 %v5159
    %5705 = vmatpush.bf16.msra.mxu0 %v5155
    %5706 = vmatpush.bf16.msra.mxu0 %v5151
    %5707 = vmatmul.bf16.gmra.mxu0 %v4181
    %v5708 = vpop.f32.mrf.mxu0
    %v5709 = vpop.f32.mrf.mxu0
    %v5710 = vadd.f32 %v5637, %v5709
    %5711 = vmatmul.bf16.gmra.mxu0 %v4183
    %v5712 = vpop.f32.mrf.mxu0
    %v5713 = vadd.f32 %v5640, %v5712
    %v5714 = vpop.f32.mrf.mxu0
    %5715 = vmatmul.bf16.gmra.mxu0 %v4185
    %v5716 = vpop.f32.mrf.mxu0
    %v5717 = vpop.f32.mrf.mxu0
    %v5718 = vadd.f32 %v5645, %v5717
    %5719 = vmatmul.bf16.gmra.mxu0 %v4187
    %v5720 = vpop.f32.mrf.mxu0
    %v5721 = vadd.f32 %v5648, %v5720
    %v5722 = vpop.f32.mrf.mxu0
    %5723 = vmatmul.bf16.gmra.mxu0 %v4189
    %v5724 = vpop.f32.mrf.mxu0
    %v5725 = vpop.f32.mrf.mxu0
    %v5726 = vadd.f32 %v5653, %v5725
    %5727 = vmatmul.bf16.gmra.mxu0 %v4191
    %v5728 = vpop.f32.mrf.mxu0
    %v5729 = vadd.f32 %v5656, %v5728
    %v5730 = vpop.f32.mrf.mxu0
    %5731 = vmatmul.bf16.gmra.mxu0 %v4193
    %v5732 = vpop.f32.mrf.mxu0
    %v5733 = vpop.f32.mrf.mxu0
    %v5734 = vadd.f32 %v5661, %v5733
    %5735 = vmatmul.bf16.gmra.mxu0 %v4195
    %v5736 = vpop.f32.mrf.mxu0
    %v5737 = vadd.f32 %v5664, %v5736
    %v5738 = vpop.f32.mrf.mxu0
    %5739 = vmatmul.bf16.gmra.mxu0 %v4197
    %v5740 = vpop.f32.mrf.mxu0
    %v5741 = vpop.f32.mrf.mxu0
    %v5742 = vadd.f32 %v5669, %v5741
    %5743 = vmatmul.bf16.gmra.mxu0 %v4199
    %v5744 = vpop.f32.mrf.mxu0
    %v5745 = vadd.f32 %v5672, %v5744
    %v5746 = vpop.f32.mrf.mxu0
    %5747 = vmatmul.bf16.gmra.mxu0 %v4201
    %v5748 = vpop.f32.mrf.mxu0
    %v5749 = vpop.f32.mrf.mxu0
    %v5750 = vadd.f32 %v5677, %v5749
    %5751 = vmatmul.bf16.gmra.mxu0 %v4203
    %v5752 = vpop.f32.mrf.mxu0
    %v5753 = vadd.f32 %v5680, %v5752
    %v5754 = vpop.f32.mrf.mxu0
    %5755 = vmatmul.bf16.gmra.mxu0 %v4205
    %v5756 = vpop.f32.mrf.mxu0
    %v5757 = vpop.f32.mrf.mxu0
    %v5758 = vadd.f32 %v5685, %v5757
    %5759 = vmatmul.bf16.gmra.mxu0 %v4207
    %v5760 = vpop.f32.mrf.mxu0
    %v5761 = vadd.f32 %v5688, %v5760
    %v5762 = vpop.f32.mrf.mxu0
    %5763 = vmatmul.bf16.gmra.mxu0 %v4209
    %v5764 = vpop.f32.mrf.mxu0
    %v5765 = vpop.f32.mrf.mxu0
    %v5766 = vadd.f32 %v5693, %v5765
    %5767 = vmatmul.bf16.gmra.mxu0 %v4211
    %v5768 = vpop.f32.mrf.mxu0
    %v5769 = vadd.f32 %v5696, %v5768
    %v5770 = vpop.f32.mrf.mxu0
    %5771 = vdwg.mxu0
    %5772 = vmatpush.bf16.msra.mxu0 %v5211
    %5773 = vmatpush.bf16.msra.mxu0 %v5207
    %5774 = vmatpush.bf16.msra.mxu0 %v5203
    %5775 = vmatpush.bf16.msra.mxu0 %v5199
    %5776 = vmatpush.bf16.msra.mxu0 %v5195
    %5777 = vmatpush.bf16.msra.mxu0 %v5191
    %5778 = vmatpush.bf16.msra.mxu0 %v5187
    %5779 = vmatpush.bf16.msra.mxu0 %v5183
    %5780 = vmatmul.bf16.gmra.mxu0 %v4182
    %v5781 = vpop.f32.mrf.mxu0
    %v5782 = vpop.f32.mrf.mxu0
    %v5783 = vadd.f32 %v5710, %v5782
    %5784 = vmatmul.bf16.gmra.mxu0 %v4184
    %v5785 = vpop.f32.mrf.mxu0
    %v5786 = vadd.f32 %v5713, %v5785
    %v5787 = vpop.f32.mrf.mxu0
    %5788 = vmatmul.bf16.gmra.mxu0 %v4186
    %v5789 = vpop.f32.mrf.mxu0
    %v5790 = vpop.f32.mrf.mxu0
    %v5791 = vadd.f32 %v5718, %v5790
    %5792 = vmatmul.bf16.gmra.mxu0 %v4188
    %v5793 = vpop.f32.mrf.mxu0
    %v5794 = vadd.f32 %v5721, %v5793
    %v5795 = vpop.f32.mrf.mxu0
    %5796 = vmatmul.bf16.gmra.mxu0 %v4190
    %v5797 = vpop.f32.mrf.mxu0
    %v5798 = vpop.f32.mrf.mxu0
    %v5799 = vadd.f32 %v5726, %v5798
    %5800 = vmatmul.bf16.gmra.mxu0 %v4192
    %v5801 = vpop.f32.mrf.mxu0
    %v5802 = vadd.f32 %v5729, %v5801
    %v5803 = vpop.f32.mrf.mxu0
    %5804 = vmatmul.bf16.gmra.mxu0 %v4194
    %v5805 = vpop.f32.mrf.mxu0
    %v5806 = vpop.f32.mrf.mxu0
    %v5807 = vadd.f32 %v5734, %v5806
    %5808 = vmatmul.bf16.gmra.mxu0 %v4196
    %v5809 = vpop.f32.mrf.mxu0
    %v5810 = vadd.f32 %v5737, %v5809
    %v5811 = vpop.f32.mrf.mxu0
    %5812 = vmatmul.bf16.gmra.mxu0 %v4198
    %v5813 = vpop.f32.mrf.mxu0
    %v5814 = vpop.f32.mrf.mxu0
    %v5815 = vadd.f32 %v5742, %v5814
    %5816 = vmatmul.bf16.gmra.mxu0 %v4200
    %v5817 = vpop.f32.mrf.mxu0
    %v5818 = vadd.f32 %v5745, %v5817
    %v5819 = vpop.f32.mrf.mxu0
    %5820 = vmatmul.bf16.gmra.mxu0 %v4202
    %v5821 = vpop.f32.mrf.mxu0
    %v5822 = vpop.f32.mrf.mxu0
    %v5823 = vadd.f32 %v5750, %v5822
    %5824 = vmatmul.bf16.gmra.mxu0 %v4204
    %v5825 = vpop.f32.mrf.mxu0
    %v5826 = vadd.f32 %v5753, %v5825
    %v5827 = vpop.f32.mrf.mxu0
    %5828 = vmatmul.bf16.gmra.mxu0 %v4206
    %v5829 = vpop.f32.mrf.mxu0
    %v5830 = vpop.f32.mrf.mxu0
    %v5831 = vadd.f32 %v5758, %v5830
    %5832 = vmatmul.bf16.gmra.mxu0 %v4208
    %v5833 = vpop.f32.mrf.mxu0
    %v5834 = vadd.f32 %v5761, %v5833
    %v5835 = vpop.f32.mrf.mxu0
    %5836 = vmatmul.bf16.gmra.mxu0 %v4210
    %v5837 = vpop.f32.mrf.mxu0
    %v5838 = vpop.f32.mrf.mxu0
    %v5839 = vadd.f32 %v5766, %v5838
    %5840 = vmatmul.bf16.gmra.mxu0 %v4212
    %v5841 = vpop.f32.mrf.mxu0
    %v5842 = vadd.f32 %v5769, %v5841
    %v5843 = vpop.f32.mrf.mxu0
    %5844 = vdwg.mxu0
    %5845 = vmatpush.bf16.msra.mxu0 %v5052
    %5846 = vmatpush.bf16.msra.mxu0 %v5048
    %5847 = vmatpush.bf16.msra.mxu0 %v5044
    %5848 = vmatpush.bf16.msra.mxu0 %v5040
    %5849 = vmatpush.bf16.msra.mxu0 %v5036
    %5850 = vmatpush.bf16.msra.mxu0 %v5032
    %5851 = vmatpush.bf16.msra.mxu0 %v5028
    %5852 = vmatpush.bf16.msra.mxu0 %v5024
    %5853 = vmatmul.bf16.gmra.mxu0 %v3861
    %v5854 = vpop.f32.mrf.mxu0
    %v5855 = vpop.f32.mrf.mxu0
    %v5856 = vadd.f32 %v4440, %v5855
    %5857 = vmatmul.bf16.gmra.mxu0 %v3863
    %v5858 = vpop.f32.mrf.mxu0
    %v5859 = vadd.f32 %v4440, %v5858
    %v5860 = vpop.f32.mrf.mxu0
    %5861 = vmatmul.bf16.gmra.mxu0 %v3865
    %v5862 = vpop.f32.mrf.mxu0
    %v5863 = vpop.f32.mrf.mxu0
    %v5864 = vadd.f32 %v4440, %v5863
    %5865 = vmatmul.bf16.gmra.mxu0 %v3867
    %v5866 = vpop.f32.mrf.mxu0
    %v5867 = vadd.f32 %v4440, %v5866
    %v5868 = vpop.f32.mrf.mxu0
    %5869 = vmatmul.bf16.gmra.mxu0 %v3869
    %v5870 = vpop.f32.mrf.mxu0
    %v5871 = vpop.f32.mrf.mxu0
    %v5872 = vadd.f32 %v4440, %v5871
    %5873 = vmatmul.bf16.gmra.mxu0 %v3871
    %v5874 = vpop.f32.mrf.mxu0
    %v5875 = vadd.f32 %v4440, %v5874
    %v5876 = vpop.f32.mrf.mxu0
    %5877 = vmatmul.bf16.gmra.mxu0 %v3873
    %v5878 = vpop.f32.mrf.mxu0
    %v5879 = vpop.f32.mrf.mxu0
    %v5880 = vadd.f32 %v4440, %v5879
    %5881 = vmatmul.bf16.gmra.mxu0 %v3875
    %v5882 = vpop.f32.mrf.mxu0
    %v5883 = vadd.f32 %v4440, %v5882
    %v5884 = vpop.f32.mrf.mxu0
    %5885 = vmatmul.bf16.gmra.mxu0 %v3877
    %v5886 = vpop.f32.mrf.mxu0
    %v5887 = vpop.f32.mrf.mxu0
    %v5888 = vadd.f32 %v4440, %v5887
    %5889 = vmatmul.bf16.gmra.mxu0 %v3879
    %v5890 = vpop.f32.mrf.mxu0
    %v5891 = vadd.f32 %v4440, %v5890
    %v5892 = vpop.f32.mrf.mxu0
    %5893 = vmatmul.bf16.gmra.mxu0 %v3881
    %v5894 = vpop.f32.mrf.mxu0
    %v5895 = vpop.f32.mrf.mxu0
    %v5896 = vadd.f32 %v4440, %v5895
    %5897 = vmatmul.bf16.gmra.mxu0 %v3883
    %v5898 = vpop.f32.mrf.mxu0
    %v5899 = vadd.f32 %v4440, %v5898
    %v5900 = vpop.f32.mrf.mxu0
    %5901 = vmatmul.bf16.gmra.mxu0 %v3885
    %v5902 = vpop.f32.mrf.mxu0
    %v5903 = vpop.f32.mrf.mxu0
    %v5904 = vadd.f32 %v4440, %v5903
    %5905 = vmatmul.bf16.gmra.mxu0 %v3887
    %v5906 = vpop.f32.mrf.mxu0
    %v5907 = vadd.f32 %v4440, %v5906
    %v5908 = vpop.f32.mrf.mxu0
    %5909 = vmatmul.bf16.gmra.mxu0 %v3889
    %v5910 = vpop.f32.mrf.mxu0
    %v5911 = vpop.f32.mrf.mxu0
    %v5912 = vadd.f32 %v4440, %v5911
    %5913 = vmatmul.bf16.gmra.mxu0 %v3891
    %v5914 = vpop.f32.mrf.mxu0
    %v5915 = vadd.f32 %v4440, %v5914
    %v5916 = vpop.f32.mrf.mxu0
    %5917 = vdwg.mxu0
    %5918 = vmatpush.bf16.msra.mxu0 %v5084
    %5919 = vmatpush.bf16.msra.mxu0 %v5080
    %5920 = vmatpush.bf16.msra.mxu0 %v5076
    %5921 = vmatpush.bf16.msra.mxu0 %v5072
    %5922 = vmatpush.bf16.msra.mxu0 %v5068
    %5923 = vmatpush.bf16.msra.mxu0 %v5064
    %5924 = vmatpush.bf16.msra.mxu0 %v5060
    %5925 = vmatpush.bf16.msra.mxu0 %v5056
    %5926 = vmatmul.bf16.gmra.mxu0 %v3862
    %v5927 = vpop.f32.mrf.mxu0
    %v5928 = vpop.f32.mrf.mxu0
    %v5929 = vadd.f32 %v5856, %v5928
    %5930 = vmatmul.bf16.gmra.mxu0 %v3864
    %v5931 = vpop.f32.mrf.mxu0
    %v5932 = vadd.f32 %v5859, %v5931
    %v5933 = vpop.f32.mrf.mxu0
    %5934 = vmatmul.bf16.gmra.mxu0 %v3866
    %v5935 = vpop.f32.mrf.mxu0
    %v5936 = vpop.f32.mrf.mxu0
    %v5937 = vadd.f32 %v5864, %v5936
    %5938 = vmatmul.bf16.gmra.mxu0 %v3868
    %v5939 = vpop.f32.mrf.mxu0
    %v5940 = vadd.f32 %v5867, %v5939
    %v5941 = vpop.f32.mrf.mxu0
    %5942 = vmatmul.bf16.gmra.mxu0 %v3870
    %v5943 = vpop.f32.mrf.mxu0
    %v5944 = vpop.f32.mrf.mxu0
    %v5945 = vadd.f32 %v5872, %v5944
    %5946 = vmatmul.bf16.gmra.mxu0 %v3872
    %v5947 = vpop.f32.mrf.mxu0
    %v5948 = vadd.f32 %v5875, %v5947
    %v5949 = vpop.f32.mrf.mxu0
    %5950 = vmatmul.bf16.gmra.mxu0 %v3874
    %v5951 = vpop.f32.mrf.mxu0
    %v5952 = vpop.f32.mrf.mxu0
    %v5953 = vadd.f32 %v5880, %v5952
    %5954 = vmatmul.bf16.gmra.mxu0 %v3876
    %v5955 = vpop.f32.mrf.mxu0
    %v5956 = vadd.f32 %v5883, %v5955
    %v5957 = vpop.f32.mrf.mxu0
    %5958 = vmatmul.bf16.gmra.mxu0 %v3878
    %v5959 = vpop.f32.mrf.mxu0
    %v5960 = vpop.f32.mrf.mxu0
    %v5961 = vadd.f32 %v5888, %v5960
    %5962 = vmatmul.bf16.gmra.mxu0 %v3880
    %v5963 = vpop.f32.mrf.mxu0
    %v5964 = vadd.f32 %v5891, %v5963
    %v5965 = vpop.f32.mrf.mxu0
    %5966 = vmatmul.bf16.gmra.mxu0 %v3882
    %v5967 = vpop.f32.mrf.mxu0
    %v5968 = vpop.f32.mrf.mxu0
    %v5969 = vadd.f32 %v5896, %v5968
    %5970 = vmatmul.bf16.gmra.mxu0 %v3884
    %v5971 = vpop.f32.mrf.mxu0
    %v5972 = vadd.f32 %v5899, %v5971
    %v5973 = vpop.f32.mrf.mxu0
    %5974 = vmatmul.bf16.gmra.mxu0 %v3886
    %v5975 = vpop.f32.mrf.mxu0
    %v5976 = vpop.f32.mrf.mxu0
    %v5977 = vadd.f32 %v5904, %v5976
    %5978 = vmatmul.bf16.gmra.mxu0 %v3888
    %v5979 = vpop.f32.mrf.mxu0
    %v5980 = vadd.f32 %v5907, %v5979
    %v5981 = vpop.f32.mrf.mxu0
    %5982 = vmatmul.bf16.gmra.mxu0 %v3890
    %v5983 = vpop.f32.mrf.mxu0
    %v5984 = vpop.f32.mrf.mxu0
    %v5985 = vadd.f32 %v5912, %v5984
    %5986 = vmatmul.bf16.gmra.mxu0 %v3892
    %v5987 = vpop.f32.mrf.mxu0
    %v5988 = vadd.f32 %v5915, %v5987
    %v5989 = vpop.f32.mrf.mxu0
    %5990 = vdwg.mxu0
    %5991 = vmatpush.bf16.msra.mxu0 %v5116
    %5992 = vmatpush.bf16.msra.mxu0 %v5112
    %5993 = vmatpush.bf16.msra.mxu0 %v5108
    %5994 = vmatpush.bf16.msra.mxu0 %v5104
    %5995 = vmatpush.bf16.msra.mxu0 %v5100
    %5996 = vmatpush.bf16.msra.mxu0 %v5096
    %5997 = vmatpush.bf16.msra.mxu0 %v5092
    %5998 = vmatpush.bf16.msra.mxu0 %v5088
    %5999 = vmatmul.bf16.gmra.mxu0 %v4021
    %v6000 = vpop.f32.mrf.mxu0
    %v6001 = vpop.f32.mrf.mxu0
    %v6002 = vadd.f32 %v5929, %v6001
    %6003 = vmatmul.bf16.gmra.mxu0 %v4023
    %v6004 = vpop.f32.mrf.mxu0
    %v6005 = vadd.f32 %v5932, %v6004
    %v6006 = vpop.f32.mrf.mxu0
    %6007 = vmatmul.bf16.gmra.mxu0 %v4025
    %v6008 = vpop.f32.mrf.mxu0
    %v6009 = vpop.f32.mrf.mxu0
    %v6010 = vadd.f32 %v5937, %v6009
    %6011 = vmatmul.bf16.gmra.mxu0 %v4027
    %v6012 = vpop.f32.mrf.mxu0
    %v6013 = vadd.f32 %v5940, %v6012
    %v6014 = vpop.f32.mrf.mxu0
    %6015 = vmatmul.bf16.gmra.mxu0 %v4029
    %v6016 = vpop.f32.mrf.mxu0
    %v6017 = vpop.f32.mrf.mxu0
    %v6018 = vadd.f32 %v5945, %v6017
    %6019 = vmatmul.bf16.gmra.mxu0 %v4031
    %v6020 = vpop.f32.mrf.mxu0
    %v6021 = vadd.f32 %v5948, %v6020
    %v6022 = vpop.f32.mrf.mxu0
    %6023 = vmatmul.bf16.gmra.mxu0 %v4033
    %v6024 = vpop.f32.mrf.mxu0
    %v6025 = vpop.f32.mrf.mxu0
    %v6026 = vadd.f32 %v5953, %v6025
    %6027 = vmatmul.bf16.gmra.mxu0 %v4035
    %v6028 = vpop.f32.mrf.mxu0
    %v6029 = vadd.f32 %v5956, %v6028
    %v6030 = vpop.f32.mrf.mxu0
    %6031 = vmatmul.bf16.gmra.mxu0 %v4037
    %v6032 = vpop.f32.mrf.mxu0
    %v6033 = vpop.f32.mrf.mxu0
    %v6034 = vadd.f32 %v5961, %v6033
    %6035 = vmatmul.bf16.gmra.mxu0 %v4039
    %v6036 = vpop.f32.mrf.mxu0
    %v6037 = vadd.f32 %v5964, %v6036
    %v6038 = vpop.f32.mrf.mxu0
    %6039 = vmatmul.bf16.gmra.mxu0 %v4041
    %v6040 = vpop.f32.mrf.mxu0
    %v6041 = vpop.f32.mrf.mxu0
    %v6042 = vadd.f32 %v5969, %v6041
    %6043 = vmatmul.bf16.gmra.mxu0 %v4043
    %v6044 = vpop.f32.mrf.mxu0
    %v6045 = vadd.f32 %v5972, %v6044
    %v6046 = vpop.f32.mrf.mxu0
    %6047 = vmatmul.bf16.gmra.mxu0 %v4045
    %v6048 = vpop.f32.mrf.mxu0
    %v6049 = vpop.f32.mrf.mxu0
    %v6050 = vadd.f32 %v5977, %v6049
    %6051 = vmatmul.bf16.gmra.mxu0 %v4047
    %v6052 = vpop.f32.mrf.mxu0
    %v6053 = vadd.f32 %v5980, %v6052
    %v6054 = vpop.f32.mrf.mxu0
    %6055 = vmatmul.bf16.gmra.mxu0 %v4049
    %v6056 = vpop.f32.mrf.mxu0
    %v6057 = vpop.f32.mrf.mxu0
    %v6058 = vadd.f32 %v5985, %v6057
    %6059 = vmatmul.bf16.gmra.mxu0 %v4051
    %v6060 = vpop.f32.mrf.mxu0
    %v6061 = vadd.f32 %v5988, %v6060
    %v6062 = vpop.f32.mrf.mxu0
    %6063 = vdwg.mxu0
    %6064 = vmatpush.bf16.msra.mxu0 %v5148
    %6065 = vmatpush.bf16.msra.mxu0 %v5144
    %6066 = vmatpush.bf16.msra.mxu0 %v5140
    %6067 = vmatpush.bf16.msra.mxu0 %v5136
    %6068 = vmatpush.bf16.msra.mxu0 %v5132
    %6069 = vmatpush.bf16.msra.mxu0 %v5128
    %6070 = vmatpush.bf16.msra.mxu0 %v5124
    %6071 = vmatpush.bf16.msra.mxu0 %v5120
    %6072 = vmatmul.bf16.gmra.mxu0 %v4022
    %v6073 = vpop.f32.mrf.mxu0
    %v6074 = vpop.f32.mrf.mxu0
    %v6075 = vadd.f32 %v6002, %v6074
    %6076 = vmatmul.bf16.gmra.mxu0 %v4024
    %v6077 = vpop.f32.mrf.mxu0
    %v6078 = vadd.f32 %v6005, %v6077
    %v6079 = vpop.f32.mrf.mxu0
    %6080 = vmatmul.bf16.gmra.mxu0 %v4026
    %v6081 = vpop.f32.mrf.mxu0
    %v6082 = vpop.f32.mrf.mxu0
    %v6083 = vadd.f32 %v6010, %v6082
    %6084 = vmatmul.bf16.gmra.mxu0 %v4028
    %v6085 = vpop.f32.mrf.mxu0
    %v6086 = vadd.f32 %v6013, %v6085
    %v6087 = vpop.f32.mrf.mxu0
    %6088 = vmatmul.bf16.gmra.mxu0 %v4030
    %v6089 = vpop.f32.mrf.mxu0
    %v6090 = vpop.f32.mrf.mxu0
    %v6091 = vadd.f32 %v6018, %v6090
    %6092 = vmatmul.bf16.gmra.mxu0 %v4032
    %v6093 = vpop.f32.mrf.mxu0
    %v6094 = vadd.f32 %v6021, %v6093
    %v6095 = vpop.f32.mrf.mxu0
    %6096 = vmatmul.bf16.gmra.mxu0 %v4034
    %v6097 = vpop.f32.mrf.mxu0
    %v6098 = vpop.f32.mrf.mxu0
    %v6099 = vadd.f32 %v6026, %v6098
    %6100 = vmatmul.bf16.gmra.mxu0 %v4036
    %v6101 = vpop.f32.mrf.mxu0
    %v6102 = vadd.f32 %v6029, %v6101
    %v6103 = vpop.f32.mrf.mxu0
    %6104 = vmatmul.bf16.gmra.mxu0 %v4038
    %v6105 = vpop.f32.mrf.mxu0
    %v6106 = vpop.f32.mrf.mxu0
    %v6107 = vadd.f32 %v6034, %v6106
    %6108 = vmatmul.bf16.gmra.mxu0 %v4040
    %v6109 = vpop.f32.mrf.mxu0
    %v6110 = vadd.f32 %v6037, %v6109
    %v6111 = vpop.f32.mrf.mxu0
    %6112 = vmatmul.bf16.gmra.mxu0 %v4042
    %v6113 = vpop.f32.mrf.mxu0
    %v6114 = vpop.f32.mrf.mxu0
    %v6115 = vadd.f32 %v6042, %v6114
    %6116 = vmatmul.bf16.gmra.mxu0 %v4044
    %v6117 = vpop.f32.mrf.mxu0
    %v6118 = vadd.f32 %v6045, %v6117
    %v6119 = vpop.f32.mrf.mxu0
    %6120 = vmatmul.bf16.gmra.mxu0 %v4046
    %v6121 = vpop.f32.mrf.mxu0
    %v6122 = vpop.f32.mrf.mxu0
    %v6123 = vadd.f32 %v6050, %v6122
    %6124 = vmatmul.bf16.gmra.mxu0 %v4048
    %v6125 = vpop.f32.mrf.mxu0
    %v6126 = vadd.f32 %v6053, %v6125
    %v6127 = vpop.f32.mrf.mxu0
    %6128 = vmatmul.bf16.gmra.mxu0 %v4050
    %v6129 = vpop.f32.mrf.mxu0
    %v6130 = vpop.f32.mrf.mxu0
    %v6131 = vadd.f32 %v6058, %v6130
    %6132 = vmatmul.bf16.gmra.mxu0 %v4052
    %v6133 = vpop.f32.mrf.mxu0
    %v6134 = vadd.f32 %v6061, %v6133
    %v6135 = vpop.f32.mrf.mxu0
    %6136 = vdwg.mxu0
    %6137 = vmatpush.bf16.msra.mxu0 %v5180
    %6138 = vmatpush.bf16.msra.mxu0 %v5176
    %6139 = vmatpush.bf16.msra.mxu0 %v5172
    %6140 = vmatpush.bf16.msra.mxu0 %v5168
    %6141 = vmatpush.bf16.msra.mxu0 %v5164
    %6142 = vmatpush.bf16.msra.mxu0 %v5160
    %6143 = vmatpush.bf16.msra.mxu0 %v5156
    %6144 = vmatpush.bf16.msra.mxu0 %v5152
    %6145 = vmatmul.bf16.gmra.mxu0 %v4181
    %v6146 = vpop.f32.mrf.mxu0
    %v6147 = vpop.f32.mrf.mxu0
    %v6148 = vadd.f32 %v6075, %v6147
    %6149 = vmatmul.bf16.gmra.mxu0 %v4183
    %v6150 = vpop.f32.mrf.mxu0
    %v6151 = vadd.f32 %v6078, %v6150
    %v6152 = vpop.f32.mrf.mxu0
    %6153 = vmatmul.bf16.gmra.mxu0 %v4185
    %v6154 = vpop.f32.mrf.mxu0
    %v6155 = vpop.f32.mrf.mxu0
    %v6156 = vadd.f32 %v6083, %v6155
    %6157 = vmatmul.bf16.gmra.mxu0 %v4187
    %v6158 = vpop.f32.mrf.mxu0
    %v6159 = vadd.f32 %v6086, %v6158
    %v6160 = vpop.f32.mrf.mxu0
    %6161 = vmatmul.bf16.gmra.mxu0 %v4189
    %v6162 = vpop.f32.mrf.mxu0
    %v6163 = vpop.f32.mrf.mxu0
    %v6164 = vadd.f32 %v6091, %v6163
    %6165 = vmatmul.bf16.gmra.mxu0 %v4191
    %v6166 = vpop.f32.mrf.mxu0
    %v6167 = vadd.f32 %v6094, %v6166
    %v6168 = vpop.f32.mrf.mxu0
    %6169 = vmatmul.bf16.gmra.mxu0 %v4193
    %v6170 = vpop.f32.mrf.mxu0
    %v6171 = vpop.f32.mrf.mxu0
    %v6172 = vadd.f32 %v6099, %v6171
    %6173 = vmatmul.bf16.gmra.mxu0 %v4195
    %v6174 = vpop.f32.mrf.mxu0
    %v6175 = vadd.f32 %v6102, %v6174
    %v6176 = vpop.f32.mrf.mxu0
    %6177 = vmatmul.bf16.gmra.mxu0 %v4197
    %v6178 = vpop.f32.mrf.mxu0
    %v6179 = vpop.f32.mrf.mxu0
    %v6180 = vadd.f32 %v6107, %v6179
    %6181 = vmatmul.bf16.gmra.mxu0 %v4199
    %v6182 = vpop.f32.mrf.mxu0
    %v6183 = vadd.f32 %v6110, %v6182
    %v6184 = vpop.f32.mrf.mxu0
    %6185 = vmatmul.bf16.gmra.mxu0 %v4201
    %v6186 = vpop.f32.mrf.mxu0
    %v6187 = vpop.f32.mrf.mxu0
    %v6188 = vadd.f32 %v6115, %v6187
    %6189 = vmatmul.bf16.gmra.mxu0 %v4203
    %v6190 = vpop.f32.mrf.mxu0
    %v6191 = vadd.f32 %v6118, %v6190
    %v6192 = vpop.f32.mrf.mxu0
    %6193 = vmatmul.bf16.gmra.mxu0 %v4205
    %v6194 = vpop.f32.mrf.mxu0
    %v6195 = vpop.f32.mrf.mxu0
    %v6196 = vadd.f32 %v6123, %v6195
    %6197 = vmatmul.bf16.gmra.mxu0 %v4207
    %v6198 = vpop.f32.mrf.mxu0
    %v6199 = vadd.f32 %v6126, %v6198
    %v6200 = vpop.f32.mrf.mxu0
    %6201 = vmatmul.bf16.gmra.mxu0 %v4209
    %v6202 = vpop.f32.mrf.mxu0
    %v6203 = vpop.f32.mrf.mxu0
    %v6204 = vadd.f32 %v6131, %v6203
    %6205 = vmatmul.bf16.gmra.mxu0 %v4211
    %v6206 = vpop.f32.mrf.mxu0
    %v6207 = vadd.f32 %v6134, %v6206
    %v6208 = vpop.f32.mrf.mxu0
    %6209 = vdwg.mxu0
    %6210 = vmatpush.bf16.msra.mxu0 %v5212
    %6211 = vmatpush.bf16.msra.mxu0 %v5208
    %6212 = vmatpush.bf16.msra.mxu0 %v5204
    %6213 = vmatpush.bf16.msra.mxu0 %v5200
    %6214 = vmatpush.bf16.msra.mxu0 %v5196
    %6215 = vmatpush.bf16.msra.mxu0 %v5192
    %6216 = vmatpush.bf16.msra.mxu0 %v5188
    %6217 = vmatpush.bf16.msra.mxu0 %v5184
    %6218 = vmatmul.bf16.gmra.mxu0 %v4182
    %v6219 = vpop.f32.mrf.mxu0
    %v6220 = vpop.f32.mrf.mxu0
    %v6221 = vadd.f32 %v6148, %v6220
    %6222 = vmatmul.bf16.gmra.mxu0 %v4184
    %v6223 = vpop.f32.mrf.mxu0
    %v6224 = vadd.f32 %v6151, %v6223
    %v6225 = vpop.f32.mrf.mxu0
    %6226 = vmatmul.bf16.gmra.mxu0 %v4186
    %v6227 = vpop.f32.mrf.mxu0
    %v6228 = vpop.f32.mrf.mxu0
    %v6229 = vadd.f32 %v6156, %v6228
    %6230 = vmatmul.bf16.gmra.mxu0 %v4188
    %v6231 = vpop.f32.mrf.mxu0
    %v6232 = vadd.f32 %v6159, %v6231
    %v6233 = vpop.f32.mrf.mxu0
    %6234 = vmatmul.bf16.gmra.mxu0 %v4190
    %v6235 = vpop.f32.mrf.mxu0
    %v6236 = vpop.f32.mrf.mxu0
    %v6237 = vadd.f32 %v6164, %v6236
    %6238 = vmatmul.bf16.gmra.mxu0 %v4192
    %v6239 = vpop.f32.mrf.mxu0
    %v6240 = vadd.f32 %v6167, %v6239
    %v6241 = vpop.f32.mrf.mxu0
    %6242 = vmatmul.bf16.gmra.mxu0 %v4194
    %v6243 = vpop.f32.mrf.mxu0
    %v6244 = vpop.f32.mrf.mxu0
    %v6245 = vadd.f32 %v6172, %v6244
    %6246 = vmatmul.bf16.gmra.mxu0 %v4196
    %v6247 = vpop.f32.mrf.mxu0
    %v6248 = vadd.f32 %v6175, %v6247
    %v6249 = vpop.f32.mrf.mxu0
    %6250 = vmatmul.bf16.gmra.mxu0 %v4198
    %v6251 = vpop.f32.mrf.mxu0
    %v6252 = vpop.f32.mrf.mxu0
    %v6253 = vadd.f32 %v6180, %v6252
    %6254 = vmatmul.bf16.gmra.mxu0 %v4200
    %v6255 = vpop.f32.mrf.mxu0
    %v6256 = vadd.f32 %v6183, %v6255
    %v6257 = vpop.f32.mrf.mxu0
    %6258 = vmatmul.bf16.gmra.mxu0 %v4202
    %v6259 = vpop.f32.mrf.mxu0
    %v6260 = vpop.f32.mrf.mxu0
    %v6261 = vadd.f32 %v6188, %v6260
    %6262 = vmatmul.bf16.gmra.mxu0 %v4204
    %v6263 = vpop.f32.mrf.mxu0
    %v6264 = vadd.f32 %v6191, %v6263
    %v6265 = vpop.f32.mrf.mxu0
    %6266 = vmatmul.bf16.gmra.mxu0 %v4206
    %v6267 = vpop.f32.mrf.mxu0
    %v6268 = vpop.f32.mrf.mxu0
    %v6269 = vadd.f32 %v6196, %v6268
    %6270 = vmatmul.bf16.gmra.mxu0 %v4208
    %v6271 = vpop.f32.mrf.mxu0
    %v6272 = vadd.f32 %v6199, %v6271
    %v6273 = vpop.f32.mrf.mxu0
    %6274 = vmatmul.bf16.gmra.mxu0 %v4210
    %v6275 = vpop.f32.mrf.mxu0
    %v6276 = vpop.f32.mrf.mxu0
    %v6277 = vadd.f32 %v6204, %v6276
    %6278 = vmatmul.bf16.gmra.mxu0 %v4212
    %v6279 = vpop.f32.mrf.mxu0
    %v6280 = vadd.f32 %v6207, %v6279
    %v6281 = vpop.f32.mrf.mxu0
    %6282 = vdwg.mxu0
    %6283 = vmatpush.bf16.msra.mxu0 %v5053
    %6284 = vmatpush.bf16.msra.mxu0 %v5049
    %6285 = vmatpush.bf16.msra.mxu0 %v5045
    %6286 = vmatpush.bf16.msra.mxu0 %v5041
    %6287 = vmatpush.bf16.msra.mxu0 %v5037
    %6288 = vmatpush.bf16.msra.mxu0 %v5033
    %6289 = vmatpush.bf16.msra.mxu0 %v5029
    %6290 = vmatpush.bf16.msra.mxu0 %v5025
    %6291 = vmatmul.bf16.gmra.mxu0 %v3861
    %v6292 = vpop.f32.mrf.mxu0
    %v6293 = vpop.f32.mrf.mxu0
    %v6294 = vadd.f32 %v4441, %v6293
    %6295 = vmatmul.bf16.gmra.mxu0 %v3863
    %v6296 = vpop.f32.mrf.mxu0
    %v6297 = vadd.f32 %v4441, %v6296
    %v6298 = vpop.f32.mrf.mxu0
    %6299 = vmatmul.bf16.gmra.mxu0 %v3865
    %v6300 = vpop.f32.mrf.mxu0
    %v6301 = vpop.f32.mrf.mxu0
    %v6302 = vadd.f32 %v4441, %v6301
    %6303 = vmatmul.bf16.gmra.mxu0 %v3867
    %v6304 = vpop.f32.mrf.mxu0
    %v6305 = vadd.f32 %v4441, %v6304
    %v6306 = vpop.f32.mrf.mxu0
    %6307 = vmatmul.bf16.gmra.mxu0 %v3869
    %v6308 = vpop.f32.mrf.mxu0
    %v6309 = vpop.f32.mrf.mxu0
    %v6310 = vadd.f32 %v4441, %v6309
    %6311 = vmatmul.bf16.gmra.mxu0 %v3871
    %v6312 = vpop.f32.mrf.mxu0
    %v6313 = vadd.f32 %v4441, %v6312
    %v6314 = vpop.f32.mrf.mxu0
    %6315 = vmatmul.bf16.gmra.mxu0 %v3873
    %v6316 = vpop.f32.mrf.mxu0
    %v6317 = vpop.f32.mrf.mxu0
    %v6318 = vadd.f32 %v4441, %v6317
    %6319 = vmatmul.bf16.gmra.mxu0 %v3875
    %v6320 = vpop.f32.mrf.mxu0
    %v6321 = vadd.f32 %v4441, %v6320
    %v6322 = vpop.f32.mrf.mxu0
    %6323 = vmatmul.bf16.gmra.mxu0 %v3877
    %v6324 = vpop.f32.mrf.mxu0
    %v6325 = vpop.f32.mrf.mxu0
    %v6326 = vadd.f32 %v4441, %v6325
    %6327 = vmatmul.bf16.gmra.mxu0 %v3879
    %v6328 = vpop.f32.mrf.mxu0
    %v6329 = vadd.f32 %v4441, %v6328
    %v6330 = vpop.f32.mrf.mxu0
    %6331 = vmatmul.bf16.gmra.mxu0 %v3881
    %v6332 = vpop.f32.mrf.mxu0
    %v6333 = vpop.f32.mrf.mxu0
    %v6334 = vadd.f32 %v4441, %v6333
    %6335 = vmatmul.bf16.gmra.mxu0 %v3883
    %v6336 = vpop.f32.mrf.mxu0
    %v6337 = vadd.f32 %v4441, %v6336
    %v6338 = vpop.f32.mrf.mxu0
    %6339 = vmatmul.bf16.gmra.mxu0 %v3885
    %v6340 = vpop.f32.mrf.mxu0
    %v6341 = vpop.f32.mrf.mxu0
    %v6342 = vadd.f32 %v4441, %v6341
    %6343 = vmatmul.bf16.gmra.mxu0 %v3887
    %v6344 = vpop.f32.mrf.mxu0
    %v6345 = vadd.f32 %v4441, %v6344
    %v6346 = vpop.f32.mrf.mxu0
    %6347 = vmatmul.bf16.gmra.mxu0 %v3889
    %v6348 = vpop.f32.mrf.mxu0
    %v6349 = vpop.f32.mrf.mxu0
    %v6350 = vadd.f32 %v4441, %v6349
    %6351 = vmatmul.bf16.gmra.mxu0 %v3891
    %v6352 = vpop.f32.mrf.mxu0
    %v6353 = vadd.f32 %v4441, %v6352
    %v6354 = vpop.f32.mrf.mxu0
    %6355 = vdwg.mxu0
    %6356 = vmatpush.bf16.msra.mxu0 %v5085
    %6357 = vmatpush.bf16.msra.mxu0 %v5081
    %6358 = vmatpush.bf16.msra.mxu0 %v5077
    %6359 = vmatpush.bf16.msra.mxu0 %v5073
    %6360 = vmatpush.bf16.msra.mxu0 %v5069
    %6361 = vmatpush.bf16.msra.mxu0 %v5065
    %6362 = vmatpush.bf16.msra.mxu0 %v5061
    %6363 = vmatpush.bf16.msra.mxu0 %v5057
    %6364 = vmatmul.bf16.gmra.mxu0 %v3862
    %v6365 = vpop.f32.mrf.mxu0
    %v6366 = vpop.f32.mrf.mxu0
    %v6367 = vadd.f32 %v6294, %v6366
    %6368 = vmatmul.bf16.gmra.mxu0 %v3864
    %v6369 = vpop.f32.mrf.mxu0
    %v6370 = vadd.f32 %v6297, %v6369
    %v6371 = vpop.f32.mrf.mxu0
    %6372 = vmatmul.bf16.gmra.mxu0 %v3866
    %v6373 = vpop.f32.mrf.mxu0
    %v6374 = vpop.f32.mrf.mxu0
    %v6375 = vadd.f32 %v6302, %v6374
    %6376 = vmatmul.bf16.gmra.mxu0 %v3868
    %v6377 = vpop.f32.mrf.mxu0
    %v6378 = vadd.f32 %v6305, %v6377
    %v6379 = vpop.f32.mrf.mxu0
    %6380 = vmatmul.bf16.gmra.mxu0 %v3870
    %v6381 = vpop.f32.mrf.mxu0
    %v6382 = vpop.f32.mrf.mxu0
    %v6383 = vadd.f32 %v6310, %v6382
    %6384 = vmatmul.bf16.gmra.mxu0 %v3872
    %v6385 = vpop.f32.mrf.mxu0
    %v6386 = vadd.f32 %v6313, %v6385
    %v6387 = vpop.f32.mrf.mxu0
    %6388 = vmatmul.bf16.gmra.mxu0 %v3874
    %v6389 = vpop.f32.mrf.mxu0
    %v6390 = vpop.f32.mrf.mxu0
    %v6391 = vadd.f32 %v6318, %v6390
    %6392 = vmatmul.bf16.gmra.mxu0 %v3876
    %v6393 = vpop.f32.mrf.mxu0
    %v6394 = vadd.f32 %v6321, %v6393
    %v6395 = vpop.f32.mrf.mxu0
    %6396 = vmatmul.bf16.gmra.mxu0 %v3878
    %v6397 = vpop.f32.mrf.mxu0
    %v6398 = vpop.f32.mrf.mxu0
    %v6399 = vadd.f32 %v6326, %v6398
    %6400 = vmatmul.bf16.gmra.mxu0 %v3880
    %v6401 = vpop.f32.mrf.mxu0
    %v6402 = vadd.f32 %v6329, %v6401
    %v6403 = vpop.f32.mrf.mxu0
    %6404 = vmatmul.bf16.gmra.mxu0 %v3882
    %v6405 = vpop.f32.mrf.mxu0
    %v6406 = vpop.f32.mrf.mxu0
    %v6407 = vadd.f32 %v6334, %v6406
    %6408 = vmatmul.bf16.gmra.mxu0 %v3884
    %v6409 = vpop.f32.mrf.mxu0
    %v6410 = vadd.f32 %v6337, %v6409
    %v6411 = vpop.f32.mrf.mxu0
    %6412 = vmatmul.bf16.gmra.mxu0 %v3886
    %v6413 = vpop.f32.mrf.mxu0
    %v6414 = vpop.f32.mrf.mxu0
    %v6415 = vadd.f32 %v6342, %v6414
    %6416 = vmatmul.bf16.gmra.mxu0 %v3888
    %v6417 = vpop.f32.mrf.mxu0
    %v6418 = vadd.f32 %v6345, %v6417
    %v6419 = vpop.f32.mrf.mxu0
    %6420 = vmatmul.bf16.gmra.mxu0 %v3890
    %v6421 = vpop.f32.mrf.mxu0
    %v6422 = vpop.f32.mrf.mxu0
    %v6423 = vadd.f32 %v6350, %v6422
    %6424 = vmatmul.bf16.gmra.mxu0 %v3892
    %v6425 = vpop.f32.mrf.mxu0
    %v6426 = vadd.f32 %v6353, %v6425
    %v6427 = vpop.f32.mrf.mxu0
    %6428 = vdwg.mxu0
    %6429 = vmatpush.bf16.msra.mxu0 %v5117
    %6430 = vmatpush.bf16.msra.mxu0 %v5113
    %6431 = vmatpush.bf16.msra.mxu0 %v5109
    %6432 = vmatpush.bf16.msra.mxu0 %v5105
    %6433 = vmatpush.bf16.msra.mxu0 %v5101
    %6434 = vmatpush.bf16.msra.mxu0 %v5097
    %6435 = vmatpush.bf16.msra.mxu0 %v5093
    %6436 = vmatpush.bf16.msra.mxu0 %v5089
    %6437 = vmatmul.bf16.gmra.mxu0 %v4021
    %v6438 = vpop.f32.mrf.mxu0
    %v6439 = vpop.f32.mrf.mxu0
    %v6440 = vadd.f32 %v6367, %v6439
    %6441 = vmatmul.bf16.gmra.mxu0 %v4023
    %v6442 = vpop.f32.mrf.mxu0
    %v6443 = vadd.f32 %v6370, %v6442
    %v6444 = vpop.f32.mrf.mxu0
    %6445 = vmatmul.bf16.gmra.mxu0 %v4025
    %v6446 = vpop.f32.mrf.mxu0
    %v6447 = vpop.f32.mrf.mxu0
    %v6448 = vadd.f32 %v6375, %v6447
    %6449 = vmatmul.bf16.gmra.mxu0 %v4027
    %v6450 = vpop.f32.mrf.mxu0
    %v6451 = vadd.f32 %v6378, %v6450
    %v6452 = vpop.f32.mrf.mxu0
    %6453 = vmatmul.bf16.gmra.mxu0 %v4029
    %v6454 = vpop.f32.mrf.mxu0
    %v6455 = vpop.f32.mrf.mxu0
    %v6456 = vadd.f32 %v6383, %v6455
    %6457 = vmatmul.bf16.gmra.mxu0 %v4031
    %v6458 = vpop.f32.mrf.mxu0
    %v6459 = vadd.f32 %v6386, %v6458
    %v6460 = vpop.f32.mrf.mxu0
    %6461 = vmatmul.bf16.gmra.mxu0 %v4033
    %v6462 = vpop.f32.mrf.mxu0
    %v6463 = vpop.f32.mrf.mxu0
    %v6464 = vadd.f32 %v6391, %v6463
    %6465 = vmatmul.bf16.gmra.mxu0 %v4035
    %v6466 = vpop.f32.mrf.mxu0
    %v6467 = vadd.f32 %v6394, %v6466
    %v6468 = vpop.f32.mrf.mxu0
    %6469 = vmatmul.bf16.gmra.mxu0 %v4037
    %v6470 = vpop.f32.mrf.mxu0
    %v6471 = vpop.f32.mrf.mxu0
    %v6472 = vadd.f32 %v6399, %v6471
    %6473 = vmatmul.bf16.gmra.mxu0 %v4039
    %v6474 = vpop.f32.mrf.mxu0
    %v6475 = vadd.f32 %v6402, %v6474
    %v6476 = vpop.f32.mrf.mxu0
    %6477 = vmatmul.bf16.gmra.mxu0 %v4041
    %v6478 = vpop.f32.mrf.mxu0
    %v6479 = vpop.f32.mrf.mxu0
    %v6480 = vadd.f32 %v6407, %v6479
    %6481 = vmatmul.bf16.gmra.mxu0 %v4043
    %v6482 = vpop.f32.mrf.mxu0
    %v6483 = vadd.f32 %v6410, %v6482
    %v6484 = vpop.f32.mrf.mxu0
    %6485 = vmatmul.bf16.gmra.mxu0 %v4045
    %v6486 = vpop.f32.mrf.mxu0
    %v6487 = vpop.f32.mrf.mxu0
    %v6488 = vadd.f32 %v6415, %v6487
    %6489 = vmatmul.bf16.gmra.mxu0 %v4047
    %v6490 = vpop.f32.mrf.mxu0
    %v6491 = vadd.f32 %v6418, %v6490
    %v6492 = vpop.f32.mrf.mxu0
    %6493 = vmatmul.bf16.gmra.mxu0 %v4049
    %v6494 = vpop.f32.mrf.mxu0
    %v6495 = vpop.f32.mrf.mxu0
    %v6496 = vadd.f32 %v6423, %v6495
    %6497 = vmatmul.bf16.gmra.mxu0 %v4051
    %v6498 = vpop.f32.mrf.mxu0
    %v6499 = vadd.f32 %v6426, %v6498
    %v6500 = vpop.f32.mrf.mxu0
    %6501 = vdwg.mxu0
    %6502 = vmatpush.bf16.msra.mxu0 %v5149
    %6503 = vmatpush.bf16.msra.mxu0 %v5145
    %6504 = vmatpush.bf16.msra.mxu0 %v5141
    %6505 = vmatpush.bf16.msra.mxu0 %v5137
    %6506 = vmatpush.bf16.msra.mxu0 %v5133
    %6507 = vmatpush.bf16.msra.mxu0 %v5129
    %6508 = vmatpush.bf16.msra.mxu0 %v5125
    %6509 = vmatpush.bf16.msra.mxu0 %v5121
    %6510 = vmatmul.bf16.gmra.mxu0 %v4022
    %v6511 = vpop.f32.mrf.mxu0
    %v6512 = vpop.f32.mrf.mxu0
    %v6513 = vadd.f32 %v6440, %v6512
    %6514 = vmatmul.bf16.gmra.mxu0 %v4024
    %v6515 = vpop.f32.mrf.mxu0
    %v6516 = vadd.f32 %v6443, %v6515
    %v6517 = vpop.f32.mrf.mxu0
    %6518 = vmatmul.bf16.gmra.mxu0 %v4026
    %v6519 = vpop.f32.mrf.mxu0
    %v6520 = vpop.f32.mrf.mxu0
    %v6521 = vadd.f32 %v6448, %v6520
    %6522 = vmatmul.bf16.gmra.mxu0 %v4028
    %v6523 = vpop.f32.mrf.mxu0
    %v6524 = vadd.f32 %v6451, %v6523
    %v6525 = vpop.f32.mrf.mxu0
    %6526 = vmatmul.bf16.gmra.mxu0 %v4030
    %v6527 = vpop.f32.mrf.mxu0
    %v6528 = vpop.f32.mrf.mxu0
    %v6529 = vadd.f32 %v6456, %v6528
    %6530 = vmatmul.bf16.gmra.mxu0 %v4032
    %v6531 = vpop.f32.mrf.mxu0
    %v6532 = vadd.f32 %v6459, %v6531
    %v6533 = vpop.f32.mrf.mxu0
    %6534 = vmatmul.bf16.gmra.mxu0 %v4034
    %v6535 = vpop.f32.mrf.mxu0
    %v6536 = vpop.f32.mrf.mxu0
    %v6537 = vadd.f32 %v6464, %v6536
    %6538 = vmatmul.bf16.gmra.mxu0 %v4036
    %v6539 = vpop.f32.mrf.mxu0
    %v6540 = vadd.f32 %v6467, %v6539
    %v6541 = vpop.f32.mrf.mxu0
    %6542 = vmatmul.bf16.gmra.mxu0 %v4038
    %v6543 = vpop.f32.mrf.mxu0
    %v6544 = vpop.f32.mrf.mxu0
    %v6545 = vadd.f32 %v6472, %v6544
    %6546 = vmatmul.bf16.gmra.mxu0 %v4040
    %v6547 = vpop.f32.mrf.mxu0
    %v6548 = vadd.f32 %v6475, %v6547
    %v6549 = vpop.f32.mrf.mxu0
    %6550 = vmatmul.bf16.gmra.mxu0 %v4042
    %v6551 = vpop.f32.mrf.mxu0
    %v6552 = vpop.f32.mrf.mxu0
    %v6553 = vadd.f32 %v6480, %v6552
    %6554 = vmatmul.bf16.gmra.mxu0 %v4044
    %v6555 = vpop.f32.mrf.mxu0
    %v6556 = vadd.f32 %v6483, %v6555
    %v6557 = vpop.f32.mrf.mxu0
    %6558 = vmatmul.bf16.gmra.mxu0 %v4046
    %v6559 = vpop.f32.mrf.mxu0
    %v6560 = vpop.f32.mrf.mxu0
    %v6561 = vadd.f32 %v6488, %v6560
    %6562 = vmatmul.bf16.gmra.mxu0 %v4048
    %v6563 = vpop.f32.mrf.mxu0
    %v6564 = vadd.f32 %v6491, %v6563
    %v6565 = vpop.f32.mrf.mxu0
    %6566 = vmatmul.bf16.gmra.mxu0 %v4050
    %v6567 = vpop.f32.mrf.mxu0
    %v6568 = vpop.f32.mrf.mxu0
    %v6569 = vadd.f32 %v6496, %v6568
    %6570 = vmatmul.bf16.gmra.mxu0 %v4052
    %v6571 = vpop.f32.mrf.mxu0
    %v6572 = vadd.f32 %v6499, %v6571
    %v6573 = vpop.f32.mrf.mxu0
    %6574 = vdwg.mxu0
    %6575 = vmatpush.bf16.msra.mxu0 %v5181
    %6576 = vmatpush.bf16.msra.mxu0 %v5177
    %6577 = vmatpush.bf16.msra.mxu0 %v5173
    %6578 = vmatpush.bf16.msra.mxu0 %v5169
    %6579 = vmatpush.bf16.msra.mxu0 %v5165
    %6580 = vmatpush.bf16.msra.mxu0 %v5161
    %6581 = vmatpush.bf16.msra.mxu0 %v5157
    %6582 = vmatpush.bf16.msra.mxu0 %v5153
    %6583 = vmatmul.bf16.gmra.mxu0 %v4181
    %v6584 = vpop.f32.mrf.mxu0
    %v6585 = vpop.f32.mrf.mxu0
    %v6586 = vadd.f32 %v6513, %v6585
    %6587 = vmatmul.bf16.gmra.mxu0 %v4183
    %v6588 = vpop.f32.mrf.mxu0
    %v6589 = vadd.f32 %v6516, %v6588
    %v6590 = vpop.f32.mrf.mxu0
    %6591 = vmatmul.bf16.gmra.mxu0 %v4185
    %v6592 = vpop.f32.mrf.mxu0
    %v6593 = vpop.f32.mrf.mxu0
    %v6594 = vadd.f32 %v6521, %v6593
    %6595 = vmatmul.bf16.gmra.mxu0 %v4187
    %v6596 = vpop.f32.mrf.mxu0
    %v6597 = vadd.f32 %v6524, %v6596
    %v6598 = vpop.f32.mrf.mxu0
    %6599 = vmatmul.bf16.gmra.mxu0 %v4189
    %v6600 = vpop.f32.mrf.mxu0
    %v6601 = vpop.f32.mrf.mxu0
    %v6602 = vadd.f32 %v6529, %v6601
    %6603 = vmatmul.bf16.gmra.mxu0 %v4191
    %v6604 = vpop.f32.mrf.mxu0
    %v6605 = vadd.f32 %v6532, %v6604
    %v6606 = vpop.f32.mrf.mxu0
    %6607 = vmatmul.bf16.gmra.mxu0 %v4193
    %v6608 = vpop.f32.mrf.mxu0
    %v6609 = vpop.f32.mrf.mxu0
    %v6610 = vadd.f32 %v6537, %v6609
    %6611 = vmatmul.bf16.gmra.mxu0 %v4195
    %v6612 = vpop.f32.mrf.mxu0
    %v6613 = vadd.f32 %v6540, %v6612
    %v6614 = vpop.f32.mrf.mxu0
    %6615 = vmatmul.bf16.gmra.mxu0 %v4197
    %v6616 = vpop.f32.mrf.mxu0
    %v6617 = vpop.f32.mrf.mxu0
    %v6618 = vadd.f32 %v6545, %v6617
    %6619 = vmatmul.bf16.gmra.mxu0 %v4199
    %v6620 = vpop.f32.mrf.mxu0
    %v6621 = vadd.f32 %v6548, %v6620
    %v6622 = vpop.f32.mrf.mxu0
    %6623 = vmatmul.bf16.gmra.mxu0 %v4201
    %v6624 = vpop.f32.mrf.mxu0
    %v6625 = vpop.f32.mrf.mxu0
    %v6626 = vadd.f32 %v6553, %v6625
    %6627 = vmatmul.bf16.gmra.mxu0 %v4203
    %v6628 = vpop.f32.mrf.mxu0
    %v6629 = vadd.f32 %v6556, %v6628
    %v6630 = vpop.f32.mrf.mxu0
    %6631 = vmatmul.bf16.gmra.mxu0 %v4205
    %v6632 = vpop.f32.mrf.mxu0
    %v6633 = vpop.f32.mrf.mxu0
    %v6634 = vadd.f32 %v6561, %v6633
    %6635 = vmatmul.bf16.gmra.mxu0 %v4207
    %v6636 = vpop.f32.mrf.mxu0
    %v6637 = vadd.f32 %v6564, %v6636
    %v6638 = vpop.f32.mrf.mxu0
    %6639 = vmatmul.bf16.gmra.mxu0 %v4209
    %v6640 = vpop.f32.mrf.mxu0
    %v6641 = vpop.f32.mrf.mxu0
    %v6642 = vadd.f32 %v6569, %v6641
    %6643 = vmatmul.bf16.gmra.mxu0 %v4211
    %v6644 = vpop.f32.mrf.mxu0
    %v6645 = vadd.f32 %v6572, %v6644
    %v6646 = vpop.f32.mrf.mxu0
    %6647 = vdwg.mxu0
    %6648 = vmatpush.bf16.msra.mxu0 %v5213
    %6649 = vmatpush.bf16.msra.mxu0 %v5209
    %6650 = vmatpush.bf16.msra.mxu0 %v5205
    %6651 = vmatpush.bf16.msra.mxu0 %v5201
    %6652 = vmatpush.bf16.msra.mxu0 %v5197
    %6653 = vmatpush.bf16.msra.mxu0 %v5193
    %6654 = vmatpush.bf16.msra.mxu0 %v5189
    %6655 = vmatpush.bf16.msra.mxu0 %v5185
    %6656 = vmatmul.bf16.gmra.mxu0 %v4182
    %v6657 = vpop.f32.mrf.mxu0
    %v6658 = vpop.f32.mrf.mxu0
    %v6659 = vadd.f32 %v6586, %v6658
    %6660 = vmatmul.bf16.gmra.mxu0 %v4184
    %v6661 = vpop.f32.mrf.mxu0
    %v6662 = vadd.f32 %v6589, %v6661
    %v6663 = vpop.f32.mrf.mxu0
    %6664 = vmatmul.bf16.gmra.mxu0 %v4186
    %v6665 = vpop.f32.mrf.mxu0
    %v6666 = vpop.f32.mrf.mxu0
    %v6667 = vadd.f32 %v6594, %v6666
    %6668 = vmatmul.bf16.gmra.mxu0 %v4188
    %v6669 = vpop.f32.mrf.mxu0
    %v6670 = vadd.f32 %v6597, %v6669
    %v6671 = vpop.f32.mrf.mxu0
    %6672 = vmatmul.bf16.gmra.mxu0 %v4190
    %v6673 = vpop.f32.mrf.mxu0
    %v6674 = vpop.f32.mrf.mxu0
    %v6675 = vadd.f32 %v6602, %v6674
    %6676 = vmatmul.bf16.gmra.mxu0 %v4192
    %v6677 = vpop.f32.mrf.mxu0
    %v6678 = vadd.f32 %v6605, %v6677
    %v6679 = vpop.f32.mrf.mxu0
    %6680 = vmatmul.bf16.gmra.mxu0 %v4194
    %v6681 = vpop.f32.mrf.mxu0
    %v6682 = vpop.f32.mrf.mxu0
    %v6683 = vadd.f32 %v6610, %v6682
    %6684 = vmatmul.bf16.gmra.mxu0 %v4196
    %v6685 = vpop.f32.mrf.mxu0
    %v6686 = vadd.f32 %v6613, %v6685
    %v6687 = vpop.f32.mrf.mxu0
    %6688 = vmatmul.bf16.gmra.mxu0 %v4198
    %v6689 = vpop.f32.mrf.mxu0
    %v6690 = vpop.f32.mrf.mxu0
    %v6691 = vadd.f32 %v6618, %v6690
    %6692 = vmatmul.bf16.gmra.mxu0 %v4200
    %v6693 = vpop.f32.mrf.mxu0
    %v6694 = vadd.f32 %v6621, %v6693
    %v6695 = vpop.f32.mrf.mxu0
    %6696 = vmatmul.bf16.gmra.mxu0 %v4202
    %v6697 = vpop.f32.mrf.mxu0
    %v6698 = vpop.f32.mrf.mxu0
    %v6699 = vadd.f32 %v6626, %v6698
    %6700 = vmatmul.bf16.gmra.mxu0 %v4204
    %v6701 = vpop.f32.mrf.mxu0
    %v6702 = vadd.f32 %v6629, %v6701
    %v6703 = vpop.f32.mrf.mxu0
    %6704 = vmatmul.bf16.gmra.mxu0 %v4206
    %v6705 = vpop.f32.mrf.mxu0
    %v6706 = vpop.f32.mrf.mxu0
    %v6707 = vadd.f32 %v6634, %v6706
    %6708 = vmatmul.bf16.gmra.mxu0 %v4208
    %v6709 = vpop.f32.mrf.mxu0
    %v6710 = vadd.f32 %v6637, %v6709
    %v6711 = vpop.f32.mrf.mxu0
    %6712 = vmatmul.bf16.gmra.mxu0 %v4210
    %v6713 = vpop.f32.mrf.mxu0
    %v6714 = vpop.f32.mrf.mxu0
    %v6715 = vadd.f32 %v6642, %v6714
    %6716 = vmatmul.bf16.gmra.mxu0 %v4212
    %v6717 = vpop.f32.mrf.mxu0
    %v6718 = vadd.f32 %v6645, %v6717
    %v6719 = vpop.f32.mrf.mxu0
    %6720 = vdwg.mxu0
    %6721 = vmatpush.bf16.msra.mxu0 %v5054
    %6722 = vmatpush.bf16.msra.mxu0 %v5050
    %6723 = vmatpush.bf16.msra.mxu0 %v5046
    %6724 = vmatpush.bf16.msra.mxu0 %v5042
    %6725 = vmatpush.bf16.msra.mxu0 %v5038
    %6726 = vmatpush.bf16.msra.mxu0 %v5034
    %6727 = vmatpush.bf16.msra.mxu0 %v5030
    %6728 = vmatpush.bf16.msra.mxu0 %v5026
    %6729 = vmatmul.bf16.gmra.mxu0 %v3861
    %v6730 = vpop.f32.mrf.mxu0
    %v6731 = vpop.f32.mrf.mxu0
    %v6732 = vadd.f32 %v4442, %v6731
    %6733 = vmatmul.bf16.gmra.mxu0 %v3863
    %v6734 = vpop.f32.mrf.mxu0
    %v6735 = vadd.f32 %v4442, %v6734
    %v6736 = vpop.f32.mrf.mxu0
    %6737 = vmatmul.bf16.gmra.mxu0 %v3865
    %v6738 = vpop.f32.mrf.mxu0
    %v6739 = vpop.f32.mrf.mxu0
    %v6740 = vadd.f32 %v4442, %v6739
    %6741 = vmatmul.bf16.gmra.mxu0 %v3867
    %v6742 = vpop.f32.mrf.mxu0
    %v6743 = vadd.f32 %v4442, %v6742
    %v6744 = vpop.f32.mrf.mxu0
    %6745 = vmatmul.bf16.gmra.mxu0 %v3869
    %v6746 = vpop.f32.mrf.mxu0
    %v6747 = vpop.f32.mrf.mxu0
    %v6748 = vadd.f32 %v4442, %v6747
    %6749 = vmatmul.bf16.gmra.mxu0 %v3871
    %v6750 = vpop.f32.mrf.mxu0
    %v6751 = vadd.f32 %v4442, %v6750
    %v6752 = vpop.f32.mrf.mxu0
    %6753 = vmatmul.bf16.gmra.mxu0 %v3873
    %v6754 = vpop.f32.mrf.mxu0
    %v6755 = vpop.f32.mrf.mxu0
    %v6756 = vadd.f32 %v4442, %v6755
    %6757 = vmatmul.bf16.gmra.mxu0 %v3875
    %v6758 = vpop.f32.mrf.mxu0
    %v6759 = vadd.f32 %v4442, %v6758
    %v6760 = vpop.f32.mrf.mxu0
    %6761 = vmatmul.bf16.gmra.mxu0 %v3877
    %v6762 = vpop.f32.mrf.mxu0
    %v6763 = vpop.f32.mrf.mxu0
    %v6764 = vadd.f32 %v4442, %v6763
    %6765 = vmatmul.bf16.gmra.mxu0 %v3879
    %v6766 = vpop.f32.mrf.mxu0
    %v6767 = vadd.f32 %v4442, %v6766
    %v6768 = vpop.f32.mrf.mxu0
    %6769 = vmatmul.bf16.gmra.mxu0 %v3881
    %v6770 = vpop.f32.mrf.mxu0
    %v6771 = vpop.f32.mrf.mxu0
    %v6772 = vadd.f32 %v4442, %v6771
    %6773 = vmatmul.bf16.gmra.mxu0 %v3883
    %v6774 = vpop.f32.mrf.mxu0
    %v6775 = vadd.f32 %v4442, %v6774
    %v6776 = vpop.f32.mrf.mxu0
    %6777 = vmatmul.bf16.gmra.mxu0 %v3885
    %v6778 = vpop.f32.mrf.mxu0
    %v6779 = vpop.f32.mrf.mxu0
    %v6780 = vadd.f32 %v4442, %v6779
    %6781 = vmatmul.bf16.gmra.mxu0 %v3887
    %v6782 = vpop.f32.mrf.mxu0
    %v6783 = vadd.f32 %v4442, %v6782
    %v6784 = vpop.f32.mrf.mxu0
    %6785 = vmatmul.bf16.gmra.mxu0 %v3889
    %v6786 = vpop.f32.mrf.mxu0
    %v6787 = vpop.f32.mrf.mxu0
    %v6788 = vadd.f32 %v4442, %v6787
    %6789 = vmatmul.bf16.gmra.mxu0 %v3891
    %v6790 = vpop.f32.mrf.mxu0
    %v6791 = vadd.f32 %v4442, %v6790
    %v6792 = vpop.f32.mrf.mxu0
    %6793 = vdwg.mxu0
    %6794 = vmatpush.bf16.msra.mxu0 %v5086
    %6795 = vmatpush.bf16.msra.mxu0 %v5082
    %6796 = vmatpush.bf16.msra.mxu0 %v5078
    %6797 = vmatpush.bf16.msra.mxu0 %v5074
    %6798 = vmatpush.bf16.msra.mxu0 %v5070
    %6799 = vmatpush.bf16.msra.mxu0 %v5066
    %6800 = vmatpush.bf16.msra.mxu0 %v5062
    %6801 = vmatpush.bf16.msra.mxu0 %v5058
    %6802 = vmatmul.bf16.gmra.mxu0 %v3862
    %v6803 = vpop.f32.mrf.mxu0
    %v6804 = vpop.f32.mrf.mxu0
    %v6805 = vadd.f32 %v6732, %v6804
    %6806 = vmatmul.bf16.gmra.mxu0 %v3864
    %v6807 = vpop.f32.mrf.mxu0
    %v6808 = vadd.f32 %v6735, %v6807
    %v6809 = vpop.f32.mrf.mxu0
    %6810 = vmatmul.bf16.gmra.mxu0 %v3866
    %v6811 = vpop.f32.mrf.mxu0
    %v6812 = vpop.f32.mrf.mxu0
    %v6813 = vadd.f32 %v6740, %v6812
    %6814 = vmatmul.bf16.gmra.mxu0 %v3868
    %v6815 = vpop.f32.mrf.mxu0
    %v6816 = vadd.f32 %v6743, %v6815
    %v6817 = vpop.f32.mrf.mxu0
    %6818 = vmatmul.bf16.gmra.mxu0 %v3870
    %v6819 = vpop.f32.mrf.mxu0
    %v6820 = vpop.f32.mrf.mxu0
    %v6821 = vadd.f32 %v6748, %v6820
    %6822 = vmatmul.bf16.gmra.mxu0 %v3872
    %v6823 = vpop.f32.mrf.mxu0
    %v6824 = vadd.f32 %v6751, %v6823
    %v6825 = vpop.f32.mrf.mxu0
    %6826 = vmatmul.bf16.gmra.mxu0 %v3874
    %v6827 = vpop.f32.mrf.mxu0
    %v6828 = vpop.f32.mrf.mxu0
    %v6829 = vadd.f32 %v6756, %v6828
    %6830 = vmatmul.bf16.gmra.mxu0 %v3876
    %v6831 = vpop.f32.mrf.mxu0
    %v6832 = vadd.f32 %v6759, %v6831
    %v6833 = vpop.f32.mrf.mxu0
    %6834 = vmatmul.bf16.gmra.mxu0 %v3878
    %v6835 = vpop.f32.mrf.mxu0
    %v6836 = vpop.f32.mrf.mxu0
    %v6837 = vadd.f32 %v6764, %v6836
    %6838 = vmatmul.bf16.gmra.mxu0 %v3880
    %v6839 = vpop.f32.mrf.mxu0
    %v6840 = vadd.f32 %v6767, %v6839
    %v6841 = vpop.f32.mrf.mxu0
    %6842 = vmatmul.bf16.gmra.mxu0 %v3882
    %v6843 = vpop.f32.mrf.mxu0
    %v6844 = vpop.f32.mrf.mxu0
    %v6845 = vadd.f32 %v6772, %v6844
    %6846 = vmatmul.bf16.gmra.mxu0 %v3884
    %v6847 = vpop.f32.mrf.mxu0
    %v6848 = vadd.f32 %v6775, %v6847
    %v6849 = vpop.f32.mrf.mxu0
    %6850 = vmatmul.bf16.gmra.mxu0 %v3886
    %v6851 = vpop.f32.mrf.mxu0
    %v6852 = vpop.f32.mrf.mxu0
    %v6853 = vadd.f32 %v6780, %v6852
    %6854 = vmatmul.bf16.gmra.mxu0 %v3888
    %v6855 = vpop.f32.mrf.mxu0
    %v6856 = vadd.f32 %v6783, %v6855
    %v6857 = vpop.f32.mrf.mxu0
    %6858 = vmatmul.bf16.gmra.mxu0 %v3890
    %v6859 = vpop.f32.mrf.mxu0
    %v6860 = vpop.f32.mrf.mxu0
    %v6861 = vadd.f32 %v6788, %v6860
    %6862 = vmatmul.bf16.gmra.mxu0 %v3892
    %v6863 = vpop.f32.mrf.mxu0
    %v6864 = vadd.f32 %v6791, %v6863
    %v6865 = vpop.f32.mrf.mxu0
    %6866 = vdwg.mxu0
    %6867 = vmatpush.bf16.msra.mxu0 %v5118
    %6868 = vmatpush.bf16.msra.mxu0 %v5114
    %6869 = vmatpush.bf16.msra.mxu0 %v5110
    %6870 = vmatpush.bf16.msra.mxu0 %v5106
    %6871 = vmatpush.bf16.msra.mxu0 %v5102
    %6872 = vmatpush.bf16.msra.mxu0 %v5098
    %6873 = vmatpush.bf16.msra.mxu0 %v5094
    %6874 = vmatpush.bf16.msra.mxu0 %v5090
    %6875 = vmatmul.bf16.gmra.mxu0 %v4021
    %v6876 = vpop.f32.mrf.mxu0
    %v6877 = vpop.f32.mrf.mxu0
    %v6878 = vadd.f32 %v6805, %v6877
    %6879 = vmatmul.bf16.gmra.mxu0 %v4023
    %v6880 = vpop.f32.mrf.mxu0
    %v6881 = vadd.f32 %v6808, %v6880
    %v6882 = vpop.f32.mrf.mxu0
    %6883 = vmatmul.bf16.gmra.mxu0 %v4025
    %v6884 = vpop.f32.mrf.mxu0
    %v6885 = vpop.f32.mrf.mxu0
    %v6886 = vadd.f32 %v6813, %v6885
    %6887 = vmatmul.bf16.gmra.mxu0 %v4027
    %v6888 = vpop.f32.mrf.mxu0
    %v6889 = vadd.f32 %v6816, %v6888
    %v6890 = vpop.f32.mrf.mxu0
    %6891 = vmatmul.bf16.gmra.mxu0 %v4029
    %v6892 = vpop.f32.mrf.mxu0
    %v6893 = vpop.f32.mrf.mxu0
    %v6894 = vadd.f32 %v6821, %v6893
    %6895 = vmatmul.bf16.gmra.mxu0 %v4031
    %v6896 = vpop.f32.mrf.mxu0
    %v6897 = vadd.f32 %v6824, %v6896
    %v6898 = vpop.f32.mrf.mxu0
    %6899 = vmatmul.bf16.gmra.mxu0 %v4033
    %v6900 = vpop.f32.mrf.mxu0
    %v6901 = vpop.f32.mrf.mxu0
    %v6902 = vadd.f32 %v6829, %v6901
    %6903 = vmatmul.bf16.gmra.mxu0 %v4035
    %v6904 = vpop.f32.mrf.mxu0
    %v6905 = vadd.f32 %v6832, %v6904
    %v6906 = vpop.f32.mrf.mxu0
    %6907 = vmatmul.bf16.gmra.mxu0 %v4037
    %v6908 = vpop.f32.mrf.mxu0
    %v6909 = vpop.f32.mrf.mxu0
    %v6910 = vadd.f32 %v6837, %v6909
    %6911 = vmatmul.bf16.gmra.mxu0 %v4039
    %v6912 = vpop.f32.mrf.mxu0
    %v6913 = vadd.f32 %v6840, %v6912
    %v6914 = vpop.f32.mrf.mxu0
    %6915 = vmatmul.bf16.gmra.mxu0 %v4041
    %v6916 = vpop.f32.mrf.mxu0
    %v6917 = vpop.f32.mrf.mxu0
    %v6918 = vadd.f32 %v6845, %v6917
    %6919 = vmatmul.bf16.gmra.mxu0 %v4043
    %v6920 = vpop.f32.mrf.mxu0
    %v6921 = vadd.f32 %v6848, %v6920
    %v6922 = vpop.f32.mrf.mxu0
    %6923 = vmatmul.bf16.gmra.mxu0 %v4045
    %v6924 = vpop.f32.mrf.mxu0
    %v6925 = vpop.f32.mrf.mxu0
    %v6926 = vadd.f32 %v6853, %v6925
    %6927 = vmatmul.bf16.gmra.mxu0 %v4047
    %v6928 = vpop.f32.mrf.mxu0
    %v6929 = vadd.f32 %v6856, %v6928
    %v6930 = vpop.f32.mrf.mxu0
    %6931 = vmatmul.bf16.gmra.mxu0 %v4049
    %v6932 = vpop.f32.mrf.mxu0
    %v6933 = vpop.f32.mrf.mxu0
    %v6934 = vadd.f32 %v6861, %v6933
    %6935 = vmatmul.bf16.gmra.mxu0 %v4051
    %v6936 = vpop.f32.mrf.mxu0
    %v6937 = vadd.f32 %v6864, %v6936
    %v6938 = vpop.f32.mrf.mxu0
    %6939 = vdwg.mxu0
    %6940 = vmatpush.bf16.msra.mxu0 %v5150
    %6941 = vmatpush.bf16.msra.mxu0 %v5146
    %6942 = vmatpush.bf16.msra.mxu0 %v5142
    %6943 = vmatpush.bf16.msra.mxu0 %v5138
    %6944 = vmatpush.bf16.msra.mxu0 %v5134
    %6945 = vmatpush.bf16.msra.mxu0 %v5130
    %6946 = vmatpush.bf16.msra.mxu0 %v5126
    %6947 = vmatpush.bf16.msra.mxu0 %v5122
    %6948 = vmatmul.bf16.gmra.mxu0 %v4022
    %v6949 = vpop.f32.mrf.mxu0
    %v6950 = vpop.f32.mrf.mxu0
    %v6951 = vadd.f32 %v6878, %v6950
    %6952 = vmatmul.bf16.gmra.mxu0 %v4024
    %v6953 = vpop.f32.mrf.mxu0
    %v6954 = vadd.f32 %v6881, %v6953
    %v6955 = vpop.f32.mrf.mxu0
    %6956 = vmatmul.bf16.gmra.mxu0 %v4026
    %v6957 = vpop.f32.mrf.mxu0
    %v6958 = vpop.f32.mrf.mxu0
    %v6959 = vadd.f32 %v6886, %v6958
    %6960 = vmatmul.bf16.gmra.mxu0 %v4028
    %v6961 = vpop.f32.mrf.mxu0
    %v6962 = vadd.f32 %v6889, %v6961
    %v6963 = vpop.f32.mrf.mxu0
    %6964 = vmatmul.bf16.gmra.mxu0 %v4030
    %v6965 = vpop.f32.mrf.mxu0
    %v6966 = vpop.f32.mrf.mxu0
    %v6967 = vadd.f32 %v6894, %v6966
    %6968 = vmatmul.bf16.gmra.mxu0 %v4032
    %v6969 = vpop.f32.mrf.mxu0
    %v6970 = vadd.f32 %v6897, %v6969
    %v6971 = vpop.f32.mrf.mxu0
    %6972 = vmatmul.bf16.gmra.mxu0 %v4034
    %v6973 = vpop.f32.mrf.mxu0
    %v6974 = vpop.f32.mrf.mxu0
    %v6975 = vadd.f32 %v6902, %v6974
    %6976 = vmatmul.bf16.gmra.mxu0 %v4036
    %v6977 = vpop.f32.mrf.mxu0
    %v6978 = vadd.f32 %v6905, %v6977
    %v6979 = vpop.f32.mrf.mxu0
    %6980 = vmatmul.bf16.gmra.mxu0 %v4038
    %v6981 = vpop.f32.mrf.mxu0
    %v6982 = vpop.f32.mrf.mxu0
    %v6983 = vadd.f32 %v6910, %v6982
    %6984 = vmatmul.bf16.gmra.mxu0 %v4040
    %v6985 = vpop.f32.mrf.mxu0
    %v6986 = vadd.f32 %v6913, %v6985
    %v6987 = vpop.f32.mrf.mxu0
    %6988 = vmatmul.bf16.gmra.mxu0 %v4042
    %v6989 = vpop.f32.mrf.mxu0
    %v6990 = vpop.f32.mrf.mxu0
    %v6991 = vadd.f32 %v6918, %v6990
    %6992 = vmatmul.bf16.gmra.mxu0 %v4044
    %v6993 = vpop.f32.mrf.mxu0
    %v6994 = vadd.f32 %v6921, %v6993
    %v6995 = vpop.f32.mrf.mxu0
    %6996 = vmatmul.bf16.gmra.mxu0 %v4046
    %v6997 = vpop.f32.mrf.mxu0
    %v6998 = vpop.f32.mrf.mxu0
    %v6999 = vadd.f32 %v6926, %v6998
    %7000 = vmatmul.bf16.gmra.mxu0 %v4048
    %v7001 = vpop.f32.mrf.mxu0
    %v7002 = vadd.f32 %v6929, %v7001
    %v7003 = vpop.f32.mrf.mxu0
    %7004 = vmatmul.bf16.gmra.mxu0 %v4050
    %v7005 = vpop.f32.mrf.mxu0
    %v7006 = vpop.f32.mrf.mxu0
    %v7007 = vadd.f32 %v6934, %v7006
    %7008 = vmatmul.bf16.gmra.mxu0 %v4052
    %v7009 = vpop.f32.mrf.mxu0
    %v7010 = vadd.f32 %v6937, %v7009
    %v7011 = vpop.f32.mrf.mxu0
    %7012 = vdwg.mxu0
    %7013 = vmatpush.bf16.msra.mxu0 %v5182
    %7014 = vmatpush.bf16.msra.mxu0 %v5178
    %7015 = vmatpush.bf16.msra.mxu0 %v5174
    %7016 = vmatpush.bf16.msra.mxu0 %v5170
    %7017 = vmatpush.bf16.msra.mxu0 %v5166
    %7018 = vmatpush.bf16.msra.mxu0 %v5162
    %7019 = vmatpush.bf16.msra.mxu0 %v5158
    %7020 = vmatpush.bf16.msra.mxu0 %v5154
    %7021 = vmatmul.bf16.gmra.mxu0 %v4181
    %v7022 = vpop.f32.mrf.mxu0
    %v7023 = vpop.f32.mrf.mxu0
    %v7024 = vadd.f32 %v6951, %v7023
    %7025 = vmatmul.bf16.gmra.mxu0 %v4183
    %v7026 = vpop.f32.mrf.mxu0
    %v7027 = vadd.f32 %v6954, %v7026
    %v7028 = vpop.f32.mrf.mxu0
    %7029 = vmatmul.bf16.gmra.mxu0 %v4185
    %v7030 = vpop.f32.mrf.mxu0
    %v7031 = vpop.f32.mrf.mxu0
    %v7032 = vadd.f32 %v6959, %v7031
    %7033 = vmatmul.bf16.gmra.mxu0 %v4187
    %v7034 = vpop.f32.mrf.mxu0
    %v7035 = vadd.f32 %v6962, %v7034
    %v7036 = vpop.f32.mrf.mxu0
    %7037 = vmatmul.bf16.gmra.mxu0 %v4189
    %v7038 = vpop.f32.mrf.mxu0
    %v7039 = vpop.f32.mrf.mxu0
    %v7040 = vadd.f32 %v6967, %v7039
    %7041 = vmatmul.bf16.gmra.mxu0 %v4191
    %v7042 = vpop.f32.mrf.mxu0
    %v7043 = vadd.f32 %v6970, %v7042
    %v7044 = vpop.f32.mrf.mxu0
    %7045 = vmatmul.bf16.gmra.mxu0 %v4193
    %v7046 = vpop.f32.mrf.mxu0
    %v7047 = vpop.f32.mrf.mxu0
    %v7048 = vadd.f32 %v6975, %v7047
    %7049 = vmatmul.bf16.gmra.mxu0 %v4195
    %v7050 = vpop.f32.mrf.mxu0
    %v7051 = vadd.f32 %v6978, %v7050
    %v7052 = vpop.f32.mrf.mxu0
    %7053 = vmatmul.bf16.gmra.mxu0 %v4197
    %v7054 = vpop.f32.mrf.mxu0
    %v7055 = vpop.f32.mrf.mxu0
    %v7056 = vadd.f32 %v6983, %v7055
    %7057 = vmatmul.bf16.gmra.mxu0 %v4199
    %v7058 = vpop.f32.mrf.mxu0
    %v7059 = vadd.f32 %v6986, %v7058
    %v7060 = vpop.f32.mrf.mxu0
    %7061 = vmatmul.bf16.gmra.mxu0 %v4201
    %v7062 = vpop.f32.mrf.mxu0
    %v7063 = vpop.f32.mrf.mxu0
    %v7064 = vadd.f32 %v6991, %v7063
    %7065 = vmatmul.bf16.gmra.mxu0 %v4203
    %v7066 = vpop.f32.mrf.mxu0
    %v7067 = vadd.f32 %v6994, %v7066
    %v7068 = vpop.f32.mrf.mxu0
    %7069 = vmatmul.bf16.gmra.mxu0 %v4205
    %v7070 = vpop.f32.mrf.mxu0
    %v7071 = vpop.f32.mrf.mxu0
    %v7072 = vadd.f32 %v6999, %v7071
    %7073 = vmatmul.bf16.gmra.mxu0 %v4207
    %v7074 = vpop.f32.mrf.mxu0
    %v7075 = vadd.f32 %v7002, %v7074
    %v7076 = vpop.f32.mrf.mxu0
    %7077 = vmatmul.bf16.gmra.mxu0 %v4209
    %v7078 = vpop.f32.mrf.mxu0
    %v7079 = vpop.f32.mrf.mxu0
    %v7080 = vadd.f32 %v7007, %v7079
    %7081 = vmatmul.bf16.gmra.mxu0 %v4211
    %v7082 = vpop.f32.mrf.mxu0
    %v7083 = vadd.f32 %v7010, %v7082
    %v7084 = vpop.f32.mrf.mxu0
    %7085 = vdwg.mxu0
    %7086 = vmatpush.bf16.msra.mxu0 %v5214
    %7087 = vmatpush.bf16.msra.mxu0 %v5210
    %7088 = vmatpush.bf16.msra.mxu0 %v5206
    %7089 = vmatpush.bf16.msra.mxu0 %v5202
    %7090 = vmatpush.bf16.msra.mxu0 %v5198
    %7091 = vmatpush.bf16.msra.mxu0 %v5194
    %7092 = vmatpush.bf16.msra.mxu0 %v5190
    %7093 = vmatpush.bf16.msra.mxu0 %v5186
    %7094 = vmatmul.bf16.gmra.mxu0 %v4182
    %v7095 = vpop.f32.mrf.mxu0
    %v7096 = vpop.f32.mrf.mxu0
    %v7097 = vadd.f32 %v7024, %v7096
    %7098 = vmatmul.bf16.gmra.mxu0 %v4184
    %v7099 = vpop.f32.mrf.mxu0
    %v7100 = vadd.f32 %v7027, %v7099
    %v7101 = vpop.f32.mrf.mxu0
    %7102 = vmatmul.bf16.gmra.mxu0 %v4186
    %v7103 = vpop.f32.mrf.mxu0
    %v7104 = vpop.f32.mrf.mxu0
    %v7105 = vadd.f32 %v7032, %v7104
    %7106 = vmatmul.bf16.gmra.mxu0 %v4188
    %v7107 = vpop.f32.mrf.mxu0
    %v7108 = vadd.f32 %v7035, %v7107
    %v7109 = vpop.f32.mrf.mxu0
    %7110 = vmatmul.bf16.gmra.mxu0 %v4190
    %v7111 = vpop.f32.mrf.mxu0
    %v7112 = vpop.f32.mrf.mxu0
    %v7113 = vadd.f32 %v7040, %v7112
    %7114 = vmatmul.bf16.gmra.mxu0 %v4192
    %v7115 = vpop.f32.mrf.mxu0
    %v7116 = vadd.f32 %v7043, %v7115
    %v7117 = vpop.f32.mrf.mxu0
    %7118 = vmatmul.bf16.gmra.mxu0 %v4194
    %v7119 = vpop.f32.mrf.mxu0
    %v7120 = vpop.f32.mrf.mxu0
    %v7121 = vadd.f32 %v7048, %v7120
    %7122 = vmatmul.bf16.gmra.mxu0 %v4196
    %v7123 = vpop.f32.mrf.mxu0
    %v7124 = vadd.f32 %v7051, %v7123
    %v7125 = vpop.f32.mrf.mxu0
    %7126 = vmatmul.bf16.gmra.mxu0 %v4198
    %v7127 = vpop.f32.mrf.mxu0
    %v7128 = vpop.f32.mrf.mxu0
    %v7129 = vadd.f32 %v7056, %v7128
    %7130 = vmatmul.bf16.gmra.mxu0 %v4200
    %v7131 = vpop.f32.mrf.mxu0
    %v7132 = vadd.f32 %v7059, %v7131
    %v7133 = vpop.f32.mrf.mxu0
    %7134 = vmatmul.bf16.gmra.mxu0 %v4202
    %v7135 = vpop.f32.mrf.mxu0
    %v7136 = vpop.f32.mrf.mxu0
    %v7137 = vadd.f32 %v7064, %v7136
    %7138 = vmatmul.bf16.gmra.mxu0 %v4204
    %v7139 = vpop.f32.mrf.mxu0
    %v7140 = vadd.f32 %v7067, %v7139
    %v7141 = vpop.f32.mrf.mxu0
    %7142 = vmatmul.bf16.gmra.mxu0 %v4206
    %v7143 = vpop.f32.mrf.mxu0
    %v7144 = vpop.f32.mrf.mxu0
    %v7145 = vadd.f32 %v7072, %v7144
    %7146 = vmatmul.bf16.gmra.mxu0 %v4208
    %v7147 = vpop.f32.mrf.mxu0
    %v7148 = vadd.f32 %v7075, %v7147
    %v7149 = vpop.f32.mrf.mxu0
    %7150 = vmatmul.bf16.gmra.mxu0 %v4210
    %v7151 = vpop.f32.mrf.mxu0
    %v7152 = vpop.f32.mrf.mxu0
    %v7153 = vadd.f32 %v7080, %v7152
    %7154 = vmatmul.bf16.gmra.mxu0 %v4212
    %v7155 = vpop.f32.mrf.mxu0
    %v7156 = vadd.f32 %v7083, %v7155
    %v7157 = vpop.f32.mrf.mxu0
    %7158 = vdwg.mxu0
    %v7159 = vmax.f32 %v5783, 0.0
    %v7160 = vmax.f32 %v6221, 0.0
    %v7161 = vmax.f32 %v6659, 0.0
    %v7162 = vmax.f32 %v7097, 0.0
    %v7163 = vmax.f32 %v5786, 0.0
    %v7164 = vmax.f32 %v6224, 0.0
    %v7165 = vmax.f32 %v6662, 0.0
    %v7166 = vmax.f32 %v7100, 0.0
    %v7167 = vmax.f32 %v5791, 0.0
    %v7168 = vmax.f32 %v6229, 0.0
    %v7169 = vmax.f32 %v6667, 0.0
    %v7170 = vmax.f32 %v7105, 0.0
    %v7171 = vmax.f32 %v5794, 0.0
    %v7172 = vmax.f32 %v6232, 0.0
    %v7173 = vmax.f32 %v6670, 0.0
    %v7174 = vmax.f32 %v7108, 0.0
    %v7175 = vmax.f32 %v5799, 0.0
    %v7176 = vmax.f32 %v6237, 0.0
    %v7177 = vmax.f32 %v6675, 0.0
    %v7178 = vmax.f32 %v7113, 0.0
    %v7179 = vmax.f32 %v5802, 0.0
    %v7180 = vmax.f32 %v6240, 0.0
    %v7181 = vmax.f32 %v6678, 0.0
    %v7182 = vmax.f32 %v7116, 0.0
    %v7183 = vmax.f32 %v5807, 0.0
    %v7184 = vmax.f32 %v6245, 0.0
    %v7185 = vmax.f32 %v6683, 0.0
    %v7186 = vmax.f32 %v7121, 0.0
    %v7187 = vmax.f32 %v5810, 0.0
    %v7188 = vmax.f32 %v6248, 0.0
    %v7189 = vmax.f32 %v6686, 0.0
    %v7190 = vmax.f32 %v7124, 0.0
    %v7191 = vmax.f32 %v5815, 0.0
    %v7192 = vmax.f32 %v6253, 0.0
    %v7193 = vmax.f32 %v6691, 0.0
    %v7194 = vmax.f32 %v7129, 0.0
    %v7195 = vmax.f32 %v5818, 0.0
    %v7196 = vmax.f32 %v6256, 0.0
    %v7197 = vmax.f32 %v6694, 0.0
    %v7198 = vmax.f32 %v7132, 0.0
    %v7199 = vmax.f32 %v5823, 0.0
    %v7200 = vmax.f32 %v6261, 0.0
    %v7201 = vmax.f32 %v6699, 0.0
    %v7202 = vmax.f32 %v7137, 0.0
    %v7203 = vmax.f32 %v5826, 0.0
    %v7204 = vmax.f32 %v6264, 0.0
    %v7205 = vmax.f32 %v6702, 0.0
    %v7206 = vmax.f32 %v7140, 0.0
    %v7207 = vmax.f32 %v5831, 0.0
    %v7208 = vmax.f32 %v6269, 0.0
    %v7209 = vmax.f32 %v6707, 0.0
    %v7210 = vmax.f32 %v7145, 0.0
    %v7211 = vmax.f32 %v5834, 0.0
    %v7212 = vmax.f32 %v6272, 0.0
    %v7213 = vmax.f32 %v6710, 0.0
    %v7214 = vmax.f32 %v7148, 0.0
    %v7215 = vmax.f32 %v5839, 0.0
    %v7216 = vmax.f32 %v6277, 0.0
    %v7217 = vmax.f32 %v6715, 0.0
    %v7218 = vmax.f32 %v7153, 0.0
    %v7219 = vmax.f32 %v5842, 0.0
    %v7220 = vmax.f32 %v6280, 0.0
    %v7221 = vmax.f32 %v6718, 0.0
    %v7222 = vmax.f32 %v7156, 0.0
    %v7223 = vstv %s370
    %v7224 = vadd.s32 %v7223, %v373
    %v7225 = vadd.s32 %v7223, %v374
    %vm7226 = vcmp.lt.s32.totalorder %v7224, 16
    %vm7227 = vcmp.lt.s32.totalorder %v7225, 16
    %v7228 = vsel %vm7226, 1, 0
    %v7229 = vsel %vm7227, 1, 0
    %vm7230 = vcmp.eq.s32.totalorder %v7228, 1
    %vm7231 = vcmp.eq.s32.totalorder %v7229, 1
    %v7232 = vsel %vm7230, %v7159, 0.0
    %v7233 = vsel %vm7230, %v7160, 0.0
    %v7234 = vsel %vm7230, %v7161, 0.0
    %v7235 = vsel %vm7230, %v7162, 0.0
    %v7236 = vsel %vm7231, %v7163, 0.0
    %v7237 = vsel %vm7231, %v7164, 0.0
    %v7238 = vsel %vm7231, %v7165, 0.0
    %v7239 = vsel %vm7231, %v7166, 0.0
    %v7240 = vsel %vm7230, %v7167, 0.0
    %v7241 = vsel %vm7230, %v7168, 0.0
    %v7242 = vsel %vm7230, %v7169, 0.0
    %v7243 = vsel %vm7230, %v7170, 0.0
    %v7244 = vsel %vm7231, %v7171, 0.0
    %v7245 = vsel %vm7231, %v7172, 0.0
    %v7246 = vsel %vm7231, %v7173, 0.0
    %v7247 = vsel %vm7231, %v7174, 0.0
    %v7248 = vsel %vm7230, %v7175, 0.0
    %v7249 = vsel %vm7230, %v7176, 0.0
    %v7250 = vsel %vm7230, %v7177, 0.0
    %v7251 = vsel %vm7230, %v7178, 0.0
    %v7252 = vsel %vm7231, %v7179, 0.0
    %v7253 = vsel %vm7231, %v7180, 0.0
    %v7254 = vsel %vm7231, %v7181, 0.0
    %v7255 = vsel %vm7231, %v7182, 0.0
    %v7256 = vsel %vm7230, %v7183, 0.0
    %v7257 = vsel %vm7230, %v7184, 0.0
    %v7258 = vsel %vm7230, %v7185, 0.0
    %v7259 = vsel %vm7230, %v7186, 0.0
    %v7260 = vsel %vm7231, %v7187, 0.0
    %v7261 = vsel %vm7231, %v7188, 0.0
    %v7262 = vsel %vm7231, %v7189, 0.0
    %v7263 = vsel %vm7231, %v7190, 0.0
    %v7264 = vsel %vm7230, %v7191, 0.0
    %v7265 = vsel %vm7230, %v7192, 0.0
    %v7266 = vsel %vm7230, %v7193, 0.0
    %v7267 = vsel %vm7230, %v7194, 0.0
    %v7268 = vsel %vm7231, %v7195, 0.0
    %v7269 = vsel %vm7231, %v7196, 0.0
    %v7270 = vsel %vm7231, %v7197, 0.0
    %v7271 = vsel %vm7231, %v7198, 0.0
    %v7272 = vsel %vm7230, %v7199, 0.0
    %v7273 = vsel %vm7230, %v7200, 0.0
    %v7274 = vsel %vm7230, %v7201, 0.0
    %v7275 = vsel %vm7230, %v7202, 0.0
    %v7276 = vsel %vm7231, %v7203, 0.0
    %v7277 = vsel %vm7231, %v7204, 0.0
    %v7278 = vsel %vm7231, %v7205, 0.0
    %v7279 = vsel %vm7231, %v7206, 0.0
    %v7280 = vsel %vm7230, %v7207, 0.0
    %v7281 = vsel %vm7230, %v7208, 0.0
    %v7282 = vsel %vm7230, %v7209, 0.0
    %v7283 = vsel %vm7230, %v7210, 0.0
    %v7284 = vsel %vm7231, %v7211, 0.0
    %v7285 = vsel %vm7231, %v7212, 0.0
    %v7286 = vsel %vm7231, %v7213, 0.0
    %v7287 = vsel %vm7231, %v7214, 0.0
    %v7288 = vsel %vm7230, %v7215, 0.0
    %v7289 = vsel %vm7230, %v7216, 0.0
    %v7290 = vsel %vm7230, %v7217, 0.0
    %v7291 = vsel %vm7230, %v7218, 0.0
    %v7292 = vsel %vm7231, %v7219, 0.0
    %v7293 = vsel %vm7231, %v7220, 0.0
    %v7294 = vsel %vm7231, %v7221, 0.0
    %v7295 = vsel %vm7231, %v7222, 0.0
    %v7296 = vadd.f32 %v7232, %v7236
    %v7297 = vrot.slane %v7296, 4
    %v7298 = vadd.f32 %v7296, %v7297
    %v7299 = vrot.slane %v7298, 2
    %v7300 = vadd.f32 %v7298, %v7299
    %v7301 = vrot.slane %v7300, 1
    %v7302 = vadd.f32 %v7300, %v7301
    %v7303 = vadd.f32 %v7233, %v7237
    %v7304 = vrot.slane %v7303, 4
    %v7305 = vadd.f32 %v7303, %v7304
    %v7306 = vrot.slane %v7305, 2
    %v7307 = vadd.f32 %v7305, %v7306
    %v7308 = vrot.slane %v7307, 1
    %v7309 = vadd.f32 %v7307, %v7308
    %v7310 = vadd.f32 %v7234, %v7238
    %v7311 = vrot.slane %v7310, 4
    %v7312 = vadd.f32 %v7310, %v7311
    %v7313 = vrot.slane %v7312, 2
    %v7314 = vadd.f32 %v7312, %v7313
    %v7315 = vrot.slane %v7314, 1
    %v7316 = vadd.f32 %v7314, %v7315
    %v7317 = vadd.f32 %v7235, %v7239
    %v7318 = vrot.slane %v7317, 4
    %v7319 = vadd.f32 %v7317, %v7318
    %v7320 = vrot.slane %v7319, 2
    %v7321 = vadd.f32 %v7319, %v7320
    %v7322 = vrot.slane %v7321, 1
    %v7323 = vadd.f32 %v7321, %v7322
    %v7324 = vadd.f32 %v7240, %v7244
    %v7325 = vrot.slane %v7324, 4
    %v7326 = vadd.f32 %v7324, %v7325
    %v7327 = vrot.slane %v7326, 2
    %v7328 = vadd.f32 %v7326, %v7327
    %v7329 = vrot.slane %v7328, 1
    %v7330 = vadd.f32 %v7328, %v7329
    %v7331 = vadd.f32 %v7241, %v7245
    %v7332 = vrot.slane %v7331, 4
    %v7333 = vadd.f32 %v7331, %v7332
    %v7334 = vrot.slane %v7333, 2
    %v7335 = vadd.f32 %v7333, %v7334
    %v7336 = vrot.slane %v7335, 1
    %v7337 = vadd.f32 %v7335, %v7336
    %v7338 = vadd.f32 %v7242, %v7246
    %v7339 = vrot.slane %v7338, 4
    %v7340 = vadd.f32 %v7338, %v7339
    %v7341 = vrot.slane %v7340, 2
    %v7342 = vadd.f32 %v7340, %v7341
    %v7343 = vrot.slane %v7342, 1
    %v7344 = vadd.f32 %v7342, %v7343
    %v7345 = vadd.f32 %v7243, %v7247
    %v7346 = vrot.slane %v7345, 4
    %v7347 = vadd.f32 %v7345, %v7346
    %v7348 = vrot.slane %v7347, 2
    %v7349 = vadd.f32 %v7347, %v7348
    %v7350 = vrot.slane %v7349, 1
    %v7351 = vadd.f32 %v7349, %v7350
    %v7352 = vadd.f32 %v7248, %v7252
    %v7353 = vrot.slane %v7352, 4
    %v7354 = vadd.f32 %v7352, %v7353
    %v7355 = vrot.slane %v7354, 2
    %v7356 = vadd.f32 %v7354, %v7355
    %v7357 = vrot.slane %v7356, 1
    %v7358 = vadd.f32 %v7356, %v7357
    %v7359 = vadd.f32 %v7249, %v7253
    %v7360 = vrot.slane %v7359, 4
    %v7361 = vadd.f32 %v7359, %v7360
    %v7362 = vrot.slane %v7361, 2
    %v7363 = vadd.f32 %v7361, %v7362
    %v7364 = vrot.slane %v7363, 1
    %v7365 = vadd.f32 %v7363, %v7364
    %v7366 = vadd.f32 %v7250, %v7254
    %v7367 = vrot.slane %v7366, 4
    %v7368 = vadd.f32 %v7366, %v7367
    %v7369 = vrot.slane %v7368, 2
    %v7370 = vadd.f32 %v7368, %v7369
    %v7371 = vrot.slane %v7370, 1
    %v7372 = vadd.f32 %v7370, %v7371
    %v7373 = vadd.f32 %v7251, %v7255
    %v7374 = vrot.slane %v7373, 4
    %v7375 = vadd.f32 %v7373, %v7374
    %v7376 = vrot.slane %v7375, 2
    %v7377 = vadd.f32 %v7375, %v7376
    %v7378 = vrot.slane %v7377, 1
    %v7379 = vadd.f32 %v7377, %v7378
    %v7380 = vadd.f32 %v7256, %v7260
    %v7381 = vrot.slane %v7380, 4
    %v7382 = vadd.f32 %v7380, %v7381
    %v7383 = vrot.slane %v7382, 2
    %v7384 = vadd.f32 %v7382, %v7383
    %v7385 = vrot.slane %v7384, 1
    %v7386 = vadd.f32 %v7384, %v7385
    %v7387 = vadd.f32 %v7257, %v7261
    %v7388 = vrot.slane %v7387, 4
    %v7389 = vadd.f32 %v7387, %v7388
    %v7390 = vrot.slane %v7389, 2
    %v7391 = vadd.f32 %v7389, %v7390
    %v7392 = vrot.slane %v7391, 1
    %v7393 = vadd.f32 %v7391, %v7392
    %v7394 = vadd.f32 %v7258, %v7262
    %v7395 = vrot.slane %v7394, 4
    %v7396 = vadd.f32 %v7394, %v7395
    %v7397 = vrot.slane %v7396, 2
    %v7398 = vadd.f32 %v7396, %v7397
    %v7399 = vrot.slane %v7398, 1
    %v7400 = vadd.f32 %v7398, %v7399
    %v7401 = vadd.f32 %v7259, %v7263
    %v7402 = vrot.slane %v7401, 4
    %v7403 = vadd.f32 %v7401, %v7402
    %v7404 = vrot.slane %v7403, 2
    %v7405 = vadd.f32 %v7403, %v7404
    %v7406 = vrot.slane %v7405, 1
    %v7407 = vadd.f32 %v7405, %v7406
    %v7408 = vadd.f32 %v7264, %v7268
    %v7409 = vrot.slane %v7408, 4
    %v7410 = vadd.f32 %v7408, %v7409
    %v7411 = vrot.slane %v7410, 2
    %v7412 = vadd.f32 %v7410, %v7411
    %v7413 = vrot.slane %v7412, 1
    %v7414 = vadd.f32 %v7412, %v7413
    %v7415 = vadd.f32 %v7265, %v7269
    %v7416 = vrot.slane %v7415, 4
    %v7417 = vadd.f32 %v7415, %v7416
    %v7418 = vrot.slane %v7417, 2
    %v7419 = vadd.f32 %v7417, %v7418
    %v7420 = vrot.slane %v7419, 1
    %v7421 = vadd.f32 %v7419, %v7420
    %v7422 = vadd.f32 %v7266, %v7270
    %v7423 = vrot.slane %v7422, 4
    %v7424 = vadd.f32 %v7422, %v7423
    %v7425 = vrot.slane %v7424, 2
    %v7426 = vadd.f32 %v7424, %v7425
    %v7427 = vrot.slane %v7426, 1
    %v7428 = vadd.f32 %v7426, %v7427
    %v7429 = vadd.f32 %v7267, %v7271
    %v7430 = vrot.slane %v7429, 4
    %v7431 = vadd.f32 %v7429, %v7430
    %v7432 = vrot.slane %v7431, 2
    %v7433 = vadd.f32 %v7431, %v7432
    %v7434 = vrot.slane %v7433, 1
    %v7435 = vadd.f32 %v7433, %v7434
    %v7436 = vadd.f32 %v7272, %v7276
    %v7437 = vrot.slane %v7436, 4
    %v7438 = vadd.f32 %v7436, %v7437
    %v7439 = vrot.slane %v7438, 2
    %v7440 = vadd.f32 %v7438, %v7439
    %v7441 = vrot.slane %v7440, 1
    %v7442 = vadd.f32 %v7440, %v7441
    %v7443 = vadd.f32 %v7273, %v7277
    %v7444 = vrot.slane %v7443, 4
    %v7445 = vadd.f32 %v7443, %v7444
    %v7446 = vrot.slane %v7445, 2
    %v7447 = vadd.f32 %v7445, %v7446
    %v7448 = vrot.slane %v7447, 1
    %v7449 = vadd.f32 %v7447, %v7448
    %v7450 = vadd.f32 %v7274, %v7278
    %v7451 = vrot.slane %v7450, 4
    %v7452 = vadd.f32 %v7450, %v7451
    %v7453 = vrot.slane %v7452, 2
    %v7454 = vadd.f32 %v7452, %v7453
    %v7455 = vrot.slane %v7454, 1
    %v7456 = vadd.f32 %v7454, %v7455
    %v7457 = vadd.f32 %v7275, %v7279
    %v7458 = vrot.slane %v7457, 4
    %v7459 = vadd.f32 %v7457, %v7458
    %v7460 = vrot.slane %v7459, 2
    %v7461 = vadd.f32 %v7459, %v7460
    %v7462 = vrot.slane %v7461, 1
    %v7463 = vadd.f32 %v7461, %v7462
    %v7464 = vadd.f32 %v7280, %v7284
    %v7465 = vrot.slane %v7464, 4
    %v7466 = vadd.f32 %v7464, %v7465
    %v7467 = vrot.slane %v7466, 2
    %v7468 = vadd.f32 %v7466, %v7467
    %v7469 = vrot.slane %v7468, 1
    %v7470 = vadd.f32 %v7468, %v7469
    %v7471 = vadd.f32 %v7281, %v7285
    %v7472 = vrot.slane %v7471, 4
    %v7473 = vadd.f32 %v7471, %v7472
    %v7474 = vrot.slane %v7473, 2
    %v7475 = vadd.f32 %v7473, %v7474
    %v7476 = vrot.slane %v7475, 1
    %v7477 = vadd.f32 %v7475, %v7476
    %v7478 = vadd.f32 %v7282, %v7286
    %v7479 = vrot.slane %v7478, 4
    %v7480 = vadd.f32 %v7478, %v7479
    %v7481 = vrot.slane %v7480, 2
    %v7482 = vadd.f32 %v7480, %v7481
    %v7483 = vrot.slane %v7482, 1
    %v7484 = vadd.f32 %v7482, %v7483
    %v7485 = vadd.f32 %v7283, %v7287
    %v7486 = vrot.slane %v7485, 4
    %v7487 = vadd.f32 %v7485, %v7486
    %v7488 = vrot.slane %v7487, 2
    %v7489 = vadd.f32 %v7487, %v7488
    %v7490 = vrot.slane %v7489, 1
    %v7491 = vadd.f32 %v7489, %v7490
    %v7492 = vadd.f32 %v7288, %v7292
    %v7493 = vrot.slane %v7492, 4
    %v7494 = vadd.f32 %v7492, %v7493
    %v7495 = vrot.slane %v7494, 2
    %v7496 = vadd.f32 %v7494, %v7495
    %v7497 = vrot.slane %v7496, 1
    %v7498 = vadd.f32 %v7496, %v7497
    %v7499 = vadd.f32 %v7289, %v7293
    %v7500 = vrot.slane %v7499, 4
    %v7501 = vadd.f32 %v7499, %v7500
    %v7502 = vrot.slane %v7501, 2
    %v7503 = vadd.f32 %v7501, %v7502
    %v7504 = vrot.slane %v7503, 1
    %v7505 = vadd.f32 %v7503, %v7504
    %v7506 = vadd.f32 %v7290, %v7294
    %v7507 = vrot.slane %v7506, 4
    %v7508 = vadd.f32 %v7506, %v7507
    %v7509 = vrot.slane %v7508, 2
    %v7510 = vadd.f32 %v7508, %v7509
    %v7511 = vrot.slane %v7510, 1
    %v7512 = vadd.f32 %v7510, %v7511
    %v7513 = vadd.f32 %v7291, %v7295
    %v7514 = vrot.slane %v7513, 4
    %v7515 = vadd.f32 %v7513, %v7514
    %v7516 = vrot.slane %v7515, 2
    %v7517 = vadd.f32 %v7515, %v7516
    %v7518 = vrot.slane %v7517, 1
    %v7519 = vadd.f32 %v7517, %v7518
    %p7520 = scmp.eq.s32.totalorder 0, 0
    // Predicated region
    $region74: #{tpu_custom_call.1} parent=1 // pred_check
      %p7521 = pneg %p7520
    $region75: #{tpu_custom_call.1} parent=1 // pred_check_branch
      %7523 = sbr.rel (%p7521) target = $region77
    $region76: #{tpu_custom_call.1} parent=1 // pred_region
      %7524 = vst [vmem:[#allocation2] sm:$0xff] 0.0
      %7525 = vst [vmem:[#allocation2 + $0x8] sm:$0xff] 0.0
      %7526 = vst [vmem:[#allocation2 + $0x10] sm:$0xff] 0.0
      %7527 = vst [vmem:[#allocation2 + $0x18] sm:$0xff] 0.0
    $region77: #{tpu_custom_call.1} parent=1 // pred_fallthru
      _
    %v7528 = vld [vmem:[#allocation2] sm:$0xff]
    %v7529 = vld [vmem:[#allocation2 + $0x8] sm:$0xff]
    %v7530 = vld [vmem:[#allocation2 + $0x10] sm:$0xff]
    %v7531 = vld [vmem:[#allocation2 + $0x18] sm:$0xff]
    %vm7564 = vcmask 1041409
    %v7565 = vsel %vm7564, %v7330, %v7302
    %vm7566 = vcmask 1042434
    %v7567 = vsel %vm7566, %v7358, %v7565
    %vm7568 = vcmask 1043459
    %v7569 = vsel %vm7568, %v7386, %v7567
    %vm7570 = vcmask 1044484
    %v7571 = vsel %vm7570, %v7414, %v7569
    %vm7572 = vcmask 1045509
    %v7573 = vsel %vm7572, %v7442, %v7571
    %vm7574 = vcmask 1046534
    %v7575 = vsel %vm7574, %v7470, %v7573
    %vm7576 = vcmask 1047559
    %v7577 = vsel %vm7576, %v7498, %v7575
    %v7578 = vsel %vm7564, %v7337, %v7309
    %v7579 = vsel %vm7566, %v7365, %v7578
    %v7580 = vsel %vm7568, %v7393, %v7579
    %v7581 = vsel %vm7570, %v7421, %v7580
    %v7582 = vsel %vm7572, %v7449, %v7581
    %v7583 = vsel %vm7574, %v7477, %v7582
    %v7584 = vsel %vm7576, %v7505, %v7583
    %v7585 = vsel %vm7564, %v7344, %v7316
    %v7586 = vsel %vm7566, %v7372, %v7585
    %v7587 = vsel %vm7568, %v7400, %v7586
    %v7588 = vsel %vm7570, %v7428, %v7587
    %v7589 = vsel %vm7572, %v7456, %v7588
    %v7590 = vsel %vm7574, %v7484, %v7589
    %v7591 = vsel %vm7576, %v7512, %v7590
    %v7592 = vsel %vm7564, %v7351, %v7323
    %v7593 = vsel %vm7566, %v7379, %v7592
    %v7594 = vsel %vm7568, %v7407, %v7593
    %v7595 = vsel %vm7570, %v7435, %v7594
    %v7596 = vsel %vm7572, %v7463, %v7595
    %v7597 = vsel %vm7574, %v7491, %v7596
    %v7598 = vsel %vm7576, %v7519, %v7597
    %v7603 = vadd.f32 %v7528, %v7577
    %v7604 = vadd.f32 %v7529, %v7584
    %v7605 = vadd.f32 %v7530, %v7591
    %v7606 = vadd.f32 %v7531, %v7598
    %7607 = vst [vmem:[#allocation2] sm:$0xff] %v7603
    %7608 = vst [vmem:[#allocation2 + $0x8] sm:$0xff] %v7604
    %7609 = vst [vmem:[#allocation2 + $0x10] sm:$0xff] %v7605
    %7610 = vst [vmem:[#allocation2 + $0x18] sm:$0xff] %v7606
    // Predicated region
    $region78: #{tpu_custom_call.1} parent=1 // pred_check
      %p7611 = pneg %p7520
    $region79: #{tpu_custom_call.1} parent=1 // pred_check_branch
      %7613 = sbr.rel (%p7611) target = $region81
    $region80: #{tpu_custom_call.1} parent=1 // pred_region
      %v7614 = vld [vmem:[#allocation2] sm:$0xff]
      %v7615 = vld [vmem:[#allocation2 + $0x8] sm:$0xff]
      %v7616 = vld [vmem:[#allocation2 + $0x10] sm:$0xff]
      %v7617 = vld [vmem:[#allocation2 + $0x18] sm:$0xff]
      %v7618 = vmul.f32 %v7614, 0.0625
      %v7619 = vmul.f32 %v7615, 0.0625
      %v7620 = vmul.f32 %v7616, 0.0625
      %v7621 = vmul.f32 %v7617, 0.0625
      %v7622 = vpack.c.bf16 %v7618, %v7618
      %v7623 = vpack.c.bf16 %v7619, %v7619
      %v7624 = vpack.c.bf16 %v7620, %v7620
      %v7625 = vpack.c.bf16 %v7621, %v7621
      %v7626 = vld [vmem:[#allocation14] sm:$0xf]
      %v7627 = vld [vmem:[#allocation14 + $0x4] sm:$0xf]
      %v7628 = vld [vmem:[#allocation14 + $0x8] sm:$0xf]
      %v7629 = vld [vmem:[#allocation14 + $0xc] sm:$0xf]
      %v7630 = vld [vmem:[#allocation14 + $0x10] sm:$0xf]
      %v7631 = vld [vmem:[#allocation14 + $0x14] sm:$0xf]
      %v7632 = vld [vmem:[#allocation14 + $0x18] sm:$0xf]
      %v7633 = vld [vmem:[#allocation14 + $0x1c] sm:$0xf]
      %v7634 = vld [vmem:[#allocation14 + $0x20] sm:$0xf]
      %v7635 = vld [vmem:[#allocation14 + $0x24] sm:$0xf]
      %v7636 = vld [vmem:[#allocation14 + $0x28] sm:$0xf]
      %v7637 = vld [vmem:[#allocation14 + $0x2c] sm:$0xf]
      %v7638 = vld [vmem:[#allocation14 + $0x30] sm:$0xf]
      %v7639 = vld [vmem:[#allocation14 + $0x34] sm:$0xf]
      %v7640 = vld [vmem:[#allocation14 + $0x38] sm:$0xf]
      %v7641 = vld [vmem:[#allocation14 + $0x3c] sm:$0xf]
      %v7642 = vld [vmem:[#allocation14 + $0x40] sm:$0xf]
      %v7643 = vld [vmem:[#allocation14 + $0x44] sm:$0xf]
      %v7644 = vld [vmem:[#allocation14 + $0x48] sm:$0xf]
      %v7645 = vld [vmem:[#allocation14 + $0x4c] sm:$0xf]
      %v7646 = vld [vmem:[#allocation14 + $0x50] sm:$0xf]
      %v7647 = vld [vmem:[#allocation14 + $0x54] sm:$0xf]
      %v7648 = vld [vmem:[#allocation14 + $0x58] sm:$0xf]
      %v7649 = vld [vmem:[#allocation14 + $0x5c] sm:$0xf]
      %v7650 = vld [vmem:[#allocation14 + $0x60] sm:$0xf]
      %v7651 = vld [vmem:[#allocation14 + $0x64] sm:$0xf]
      %v7652 = vld [vmem:[#allocation14 + $0x68] sm:$0xf]
      %v7653 = vld [vmem:[#allocation14 + $0x6c] sm:$0xf]
      %v7654 = vld [vmem:[#allocation14 + $0x70] sm:$0xf]
      %v7655 = vld [vmem:[#allocation14 + $0x74] sm:$0xf]
      %v7656 = vld [vmem:[#allocation14 + $0x78] sm:$0xf]
      %v7657 = vld [vmem:[#allocation14 + $0x7c] sm:$0xf]
      %v7658 = vld [vmem:[#allocation14 + $0x80] sm:$0xf]
      %v7659 = vld [vmem:[#allocation14 + $0x84] sm:$0xf]
      %v7660 = vld [vmem:[#allocation14 + $0x88] sm:$0xf]
      %v7661 = vld [vmem:[#allocation14 + $0x8c] sm:$0xf]
      %v7662 = vld [vmem:[#allocation14 + $0x90] sm:$0xf]
      %v7663 = vld [vmem:[#allocation14 + $0x94] sm:$0xf]
      %v7664 = vld [vmem:[#allocation14 + $0x98] sm:$0xf]
      %v7665 = vld [vmem:[#allocation14 + $0x9c] sm:$0xf]
      %v7666 = vld [vmem:[#allocation14 + $0xa0] sm:$0xf]
      %v7667 = vld [vmem:[#allocation14 + $0xa4] sm:$0xf]
      %v7668 = vld [vmem:[#allocation14 + $0xa8] sm:$0xf]
      %v7669 = vld [vmem:[#allocation14 + $0xac] sm:$0xf]
      %v7670 = vld [vmem:[#allocation14 + $0xb0] sm:$0xf]
      %v7671 = vld [vmem:[#allocation14 + $0xb4] sm:$0xf]
      %v7672 = vld [vmem:[#allocation14 + $0xb8] sm:$0xf]
      %v7673 = vld [vmem:[#allocation14 + $0xbc] sm:$0xf]
      %v7674 = vld [vmem:[#allocation14 + $0xc0] sm:$0xf]
      %v7675 = vld [vmem:[#allocation14 + $0xc4] sm:$0xf]
      %v7676 = vld [vmem:[#allocation14 + $0xc8] sm:$0xf]
      %v7677 = vld [vmem:[#allocation14 + $0xcc] sm:$0xf]
      %v7678 = vld [vmem:[#allocation14 + $0xd0] sm:$0xf]
      %v7679 = vld [vmem:[#allocation14 + $0xd4] sm:$0xf]
      %v7680 = vld [vmem:[#allocation14 + $0xd8] sm:$0xf]
      %v7681 = vld [vmem:[#allocation14 + $0xdc] sm:$0xf]
      %v7682 = vld [vmem:[#allocation14 + $0xe0] sm:$0xf]
      %v7683 = vld [vmem:[#allocation14 + $0xe4] sm:$0xf]
      %v7684 = vld [vmem:[#allocation14 + $0xe8] sm:$0xf]
      %v7685 = vld [vmem:[#allocation14 + $0xec] sm:$0xf]
      %v7686 = vld [vmem:[#allocation14 + $0xf0] sm:$0xf]
      %v7687 = vld [vmem:[#allocation14 + $0xf4] sm:$0xf]
      %v7688 = vld [vmem:[#allocation14 + $0xf8] sm:$0xf]
      %v7689 = vld [vmem:[#allocation14 + $0xfc] sm:$0xf]
      %v7690 = vld [vmem:[%s10] sm:$0x1]
      %v7692 = vperm.slane %v7690, 0
      %v7758 = vunpack.c.l.b16 %v7626
      %v7759 = vunpack.c.l.b16 %v7627
      %v7760 = vunpack.c.l.b16 %v7628
      %v7761 = vunpack.c.l.b16 %v7629
      %v7762 = vunpack.c.l.b16 %v7630
      %v7763 = vunpack.c.l.b16 %v7631
      %v7764 = vunpack.c.l.b16 %v7632
      %v7765 = vunpack.c.l.b16 %v7633
      %v7766 = vunpack.c.l.b16 %v7634
      %v7767 = vunpack.c.l.b16 %v7635
      %v7768 = vunpack.c.l.b16 %v7636
      %v7769 = vunpack.c.l.b16 %v7637
      %v7770 = vunpack.c.l.b16 %v7638
      %v7771 = vunpack.c.l.b16 %v7639
      %v7772 = vunpack.c.l.b16 %v7640
      %v7773 = vunpack.c.l.b16 %v7641
      %v7774 = vunpack.c.l.b16 %v7642
      %v7775 = vunpack.c.l.b16 %v7643
      %v7776 = vunpack.c.l.b16 %v7644
      %v7777 = vunpack.c.l.b16 %v7645
      %v7778 = vunpack.c.l.b16 %v7646
      %v7779 = vunpack.c.l.b16 %v7647
      %v7780 = vunpack.c.l.b16 %v7648
      %v7781 = vunpack.c.l.b16 %v7649
      %v7782 = vunpack.c.l.b16 %v7650
      %v7783 = vunpack.c.l.b16 %v7651
      %v7784 = vunpack.c.l.b16 %v7652
      %v7785 = vunpack.c.l.b16 %v7653
      %v7786 = vunpack.c.l.b16 %v7654
      %v7787 = vunpack.c.l.b16 %v7655
      %v7788 = vunpack.c.l.b16 %v7656
      %v7789 = vunpack.c.l.b16 %v7657
      %v7790 = vunpack.c.l.b16 %v7658
      %v7791 = vunpack.c.l.b16 %v7659
      %v7792 = vunpack.c.l.b16 %v7660
      %v7793 = vunpack.c.l.b16 %v7661
      %v7794 = vunpack.c.l.b16 %v7662
      %v7795 = vunpack.c.l.b16 %v7663
      %v7796 = vunpack.c.l.b16 %v7664
      %v7797 = vunpack.c.l.b16 %v7665
      %v7798 = vunpack.c.l.b16 %v7666
      %v7799 = vunpack.c.l.b16 %v7667
      %v7800 = vunpack.c.l.b16 %v7668
      %v7801 = vunpack.c.l.b16 %v7669
      %v7802 = vunpack.c.l.b16 %v7670
      %v7803 = vunpack.c.l.b16 %v7671
      %v7804 = vunpack.c.l.b16 %v7672
      %v7805 = vunpack.c.l.b16 %v7673
      %v7806 = vunpack.c.l.b16 %v7674
      %v7807 = vunpack.c.l.b16 %v7675
      %v7808 = vunpack.c.l.b16 %v7676
      %v7809 = vunpack.c.l.b16 %v7677
      %v7810 = vunpack.c.l.b16 %v7678
      %v7811 = vunpack.c.l.b16 %v7679
      %v7812 = vunpack.c.l.b16 %v7680
      %v7813 = vunpack.c.l.b16 %v7681
      %v7814 = vunpack.c.l.b16 %v7682
      %v7815 = vunpack.c.l.b16 %v7683
      %v7816 = vunpack.c.l.b16 %v7684
      %v7817 = vunpack.c.l.b16 %v7685
      %v7818 = vunpack.c.l.b16 %v7686
      %v7819 = vunpack.c.l.b16 %v7687
      %v7820 = vunpack.c.l.b16 %v7688
      %v7821 = vunpack.c.l.b16 %v7689
      %v7822 = vpack.c.b16 %v7759, %v7758
      %v7823 = vpack.c.b16 %v7761, %v7760
      %v7824 = vpack.c.b16 %v7763, %v7762
      %v7825 = vpack.c.b16 %v7765, %v7764
      %v7826 = vpack.c.b16 %v7767, %v7766
      %v7827 = vpack.c.b16 %v7769, %v7768
      %v7828 = vpack.c.b16 %v7771, %v7770
      %v7829 = vpack.c.b16 %v7773, %v7772
      %v7830 = vpack.c.b16 %v7775, %v7774
      %v7831 = vpack.c.b16 %v7777, %v7776
      %v7832 = vpack.c.b16 %v7779, %v7778
      %v7833 = vpack.c.b16 %v7781, %v7780
      %v7834 = vpack.c.b16 %v7783, %v7782
      %v7835 = vpack.c.b16 %v7785, %v7784
      %v7836 = vpack.c.b16 %v7787, %v7786
      %v7837 = vpack.c.b16 %v7789, %v7788
      %v7838 = vpack.c.b16 %v7791, %v7790
      %v7839 = vpack.c.b16 %v7793, %v7792
      %v7840 = vpack.c.b16 %v7795, %v7794
      %v7841 = vpack.c.b16 %v7797, %v7796
      %v7842 = vpack.c.b16 %v7799, %v7798
      %v7843 = vpack.c.b16 %v7801, %v7800
      %v7844 = vpack.c.b16 %v7803, %v7802
      %v7845 = vpack.c.b16 %v7805, %v7804
      %v7846 = vpack.c.b16 %v7807, %v7806
      %v7847 = vpack.c.b16 %v7809, %v7808
      %v7848 = vpack.c.b16 %v7811, %v7810
      %v7849 = vpack.c.b16 %v7813, %v7812
      %v7850 = vpack.c.b16 %v7815, %v7814
      %v7851 = vpack.c.b16 %v7817, %v7816
      %v7852 = vpack.c.b16 %v7819, %v7818
      %v7853 = vpack.c.b16 %v7821, %v7820
      %7886 = vmatpush.bf16.msra.mxu0 %v7829
      %7887 = vmatpush.bf16.msra.mxu0 %v7828
      %7888 = vmatpush.bf16.msra.mxu0 %v7827
      %7889 = vmatpush.bf16.msra.mxu0 %v7826
      %7890 = vmatpush.bf16.msra.mxu0 %v7825
      %7891 = vmatpush.bf16.msra.mxu0 %v7824
      %7892 = vmatpush.bf16.msra.mxu0 %v7823
      %7893 = vmatpush.bf16.msra.mxu0 %v7822
      %7894 = vmatmul.bf16.gmra.mxu0 %v7622
      %v7895 = vpop.f32.mrf.mxu0
      %v7896 = vadd.f32 %v7692, %v7895
      %v7897 = vpop.f32.mrf.mxu0
      %7898 = vdwg.mxu0
      %7899 = vmatpush.bf16.msra.mxu0 %v7837
      %7900 = vmatpush.bf16.msra.mxu0 %v7836
      %7901 = vmatpush.bf16.msra.mxu0 %v7835
      %7902 = vmatpush.bf16.msra.mxu0 %v7834
      %7903 = vmatpush.bf16.msra.mxu0 %v7833
      %7904 = vmatpush.bf16.msra.mxu0 %v7832
      %7905 = vmatpush.bf16.msra.mxu0 %v7831
      %7906 = vmatpush.bf16.msra.mxu0 %v7830
      %7907 = vmatmul.bf16.gmra.mxu0 %v7623
      %v7908 = vpop.f32.mrf.mxu0
      %v7909 = vadd.f32 %v7896, %v7908
      %v7910 = vpop.f32.mrf.mxu0
      %7911 = vdwg.mxu0
      %7912 = vmatpush.bf16.msra.mxu0 %v7845
      %7913 = vmatpush.bf16.msra.mxu0 %v7844
      %7914 = vmatpush.bf16.msra.mxu0 %v7843
      %7915 = vmatpush.bf16.msra.mxu0 %v7842
      %7916 = vmatpush.bf16.msra.mxu0 %v7841
      %7917 = vmatpush.bf16.msra.mxu0 %v7840
      %7918 = vmatpush.bf16.msra.mxu0 %v7839
      %7919 = vmatpush.bf16.msra.mxu0 %v7838
      %7920 = vmatmul.bf16.gmra.mxu0 %v7624
      %v7921 = vpop.f32.mrf.mxu0
      %v7922 = vadd.f32 %v7909, %v7921
      %v7923 = vpop.f32.mrf.mxu0
      %7924 = vdwg.mxu0
      %7925 = vmatpush.bf16.msra.mxu0 %v7853
      %7926 = vmatpush.bf16.msra.mxu0 %v7852
      %7927 = vmatpush.bf16.msra.mxu0 %v7851
      %7928 = vmatpush.bf16.msra.mxu0 %v7850
      %7929 = vmatpush.bf16.msra.mxu0 %v7849
      %7930 = vmatpush.bf16.msra.mxu0 %v7848
      %7931 = vmatpush.bf16.msra.mxu0 %v7847
      %7932 = vmatpush.bf16.msra.mxu0 %v7846
      %7933 = vmatmul.bf16.gmra.mxu0 %v7625
      %v7934 = vpop.f32.mrf.mxu0
      %v7935 = vadd.f32 %v7922, %v7934
      %v7936 = vpop.f32.mrf.mxu0
      %7937 = vdwg.mxu0
      %v7938 = vmul.f32 %v7935, %v7935
      %7939 = vadd.xlane.f32.xlu0 %v7938
      %v7940 = vpop.xlane.xlu0 %7939
      %v7941 = vmax.f32 %v7940, 1e-24
      %v7942 = vrsqrt.pop %v7941
      %v7943 = vmul.f32 %v7942, %v7941
      %v7944 = vmul.f32 %v7943, %v7942
      %v7945 = vmul.f32 0.5, %v7944
      %v7946 = vsub.f32 1.5, %v7945
      %v7947 = vmul.f32 %v7942, %v7946
      %vm7948 = vweird.f32 %v7941
      %vm7949 = vweird.f32 %v7942
      %vm7950 = vmor %vm7948, %vm7949
      %v7951 = vsel %vm7950, %v7942, %v7947
      %v7952 = vmul.f32 %v7935, %v7951
      %7953 = vst [vmem:[#allocation15] sm:$0xff] %v7952
    $region81: #{tpu_custom_call.1} parent=1 // pred_fallthru
      _
    // Predicated region
    $region82: #{tpu_custom_call.1} parent=1 // pred_check
      _
    $region83: #{tpu_custom_call.1} parent=1 // pred_check_branch
      %7955 = sbr.rel (0) target = $region85
    $region84: #{tpu_custom_call.1} parent=1 // pred_region
      %7957 = vsyncadd [#allocation5], 0
      %s7959 = sshll.u32 [#allocation15], 4
      %s7960 = int_to_ptr.vmem [resolvable:$true] %s7959
      %s7961 = sshll.u32 %s11, 4
      %s7962 = int_to_ptr.hbm [resolvable:$true] %s7961
      %7964 = dma.vmem_to_hbm [thread:$0]  %s7960, 128, %s7962, [#allocation5]
    $region85: #{tpu_custom_call.1} parent=1 // pred_fallthru
      _
    // Predicated region
    $region86: #{tpu_custom_call.1} parent=1 // pred_check
      _
    $region87: #{tpu_custom_call.1} parent=1 // pred_check_branch
      %7966 = sbr.rel (0) target = $region89
    $region88: #{tpu_custom_call.1} parent=1 // pred_region
      %7968 = dma.done [#allocation5], 128
    $region89: #{tpu_custom_call.1} parent=1 // pred_fallthru
      _
    %7969 = vsyncpa [#allocation4], 1
    %7970 = vsyncpa [#allocation7], 1
    %7971 = vsyncpa [#allocation10], 1
    %7972 = vsyncpa [#allocation13], 1
    %7973 = vsyncpa [#allocation5], 1

</llo_original>
